<compile_context>
chip_gen: v7x
topology: tpu7x:2x2x1
jax: 0.10.0
libtpu: 0.0.40
codegen_flags: <defaults>
</compile_context>

<pallas_src>
import functools

import jax
import jax.numpy as jnp
from jax.experimental import pallas as pl
from jax.experimental.pallas import tpu as pltpu


# ----------------------------------------------------------------------------
# small helpers
# ----------------------------------------------------------------------------
def _round_up(x, m):
    return (x + m - 1) // m * m


def _row_tiling(M, target):
    """Pick a row tile (multiple of 16, <= target) and the padded row count."""
    tm = min(target, _round_up(M, 16))
    return tm, _round_up(M, tm)


# ----------------------------------------------------------------------------
# Pallas kernels
# ----------------------------------------------------------------------------
def matmul_stats_kernel(a_ref, b_ref, o_ref, sum_ref, sq_ref, acc_ref):
    """acc += a @ b over the K grid axis; at the last K step write the output tile
    and per-column partial sum / sum-of-squares.  The (8, Nc) stats tiles are
    written with all 8 rows equal; the host-side reduction reads row 0 of each
    tile, so there is no cross-grid-step accumulator (keeps the M axis parallel)."""
    k = pl.program_id(1)

    @pl.when(k == 0)
    def _():
        acc_ref[...] = jnp.zeros_like(acc_ref)

    acc_ref[...] += jnp.dot(a_ref[...], b_ref[...],
                            preferred_element_type=jnp.float32)

    @pl.when(k == pl.num_programs(1) - 1)
    def _():
        c = acc_ref[...]
        o_ref[...] = c
        sum_ref[...] = jnp.broadcast_to(
            jnp.sum(c, axis=0, keepdims=True), sum_ref.shape)
        sq_ref[...] = jnp.broadcast_to(
            jnp.sum(c * c, axis=0, keepdims=True), sq_ref.shape)


def bn_prelu_kernel(x_ref, s_ref, t_ref, a_ref, o_ref):
    """o = PReLU(scale * x + shift)   (per-column scale/shift/alpha)."""
    y = x_ref[...].astype(jnp.float32) * s_ref[...] + t_ref[...]
    y = jnp.where(y >= 0.0, y, a_ref[...] * y)
    o_ref[...] = y.astype(o_ref.dtype)


def bn_prelu_res_kernel(x_ref, s_ref, t_ref, a_ref, r_ref, o_ref):
    """o = PReLU(scale * x + shift) + res."""
    y = x_ref[...].astype(jnp.float32) * s_ref[...] + t_ref[...]
    y = jnp.where(y >= 0.0, y, a_ref[...] * y)
    o_ref[...] = (y + r_ref[...].astype(jnp.float32)).astype(o_ref.dtype)


# ----------------------------------------------------------------------------
# Pallas wrappers
# ----------------------------------------------------------------------------
def matmul_bn_stats(A, B, *, target_rows=1024, target_k=512):
    """A:(M,K) @ B:(K,Nc) on the MXU in bf16 (fp32 accumulation).

    Returns (out:(M,Nc) fp32, colsum:(Nc,) fp32, colsumsq:(Nc,) fp32).
    Zero row/column padding contributes exactly 0 to both output and stats
    (no bias is added inside the kernel), so BN statistics stay exact."""
    M, K = A.shape
    K2, Nc = B.shape
    assert K == K2

    tm, Mp = _row_tiling(M, target_rows)
    if K <= target_k:
        tk, Kp = K, K                      # single K block: full-dim block is legal
    else:
        tk, Kp = target_k, _round_up(K, target_k)

    A = A.astype(jnp.bfloat16)
    B = B.astype(jnp.bfloat16)
    if Mp != M or Kp != K:
        A = jnp.pad(A, ((0, Mp - M), (0, Kp - K)))
    if Kp != K:
        B = jnp.pad(B, ((0, Kp - K), (0, 0)))

    gm, gk = Mp // tm, Kp // tk
    out, psum, psq = pl.pallas_call(
        matmul_stats_kernel,
        out_shape=(
            jax.ShapeDtypeStruct((Mp, Nc), jnp.float32),
            jax.ShapeDtypeStruct((gm * 8, Nc), jnp.float32),
            jax.ShapeDtypeStruct((gm * 8, Nc), jnp.float32),
        ),
        grid_spec=pltpu.PrefetchScalarGridSpec(
            num_scalar_prefetch=0,
            grid=(gm, gk),
            in_specs=[
                pl.BlockSpec((tm, tk), lambda i, k: (i, k)),
                pl.BlockSpec((tk, Nc), lambda i, k: (k, 0)),
            ],
            out_specs=(
                pl.BlockSpec((tm, Nc), lambda i, k: (i, 0)),
                pl.BlockSpec((8, Nc), lambda i, k: (i, 0)),
                pl.BlockSpec((8, Nc), lambda i, k: (i, 0)),
            ),
            scratch_shapes=[pltpu.VMEM((tm, Nc), jnp.float32)],
        ),
        compiler_params=pltpu.CompilerParams(
            dimension_semantics=("parallel", "arbitrary")),
    )(A, B)

    colsum = psum.reshape(gm, 8, Nc)[:, 0, :].sum(axis=0)
    colsq = psq.reshape(gm, 8, Nc)[:, 0, :].sum(axis=0)
    return out[:M], colsum, colsq


def bn_prelu(X, scale, shift, alpha, res=None, *, out_dtype=jnp.float32,
             target_rows=2048):
    """PReLU(scale * X + shift) [+ res]; per-column params of length C.

    Runs on a lane-dense (M/G, G*C) = (*, 128) view (free reshape of the
    contiguous row-major buffer) so loads/stores use full 128-lane vregs."""
    M, C = X.shape
    if C % 128 == 0:
        G = 1
    elif 128 % C == 0 and M % (128 // C) == 0:
        G = 128 // C
    else:
        G = 1
    Mg, Cg = M // G, C * G

    Xg = X.reshape(Mg, Cg)
    rg = None if res is None else res.reshape(Mg, Cg)
    sg = jnp.tile(scale.astype(jnp.float32), G).reshape(1, Cg)
    tg = jnp.tile(shift.astype(jnp.float32), G).reshape(1, Cg)
    ag = jnp.tile(alpha.astype(jnp.float32), G).reshape(1, Cg)

    tm, Mp = _row_tiling(Mg, target_rows)
    if Mp != Mg:
        Xg = jnp.pad(Xg, ((0, Mp - Mg), (0, 0)))
        if rg is not None:
            rg = jnp.pad(rg, ((0, Mp - Mg), (0, 0)))

    row_spec = pl.BlockSpec((tm, Cg), lambda i: (i, 0))
    par_spec = pl.BlockSpec((1, Cg), lambda i: (0, 0))
    in_specs = [row_spec, par_spec, par_spec, par_spec]
    args = [Xg, sg, tg, ag]
    kernel = bn_prelu_kernel
    if rg is not None:               # no zero-filled residual traffic when absent
        in_specs.append(row_spec)
        args.append(rg)
        kernel = bn_prelu_res_kernel

    out = pl.pallas_call(
        kernel,
        out_shape=jax.ShapeDtypeStruct((Mp, Cg), out_dtype),
        grid_spec=pltpu.PrefetchScalarGridSpec(
            num_scalar_prefetch=0,
            grid=(Mp // tm,),
            in_specs=in_specs,
            out_specs=row_spec,
        ),
        compiler_params=pltpu.CompilerParams(
            dimension_semantics=("parallel",)),
    )(*args)
    return out[:Mg].reshape(M, C)


# ----------------------------------------------------------------------------
# glue (BN folding, im2col, params) in plain JAX
# ----------------------------------------------------------------------------
def bn_fold(colsum, colsumsq, count, gamma, beta, eps=1e-5):
    """Training-mode BN (batch mean, biased batch var) folded into scale/shift."""
    mean = colsum / count
    var = jnp.maximum(colsumsq / count - mean * mean, 0.0)   # clamp cancellation
    scale = gamma / jnp.sqrt(var + eps)
    shift = beta - mean * scale
    return scale, shift


def im2col_3x3x3(x_cl):
    """x_cl: (N, D, H, W, C) -> (N*D*H*W, 27*C) with padding=1 ("same" conv)."""
    # TODO(synk): gather the 27 shifted windows inside the matmul kernel (manual DMA
    # of padded depth slabs) to avoid materializing this 27x-wide bf16 buffer in HBM.
    N, D, H, W, C = x_cl.shape
    xp = jnp.pad(x_cl, ((0, 0), (1, 1), (1, 1), (1, 1), (0, 0)))
    cols = [xp[:, kd:kd + D, kh:kh + H, kw:kw + W, :]
            for kd in range(3) for kh in range(3) for kw in range(3)]
    return jnp.concatenate(cols, axis=-1).reshape(N * D * H * W, 27 * C)


def init_params(key, in_channels, br1, br2, out_channels, layers):
    ks = jax.random.split(key, 2 + 2 * layers)
    p = {}
    # ConvTranspose3d(in, out, k=2, s=2): weight (Cin, Cout, 2, 2, 2)
    p["up_w"] = 0.1 * jax.random.normal(ks[0], (in_channels, out_channels, 2, 2, 2), jnp.float32)
    # Biases kept for parameter fidelity but never added: with training-mode BN right
    # after each (transposed) conv, a per-channel bias cancels exactly in the forward.
    p["up_b"] = 0.01 * jax.random.normal(ks[1], (out_channels,), jnp.float32)
    p["bn_g"] = jnp.ones((out_channels,), jnp.float32)
    p["bn_b"] = jnp.zeros((out_channels,), jnp.float32)
    p["af_a"] = 0.25 * jnp.ones((out_channels,), jnp.float32)      # PReLU default
    cin = out_channels + br1 + br2
    for li in range(layers):
        # Conv3d(cin, out, k=3, p=1): weight (Cout, Cin, 3, 3, 3)
        p[f"conv{li}_w"] = 0.1 * jax.random.normal(ks[2 + 2 * li], (out_channels, cin, 3, 3, 3), jnp.float32)
        p[f"conv{li}_b"] = 0.01 * jax.random.normal(ks[3 + 2 * li], (out_channels,), jnp.float32)
        p[f"bn{li}_g"] = jnp.ones((out_channels,), jnp.float32)
        p[f"bn{li}_b"] = jnp.zeros((out_channels,), jnp.float32)
        p[f"af{li}_a"] = 0.25 * jnp.ones((out_channels,), jnp.float32)
        cin = out_channels
    return p


def net_up_block_di_forward(params, x, bridge1, bridge2, layers):
    """x: (N, Cin, D, H, W); bridges: (N, br_c, 2D, 2H, 2W) -> (N, Cout, 2D, 2H, 2W)"""
    N, Ci, D, H, W = x.shape
    Co = params["up_w"].shape[1]
    D2, H2, W2 = 2 * D, 2 * H, 2 * W
    M0 = N * D * H * W
    M = N * D2 * H2 * W2

    # ---- ConvTranspose3d(k=2, s=2) as a single (M0, Ci) @ (Ci, 8*Co) matmul ----
    x_cl = jnp.transpose(x, (0, 2, 3, 4, 1)).reshape(M0, Ci)
    w_up = jnp.transpose(params["up_w"], (0, 2, 3, 4, 1)).reshape(Ci, 8 * Co)
    y0, s0, sq0 = matmul_bn_stats(x_cl, w_up)                        # (M0, 8*Co)

    # training-mode BN stats per true channel (fold the 8 kernel positions)
    s_c = s0.reshape(8, Co).sum(axis=0)
    sq_c = sq0.reshape(8, Co).sum(axis=0)
    scale, shift = bn_fold(s_c, sq_c, float(M), params["bn_g"], params["bn_b"])

    # BN + PReLU applied pre-pixel-shuffle on the (M0, 8*Co) layout (params tiled x8)
    up_pre = bn_prelu(y0, jnp.tile(scale, 8), jnp.tile(shift, 8),
                      jnp.tile(params["af_a"], 8))

    # pixel shuffle -> channels-last upsampled tensor
    up_cl = up_pre.reshape(N, D, H, W, 2, 2, 2, Co)
    up_cl = jnp.transpose(up_cl, (0, 1, 4, 2, 5, 3, 6, 7)).reshape(N, D2, H2, W2, Co)
    up_flat = up_cl.reshape(M, Co)                                   # residual (fp32)

    # ---- concat with bridges along channels (channels-last), bf16 conv input ----
    b1_cl = jnp.transpose(bridge1, (0, 2, 3, 4, 1))
    b2_cl = jnp.transpose(bridge2, (0, 2, 3, 4, 1))
    cur = jnp.concatenate([up_cl, b1_cl, b2_cl], axis=-1).astype(jnp.bfloat16)

    # ---- NetConvBlock: [conv3x3x3 -> BN -> PReLU] x layers (+ residual on last) ----
    out_flat = None
    for li in range(layers):
        Cin_l = cur.shape[-1]
        A = im2col_3x3x3(cur)                                        # (M, 27*Cin_l) bf16
        Bm = jnp.transpose(params[f"conv{li}_w"], (2, 3, 4, 1, 0)).reshape(27 * Cin_l, Co)
        y, s, sq = matmul_bn_stats(A, Bm)                            # (M, Co) fp32
        scale, shift = bn_fold(s, sq, float(M),
                               params[f"bn{li}_g"], params[f"bn{li}_b"])
        last = li == layers - 1
        # final residual add (out + up) fused into the last elementwise kernel
        y = bn_prelu(y, scale, shift, params[f"af{li}_a"],
                     res=up_flat if last else None,
                     out_dtype=jnp.float32 if last else jnp.bfloat16)
        if last:
            out_flat = y
        else:
            cur = y.reshape(N, D2, H2, W2, Co)                       # bf16 -> next im2col

    out_cl = out_flat.reshape(N, D2, H2, W2, Co)
    return jnp.transpose(out_cl, (0, 4, 1, 2, 3))                    # back to NCDHW


# ----------------------------------------------------------------------------
if __name__ == "__main__":
    key = jax.random.PRNGKey(0)
    kx, kb1, kb2, kp = jax.random.split(key, 4)

    N, Cin, D, H, W = 2, 8, 4, 4, 4
    br1, br2, Co, layers = 4, 4, 8, 2

    x = jax.random.normal(kx, (N, Cin, D, H, W), jnp.float32)
    bridge1 = jax.random.normal(kb1, (N, br1, 2 * D, 2 * H, 2 * W), jnp.float32)
    bridge2 = jax.random.normal(kb2, (N, br2, 2 * D, 2 * H, 2 * W), jnp.float32)

    params = init_params(kp, Cin, br1, br2, Co, layers)

    fwd = jax.jit(functools.partial(net_up_block_di_forward, layers=layers))
    out = jax.block_until_ready(fwd(params, x, bridge1, bridge2))

    assert out.shape == (N, Co, 2 * D, 2 * H, 2 * W), out.shape
    assert bool(jnp.all(jnp.isfinite(out)))
    print("KERNEL_OK")
</pallas_src>

<mosaic_0001>
module attributes {stable_mosaic.version = 11 : i64} {
  func.func @matmul_stats_kernel(%arg0: i32, %arg1: i32, %arg2: memref<128x8xbf16, #tpu.memory_space<vmem>>, %arg3: memref<8x64xbf16, #tpu.memory_space<vmem>>, %arg4: memref<128x64xf32, #tpu.memory_space<vmem>>, %arg5: memref<8x64xf32, #tpu.memory_space<vmem>>, %arg6: memref<8x64xf32, #tpu.memory_space<vmem>>, %arg7: memref<128x64xf32, #tpu.memory_space<vmem>>) attributes {dimension_semantics = [#tpu.dimension_semantics<parallel>, #tpu.dimension_semantics<arbitrary>], iteration_bounds = array<i64: 1, 1>, scalar_prefetch = 0 : i64, scratch_operands = 1 : i64, tpu.core_type = #tpu.core_type<tc>, window_params = [{transform_indices = @transform_0, window_bounds = array<i64: 128, 8>}, {transform_indices = @transform_1, window_bounds = array<i64: 8, 64>}, {transform_indices = @transform_2, window_bounds = array<i64: 128, 64>}, {transform_indices = @transform_3, window_bounds = array<i64: 8, 64>}, {transform_indices = @transform_4, window_bounds = array<i64: 8, 64>}]} {
    %c0_i32 = arith.constant 0 : i32
    %0 = arith.cmpi eq, %arg1, %c0_i32 : i32
    %1 = arith.extui %0 : i1 to i32
    %c0_i32_0 = arith.constant 0 : i32
    %2 = arith.cmpi ne, %1, %c0_i32_0 : i32
    scf.if %2 {
      %cst_10 = arith.constant 0.000000e+00 : f32
      %12 = vector.broadcast %cst_10 : f32 to vector<128x64xf32>
      %c0_11 = arith.constant 0 : index
      %c0_12 = arith.constant 0 : index
      %13 = vector.load %arg7[%c0_11, %c0_12] : memref<128x64xf32, #tpu.memory_space<vmem>>, vector<128x64xf32>
      tpu.vector_store %arg7[%c0_11, %c0_12], %12 {strides = array<i32>} : memref<128x64xf32, #tpu.memory_space<vmem>>, vector<128x64xf32>,
    } else {
    }
    %c0 = arith.constant 0 : index
    %c0_1 = arith.constant 0 : index
    %3 = vector.load %arg7[%c0, %c0_1] : memref<128x64xf32, #tpu.memory_space<vmem>>, vector<128x64xf32>
    %c0_2 = arith.constant 0 : index
    %c0_3 = arith.constant 0 : index
    %4 = vector.load %arg2[%c0_2, %c0_3] : memref<128x8xbf16, #tpu.memory_space<vmem>>, vector<128x8xbf16>
    %c0_4 = arith.constant 0 : index
    %c0_5 = arith.constant 0 : index
    %5 = vector.load %arg3[%c0_4, %c0_5] : memref<8x64xbf16, #tpu.memory_space<vmem>>, vector<8x64xbf16>
    %cst = arith.constant dense<0.000000e+00> : vector<128x64xf32>
    %6 = tpu.matmul %4, %5, %cst {dimension_numbers = #tpu.dot_dimension_numbers<[1], [0], [0], [1], [0, 0, 1, 1], [], []>} : vector<128x8xbf16>, vector<8x64xbf16>, vector<128x64xf32> -> vector<128x64xf32>
    %7 = arith.addf %3, %6 : vector<128x64xf32>
    %c0_6 = arith.constant 0 : index
    %c0_7 = arith.constant 0 : index
    %8 = vector.load %arg7[%c0_6, %c0_7] : memref<128x64xf32, #tpu.memory_space<vmem>>, vector<128x64xf32>
    tpu.vector_store %arg7[%c0_6, %c0_7], %7 {strides = array<i32>} : memref<128x64xf32, #tpu.memory_space<vmem>>, vector<128x64xf32>,
    %c0_i32_8 = arith.constant 0 : i32
    %9 = arith.cmpi eq, %arg1, %c0_i32_8 : i32
    %10 = arith.extui %9 : i1 to i32
    %c0_i32_9 = arith.constant 0 : i32
    %11 = arith.cmpi ne, %10, %c0_i32_9 : i32
    scf.if %11 {
      %c0_10 = arith.constant 0 : index
      %c0_11 = arith.constant 0 : index
      %12 = vector.load %arg7[%c0_10, %c0_11] : memref<128x64xf32, #tpu.memory_space<vmem>>, vector<128x64xf32>
      %c0_12 = arith.constant 0 : index
      %c0_13 = arith.constant 0 : index
      %13 = vector.load %arg4[%c0_12, %c0_13] : memref<128x64xf32, #tpu.memory_space<vmem>>, vector<128x64xf32>
      tpu.vector_store %arg4[%c0_12, %c0_13], %12 {strides = array<i32>} : memref<128x64xf32, #tpu.memory_space<vmem>>, vector<128x64xf32>,
      %cst_14 = arith.constant dense<0.000000e+00> : vector<64xf32>
      %14 = vector.multi_reduction <add>, %12, %cst_14 [0] : vector<128x64xf32> to vector<64xf32>
      %15 = vector.shape_cast %14 : vector<64xf32> to vector<1x64xf32>
      %16 = vector.shape_cast %15 : vector<1x64xf32> to vector<1x64xf32>
      %17 = vector.broadcast %16 : vector<1x64xf32> to vector<8x64xf32>
      %c0_15 = arith.constant 0 : index
      %c0_16 = arith.constant 0 : index
      %18 = vector.load %arg5[%c0_15, %c0_16] : memref<8x64xf32, #tpu.memory_space<vmem>>, vector<8x64xf32>
      tpu.vector_store %arg5[%c0_15, %c0_16], %17 {strides = array<i32>} : memref<8x64xf32, #tpu.memory_space<vmem>>, vector<8x64xf32>,
      %19 = arith.mulf %12, %12 : vector<128x64xf32>
      %cst_17 = arith.constant dense<0.000000e+00> : vector<64xf32>
      %20 = vector.multi_reduction <add>, %19, %cst_17 [0] : vector<128x64xf32> to vector<64xf32>
      %21 = vector.shape_cast %20 : vector<64xf32> to vector<1x64xf32>
      %22 = vector.shape_cast %21 : vector<1x64xf32> to vector<1x64xf32>
      %23 = vector.broadcast %22 : vector<1x64xf32> to vector<8x64xf32>
      %c0_18 = arith.constant 0 : index
      %c0_19 = arith.constant 0 : index
      %24 = vector.load %arg6[%c0_18, %c0_19] : memref<8x64xf32, #tpu.memory_space<vmem>>, vector<8x64xf32>
      tpu.vector_store %arg6[%c0_18, %c0_19], %23 {strides = array<i32>} : memref<8x64xf32, #tpu.memory_space<vmem>>, vector<8x64xf32>,
    } else {
    }
    return
  }
  func.func @transform_0(%arg0: i32, %arg1: i32) -> (i32, i32) {
    %c0_i32 = arith.constant 0 : i32
    return %arg0, %arg1 : i32, i32
  }
  func.func @transform_1(%arg0: i32, %arg1: i32) -> (i32, i32) {
    %c0_i32 = arith.constant 0 : i32
    %c0_i32_0 = arith.constant 0 : i32
    return %arg1, %c0_i32 : i32, i32
  }
  func.func @transform_2(%arg0: i32, %arg1: i32) -> (i32, i32) {
    %c0_i32 = arith.constant 0 : i32
    %c0_i32_0 = arith.constant 0 : i32
    return %arg0, %c0_i32 : i32, i32
  }
  func.func @transform_3(%arg0: i32, %arg1: i32) -> (i32, i32) {
    %c0_i32 = arith.constant 0 : i32
    %c0_i32_0 = arith.constant 0 : i32
    return %arg0, %c0_i32 : i32, i32
  }
  func.func @transform_4(%arg0: i32, %arg1: i32) -> (i32, i32) {
    %c0_i32 = arith.constant 0 : i32
    %c0_i32_0 = arith.constant 0 : i32
    return %arg0, %c0_i32 : i32, i32
  }
}

module attributes {stable_mosaic.version = 11 : i64} {
  func.func @bn_prelu_kernel(%arg0: i32, %arg1: memref<64x128xf32, #tpu.memory_space<vmem>>, %arg2: memref<1x128xf32, #tpu.memory_space<vmem>>, %arg3: memref<1x128xf32, #tpu.memory_space<vmem>>, %arg4: memref<1x128xf32, #tpu.memory_space<vmem>>, %arg5: memref<64x128xf32, #tpu.memory_space<vmem>>) attributes {dimension_semantics = [#tpu.dimension_semantics<parallel>], iteration_bounds = array<i64: 1>, scalar_prefetch = 0 : i64, scratch_operands = 0 : i64, tpu.core_type = #tpu.core_type<tc>, window_params = [{transform_indices = @transform_0, window_bounds = array<i64: 64, 128>}, {pipeline_mode = #tpu.pipeline_mode<synchronous>, transform_indices = @transform_1, window_bounds = array<i64: 1, 128>}, {pipeline_mode = #tpu.pipeline_mode<synchronous>, transform_indices = @transform_2, window_bounds = array<i64: 1, 128>}, {pipeline_mode = #tpu.pipeline_mode<synchronous>, transform_indices = @transform_3, window_bounds = array<i64: 1, 128>}, {transform_indices = @transform_4, window_bounds = array<i64: 64, 128>}]} {
    %c0 = arith.constant 0 : index
    %c0_0 = arith.constant 0 : index
    %0 = vector.load %arg1[%c0, %c0_0] : memref<64x128xf32, #tpu.memory_space<vmem>>, vector<64x128xf32>
    %c0_1 = arith.constant 0 : index
    %c0_2 = arith.constant 0 : index
    %1 = vector.load %arg2[%c0_1, %c0_2] : memref<1x128xf32, #tpu.memory_space<vmem>>, vector<1x128xf32>
    %2 = vector.broadcast %1 : vector<1x128xf32> to vector<64x128xf32>
    %3 = arith.mulf %0, %2 : vector<64x128xf32>
    %c0_3 = arith.constant 0 : index
    %c0_4 = arith.constant 0 : index
    %4 = vector.load %arg3[%c0_3, %c0_4] : memref<1x128xf32, #tpu.memory_space<vmem>>, vector<1x128xf32>
    %5 = vector.broadcast %4 : vector<1x128xf32> to vector<64x128xf32>
    %6 = arith.addf %3, %5 : vector<64x128xf32>
    %cst = arith.constant 0.000000e+00 : f32
    %7 = vector.broadcast %cst : f32 to vector<64x128xf32>
    %8 = arith.cmpf oge, %6, %7 : vector<64x128xf32>
    %c0_5 = arith.constant 0 : index
    %c0_6 = arith.constant 0 : index
    %9 = vector.load %arg4[%c0_5, %c0_6] : memref<1x128xf32, #tpu.memory_space<vmem>>, vector<1x128xf32>
    %10 = vector.broadcast %9 : vector<1x128xf32> to vector<64x128xf32>
    %11 = arith.mulf %10, %6 : vector<64x128xf32>
    %12 = arith.select %8, %6, %11 : vector<64x128xi1>, vector<64x128xf32>
    %c0_7 = arith.constant 0 : index
    %c0_8 = arith.constant 0 : index
    %13 = vector.load %arg5[%c0_7, %c0_8] : memref<64x128xf32, #tpu.memory_space<vmem>>, vector<64x128xf32>
    tpu.vector_store %arg5[%c0_7, %c0_8], %12 {strides = array<i32>} : memref<64x128xf32, #tpu.memory_space<vmem>>, vector<64x128xf32>,
    return
  }
  func.func @transform_0(%arg0: i32) -> (i32, i32) {
    %c0_i32 = arith.constant 0 : i32
    %c0_i32_0 = arith.constant 0 : i32
    return %arg0, %c0_i32 : i32, i32
  }
  func.func @transform_1(%arg0: i32) -> (i32, i32) {
    %c0_i32 = arith.constant 0 : i32
    %c0_i32_0 = arith.constant 0 : i32
    %c0_i32_1 = arith.constant 0 : i32
    return %c0_i32, %c0_i32_0 : i32, i32
  }
  func.func @transform_2(%arg0: i32) -> (i32, i32) {
    %c0_i32 = arith.constant 0 : i32
    %c0_i32_0 = arith.constant 0 : i32
    %c0_i32_1 = arith.constant 0 : i32
    return %c0_i32, %c0_i32_0 : i32, i32
  }
  func.func @transform_3(%arg0: i32) -> (i32, i32) {
    %c0_i32 = arith.constant 0 : i32
    %c0_i32_0 = arith.constant 0 : i32
    %c0_i32_1 = arith.constant 0 : i32
    return %c0_i32, %c0_i32_0 : i32, i32
  }
  func.func @transform_4(%arg0: i32) -> (i32, i32) {
    %c0_i32 = arith.constant 0 : i32
    %c0_i32_0 = arith.constant 0 : i32
    return %arg0, %c0_i32 : i32, i32
  }
}

module attributes {stable_mosaic.version = 11 : i64} {
  func.func @matmul_stats_kernel(%arg0: i32, %arg1: i32, %arg2: memref<1024x432xbf16, #tpu.memory_space<vmem>>, %arg3: memref<432x8xbf16, #tpu.memory_space<vmem>>, %arg4: memref<1024x8xf32, #tpu.memory_space<vmem>>, %arg5: memref<8x8xf32, #tpu.memory_space<vmem>>, %arg6: memref<8x8xf32, #tpu.memory_space<vmem>>, %arg7: memref<1024x8xf32, #tpu.memory_space<vmem>>) attributes {dimension_semantics = [#tpu.dimension_semantics<parallel>, #tpu.dimension_semantics<arbitrary>], iteration_bounds = array<i64: 1, 1>, scalar_prefetch = 0 : i64, scratch_operands = 1 : i64, tpu.core_type = #tpu.core_type<tc>, window_params = [{transform_indices = @transform_0, window_bounds = array<i64: 1024, 432>}, {transform_indices = @transform_1, window_bounds = array<i64: 432, 8>}, {transform_indices = @transform_2, window_bounds = array<i64: 1024, 8>}, {transform_indices = @transform_3, window_bounds = array<i64: 8, 8>}, {transform_indices = @transform_4, window_bounds = array<i64: 8, 8>}]} {
    %c0_i32 = arith.constant 0 : i32
    %0 = arith.cmpi eq, %arg1, %c0_i32 : i32
    %1 = arith.extui %0 : i1 to i32
    %c0_i32_0 = arith.constant 0 : i32
    %2 = arith.cmpi ne, %1, %c0_i32_0 : i32
    scf.if %2 {
      %cst_10 = arith.constant 0.000000e+00 : f32
      %12 = vector.broadcast %cst_10 : f32 to vector<1024x8xf32>
      %c0_11 = arith.constant 0 : index
      %c0_12 = arith.constant 0 : index
      %13 = vector.load %arg7[%c0_11, %c0_12] : memref<1024x8xf32, #tpu.memory_space<vmem>>, vector<1024x8xf32>
      tpu.vector_store %arg7[%c0_11, %c0_12], %12 {strides = array<i32>} : memref<1024x8xf32, #tpu.memory_space<vmem>>, vector<1024x8xf32>,
    } else {
    }
    %c0 = arith.constant 0 : index
    %c0_1 = arith.constant 0 : index
    %3 = vector.load %arg7[%c0, %c0_1] : memref<1024x8xf32, #tpu.memory_space<vmem>>, vector<1024x8xf32>
    %c0_2 = arith.constant 0 : index
    %c0_3 = arith.constant 0 : index
    %4 = vector.load %arg2[%c0_2, %c0_3] : memref<1024x432xbf16, #tpu.memory_space<vmem>>, vector<1024x432xbf16>
    %c0_4 = arith.constant 0 : index
    %c0_5 = arith.constant 0 : index
    %5 = vector.load %arg3[%c0_4, %c0_5] : memref<432x8xbf16, #tpu.memory_space<vmem>>, vector<432x8xbf16>
    %cst = arith.constant dense<0.000000e+00> : vector<1024x8xf32>
    %6 = tpu.matmul %4, %5, %cst {dimension_numbers = #tpu.dot_dimension_numbers<[1], [0], [0], [1], [0, 0, 1, 1], [], []>} : vector<1024x432xbf16>, vector<432x8xbf16>, vector<1024x8xf32> -> vector<1024x8xf32>
    %7 = arith.addf %3, %6 : vector<1024x8xf32>
    %c0_6 = arith.constant 0 : index
    %c0_7 = arith.constant 0 : index
    %8 = vector.load %arg7[%c0_6, %c0_7] : memref<1024x8xf32, #tpu.memory_space<vmem>>, vector<1024x8xf32>
    tpu.vector_store %arg7[%c0_6, %c0_7], %7 {strides = array<i32>} : memref<1024x8xf32, #tpu.memory_space<vmem>>, vector<1024x8xf32>,
    %c0_i32_8 = arith.constant 0 : i32
    %9 = arith.cmpi eq, %arg1, %c0_i32_8 : i32
    %10 = arith.extui %9 : i1 to i32
    %c0_i32_9 = arith.constant 0 : i32
    %11 = arith.cmpi ne, %10, %c0_i32_9 : i32
    scf.if %11 {
      %c0_10 = arith.constant 0 : index
      %c0_11 = arith.constant 0 : index
      %12 = vector.load %arg7[%c0_10, %c0_11] : memref<1024x8xf32, #tpu.memory_space<vmem>>, vector<1024x8xf32>
      %c0_12 = arith.constant 0 : index
      %c0_13 = arith.constant 0 : index
      %13 = vector.load %arg4[%c0_12, %c0_13] : memref<1024x8xf32, #tpu.memory_space<vmem>>, vector<1024x8xf32>
      tpu.vector_store %arg4[%c0_12, %c0_13], %12 {strides = array<i32>} : memref<1024x8xf32, #tpu.memory_space<vmem>>, vector<1024x8xf32>,
      %cst_14 = arith.constant dense<0.000000e+00> : vector<8xf32>
      %14 = vector.multi_reduction <add>, %12, %cst_14 [0] : vector<1024x8xf32> to vector<8xf32>
      %15 = vector.shape_cast %14 : vector<8xf32> to vector<1x8xf32>
      %16 = vector.shape_cast %15 : vector<1x8xf32> to vector<1x8xf32>
      %17 = vector.broadcast %16 : vector<1x8xf32> to vector<8x8xf32>
      %c0_15 = arith.constant 0 : index
      %c0_16 = arith.constant 0 : index
      %18 = vector.load %arg5[%c0_15, %c0_16] : memref<8x8xf32, #tpu.memory_space<vmem>>, vector<8x8xf32>
      tpu.vector_store %arg5[%c0_15, %c0_16], %17 {strides = array<i32>} : memref<8x8xf32, #tpu.memory_space<vmem>>, vector<8x8xf32>,
      %19 = arith.mulf %12, %12 : vector<1024x8xf32>
      %cst_17 = arith.constant dense<0.000000e+00> : vector<8xf32>
      %20 = vector.multi_reduction <add>, %19, %cst_17 [0] : vector<1024x8xf32> to vector<8xf32>
      %21 = vector.shape_cast %20 : vector<8xf32> to vector<1x8xf32>
      %22 = vector.shape_cast %21 : vector<1x8xf32> to vector<1x8xf32>
      %23 = vector.broadcast %22 : vector<1x8xf32> to vector<8x8xf32>
      %c0_18 = arith.constant 0 : index
      %c0_19 = arith.constant 0 : index
      %24 = vector.load %arg6[%c0_18, %c0_19] : memref<8x8xf32, #tpu.memory_space<vmem>>, vector<8x8xf32>
      tpu.vector_store %arg6[%c0_18, %c0_19], %23 {strides = array<i32>} : memref<8x8xf32, #tpu.memory_space<vmem>>, vector<8x8xf32>,
    } else {
    }
    return
  }
  func.func @transform_0(%arg0: i32, %arg1: i32) -> (i32, i32) {
    %c0_i32 = arith.constant 0 : i32
    return %arg0, %arg1 : i32, i32
  }
  func.func @transform_1(%arg0: i32, %arg1: i32) -> (i32, i32) {
    %c0_i32 = arith.constant 0 : i32
    %c0_i32_0 = arith.constant 0 : i32
    return %arg1, %c0_i32 : i32, i32
  }
  func.func @transform_2(%arg0: i32, %arg1: i32) -> (i32, i32) {
    %c0_i32 = arith.constant 0 : i32
    %c0_i32_0 = arith.constant 0 : i32
    return %arg0, %c0_i32 : i32, i32
  }
  func.func @transform_3(%arg0: i32, %arg1: i32) -> (i32, i32) {
    %c0_i32 = arith.constant 0 : i32
    %c0_i32_0 = arith.constant 0 : i32
    return %arg0, %c0_i32 : i32, i32
  }
  func.func @transform_4(%arg0: i32, %arg1: i32) -> (i32, i32) {
    %c0_i32 = arith.constant 0 : i32
    %c0_i32_0 = arith.constant 0 : i32
    return %arg0, %c0_i32 : i32, i32
  }
}

module attributes {stable_mosaic.version = 11 : i64} {
  func.func @bn_prelu_kernel(%arg0: i32, %arg1: memref<64x128xf32, #tpu.memory_space<vmem>>, %arg2: memref<1x128xf32, #tpu.memory_space<vmem>>, %arg3: memref<1x128xf32, #tpu.memory_space<vmem>>, %arg4: memref<1x128xf32, #tpu.memory_space<vmem>>, %arg5: memref<64x128xbf16, #tpu.memory_space<vmem>>) attributes {dimension_semantics = [#tpu.dimension_semantics<parallel>], iteration_bounds = array<i64: 1>, scalar_prefetch = 0 : i64, scratch_operands = 0 : i64, tpu.core_type = #tpu.core_type<tc>, window_params = [{transform_indices = @transform_0, window_bounds = array<i64: 64, 128>}, {pipeline_mode = #tpu.pipeline_mode<synchronous>, transform_indices = @transform_1, window_bounds = array<i64: 1, 128>}, {pipeline_mode = #tpu.pipeline_mode<synchronous>, transform_indices = @transform_2, window_bounds = array<i64: 1, 128>}, {pipeline_mode = #tpu.pipeline_mode<synchronous>, transform_indices = @transform_3, window_bounds = array<i64: 1, 128>}, {transform_indices = @transform_4, window_bounds = array<i64: 64, 128>}]} {
    %c0 = arith.constant 0 : index
    %c0_0 = arith.constant 0 : index
    %0 = vector.load %arg1[%c0, %c0_0] : memref<64x128xf32, #tpu.memory_space<vmem>>, vector<64x128xf32>
    %c0_1 = arith.constant 0 : index
    %c0_2 = arith.constant 0 : index
    %1 = vector.load %arg2[%c0_1, %c0_2] : memref<1x128xf32, #tpu.memory_space<vmem>>, vector<1x128xf32>
    %2 = vector.broadcast %1 : vector<1x128xf32> to vector<64x128xf32>
    %3 = arith.mulf %0, %2 : vector<64x128xf32>
    %c0_3 = arith.constant 0 : index
    %c0_4 = arith.constant 0 : index
    %4 = vector.load %arg3[%c0_3, %c0_4] : memref<1x128xf32, #tpu.memory_space<vmem>>, vector<1x128xf32>
    %5 = vector.broadcast %4 : vector<1x128xf32> to vector<64x128xf32>
    %6 = arith.addf %3, %5 : vector<64x128xf32>
    %cst = arith.constant 0.000000e+00 : f32
    %7 = vector.broadcast %cst : f32 to vector<64x128xf32>
    %8 = arith.cmpf oge, %6, %7 : vector<64x128xf32>
    %c0_5 = arith.constant 0 : index
    %c0_6 = arith.constant 0 : index
    %9 = vector.load %arg4[%c0_5, %c0_6] : memref<1x128xf32, #tpu.memory_space<vmem>>, vector<1x128xf32>
    %10 = vector.broadcast %9 : vector<1x128xf32> to vector<64x128xf32>
    %11 = arith.mulf %10, %6 : vector<64x128xf32>
    %12 = arith.select %8, %6, %11 : vector<64x128xi1>, vector<64x128xf32>
    %13 = arith.truncf %12 : vector<64x128xf32> to vector<64x128xbf16>
    %c0_7 = arith.constant 0 : index
    %c0_8 = arith.constant 0 : index
    %14 = vector.load %arg5[%c0_7, %c0_8] : memref<64x128xbf16, #tpu.memory_space<vmem>>, vector<64x128xbf16>
    tpu.vector_store %arg5[%c0_7, %c0_8], %13 {strides = array<i32>} : memref<64x128xbf16, #tpu.memory_space<vmem>>, vector<64x128xbf16>,
    return
  }
  func.func @transform_0(%arg0: i32) -> (i32, i32) {
    %c0_i32 = arith.constant 0 : i32
    %c0_i32_0 = arith.constant 0 : i32
    return %arg0, %c0_i32 : i32, i32
  }
  func.func @transform_1(%arg0: i32) -> (i32, i32) {
    %c0_i32 = arith.constant 0 : i32
    %c0_i32_0 = arith.constant 0 : i32
    %c0_i32_1 = arith.constant 0 : i32
    return %c0_i32, %c0_i32_0 : i32, i32
  }
  func.func @transform_2(%arg0: i32) -> (i32, i32) {
    %c0_i32 = arith.constant 0 : i32
    %c0_i32_0 = arith.constant 0 : i32
    %c0_i32_1 = arith.constant 0 : i32
    return %c0_i32, %c0_i32_0 : i32, i32
  }
  func.func @transform_3(%arg0: i32) -> (i32, i32) {
    %c0_i32 = arith.constant 0 : i32
    %c0_i32_0 = arith.constant 0 : i32
    %c0_i32_1 = arith.constant 0 : i32
    return %c0_i32, %c0_i32_0 : i32, i32
  }
  func.func @transform_4(%arg0: i32) -> (i32, i32) {
    %c0_i32 = arith.constant 0 : i32
    %c0_i32_0 = arith.constant 0 : i32
    return %arg0, %c0_i32 : i32, i32
  }
}

module attributes {stable_mosaic.version = 11 : i64} {
  func.func @matmul_stats_kernel(%arg0: i32, %arg1: i32, %arg2: memref<1024x216xbf16, #tpu.memory_space<vmem>>, %arg3: memref<216x8xbf16, #tpu.memory_space<vmem>>, %arg4: memref<1024x8xf32, #tpu.memory_space<vmem>>, %arg5: memref<8x8xf32, #tpu.memory_space<vmem>>, %arg6: memref<8x8xf32, #tpu.memory_space<vmem>>, %arg7: memref<1024x8xf32, #tpu.memory_space<vmem>>) attributes {dimension_semantics = [#tpu.dimension_semantics<parallel>, #tpu.dimension_semantics<arbitrary>], iteration_bounds = array<i64: 1, 1>, scalar_prefetch = 0 : i64, scratch_operands = 1 : i64, tpu.core_type = #tpu.core_type<tc>, window_params = [{transform_indices = @transform_0, window_bounds = array<i64: 1024, 216>}, {transform_indices = @transform_1, window_bounds = array<i64: 216, 8>}, {transform_indices = @transform_2, window_bounds = array<i64: 1024, 8>}, {transform_indices = @transform_3, window_bounds = array<i64: 8, 8>}, {transform_indices = @transform_4, window_bounds = array<i64: 8, 8>}]} {
    %c0_i32 = arith.constant 0 : i32
    %0 = arith.cmpi eq, %arg1, %c0_i32 : i32
    %1 = arith.extui %0 : i1 to i32
    %c0_i32_0 = arith.constant 0 : i32
    %2 = arith.cmpi ne, %1, %c0_i32_0 : i32
    scf.if %2 {
      %cst_10 = arith.constant 0.000000e+00 : f32
      %12 = vector.broadcast %cst_10 : f32 to vector<1024x8xf32>
      %c0_11 = arith.constant 0 : index
      %c0_12 = arith.constant 0 : index
      %13 = vector.load %arg7[%c0_11, %c0_12] : memref<1024x8xf32, #tpu.memory_space<vmem>>, vector<1024x8xf32>
      tpu.vector_store %arg7[%c0_11, %c0_12], %12 {strides = array<i32>} : memref<1024x8xf32, #tpu.memory_space<vmem>>, vector<1024x8xf32>,
    } else {
    }
    %c0 = arith.constant 0 : index
    %c0_1 = arith.constant 0 : index
    %3 = vector.load %arg7[%c0, %c0_1] : memref<1024x8xf32, #tpu.memory_space<vmem>>, vector<1024x8xf32>
    %c0_2 = arith.constant 0 : index
    %c0_3 = arith.constant 0 : index
    %4 = vector.load %arg2[%c0_2, %c0_3] : memref<1024x216xbf16, #tpu.memory_space<vmem>>, vector<1024x216xbf16>
    %c0_4 = arith.constant 0 : index
    %c0_5 = arith.constant 0 : index
    %5 = vector.load %arg3[%c0_4, %c0_5] : memref<216x8xbf16, #tpu.memory_space<vmem>>, vector<216x8xbf16>
    %cst = arith.constant dense<0.000000e+00> : vector<1024x8xf32>
    %6 = tpu.matmul %4, %5, %cst {dimension_numbers = #tpu.dot_dimension_numbers<[1], [0], [0], [1], [0, 0, 1, 1], [], []>} : vector<1024x216xbf16>, vector<216x8xbf16>, vector<1024x8xf32> -> vector<1024x8xf32>
    %7 = arith.addf %3, %6 : vector<1024x8xf32>
    %c0_6 = arith.constant 0 : index
    %c0_7 = arith.constant 0 : index
    %8 = vector.load %arg7[%c0_6, %c0_7] : memref<1024x8xf32, #tpu.memory_space<vmem>>, vector<1024x8xf32>
    tpu.vector_store %arg7[%c0_6, %c0_7], %7 {strides = array<i32>} : memref<1024x8xf32, #tpu.memory_space<vmem>>, vector<1024x8xf32>,
    %c0_i32_8 = arith.constant 0 : i32
    %9 = arith.cmpi eq, %arg1, %c0_i32_8 : i32
    %10 = arith.extui %9 : i1 to i32
    %c0_i32_9 = arith.constant 0 : i32
    %11 = arith.cmpi ne, %10, %c0_i32_9 : i32
    scf.if %11 {
      %c0_10 = arith.constant 0 : index
      %c0_11 = arith.constant 0 : index
      %12 = vector.load %arg7[%c0_10, %c0_11] : memref<1024x8xf32, #tpu.memory_space<vmem>>, vector<1024x8xf32>
      %c0_12 = arith.constant 0 : index
      %c0_13 = arith.constant 0 : index
      %13 = vector.load %arg4[%c0_12, %c0_13] : memref<1024x8xf32, #tpu.memory_space<vmem>>, vector<1024x8xf32>
      tpu.vector_store %arg4[%c0_12, %c0_13], %12 {strides = array<i32>} : memref<1024x8xf32, #tpu.memory_space<vmem>>, vector<1024x8xf32>,
      %cst_14 = arith.constant dense<0.000000e+00> : vector<8xf32>
      %14 = vector.multi_reduction <add>, %12, %cst_14 [0] : vector<1024x8xf32> to vector<8xf32>
      %15 = vector.shape_cast %14 : vector<8xf32> to vector<1x8xf32>
      %16 = vector.shape_cast %15 : vector<1x8xf32> to vector<1x8xf32>
      %17 = vector.broadcast %16 : vector<1x8xf32> to vector<8x8xf32>
      %c0_15 = arith.constant 0 : index
      %c0_16 = arith.constant 0 : index
      %18 = vector.load %arg5[%c0_15, %c0_16] : memref<8x8xf32, #tpu.memory_space<vmem>>, vector<8x8xf32>
      tpu.vector_store %arg5[%c0_15, %c0_16], %17 {strides = array<i32>} : memref<8x8xf32, #tpu.memory_space<vmem>>, vector<8x8xf32>,
      %19 = arith.mulf %12, %12 : vector<1024x8xf32>
      %cst_17 = arith.constant dense<0.000000e+00> : vector<8xf32>
      %20 = vector.multi_reduction <add>, %19, %cst_17 [0] : vector<1024x8xf32> to vector<8xf32>
      %21 = vector.shape_cast %20 : vector<8xf32> to vector<1x8xf32>
      %22 = vector.shape_cast %21 : vector<1x8xf32> to vector<1x8xf32>
      %23 = vector.broadcast %22 : vector<1x8xf32> to vector<8x8xf32>
      %c0_18 = arith.constant 0 : index
      %c0_19 = arith.constant 0 : index
      %24 = vector.load %arg6[%c0_18, %c0_19] : memref<8x8xf32, #tpu.memory_space<vmem>>, vector<8x8xf32>
      tpu.vector_store %arg6[%c0_18, %c0_19], %23 {strides = array<i32>} : memref<8x8xf32, #tpu.memory_space<vmem>>, vector<8x8xf32>,
    } else {
    }
    return
  }
  func.func @transform_0(%arg0: i32, %arg1: i32) -> (i32, i32) {
    %c0_i32 = arith.constant 0 : i32
    return %arg0, %arg1 : i32, i32
  }
  func.func @transform_1(%arg0: i32, %arg1: i32) -> (i32, i32) {
    %c0_i32 = arith.constant 0 : i32
    %c0_i32_0 = arith.constant 0 : i32
    return %arg1, %c0_i32 : i32, i32
  }
  func.func @transform_2(%arg0: i32, %arg1: i32) -> (i32, i32) {
    %c0_i32 = arith.constant 0 : i32
    %c0_i32_0 = arith.constant 0 : i32
    return %arg0, %c0_i32 : i32, i32
  }
  func.func @transform_3(%arg0: i32, %arg1: i32) -> (i32, i32) {
    %c0_i32 = arith.constant 0 : i32
    %c0_i32_0 = arith.constant 0 : i32
    return %arg0, %c0_i32 : i32, i32
  }
  func.func @transform_4(%arg0: i32, %arg1: i32) -> (i32, i32) {
    %c0_i32 = arith.constant 0 : i32
    %c0_i32_0 = arith.constant 0 : i32
    return %arg0, %c0_i32 : i32, i32
  }
}

module attributes {stable_mosaic.version = 11 : i64} {
  func.func @bn_prelu_res_kernel(%arg0: i32, %arg1: memref<64x128xf32, #tpu.memory_space<vmem>>, %arg2: memref<1x128xf32, #tpu.memory_space<vmem>>, %arg3: memref<1x128xf32, #tpu.memory_space<vmem>>, %arg4: memref<1x128xf32, #tpu.memory_space<vmem>>, %arg5: memref<64x128xf32, #tpu.memory_space<vmem>>, %arg6: memref<64x128xf32, #tpu.memory_space<vmem>>) attributes {dimension_semantics = [#tpu.dimension_semantics<parallel>], iteration_bounds = array<i64: 1>, scalar_prefetch = 0 : i64, scratch_operands = 0 : i64, tpu.core_type = #tpu.core_type<tc>, window_params = [{transform_indices = @transform_0, window_bounds = array<i64: 64, 128>}, {pipeline_mode = #tpu.pipeline_mode<synchronous>, transform_indices = @transform_1, window_bounds = array<i64: 1, 128>}, {pipeline_mode = #tpu.pipeline_mode<synchronous>, transform_indices = @transform_2, window_bounds = array<i64: 1, 128>}, {pipeline_mode = #tpu.pipeline_mode<synchronous>, transform_indices = @transform_3, window_bounds = array<i64: 1, 128>}, {transform_indices = @transform_4, window_bounds = array<i64: 64, 128>}, {transform_indices = @transform_5, window_bounds = array<i64: 64, 128>}]} {
    %c0 = arith.constant 0 : index
    %c0_0 = arith.constant 0 : index
    %0 = vector.load %arg1[%c0, %c0_0] : memref<64x128xf32, #tpu.memory_space<vmem>>, vector<64x128xf32>
    %c0_1 = arith.constant 0 : index
    %c0_2 = arith.constant 0 : index
    %1 = vector.load %arg2[%c0_1, %c0_2] : memref<1x128xf32, #tpu.memory_space<vmem>>, vector<1x128xf32>
    %2 = vector.broadcast %1 : vector<1x128xf32> to vector<64x128xf32>
    %3 = arith.mulf %0, %2 : vector<64x128xf32>
    %c0_3 = arith.constant 0 : index
    %c0_4 = arith.constant 0 : index
    %4 = vector.load %arg3[%c0_3, %c0_4] : memref<1x128xf32, #tpu.memory_space<vmem>>, vector<1x128xf32>
    %5 = vector.broadcast %4 : vector<1x128xf32> to vector<64x128xf32>
    %6 = arith.addf %3, %5 : vector<64x128xf32>
    %cst = arith.constant 0.000000e+00 : f32
    %7 = vector.broadcast %cst : f32 to vector<64x128xf32>
    %8 = arith.cmpf oge, %6, %7 : vector<64x128xf32>
    %c0_5 = arith.constant 0 : index
    %c0_6 = arith.constant 0 : index
    %9 = vector.load %arg4[%c0_5, %c0_6] : memref<1x128xf32, #tpu.memory_space<vmem>>, vector<1x128xf32>
    %10 = vector.broadcast %9 : vector<1x128xf32> to vector<64x128xf32>
    %11 = arith.mulf %10, %6 : vector<64x128xf32>
    %12 = arith.select %8, %6, %11 : vector<64x128xi1>, vector<64x128xf32>
    %c0_7 = arith.constant 0 : index
    %c0_8 = arith.constant 0 : index
    %13 = vector.load %arg5[%c0_7, %c0_8] : memref<64x128xf32, #tpu.memory_space<vmem>>, vector<64x128xf32>
    %14 = arith.addf %12, %13 : vector<64x128xf32>
    %c0_9 = arith.constant 0 : index
    %c0_10 = arith.constant 0 : index
    %15 = vector.load %arg6[%c0_9, %c0_10] : memref<64x128xf32, #tpu.memory_space<vmem>>, vector<64x128xf32>
    tpu.vector_store %arg6[%c0_9, %c0_10], %14 {strides = array<i32>} : memref<64x128xf32, #tpu.memory_space<vmem>>, vector<64x128xf32>,
    return
  }
  func.func @transform_0(%arg0: i32) -> (i32, i32) {
    %c0_i32 = arith.constant 0 : i32
    %c0_i32_0 = arith.constant 0 : i32
    return %arg0, %c0_i32 : i32, i32
  }
  func.func @transform_1(%arg0: i32) -> (i32, i32) {
    %c0_i32 = arith.constant 0 : i32
    %c0_i32_0 = arith.constant 0 : i32
    %c0_i32_1 = arith.constant 0 : i32
    return %c0_i32, %c0_i32_0 : i32, i32
  }
  func.func @transform_2(%arg0: i32) -> (i32, i32) {
    %c0_i32 = arith.constant 0 : i32
    %c0_i32_0 = arith.constant 0 : i32
    %c0_i32_1 = arith.constant 0 : i32
    return %c0_i32, %c0_i32_0 : i32, i32
  }
  func.func @transform_3(%arg0: i32) -> (i32, i32) {
    %c0_i32 = arith.constant 0 : i32
    %c0_i32_0 = arith.constant 0 : i32
    %c0_i32_1 = arith.constant 0 : i32
    return %c0_i32, %c0_i32_0 : i32, i32
  }
  func.func @transform_4(%arg0: i32) -> (i32, i32) {
    %c0_i32 = arith.constant 0 : i32
    %c0_i32_0 = arith.constant 0 : i32
    return %arg0, %c0_i32 : i32, i32
  }
  func.func @transform_5(%arg0: i32) -> (i32, i32) {
    %c0_i32 = arith.constant 0 : i32
    %c0_i32_0 = arith.constant 0 : i32
    return %arg0, %c0_i32 : i32, i32
  }
}

</mosaic_0001>

<llo_original>
// kernel: tile.83
$region0: #{tile.83}
  %s0 = inlined_call_operand.vmem [shape: f32[2,64], index: 0, kind: input, shape index: {}]
  %s1 = inlined_call_operand.vmem [shape: f32[1,128], index: 1, kind: output, shape index: {}]
  $region1: #{tile.83} parent=0
    #allocation0 [shape = 'u8[4096]{0}', space=vmem, size = 0x1000, scoped, tag = 'scoped mem for output reshape']
    #allocation1 [shape = 'u8[4096]{0}', space=vmem, size = 0x1000, scoped, tag = 'scoped mem for input reshape']
    %s3 = sshllo.u32 0, 2
    %v4 = vld [vmem:[%s0] sm:%s3]
    %5 = vst [vmem:[#allocation1] sm:%s3] %v4
    %v6 = vld [vmem:[#allocation1] sm:$0x1]
    %vm7 = vcmask 523264
    %8 = vst.msk [vmem:[#allocation0] sm:$0x1] %vm7, %v6
    %s9 = scalar_lea.vmem [#allocation1], 1
    %v10 = vld [vmem:[%s9] sm:$0x1]
    %11 = vrot.lane.b32.xlu0 %v10, 64
    %v12 = vpop.permute.xlu0 %11
    %vm13 = vcmask 1048064
    %14 = vst.msk [vmem:[#allocation0] sm:$0x1] %vm13, %v12
    %s16 = sshllo.u32 0, 1
    %v18 = vld [vmem:[#allocation0] sm:%s16]
    %s19 = sshllo.u32 0, 1
    %20 = vst [vmem:[%s1] sm:%s19] %v18

// kernel: tile.81
$region0: #{tile.81}
  %s0 = inlined_call_operand.vmem [shape: f32[8,8], index: 0, kind: input, shape index: {}]
  %s1 = inlined_call_operand.vmem [shape: f32[64], index: 1, kind: output, shape index: {}]
  $region1: #{tile.81} parent=0
    #allocation0 [shape = 'u8[4096]{0}', space=vmem, size = 0x1000, scoped, tag = 'scoped mem for output reshape']
    %v2 = vld [vmem:[%s0] sm:$0x1]
    %vm3 = vcmask 64512
    %4 = vst.msk [vmem:[#allocation0] sm:$0x1] %vm3, %v2
    %s5 = scalar_lea.vmem %s0, 7
    %v6 = vld [vmem:[%s5] sm:$0x1]
    %7 = vrot.lane.b32.xlu0 %v6, 56
    %v8 = vpop.permute.xlu0 %7
    %vm9 = vcmask 523712
    %10 = vst.msk [vmem:[#allocation0] sm:$0x1] %vm9, %v8
    %s11 = scalar_lea.vmem %s0, 6
    %v12 = vld [vmem:[%s11] sm:$0x1]
    %13 = vrot.lane.b32.xlu0 %v12, 48
    %v14 = vpop.permute.xlu0 %13
    %vm15 = vcmask 458112
    %16 = vst.msk [vmem:[#allocation0] sm:$0x1] %vm15, %v14
    %s17 = scalar_lea.vmem %s0, 5
    %v18 = vld [vmem:[%s17] sm:$0x1]
    %19 = vrot.lane.b32.xlu0 %v18, 40
    %v20 = vpop.permute.xlu0 %19
    %vm21 = vcmask 392512
    %22 = vst.msk [vmem:[#allocation0] sm:$0x1] %vm21, %v20
    %s23 = scalar_lea.vmem %s0, 4
    %v24 = vld [vmem:[%s23] sm:$0x1]
    %25 = vrot.lane.b32.xlu0 %v24, 32
    %v26 = vpop.permute.xlu0 %25
    %vm27 = vcmask 326912
    %28 = vst.msk [vmem:[#allocation0] sm:$0x1] %vm27, %v26
    %s29 = scalar_lea.vmem %s0, 3
    %v30 = vld [vmem:[%s29] sm:$0x1]
    %31 = vrot.lane.b32.xlu0 %v30, 24
    %v32 = vpop.permute.xlu0 %31
    %vm33 = vcmask 261312
    %34 = vst.msk [vmem:[#allocation0] sm:$0x1] %vm33, %v32
    %s35 = scalar_lea.vmem %s0, 2
    %v36 = vld [vmem:[%s35] sm:$0x1]
    %37 = vrot.lane.b32.xlu0 %v36, 16
    %v38 = vpop.permute.xlu0 %37
    %vm39 = vcmask 195712
    %40 = vst.msk [vmem:[#allocation0] sm:$0x1] %vm39, %v38
    %s41 = scalar_lea.vmem %s0, 1
    %v42 = vld [vmem:[%s41] sm:$0x1]
    %43 = vrot.lane.b32.xlu0 %v42, 8
    %v44 = vpop.permute.xlu0 %43
    %vm45 = vcmask 130112
    %46 = vst.msk [vmem:[#allocation0] sm:$0x1] %vm45, %v44
    %s48 = sshllo.u32 0, 1
    %v50 = vld [vmem:[#allocation0] sm:%s48]
    %s51 = sshllo.u32 0, 1
    %52 = vst [vmem:[%s1] sm:%s51] %v50

// kernel: tile.68
$region0: #{tile.68}
  #allocation2 [shape = 's32[1]{0}', space=sflag, size = 0x4, scoped, tag = 'scoped memory for tile.68']
  %s0 = inlined_call_operand.hbm [shape: f32[8], index: 0, kind: input, shape index: {}]
  %s1 = inlined_call_operand.vmem [shape: f32[8,8], index: 1, kind: output, shape index: {}]
  $region1: #{tile.68} parent=0
    #allocation0 [shape = 'u8[512]{0}', space=vmem, size = 0x400, scoped, tag = 'operand span for operand 0']
    #allocation1 [shape = 's32[1]{0}', space=sflag, size = 0x4, scoped, tag = 'scoped memory for tile.68']
    %2 = vsyncpa [#allocation1], 0
    // Predicated region
    $region2: #{tile.68} parent=1 // pred_check
      _
    $region3: #{tile.68} parent=1 // pred_check_branch
      %4 = sbr.rel (0) target = $region5
    $region4: #{tile.68} parent=1 // pred_region
      %s6 = ssub.s32 16, 16
      %7 = vsyncadd [#allocation1], %s6
      %s9 = sshll.u32 [#allocation0], 4
      %s10 = int_to_ptr.vmem [resolvable:$true] %s9
      %12 = dma.hbm_to_vmem [thread:$0]  %s0, 16, %s10, [#allocation1]
    $region5: #{tile.68} parent=1 // pred_fallthru
      _
    // Predicated region
    $region6: #{tile.68} parent=1 // pred_check
      _
    $region7: #{tile.68} parent=1 // pred_check_branch
      %14 = sbr.rel (0) target = $region9
    $region8: #{tile.68} parent=1 // pred_region
      %15 = dma.done [#allocation1], 16
    $region9: #{tile.68} parent=1 // pred_fallthru
      _
    %v16 = vld [vmem:[#allocation0] ss:$0 sm:$0xff]
    %17 = vst [vmem:[%s1] sm:$0xff] %v16
    %18 = vsyncpa [#allocation1], 1

// kernel: tile.82
$region0: #{tile.82}
  #allocation0 [shape = 's32[1]{0}', space=sflag, size = 0x4, scoped, tag = 'scoped memory for tile.82']
  %s0 = inlined_call_operand.vmem [shape: f32[64], index: 0, kind: input, shape index: {}]
  %s1 = inlined_call_operand.vmem [shape: f32[2,64], index: 1, kind: output, shape index: {}]
  // Predicated region
  $region2: #{tile.82} parent=0 // pred_check
    _
  $region3: #{tile.82} parent=0 // pred_check_branch
    %3 = sbr.rel (0) target = $region5
  $region4: #{tile.82} parent=0 // pred_region
    _
  $region5: #{tile.82} parent=0 // pred_fallthru
    _
  %v4 = vld [vmem:[%s0] ss:$0 sm:$0xff]
  %5 = vst [vmem:[%s1] sm:$0x3] %v4

// kernel: tile.97
$region0: #{tile.97}
  #allocation2 [shape = 's32[1]{0}', space=sflag, size = 0x4, scoped, tag = 'scoped memory for tile.97']
  %s0 = inlined_call_operand.hbm [shape: f32[8], index: 0, kind: input, shape index: {}]
  %s1 = inlined_call_operand.vmem [shape: f32[16,8], index: 1, kind: output, shape index: {}]
  $region1: #{tile.97} parent=0
    #allocation0 [shape = 'u8[512]{0}', space=vmem, size = 0x400, scoped, tag = 'operand span for operand 0']
    #allocation1 [shape = 's32[1]{0}', space=sflag, size = 0x4, scoped, tag = 'scoped memory for tile.97']
    %2 = vsyncpa [#allocation1], 0
    // Predicated region
    $region2: #{tile.97} parent=1 // pred_check
      _
    $region3: #{tile.97} parent=1 // pred_check_branch
      %4 = sbr.rel (0) target = $region5
    $region4: #{tile.97} parent=1 // pred_region
      %s6 = ssub.s32 16, 16
      %7 = vsyncadd [#allocation1], %s6
      %s9 = sshll.u32 [#allocation0], 4
      %s10 = int_to_ptr.vmem [resolvable:$true] %s9
      %12 = dma.hbm_to_vmem [thread:$0]  %s0, 16, %s10, [#allocation1]
    $region5: #{tile.97} parent=1 // pred_fallthru
      _
    // Predicated region
    $region6: #{tile.97} parent=1 // pred_check
      _
    $region7: #{tile.97} parent=1 // pred_check_branch
      %14 = sbr.rel (0) target = $region9
    $region8: #{tile.97} parent=1 // pred_region
      %15 = dma.done [#allocation1], 16
    $region9: #{tile.97} parent=1 // pred_fallthru
      _
    %v16 = vld [vmem:[#allocation0] ss:$0 sm:$0xff]
    %17 = vst [vmem:[%s1] sm:$0xff] %v16
    %s18 = scalar_lea.vmem %s1, 8
    %19 = vst [vmem:[%s18] sm:$0xff] %v16
    %20 = vsyncpa [#allocation1], 1

// kernel: tile.98
$region0: #{tile.98}
  %s0 = inlined_call_operand.vmem [shape: f32[16,8], index: 0, kind: input, shape index: {}]
  %s1 = inlined_call_operand.vmem [shape: f32[1,128], index: 1, kind: output, shape index: {}]
  $region1: #{tile.98} parent=0
    #allocation0 [shape = 'u8[4096]{0}', space=vmem, size = 0x1000, scoped, tag = 'scoped mem for output reshape']
    %v2 = vld [vmem:[%s0] sm:$0x1]
    %vm3 = vcmask 64512
    %4 = vst.msk [vmem:[#allocation0] sm:$0x1] %vm3, %v2
    %s5 = scalar_lea.vmem %s0, 15
    %v6 = vld [vmem:[%s5] sm:$0x1]
    %7 = vrot.lane.b32.xlu0 %v6, 120
    %v8 = vpop.permute.xlu0 %7
    %vm9 = vcmask 1048512
    %10 = vst.msk [vmem:[#allocation0] sm:$0x1] %vm9, %v8
    %s11 = scalar_lea.vmem %s0, 14
    %v12 = vld [vmem:[%s11] sm:$0x1]
    %13 = vrot.lane.b32.xlu0 %v12, 112
    %v14 = vpop.permute.xlu0 %13
    %vm15 = vcmask 982912
    %16 = vst.msk [vmem:[#allocation0] sm:$0x1] %vm15, %v14
    %s17 = scalar_lea.vmem %s0, 13
    %v18 = vld [vmem:[%s17] sm:$0x1]
    %19 = vrot.lane.b32.xlu0 %v18, 104
    %v20 = vpop.permute.xlu0 %19
    %vm21 = vcmask 917312
    %22 = vst.msk [vmem:[#allocation0] sm:$0x1] %vm21, %v20
    %s23 = scalar_lea.vmem %s0, 12
    %v24 = vld [vmem:[%s23] sm:$0x1]
    %25 = vrot.lane.b32.xlu0 %v24, 96
    %v26 = vpop.permute.xlu0 %25
    %vm27 = vcmask 851712
    %28 = vst.msk [vmem:[#allocation0] sm:$0x1] %vm27, %v26
    %s29 = scalar_lea.vmem %s0, 11
    %v30 = vld [vmem:[%s29] sm:$0x1]
    %31 = vrot.lane.b32.xlu0 %v30, 88
    %v32 = vpop.permute.xlu0 %31
    %vm33 = vcmask 786112
    %34 = vst.msk [vmem:[#allocation0] sm:$0x1] %vm33, %v32
    %s35 = scalar_lea.vmem %s0, 10
    %v36 = vld [vmem:[%s35] sm:$0x1]
    %37 = vrot.lane.b32.xlu0 %v36, 80
    %v38 = vpop.permute.xlu0 %37
    %vm39 = vcmask 720512
    %40 = vst.msk [vmem:[#allocation0] sm:$0x1] %vm39, %v38
    %s41 = scalar_lea.vmem %s0, 9
    %v42 = vld [vmem:[%s41] sm:$0x1]
    %43 = vrot.lane.b32.xlu0 %v42, 72
    %v44 = vpop.permute.xlu0 %43
    %vm45 = vcmask 654912
    %46 = vst.msk [vmem:[#allocation0] sm:$0x1] %vm45, %v44
    %s47 = scalar_lea.vmem %s0, 8
    %v48 = vld [vmem:[%s47] sm:$0x1]
    %49 = vrot.lane.b32.xlu0 %v48, 64
    %v50 = vpop.permute.xlu0 %49
    %vm51 = vcmask 589312
    %52 = vst.msk [vmem:[#allocation0] sm:$0x1] %vm51, %v50
    %s53 = scalar_lea.vmem %s0, 7
    %v54 = vld [vmem:[%s53] sm:$0x1]
    %55 = vrot.lane.b32.xlu0 %v54, 56
    %v56 = vpop.permute.xlu0 %55
    %vm57 = vcmask 523712
    %58 = vst.msk [vmem:[#allocation0] sm:$0x1] %vm57, %v56
    %s59 = scalar_lea.vmem %s0, 6
    %v60 = vld [vmem:[%s59] sm:$0x1]
    %61 = vrot.lane.b32.xlu0 %v60, 48
    %v62 = vpop.permute.xlu0 %61
    %vm63 = vcmask 458112
    %64 = vst.msk [vmem:[#allocation0] sm:$0x1] %vm63, %v62
    %s65 = scalar_lea.vmem %s0, 5
    %v66 = vld [vmem:[%s65] sm:$0x1]
    %67 = vrot.lane.b32.xlu0 %v66, 40
    %v68 = vpop.permute.xlu0 %67
    %vm69 = vcmask 392512
    %70 = vst.msk [vmem:[#allocation0] sm:$0x1] %vm69, %v68
    %s71 = scalar_lea.vmem %s0, 4
    %v72 = vld [vmem:[%s71] sm:$0x1]
    %73 = vrot.lane.b32.xlu0 %v72, 32
    %v74 = vpop.permute.xlu0 %73
    %vm75 = vcmask 326912
    %76 = vst.msk [vmem:[#allocation0] sm:$0x1] %vm75, %v74
    %s77 = scalar_lea.vmem %s0, 3
    %v78 = vld [vmem:[%s77] sm:$0x1]
    %79 = vrot.lane.b32.xlu0 %v78, 24
    %v80 = vpop.permute.xlu0 %79
    %vm81 = vcmask 261312
    %82 = vst.msk [vmem:[#allocation0] sm:$0x1] %vm81, %v80
    %s83 = scalar_lea.vmem %s0, 2
    %v84 = vld [vmem:[%s83] sm:$0x1]
    %85 = vrot.lane.b32.xlu0 %v84, 16
    %v86 = vpop.permute.xlu0 %85
    %vm87 = vcmask 195712
    %88 = vst.msk [vmem:[#allocation0] sm:$0x1] %vm87, %v86
    %s89 = scalar_lea.vmem %s0, 1
    %v90 = vld [vmem:[%s89] sm:$0x1]
    %91 = vrot.lane.b32.xlu0 %v90, 8
    %v92 = vpop.permute.xlu0 %91
    %vm93 = vcmask 130112
    %94 = vst.msk [vmem:[#allocation0] sm:$0x1] %vm93, %v92
    %s96 = sshllo.u32 0, 1
    %v98 = vld [vmem:[#allocation0] sm:%s96]
    %s99 = sshllo.u32 0, 1
    %100 = vst [vmem:[%s1] sm:%s99] %v98

// kernel: tile.64
$region0: #{tile.64}
  #allocation0 [shape = 's32[1]{0}', space=sflag, size = 0x4, scoped, tag = 'scoped memory for tile.64']
  %s0 = inlined_call_operand.vmem [shape: f32[8], index: 0, kind: input, shape index: {}]
  %s1 = inlined_call_operand.vmem [shape: f32[8,8], index: 1, kind: output, shape index: {}]
  // Predicated region
  $region2: #{tile.64} parent=0 // pred_check
    _
  $region3: #{tile.64} parent=0 // pred_check_branch
    %3 = sbr.rel (0) target = $region5
  $region4: #{tile.64} parent=0 // pred_region
    _
  $region5: #{tile.64} parent=0 // pred_fallthru
    _
  %v4 = vld [vmem:[%s0] ss:$0 sm:$0xff]
  %5 = vst [vmem:[%s1] sm:$0xff] %v4

// kernel: net_up_block_di_forward.7
$region0: #{net_up_block_di_forward.7}
  #allocation0 [shape = 'u32[]', space=smem, size = 0x4, offset = 0x4, fixed_abs, tag = 'smem constant byte address 0x4 - core index']
  #allocation1 [shape = 'u32[144,128]{1,0:T(1,128)}', space=vmem, size = 0x12000, scoped, tag = 'internal scratch']
  %s0 = inlined_call_operand.vmem [shape: f32[64,128], index: 0, kind: input, shape index: {}]
  %s1 = inlined_call_operand.vmem [shape: f32[1,128], index: 1, kind: input, shape index: {}]
  %s2 = inlined_call_operand.vmem [shape: f32[1,128], index: 2, kind: input, shape index: {}]
  %s3 = inlined_call_operand.vmem [shape: f32[1,128], index: 3, kind: input, shape index: {}]
  %s4 = inlined_call_operand.vmem [shape: f32[64,128], index: 4, kind: output, shape index: {}]
  %s5 = sld [smem:[#allocation0]]
  $region26: #{net_up_block_di_forward.7} parent=0
    _
  %s7 = ssub.s32 1, %s5
  %s8 = scalar_select 0, %s7, %s5
  // Predicated region
  $region2: #{net_up_block_di_forward.7} parent=0 // pred_check
    _
  $region3: #{net_up_block_di_forward.7} parent=0 // pred_check_branch
    %10 = sbr.rel (0) target = $region5
  $region4: #{net_up_block_di_forward.7} parent=0 // pred_region
    _
  $region5: #{net_up_block_di_forward.7} parent=0 // pred_fallthru
    _
  // Predicated region
  $region6: #{net_up_block_di_forward.7} parent=0 // pred_check
    _
  $region7: #{net_up_block_di_forward.7} parent=0 // pred_check_branch
    %12 = sbr.rel (0) target = $region9
  $region8: #{net_up_block_di_forward.7} parent=0 // pred_region
    _
  $region9: #{net_up_block_di_forward.7} parent=0 // pred_fallthru
    _
  // Predicated region
  $region10: #{net_up_block_di_forward.7} parent=0 // pred_check
    _
  $region11: #{net_up_block_di_forward.7} parent=0 // pred_check_branch
    %14 = sbr.rel (0) target = $region13
  $region12: #{net_up_block_di_forward.7} parent=0 // pred_region
    _
  $region13: #{net_up_block_di_forward.7} parent=0 // pred_fallthru
    _
  // Predicated region
  $region14: #{net_up_block_di_forward.7} parent=0 // pred_check
    _
  $region15: #{net_up_block_di_forward.7} parent=0 // pred_check_branch
    %16 = sbr.rel (0) target = $region17
  $region16: #{net_up_block_di_forward.7} parent=0 // pred_region
    _
  $region17: #{net_up_block_di_forward.7} parent=0 // pred_fallthru
    _
  %v17 = vld [vmem:[%s0] sm:$0xff]
  %v18 = vld [vmem:[%s0 + $0x8] sm:$0xff]
  %v19 = vld [vmem:[%s0 + $0x10] sm:$0xff]
  %v20 = vld [vmem:[%s0 + $0x18] sm:$0xff]
  %v21 = vld [vmem:[%s0 + $0x20] sm:$0xff]
  %v22 = vld [vmem:[%s0 + $0x28] sm:$0xff]
  %v23 = vld [vmem:[%s0 + $0x30] sm:$0xff]
  %v24 = vld [vmem:[%s0 + $0x38] sm:$0xff]
  %v25 = vld [vmem:[%s1] sm:$0x1]
  %v27 = vlaneseq
  %v28 = vshrl.u32 %v27, 7
  %v29 = vsub.s32 0, %v28
  %v30 = vrot.slane %v25, %v29
  %v32 = vmul.f32 %v17, %v30
  %v33 = vmul.f32 %v18, %v30
  %v34 = vmul.f32 %v19, %v30
  %v35 = vmul.f32 %v20, %v30
  %v36 = vmul.f32 %v21, %v30
  %v37 = vmul.f32 %v22, %v30
  %v38 = vmul.f32 %v23, %v30
  %v39 = vmul.f32 %v24, %v30
  %v40 = vld [vmem:[%s2] sm:$0x1]
  %v42 = vlaneseq
  %v43 = vshrl.u32 %v42, 7
  %v44 = vsub.s32 0, %v43
  %v45 = vrot.slane %v40, %v44
  %v47 = vadd.f32 %v32, %v45
  %v48 = vadd.f32 %v33, %v45
  %v49 = vadd.f32 %v34, %v45
  %v50 = vadd.f32 %v35, %v45
  %v51 = vadd.f32 %v36, %v45
  %v52 = vadd.f32 %v37, %v45
  %v53 = vadd.f32 %v38, %v45
  %v54 = vadd.f32 %v39, %v45
  %vm55 = vcmp.ge.f32.partialorder %v47, 0.0
  %vm56 = vcmp.ge.f32.partialorder %v48, 0.0
  %vm57 = vcmp.ge.f32.partialorder %v49, 0.0
  %vm58 = vcmp.ge.f32.partialorder %v50, 0.0
  %vm59 = vcmp.ge.f32.partialorder %v51, 0.0
  %vm60 = vcmp.ge.f32.partialorder %v52, 0.0
  %vm61 = vcmp.ge.f32.partialorder %v53, 0.0
  %vm62 = vcmp.ge.f32.partialorder %v54, 0.0
  %v63 = vld [vmem:[%s3] sm:$0x1]
  %v65 = vlaneseq
  %v66 = vshrl.u32 %v65, 7
  %v67 = vsub.s32 0, %v66
  %v68 = vrot.slane %v63, %v67
  %v70 = vmul.f32 %v68, %v47
  %v71 = vmul.f32 %v68, %v48
  %v72 = vmul.f32 %v68, %v49
  %v73 = vmul.f32 %v68, %v50
  %v74 = vmul.f32 %v68, %v51
  %v75 = vmul.f32 %v68, %v52
  %v76 = vmul.f32 %v68, %v53
  %v77 = vmul.f32 %v68, %v54
  %v78 = vsel %vm55, %v47, %v70
  %v79 = vsel %vm56, %v48, %v71
  %v80 = vsel %vm57, %v49, %v72
  %v81 = vsel %vm58, %v50, %v73
  %v82 = vsel %vm59, %v51, %v74
  %v83 = vsel %vm60, %v52, %v75
  %v84 = vsel %vm61, %v53, %v76
  %v85 = vsel %vm62, %v54, %v77
  %86 = vst [vmem:[%s4] sm:$0xff] %v78
  %87 = vst [vmem:[%s4 + $0x8] sm:$0xff] %v79
  %88 = vst [vmem:[%s4 + $0x10] sm:$0xff] %v80
  %89 = vst [vmem:[%s4 + $0x18] sm:$0xff] %v81
  %90 = vst [vmem:[%s4 + $0x20] sm:$0xff] %v82
  %91 = vst [vmem:[%s4 + $0x28] sm:$0xff] %v83
  %92 = vst [vmem:[%s4 + $0x30] sm:$0xff] %v84
  %93 = vst [vmem:[%s4 + $0x38] sm:$0xff] %v85
  // Predicated region
  $region18: #{net_up_block_di_forward.7} parent=0 // pred_check
    _
  $region19: #{net_up_block_di_forward.7} parent=0 // pred_check_branch
    %95 = sbr.rel (0) target = $region21
  $region20: #{net_up_block_di_forward.7} parent=0 // pred_region
    _
  $region21: #{net_up_block_di_forward.7} parent=0 // pred_fallthru
    _
  // Predicated region
  $region22: #{net_up_block_di_forward.7} parent=0 // pred_check
    _
  $region23: #{net_up_block_di_forward.7} parent=0 // pred_check_branch
    %97 = sbr.rel (0) target = $region25
  $region24: #{net_up_block_di_forward.7} parent=0 // pred_region
    _
  $region25: #{net_up_block_di_forward.7} parent=0 // pred_fallthru
    _

// kernel: net_up_block_di_forward.6
$region0: #{net_up_block_di_forward.6}
  #allocation0 [shape = 'u32[]', space=smem, size = 0x4, offset = 0x4, fixed_abs, tag = 'smem constant byte address 0x4 - core index']
  #allocation1 [shape = 'u32[144,128]{1,0:T(1,128)}', space=vmem, size = 0x12000, scoped, tag = 'internal scratch']
  #allocation2 [shape = 'f32[128,64]{1,0:T(8,128)}', space=vmem, size = 0x10000, scoped, tag = 'scratch operand']
  %s0 = inlined_call_operand.vmem [shape: bf16[128,8], index: 0, kind: input, shape index: {}]
  %s1 = inlined_call_operand.vmem [shape: bf16[8,64], index: 1, kind: input, shape index: {}]
  %s2 = inlined_call_operand.vmem [shape: f32[128,64], index: 2, kind: output, shape index: {0}]
  %s3 = inlined_call_operand.vmem [shape: f32[8,64], index: 3, kind: output, shape index: {1}]
  %s4 = inlined_call_operand.vmem [shape: f32[8,64], index: 4, kind: output, shape index: {2}]
  %5 = xla_tuple %s2, %s3, %s4
  %s6 = sld [smem:[#allocation0]]
  $region42: #{net_up_block_di_forward.6} parent=0
    _
  %s8 = ssub.s32 1, %s6
  %s9 = scalar_select 0, %s8, %s6
  // Predicated region
  $region2: #{net_up_block_di_forward.6} parent=0 // pred_check
    _
  $region3: #{net_up_block_di_forward.6} parent=0 // pred_check_branch
    %11 = sbr.rel (0) target = $region5
  $region4: #{net_up_block_di_forward.6} parent=0 // pred_region
    _
  $region5: #{net_up_block_di_forward.6} parent=0 // pred_fallthru
    _
  // Predicated region
  $region6: #{net_up_block_di_forward.6} parent=0 // pred_check
    _
  $region7: #{net_up_block_di_forward.6} parent=0 // pred_check_branch
    %13 = sbr.rel (0) target = $region9
  $region8: #{net_up_block_di_forward.6} parent=0 // pred_region
    _
  $region9: #{net_up_block_di_forward.6} parent=0 // pred_fallthru
    _
  %p15 = scmp.eq.s32.totalorder 0, 0
  // Predicated region
  $region10: #{net_up_block_di_forward.6} parent=0 // pred_check
    %p16 = pneg %p15
  $region11: #{net_up_block_di_forward.6} parent=0 // pred_check_branch
    %18 = sbr.rel (%p16) target = $region13
  $region12: #{net_up_block_di_forward.6} parent=0 // pred_region
    %vm19 = vcmask 523264
    %20 = vst.msk [vmem:[#allocation2] sm:$0xff] %vm19, 0.0
    %21 = vst.msk [vmem:[#allocation2 + $0x8] sm:$0xff] %vm19, 0.0
    %22 = vst.msk [vmem:[#allocation2 + $0x10] sm:$0xff] %vm19, 0.0
    %23 = vst.msk [vmem:[#allocation2 + $0x18] sm:$0xff] %vm19, 0.0
    %24 = vst.msk [vmem:[#allocation2 + $0x20] sm:$0xff] %vm19, 0.0
    %25 = vst.msk [vmem:[#allocation2 + $0x28] sm:$0xff] %vm19, 0.0
    %26 = vst.msk [vmem:[#allocation2 + $0x30] sm:$0xff] %vm19, 0.0
    %27 = vst.msk [vmem:[#allocation2 + $0x38] sm:$0xff] %vm19, 0.0
    %28 = vst.msk [vmem:[#allocation2 + $0x40] sm:$0xff] %vm19, 0.0
    %29 = vst.msk [vmem:[#allocation2 + $0x48] sm:$0xff] %vm19, 0.0
    %30 = vst.msk [vmem:[#allocation2 + $0x50] sm:$0xff] %vm19, 0.0
    %31 = vst.msk [vmem:[#allocation2 + $0x58] sm:$0xff] %vm19, 0.0
    %32 = vst.msk [vmem:[#allocation2 + $0x60] sm:$0xff] %vm19, 0.0
    %33 = vst.msk [vmem:[#allocation2 + $0x68] sm:$0xff] %vm19, 0.0
    %34 = vst.msk [vmem:[#allocation2 + $0x70] sm:$0xff] %vm19, 0.0
    %35 = vst.msk [vmem:[#allocation2 + $0x78] sm:$0xff] %vm19, 0.0
  $region13: #{net_up_block_di_forward.6} parent=0 // pred_fallthru
    _
  %v36 = vld [vmem:[#allocation2] sm:$0xff]
  %v37 = vld [vmem:[#allocation2 + $0x8] sm:$0xff]
  %v38 = vld [vmem:[#allocation2 + $0x10] sm:$0xff]
  %v39 = vld [vmem:[#allocation2 + $0x18] sm:$0xff]
  %v40 = vld [vmem:[#allocation2 + $0x20] sm:$0xff]
  %v41 = vld [vmem:[#allocation2 + $0x28] sm:$0xff]
  %v42 = vld [vmem:[#allocation2 + $0x30] sm:$0xff]
  %v43 = vld [vmem:[#allocation2 + $0x38] sm:$0xff]
  %v44 = vld [vmem:[#allocation2 + $0x40] sm:$0xff]
  %v45 = vld [vmem:[#allocation2 + $0x48] sm:$0xff]
  %v46 = vld [vmem:[#allocation2 + $0x50] sm:$0xff]
  %v47 = vld [vmem:[#allocation2 + $0x58] sm:$0xff]
  %v48 = vld [vmem:[#allocation2 + $0x60] sm:$0xff]
  %v49 = vld [vmem:[#allocation2 + $0x68] sm:$0xff]
  %v50 = vld [vmem:[#allocation2 + $0x70] sm:$0xff]
  %v51 = vld [vmem:[#allocation2 + $0x78] sm:$0xff]
  %v52 = vld [vmem:[%s0] sm:$0xf]
  %v53 = vld [vmem:[%s0 + $0x4] sm:$0xf]
  %v54 = vld [vmem:[%s0 + $0x8] sm:$0xf]
  %v55 = vld [vmem:[%s0 + $0xc] sm:$0xf]
  %v56 = vld [vmem:[%s0 + $0x10] sm:$0xf]
  %v57 = vld [vmem:[%s0 + $0x14] sm:$0xf]
  %v58 = vld [vmem:[%s0 + $0x18] sm:$0xf]
  %v59 = vld [vmem:[%s0 + $0x1c] sm:$0xf]
  %v60 = vld [vmem:[%s0 + $0x20] sm:$0xf]
  %v61 = vld [vmem:[%s0 + $0x24] sm:$0xf]
  %v62 = vld [vmem:[%s0 + $0x28] sm:$0xf]
  %v63 = vld [vmem:[%s0 + $0x2c] sm:$0xf]
  %v64 = vld [vmem:[%s0 + $0x30] sm:$0xf]
  %v65 = vld [vmem:[%s0 + $0x34] sm:$0xf]
  %v66 = vld [vmem:[%s0 + $0x38] sm:$0xf]
  %v67 = vld [vmem:[%s0 + $0x3c] sm:$0xf]
  %v68 = vld [vmem:[%s1] sm:$0xf]
  %v85 = vunpack.c.l.b16 %v52
  %v86 = vunpack.c.l.b16 %v53
  %v87 = vunpack.c.l.b16 %v54
  %v88 = vunpack.c.l.b16 %v55
  %v89 = vunpack.c.l.b16 %v56
  %v90 = vunpack.c.l.b16 %v57
  %v91 = vunpack.c.l.b16 %v58
  %v92 = vunpack.c.l.b16 %v59
  %v93 = vunpack.c.l.b16 %v60
  %v94 = vunpack.c.l.b16 %v61
  %v95 = vunpack.c.l.b16 %v62
  %v96 = vunpack.c.l.b16 %v63
  %v97 = vunpack.c.l.b16 %v64
  %v98 = vunpack.c.l.b16 %v65
  %v99 = vunpack.c.l.b16 %v66
  %v100 = vunpack.c.l.b16 %v67
  %v101 = vpack.c.b16 %v86, %v85
  %v102 = vpack.c.b16 %v88, %v87
  %v103 = vpack.c.b16 %v90, %v89
  %v104 = vpack.c.b16 %v92, %v91
  %v105 = vpack.c.b16 %v94, %v93
  %v106 = vpack.c.b16 %v96, %v95
  %v107 = vpack.c.b16 %v98, %v97
  %v108 = vpack.c.b16 %v100, %v99
  %vm109 = vcmask 64512
  %v111 = vsel %vm109, %v101, 0
  %v114 = vsel %vm109, %v102, 0
  %v117 = vsel %vm109, %v103, 0
  %v120 = vsel %vm109, %v104, 0
  %v123 = vsel %vm109, %v105, 0
  %v126 = vsel %vm109, %v106, 0
  %v129 = vsel %vm109, %v107, 0
  %v132 = vsel %vm109, %v108, 0
  %vm134 = vcmask 1043456
  %v136 = vsel %vm134, %v68, 0
  %138 = vmatprep.subr.bf16.mxu0 0
  %139 = vmatpush1.bf16.msra.mxu0 %v136
  %140 = vmatprep.subr.bf16.mxu0 0
  %141 = vmatpush1.bf16.msra.mxu0 0
  %142 = vmatprep.subr.bf16.mxu0 0
  %143 = vmatpush1.bf16.msra.mxu0 0
  %144 = vmatprep.subr.bf16.mxu0 0
  %145 = vmatpush1.bf16.msra.mxu0 0
  %146 = vmatprep.subr.bf16.mxu0 0
  %147 = vmatpush1.bf16.msra.mxu0 0
  %148 = vmatprep.subr.bf16.mxu0 0
  %149 = vmatpush1.bf16.msra.mxu0 0
  %150 = vmatprep.subr.bf16.mxu0 0
  %151 = vmatpush1.bf16.msra.mxu0 0
  %152 = vmatprep.subr.bf16.mxu0 0
  %153 = vmatpush1.bf16.msra.mxu0 0
  %154 = vmatprep.subr.bf16.mxu0 0
  %155 = vmatpush1.bf16.msra.mxu0 0
  %156 = vmatprep.subr.bf16.mxu0 0
  %157 = vmatpush1.bf16.msra.mxu0 0
  %158 = vmatprep.subr.bf16.mxu0 0
  %159 = vmatpush1.bf16.msra.mxu0 0
  %160 = vmatprep.subr.bf16.mxu0 0
  %161 = vmatpush1.bf16.msra.mxu0 0
  %162 = vmatprep.subr.bf16.mxu0 0
  %163 = vmatpush1.bf16.msra.mxu0 0
  %164 = vmatprep.subr.bf16.mxu0 0
  %165 = vmatpush1.bf16.msra.mxu0 0
  %166 = vmatprep.subr.bf16.mxu0 0
  %167 = vmatpush1.bf16.msra.mxu0 0
  %168 = vmatprep.subr.bf16.mxu0 0
  %169 = vmatpush1.bf16.msra.mxu0 0
  %170 = vmatprep.mubr.bf16.mxu0 0
  %171 = vmatmul.mubr.bf16.gmra.mrb[0].mxu0 %v111
  %v172 = vpop.f32.mrb[0].mxu0
  %v173 = vadd.f32 0.0, %v172
  %v174 = vpop.f32.mrb[0].mxu0
  %v175 = vpop.f32.mrb[0].mxu0
  %v176 = vadd.f32 0.0, %v175
  %v177 = vpop.f32.mrb[0].mxu0
  %178 = vmatprep.mubr.bf16.mxu0 0
  %179 = vmatmul.mubr.bf16.gmra.mrb[0].mxu0 %v114
  %v180 = vpop.f32.mrb[0].mxu0
  %v181 = vadd.f32 0.0, %v180
  %v182 = vpop.f32.mrb[0].mxu0
  %v183 = vpop.f32.mrb[0].mxu0
  %v184 = vadd.f32 0.0, %v183
  %v185 = vpop.f32.mrb[0].mxu0
  %186 = vmatprep.mubr.bf16.mxu0 0
  %187 = vmatmul.mubr.bf16.gmra.mrb[0].mxu0 %v117
  %v188 = vpop.f32.mrb[0].mxu0
  %v189 = vadd.f32 0.0, %v188
  %v190 = vpop.f32.mrb[0].mxu0
  %v191 = vpop.f32.mrb[0].mxu0
  %v192 = vadd.f32 0.0, %v191
  %v193 = vpop.f32.mrb[0].mxu0
  %194 = vmatprep.mubr.bf16.mxu0 0
  %195 = vmatmul.mubr.bf16.gmra.mrb[0].mxu0 %v120
  %v196 = vpop.f32.mrb[0].mxu0
  %v197 = vadd.f32 0.0, %v196
  %v198 = vpop.f32.mrb[0].mxu0
  %v199 = vpop.f32.mrb[0].mxu0
  %v200 = vadd.f32 0.0, %v199
  %v201 = vpop.f32.mrb[0].mxu0
  %202 = vmatprep.mubr.bf16.mxu0 0
  %203 = vmatmul.mubr.bf16.gmra.mrb[0].mxu0 %v123
  %v204 = vpop.f32.mrb[0].mxu0
  %v205 = vadd.f32 0.0, %v204
  %v206 = vpop.f32.mrb[0].mxu0
  %v207 = vpop.f32.mrb[0].mxu0
  %v208 = vadd.f32 0.0, %v207
  %v209 = vpop.f32.mrb[0].mxu0
  %210 = vmatprep.mubr.bf16.mxu0 0
  %211 = vmatmul.mubr.bf16.gmra.mrb[0].mxu0 %v126
  %v212 = vpop.f32.mrb[0].mxu0
  %v213 = vadd.f32 0.0, %v212
  %v214 = vpop.f32.mrb[0].mxu0
  %v215 = vpop.f32.mrb[0].mxu0
  %v216 = vadd.f32 0.0, %v215
  %v217 = vpop.f32.mrb[0].mxu0
  %218 = vmatprep.mubr.bf16.mxu0 0
  %219 = vmatmul.mubr.bf16.gmra.mrb[0].mxu0 %v129
  %v220 = vpop.f32.mrb[0].mxu0
  %v221 = vadd.f32 0.0, %v220
  %v222 = vpop.f32.mrb[0].mxu0
  %v223 = vpop.f32.mrb[0].mxu0
  %v224 = vadd.f32 0.0, %v223
  %v225 = vpop.f32.mrb[0].mxu0
  %226 = vmatprep.mubr.bf16.mxu0 0
  %227 = vmatmul.mubr.bf16.gmra.mrb[0].mxu0 %v132
  %v228 = vpop.f32.mrb[0].mxu0
  %v229 = vadd.f32 0.0, %v228
  %v230 = vpop.f32.mrb[0].mxu0
  %v231 = vpop.f32.mrb[0].mxu0
  %v232 = vadd.f32 0.0, %v231
  %v233 = vpop.f32.mrb[0].mxu0
  %234 = vdwg.mxu0
  %v235 = vadd.f32 %v36, %v173
  %v236 = vadd.f32 %v37, %v176
  %v237 = vadd.f32 %v38, %v181
  %v238 = vadd.f32 %v39, %v184
  %v239 = vadd.f32 %v40, %v189
  %v240 = vadd.f32 %v41, %v192
  %v241 = vadd.f32 %v42, %v197
  %v242 = vadd.f32 %v43, %v200
  %v243 = vadd.f32 %v44, %v205
  %v244 = vadd.f32 %v45, %v208
  %v245 = vadd.f32 %v46, %v213
  %v246 = vadd.f32 %v47, %v216
  %v247 = vadd.f32 %v48, %v221
  %v248 = vadd.f32 %v49, %v224
  %v249 = vadd.f32 %v50, %v229
  %v250 = vadd.f32 %v51, %v232
  %vm251 = vcmask 523264
  %252 = vst.msk [vmem:[#allocation2] sm:$0xff] %vm251, %v235
  %253 = vst.msk [vmem:[#allocation2 + $0x8] sm:$0xff] %vm251, %v236
  %254 = vst.msk [vmem:[#allocation2 + $0x10] sm:$0xff] %vm251, %v237
  %255 = vst.msk [vmem:[#allocation2 + $0x18] sm:$0xff] %vm251, %v238
  %256 = vst.msk [vmem:[#allocation2 + $0x20] sm:$0xff] %vm251, %v239
  %257 = vst.msk [vmem:[#allocation2 + $0x28] sm:$0xff] %vm251, %v240
  %258 = vst.msk [vmem:[#allocation2 + $0x30] sm:$0xff] %vm251, %v241
  %259 = vst.msk [vmem:[#allocation2 + $0x38] sm:$0xff] %vm251, %v242
  %260 = vst.msk [vmem:[#allocation2 + $0x40] sm:$0xff] %vm251, %v243
  %261 = vst.msk [vmem:[#allocation2 + $0x48] sm:$0xff] %vm251, %v244
  %262 = vst.msk [vmem:[#allocation2 + $0x50] sm:$0xff] %vm251, %v245
  %263 = vst.msk [vmem:[#allocation2 + $0x58] sm:$0xff] %vm251, %v246
  %264 = vst.msk [vmem:[#allocation2 + $0x60] sm:$0xff] %vm251, %v247
  %265 = vst.msk [vmem:[#allocation2 + $0x68] sm:$0xff] %vm251, %v248
  %266 = vst.msk [vmem:[#allocation2 + $0x70] sm:$0xff] %vm251, %v249
  %267 = vst.msk [vmem:[#allocation2 + $0x78] sm:$0xff] %vm251, %v250
  // Predicated region
  $region14: #{net_up_block_di_forward.6} parent=0 // pred_check
    %p268 = pneg %p15
  $region15: #{net_up_block_di_forward.6} parent=0 // pred_check_branch
    %270 = sbr.rel (%p268) target = $region17
  $region16: #{net_up_block_di_forward.6} parent=0 // pred_region
    %v271 = vld [vmem:[#allocation2] sm:$0xff]
    %v272 = vld [vmem:[#allocation2 + $0x8] sm:$0xff]
    %v273 = vld [vmem:[#allocation2 + $0x10] sm:$0xff]
    %v274 = vld [vmem:[#allocation2 + $0x18] sm:$0xff]
    %v275 = vld [vmem:[#allocation2 + $0x20] sm:$0xff]
    %v276 = vld [vmem:[#allocation2 + $0x28] sm:$0xff]
    %v277 = vld [vmem:[#allocation2 + $0x30] sm:$0xff]
    %v278 = vld [vmem:[#allocation2 + $0x38] sm:$0xff]
    %v279 = vld [vmem:[#allocation2 + $0x40] sm:$0xff]
    %v280 = vld [vmem:[#allocation2 + $0x48] sm:$0xff]
    %v281 = vld [vmem:[#allocation2 + $0x50] sm:$0xff]
    %v282 = vld [vmem:[#allocation2 + $0x58] sm:$0xff]
    %v283 = vld [vmem:[#allocation2 + $0x60] sm:$0xff]
    %v284 = vld [vmem:[#allocation2 + $0x68] sm:$0xff]
    %v285 = vld [vmem:[#allocation2 + $0x70] sm:$0xff]
    %v286 = vld [vmem:[#allocation2 + $0x78] sm:$0xff]
    %287 = vst.msk [vmem:[%s2] sm:$0xff] %vm251, %v271
    %288 = vst.msk [vmem:[%s2 + $0x8] sm:$0xff] %vm251, %v272
    %289 = vst.msk [vmem:[%s2 + $0x10] sm:$0xff] %vm251, %v273
    %290 = vst.msk [vmem:[%s2 + $0x18] sm:$0xff] %vm251, %v274
    %291 = vst.msk [vmem:[%s2 + $0x20] sm:$0xff] %vm251, %v275
    %292 = vst.msk [vmem:[%s2 + $0x28] sm:$0xff] %vm251, %v276
    %293 = vst.msk [vmem:[%s2 + $0x30] sm:$0xff] %vm251, %v277
    %294 = vst.msk [vmem:[%s2 + $0x38] sm:$0xff] %vm251, %v278
    %295 = vst.msk [vmem:[%s2 + $0x40] sm:$0xff] %vm251, %v279
    %296 = vst.msk [vmem:[%s2 + $0x48] sm:$0xff] %vm251, %v280
    %297 = vst.msk [vmem:[%s2 + $0x50] sm:$0xff] %vm251, %v281
    %298 = vst.msk [vmem:[%s2 + $0x58] sm:$0xff] %vm251, %v282
    %299 = vst.msk [vmem:[%s2 + $0x60] sm:$0xff] %vm251, %v283
    %300 = vst.msk [vmem:[%s2 + $0x68] sm:$0xff] %vm251, %v284
    %301 = vst.msk [vmem:[%s2 + $0x70] sm:$0xff] %vm251, %v285
    %302 = vst.msk [vmem:[%s2 + $0x78] sm:$0xff] %vm251, %v286
    %v303 = vsel %vm251, %v271, 0.0
    %v304 = vsel %vm251, %v272, 0.0
    %v305 = vadd.f32 %v303, %v304
    %v306 = vsel %vm251, %v273, 0.0
    %v307 = vadd.f32 %v305, %v306
    %v308 = vsel %vm251, %v274, 0.0
    %v309 = vadd.f32 %v307, %v308
    %v310 = vsel %vm251, %v275, 0.0
    %v311 = vadd.f32 %v309, %v310
    %v312 = vsel %vm251, %v276, 0.0
    %v313 = vadd.f32 %v311, %v312
    %v314 = vsel %vm251, %v277, 0.0
    %v315 = vadd.f32 %v313, %v314
    %v316 = vsel %vm251, %v278, 0.0
    %v317 = vadd.f32 %v315, %v316
    %v318 = vsel %vm251, %v279, 0.0
    %v319 = vadd.f32 %v317, %v318
    %v320 = vsel %vm251, %v280, 0.0
    %v321 = vadd.f32 %v319, %v320
    %v322 = vsel %vm251, %v281, 0.0
    %v323 = vadd.f32 %v321, %v322
    %v324 = vsel %vm251, %v282, 0.0
    %v325 = vadd.f32 %v323, %v324
    %v326 = vsel %vm251, %v283, 0.0
    %v327 = vadd.f32 %v325, %v326
    %v328 = vsel %vm251, %v284, 0.0
    %v329 = vadd.f32 %v327, %v328
    %v330 = vsel %vm251, %v285, 0.0
    %v331 = vadd.f32 %v329, %v330
    %v332 = vsel %vm251, %v286, 0.0
    %v333 = vadd.f32 %v331, %v332
    %v334 = vrot.slane %v333, 4
    %v335 = vadd.f32 %v333, %v334
    %v336 = vrot.slane %v335, 2
    %v337 = vadd.f32 %v335, %v336
    %v338 = vrot.slane %v337, 1
    %v339 = vadd.f32 %v337, %v338
    %340 = vst.msk [vmem:[%s3] sm:$0xff] %vm251, %v339
    %v341 = vmul.f32 %v271, %v271
    %v342 = vmul.f32 %v272, %v272
    %v343 = vmul.f32 %v273, %v273
    %v344 = vmul.f32 %v274, %v274
    %v345 = vmul.f32 %v275, %v275
    %v346 = vmul.f32 %v276, %v276
    %v347 = vmul.f32 %v277, %v277
    %v348 = vmul.f32 %v278, %v278
    %v349 = vmul.f32 %v279, %v279
    %v350 = vmul.f32 %v280, %v280
    %v351 = vmul.f32 %v281, %v281
    %v352 = vmul.f32 %v282, %v282
    %v353 = vmul.f32 %v283, %v283
    %v354 = vmul.f32 %v284, %v284
    %v355 = vmul.f32 %v285, %v285
    %v356 = vmul.f32 %v286, %v286
    %v357 = vsel %vm251, %v341, 0.0
    %v358 = vsel %vm251, %v342, 0.0
    %v359 = vadd.f32 %v357, %v358
    %v360 = vsel %vm251, %v343, 0.0
    %v361 = vadd.f32 %v359, %v360
    %v362 = vsel %vm251, %v344, 0.0
    %v363 = vadd.f32 %v361, %v362
    %v364 = vsel %vm251, %v345, 0.0
    %v365 = vadd.f32 %v363, %v364
    %v366 = vsel %vm251, %v346, 0.0
    %v367 = vadd.f32 %v365, %v366
    %v368 = vsel %vm251, %v347, 0.0
    %v369 = vadd.f32 %v367, %v368
    %v370 = vsel %vm251, %v348, 0.0
    %v371 = vadd.f32 %v369, %v370
    %v372 = vsel %vm251, %v349, 0.0
    %v373 = vadd.f32 %v371, %v372
    %v374 = vsel %vm251, %v350, 0.0
    %v375 = vadd.f32 %v373, %v374
    %v376 = vsel %vm251, %v351, 0.0
    %v377 = vadd.f32 %v375, %v376
    %v378 = vsel %vm251, %v352, 0.0
    %v379 = vadd.f32 %v377, %v378
    %v380 = vsel %vm251, %v353, 0.0
    %v381 = vadd.f32 %v379, %v380
    %v382 = vsel %vm251, %v354, 0.0
    %v383 = vadd.f32 %v381, %v382
    %v384 = vsel %vm251, %v355, 0.0
    %v385 = vadd.f32 %v383, %v384
    %v386 = vsel %vm251, %v356, 0.0
    %v387 = vadd.f32 %v385, %v386
    %v388 = vrot.slane %v387, 4
    %v389 = vadd.f32 %v387, %v388
    %v390 = vrot.slane %v389, 2
    %v391 = vadd.f32 %v389, %v390
    %v392 = vrot.slane %v391, 1
    %v393 = vadd.f32 %v391, %v392
    %394 = vst.msk [vmem:[%s4] sm:$0xff] %vm251, %v393
  $region17: #{net_up_block_di_forward.6} parent=0 // pred_fallthru
    _
  // Predicated region
  $region18: #{net_up_block_di_forward.6} parent=0 // pred_check
    _
  $region19: #{net_up_block_di_forward.6} parent=0 // pred_check_branch
    %396 = sbr.rel (0) target = $region21
  $region20: #{net_up_block_di_forward.6} parent=0 // pred_region
    _
  $region21: #{net_up_block_di_forward.6} parent=0 // pred_fallthru
    _
  // Predicated region
  $region22: #{net_up_block_di_forward.6} parent=0 // pred_check
    _
  $region23: #{net_up_block_di_forward.6} parent=0 // pred_check_branch
    %398 = sbr.rel (0) target = $region25
  $region24: #{net_up_block_di_forward.6} parent=0 // pred_region
    _
  $region25: #{net_up_block_di_forward.6} parent=0 // pred_fallthru
    _
  // Predicated region
  $region26: #{net_up_block_di_forward.6} parent=0 // pred_check
    _
  $region27: #{net_up_block_di_forward.6} parent=0 // pred_check_branch
    %400 = sbr.rel (0) target = $region29
  $region28: #{net_up_block_di_forward.6} parent=0 // pred_region
    _
  $region29: #{net_up_block_di_forward.6} parent=0 // pred_fallthru
    _
  // Predicated region
  $region30: #{net_up_block_di_forward.6} parent=0 // pred_check
    _
  $region31: #{net_up_block_di_forward.6} parent=0 // pred_check_branch
    %402 = sbr.rel (0) target = $region33
  $region32: #{net_up_block_di_forward.6} parent=0 // pred_region
    _
  $region33: #{net_up_block_di_forward.6} parent=0 // pred_fallthru
    _
  // Predicated region
  $region34: #{net_up_block_di_forward.6} parent=0 // pred_check
    _
  $region35: #{net_up_block_di_forward.6} parent=0 // pred_check_branch
    %404 = sbr.rel (0) target = $region37
  $region36: #{net_up_block_di_forward.6} parent=0 // pred_region
    _
  $region37: #{net_up_block_di_forward.6} parent=0 // pred_fallthru
    _
  // Predicated region
  $region38: #{net_up_block_di_forward.6} parent=0 // pred_check
    _
  $region39: #{net_up_block_di_forward.6} parent=0 // pred_check_branch
    %406 = sbr.rel (0) target = $region41
  $region40: #{net_up_block_di_forward.6} parent=0 // pred_region
    _
  $region41: #{net_up_block_di_forward.6} parent=0 // pred_fallthru
    _

// kernel: tile.92
$region0: #{tile.92}
  #allocation0 [shape = 's32[1]{0}', space=sflag, size = 0x4, scoped, tag = 'scoped memory for tile.92']
  %s0 = inlined_call_operand.vmem [shape: f32[8], index: 0, kind: input, shape index: {}]
  %s1 = inlined_call_operand.vmem [shape: f32[16,8], index: 1, kind: output, shape index: {}]
  // Predicated region
  $region2: #{tile.92} parent=0 // pred_check
    _
  $region3: #{tile.92} parent=0 // pred_check_branch
    %3 = sbr.rel (0) target = $region5
  $region4: #{tile.92} parent=0 // pred_region
    _
  $region5: #{tile.92} parent=0 // pred_fallthru
    _
  %v4 = vld [vmem:[%s0] ss:$0 sm:$0xff]
  %5 = vst [vmem:[%s1] sm:$0xff] %v4
  %s6 = scalar_lea.vmem %s1, 8
  %7 = vst [vmem:[%s6] sm:$0xff] %v4

// kernel: net_up_block_di_forward.9
$region0: #{net_up_block_di_forward.9}
  #allocation0 [shape = 'u32[]', space=smem, size = 0x4, offset = 0x4, fixed_abs, tag = 'smem constant byte address 0x4 - core index']
  #allocation1 [shape = 'u32[144,128]{1,0:T(1,128)}', space=vmem, size = 0x12000, scoped, tag = 'internal scratch']
  %s0 = inlined_call_operand.vmem [shape: f32[64,128], index: 0, kind: input, shape index: {}]
  %s1 = inlined_call_operand.vmem [shape: f32[1,128], index: 1, kind: input, shape index: {}]
  %s2 = inlined_call_operand.vmem [shape: f32[1,128], index: 2, kind: input, shape index: {}]
  %s3 = inlined_call_operand.vmem [shape: f32[1,128], index: 3, kind: input, shape index: {}]
  %s4 = inlined_call_operand.vmem [shape: bf16[64,128], index: 4, kind: output, shape index: {}]
  %s5 = sld [smem:[#allocation0]]
  $region26: #{net_up_block_di_forward.9} parent=0
    _
  %s7 = ssub.s32 1, %s5
  %s8 = scalar_select 0, %s7, %s5
  // Predicated region
  $region2: #{net_up_block_di_forward.9} parent=0 // pred_check
    _
  $region3: #{net_up_block_di_forward.9} parent=0 // pred_check_branch
    %10 = sbr.rel (0) target = $region5
  $region4: #{net_up_block_di_forward.9} parent=0 // pred_region
    _
  $region5: #{net_up_block_di_forward.9} parent=0 // pred_fallthru
    _
  // Predicated region
  $region6: #{net_up_block_di_forward.9} parent=0 // pred_check
    _
  $region7: #{net_up_block_di_forward.9} parent=0 // pred_check_branch
    %12 = sbr.rel (0) target = $region9
  $region8: #{net_up_block_di_forward.9} parent=0 // pred_region
    _
  $region9: #{net_up_block_di_forward.9} parent=0 // pred_fallthru
    _
  // Predicated region
  $region10: #{net_up_block_di_forward.9} parent=0 // pred_check
    _
  $region11: #{net_up_block_di_forward.9} parent=0 // pred_check_branch
    %14 = sbr.rel (0) target = $region13
  $region12: #{net_up_block_di_forward.9} parent=0 // pred_region
    _
  $region13: #{net_up_block_di_forward.9} parent=0 // pred_fallthru
    _
  // Predicated region
  $region14: #{net_up_block_di_forward.9} parent=0 // pred_check
    _
  $region15: #{net_up_block_di_forward.9} parent=0 // pred_check_branch
    %16 = sbr.rel (0) target = $region17
  $region16: #{net_up_block_di_forward.9} parent=0 // pred_region
    _
  $region17: #{net_up_block_di_forward.9} parent=0 // pred_fallthru
    _
  %v17 = vld [vmem:[%s0] sm:$0xff]
  %v18 = vld [vmem:[%s0 + $0x8] sm:$0xff]
  %v19 = vld [vmem:[%s0 + $0x10] sm:$0xff]
  %v20 = vld [vmem:[%s0 + $0x18] sm:$0xff]
  %v21 = vld [vmem:[%s0 + $0x20] sm:$0xff]
  %v22 = vld [vmem:[%s0 + $0x28] sm:$0xff]
  %v23 = vld [vmem:[%s0 + $0x30] sm:$0xff]
  %v24 = vld [vmem:[%s0 + $0x38] sm:$0xff]
  %v25 = vld [vmem:[%s1] sm:$0x1]
  %v27 = vlaneseq
  %v28 = vshrl.u32 %v27, 7
  %v29 = vsub.s32 0, %v28
  %v30 = vrot.slane %v25, %v29
  %v32 = vmul.f32 %v17, %v30
  %v33 = vmul.f32 %v18, %v30
  %v34 = vmul.f32 %v19, %v30
  %v35 = vmul.f32 %v20, %v30
  %v36 = vmul.f32 %v21, %v30
  %v37 = vmul.f32 %v22, %v30
  %v38 = vmul.f32 %v23, %v30
  %v39 = vmul.f32 %v24, %v30
  %v40 = vld [vmem:[%s2] sm:$0x1]
  %v42 = vlaneseq
  %v43 = vshrl.u32 %v42, 7
  %v44 = vsub.s32 0, %v43
  %v45 = vrot.slane %v40, %v44
  %v47 = vadd.f32 %v32, %v45
  %v48 = vadd.f32 %v33, %v45
  %v49 = vadd.f32 %v34, %v45
  %v50 = vadd.f32 %v35, %v45
  %v51 = vadd.f32 %v36, %v45
  %v52 = vadd.f32 %v37, %v45
  %v53 = vadd.f32 %v38, %v45
  %v54 = vadd.f32 %v39, %v45
  %vm55 = vcmp.ge.f32.partialorder %v47, 0.0
  %vm56 = vcmp.ge.f32.partialorder %v48, 0.0
  %vm57 = vcmp.ge.f32.partialorder %v49, 0.0
  %vm58 = vcmp.ge.f32.partialorder %v50, 0.0
  %vm59 = vcmp.ge.f32.partialorder %v51, 0.0
  %vm60 = vcmp.ge.f32.partialorder %v52, 0.0
  %vm61 = vcmp.ge.f32.partialorder %v53, 0.0
  %vm62 = vcmp.ge.f32.partialorder %v54, 0.0
  %v63 = vld [vmem:[%s3] sm:$0x1]
  %v65 = vlaneseq
  %v66 = vshrl.u32 %v65, 7
  %v67 = vsub.s32 0, %v66
  %v68 = vrot.slane %v63, %v67
  %v70 = vmul.f32 %v68, %v47
  %v71 = vmul.f32 %v68, %v48
  %v72 = vmul.f32 %v68, %v49
  %v73 = vmul.f32 %v68, %v50
  %v74 = vmul.f32 %v68, %v51
  %v75 = vmul.f32 %v68, %v52
  %v76 = vmul.f32 %v68, %v53
  %v77 = vmul.f32 %v68, %v54
  %v78 = vsel %vm55, %v47, %v70
  %v79 = vsel %vm56, %v48, %v71
  %v80 = vsel %vm57, %v49, %v72
  %v81 = vsel %vm58, %v50, %v73
  %v82 = vsel %vm59, %v51, %v74
  %v83 = vsel %vm60, %v52, %v75
  %v84 = vsel %vm61, %v53, %v76
  %v85 = vsel %vm62, %v54, %v77
  %v86 = vpack.c.bf16 %v79, %v78
  %v87 = vpack.c.bf16 %v81, %v80
  %v88 = vpack.c.bf16 %v83, %v82
  %v89 = vpack.c.bf16 %v85, %v84
  %v94 = vunpack.c.l.b16 %v86
  %v95 = vunpack.c.h.b16 %v86
  %v96 = vunpack.c.l.b16 %v87
  %v97 = vunpack.c.h.b16 %v87
  %v98 = vunpack.c.l.b16 %v88
  %v99 = vunpack.c.h.b16 %v88
  %v100 = vunpack.c.l.b16 %v89
  %v101 = vunpack.c.h.b16 %v89
  %v102 = vpack.c.b16 %v94, %v94
  %v103 = vpack.c.b16 %v95, %v95
  %v104 = vpack.c.b16 %v96, %v96
  %v105 = vpack.c.b16 %v97, %v97
  %v106 = vpack.c.b16 %v98, %v98
  %v107 = vpack.c.b16 %v99, %v99
  %v108 = vpack.c.b16 %v100, %v100
  %v109 = vpack.c.b16 %v101, %v101
  %118 = vst [vmem:[%s4] sm:$0xf] %v102
  %119 = vst [vmem:[%s4 + $0x4] sm:$0xf] %v103
  %120 = vst [vmem:[%s4 + $0x8] sm:$0xf] %v104
  %121 = vst [vmem:[%s4 + $0xc] sm:$0xf] %v105
  %122 = vst [vmem:[%s4 + $0x10] sm:$0xf] %v106
  %123 = vst [vmem:[%s4 + $0x14] sm:$0xf] %v107
  %124 = vst [vmem:[%s4 + $0x18] sm:$0xf] %v108
  %125 = vst [vmem:[%s4 + $0x1c] sm:$0xf] %v109
  // Predicated region
  $region18: #{net_up_block_di_forward.9} parent=0 // pred_check
    _
  $region19: #{net_up_block_di_forward.9} parent=0 // pred_check_branch
    %127 = sbr.rel (0) target = $region21
  $region20: #{net_up_block_di_forward.9} parent=0 // pred_region
    _
  $region21: #{net_up_block_di_forward.9} parent=0 // pred_fallthru
    _
  // Predicated region
  $region22: #{net_up_block_di_forward.9} parent=0 // pred_check
    _
  $region23: #{net_up_block_di_forward.9} parent=0 // pred_check_branch
    %129 = sbr.rel (0) target = $region25
  $region24: #{net_up_block_di_forward.9} parent=0 // pred_region
    _
  $region25: #{net_up_block_di_forward.9} parent=0 // pred_fallthru
    _

// kernel: net_up_block_di_forward.8
$region0: #{net_up_block_di_forward.8}
  #allocation0 [shape = 'u32[]', space=smem, size = 0x4, offset = 0x4, fixed_abs, tag = 'smem constant byte address 0x4 - core index']
  #allocation1 [shape = 'u32[144,128]{1,0:T(1,128)}', space=vmem, size = 0x12000, scoped, tag = 'internal scratch']
  #allocation2 [shape = 'f32[1024,8]{1,0:T(8,128)}', space=vmem, size = 0x80000, scoped, tag = 'scratch operand']
  %s0 = inlined_call_operand.vmem [shape: bf16[1024,432], index: 0, kind: input, shape index: {}]
  %s1 = inlined_call_operand.vmem [shape: bf16[432,8], index: 1, kind: input, shape index: {}]
  %s2 = inlined_call_operand.vmem [shape: f32[1024,8], index: 2, kind: output, shape index: {0}]
  %s3 = inlined_call_operand.vmem [shape: f32[8,8], index: 3, kind: output, shape index: {1}]
  %s4 = inlined_call_operand.vmem [shape: f32[8,8], index: 4, kind: output, shape index: {2}]
  %5 = xla_tuple %s2, %s3, %s4
  %s6 = sld [smem:[#allocation0]]
  $region42: #{net_up_block_di_forward.8} parent=0
    _
  %s8 = ssub.s32 1, %s6
  %s9 = scalar_select 0, %s8, %s6
  // Predicated region
  $region2: #{net_up_block_di_forward.8} parent=0 // pred_check
    _
  $region3: #{net_up_block_di_forward.8} parent=0 // pred_check_branch
    %11 = sbr.rel (0) target = $region5
  $region4: #{net_up_block_di_forward.8} parent=0 // pred_region
    _
  $region5: #{net_up_block_di_forward.8} parent=0 // pred_fallthru
    _
  // Predicated region
  $region6: #{net_up_block_di_forward.8} parent=0 // pred_check
    _
  $region7: #{net_up_block_di_forward.8} parent=0 // pred_check_branch
    %13 = sbr.rel (0) target = $region9
  $region8: #{net_up_block_di_forward.8} parent=0 // pred_region
    _
  $region9: #{net_up_block_di_forward.8} parent=0 // pred_fallthru
    _
  %p15 = scmp.eq.s32.totalorder 0, 0
  // Predicated region
  $region10: #{net_up_block_di_forward.8} parent=0 // pred_check
    %p16 = pneg %p15
  $region11: #{net_up_block_di_forward.8} parent=0 // pred_check_branch
    %18 = sbr.rel (%p16) target = $region13
  $region12: #{net_up_block_di_forward.8} parent=0 // pred_region
    %vm19 = vcmask 64512
    %20 = vst.msk [vmem:[#allocation2] sm:$0xff] %vm19, 0.0
    %21 = vst.msk [vmem:[#allocation2 + $0x8] sm:$0xff] %vm19, 0.0
    %22 = vst.msk [vmem:[#allocation2 + $0x10] sm:$0xff] %vm19, 0.0
    %23 = vst.msk [vmem:[#allocation2 + $0x18] sm:$0xff] %vm19, 0.0
    %24 = vst.msk [vmem:[#allocation2 + $0x20] sm:$0xff] %vm19, 0.0
    %25 = vst.msk [vmem:[#allocation2 + $0x28] sm:$0xff] %vm19, 0.0
    %26 = vst.msk [vmem:[#allocation2 + $0x30] sm:$0xff] %vm19, 0.0
    %27 = vst.msk [vmem:[#allocation2 + $0x38] sm:$0xff] %vm19, 0.0
    %28 = vst.msk [vmem:[#allocation2 + $0x40] sm:$0xff] %vm19, 0.0
    %29 = vst.msk [vmem:[#allocation2 + $0x48] sm:$0xff] %vm19, 0.0
    %30 = vst.msk [vmem:[#allocation2 + $0x50] sm:$0xff] %vm19, 0.0
    %31 = vst.msk [vmem:[#allocation2 + $0x58] sm:$0xff] %vm19, 0.0
    %32 = vst.msk [vmem:[#allocation2 + $0x60] sm:$0xff] %vm19, 0.0
    %33 = vst.msk [vmem:[#allocation2 + $0x68] sm:$0xff] %vm19, 0.0
    %34 = vst.msk [vmem:[#allocation2 + $0x70] sm:$0xff] %vm19, 0.0
    %35 = vst.msk [vmem:[#allocation2 + $0x78] sm:$0xff] %vm19, 0.0
    %36 = vst.msk [vmem:[#allocation2 + $0x80] sm:$0xff] %vm19, 0.0
    %37 = vst.msk [vmem:[#allocation2 + $0x88] sm:$0xff] %vm19, 0.0
    %38 = vst.msk [vmem:[#allocation2 + $0x90] sm:$0xff] %vm19, 0.0
    %39 = vst.msk [vmem:[#allocation2 + $0x98] sm:$0xff] %vm19, 0.0
    %40 = vst.msk [vmem:[#allocation2 + $0xa0] sm:$0xff] %vm19, 0.0
    %41 = vst.msk [vmem:[#allocation2 + $0xa8] sm:$0xff] %vm19, 0.0
    %42 = vst.msk [vmem:[#allocation2 + $0xb0] sm:$0xff] %vm19, 0.0
    %43 = vst.msk [vmem:[#allocation2 + $0xb8] sm:$0xff] %vm19, 0.0
    %44 = vst.msk [vmem:[#allocation2 + $0xc0] sm:$0xff] %vm19, 0.0
    %45 = vst.msk [vmem:[#allocation2 + $0xc8] sm:$0xff] %vm19, 0.0
    %46 = vst.msk [vmem:[#allocation2 + $0xd0] sm:$0xff] %vm19, 0.0
    %47 = vst.msk [vmem:[#allocation2 + $0xd8] sm:$0xff] %vm19, 0.0
    %48 = vst.msk [vmem:[#allocation2 + $0xe0] sm:$0xff] %vm19, 0.0
    %49 = vst.msk [vmem:[#allocation2 + $0xe8] sm:$0xff] %vm19, 0.0
    %50 = vst.msk [vmem:[#allocation2 + $0xf0] sm:$0xff] %vm19, 0.0
    %51 = vst.msk [vmem:[#allocation2 + $0xf8] sm:$0xff] %vm19, 0.0
    %52 = vst.msk [vmem:[#allocation2 + $0x100] sm:$0xff] %vm19, 0.0
    %53 = vst.msk [vmem:[#allocation2 + $0x108] sm:$0xff] %vm19, 0.0
    %54 = vst.msk [vmem:[#allocation2 + $0x110] sm:$0xff] %vm19, 0.0
    %55 = vst.msk [vmem:[#allocation2 + $0x118] sm:$0xff] %vm19, 0.0
    %56 = vst.msk [vmem:[#allocation2 + $0x120] sm:$0xff] %vm19, 0.0
    %57 = vst.msk [vmem:[#allocation2 + $0x128] sm:$0xff] %vm19, 0.0
    %58 = vst.msk [vmem:[#allocation2 + $0x130] sm:$0xff] %vm19, 0.0
    %59 = vst.msk [vmem:[#allocation2 + $0x138] sm:$0xff] %vm19, 0.0
    %60 = vst.msk [vmem:[#allocation2 + $0x140] sm:$0xff] %vm19, 0.0
    %61 = vst.msk [vmem:[#allocation2 + $0x148] sm:$0xff] %vm19, 0.0
    %62 = vst.msk [vmem:[#allocation2 + $0x150] sm:$0xff] %vm19, 0.0
    %63 = vst.msk [vmem:[#allocation2 + $0x158] sm:$0xff] %vm19, 0.0
    %64 = vst.msk [vmem:[#allocation2 + $0x160] sm:$0xff] %vm19, 0.0
    %65 = vst.msk [vmem:[#allocation2 + $0x168] sm:$0xff] %vm19, 0.0
    %66 = vst.msk [vmem:[#allocation2 + $0x170] sm:$0xff] %vm19, 0.0
    %67 = vst.msk [vmem:[#allocation2 + $0x178] sm:$0xff] %vm19, 0.0
    %68 = vst.msk [vmem:[#allocation2 + $0x180] sm:$0xff] %vm19, 0.0
    %69 = vst.msk [vmem:[#allocation2 + $0x188] sm:$0xff] %vm19, 0.0
    %70 = vst.msk [vmem:[#allocation2 + $0x190] sm:$0xff] %vm19, 0.0
    %71 = vst.msk [vmem:[#allocation2 + $0x198] sm:$0xff] %vm19, 0.0
    %72 = vst.msk [vmem:[#allocation2 + $0x1a0] sm:$0xff] %vm19, 0.0
    %73 = vst.msk [vmem:[#allocation2 + $0x1a8] sm:$0xff] %vm19, 0.0
    %74 = vst.msk [vmem:[#allocation2 + $0x1b0] sm:$0xff] %vm19, 0.0
    %75 = vst.msk [vmem:[#allocation2 + $0x1b8] sm:$0xff] %vm19, 0.0
    %76 = vst.msk [vmem:[#allocation2 + $0x1c0] sm:$0xff] %vm19, 0.0
    %77 = vst.msk [vmem:[#allocation2 + $0x1c8] sm:$0xff] %vm19, 0.0
    %78 = vst.msk [vmem:[#allocation2 + $0x1d0] sm:$0xff] %vm19, 0.0
    %79 = vst.msk [vmem:[#allocation2 + $0x1d8] sm:$0xff] %vm19, 0.0
    %80 = vst.msk [vmem:[#allocation2 + $0x1e0] sm:$0xff] %vm19, 0.0
    %81 = vst.msk [vmem:[#allocation2 + $0x1e8] sm:$0xff] %vm19, 0.0
    %82 = vst.msk [vmem:[#allocation2 + $0x1f0] sm:$0xff] %vm19, 0.0
    %83 = vst.msk [vmem:[#allocation2 + $0x1f8] sm:$0xff] %vm19, 0.0
    %84 = vst.msk [vmem:[#allocation2 + $0x200] sm:$0xff] %vm19, 0.0
    %85 = vst.msk [vmem:[#allocation2 + $0x208] sm:$0xff] %vm19, 0.0
    %86 = vst.msk [vmem:[#allocation2 + $0x210] sm:$0xff] %vm19, 0.0
    %87 = vst.msk [vmem:[#allocation2 + $0x218] sm:$0xff] %vm19, 0.0
    %88 = vst.msk [vmem:[#allocation2 + $0x220] sm:$0xff] %vm19, 0.0
    %89 = vst.msk [vmem:[#allocation2 + $0x228] sm:$0xff] %vm19, 0.0
    %90 = vst.msk [vmem:[#allocation2 + $0x230] sm:$0xff] %vm19, 0.0
    %91 = vst.msk [vmem:[#allocation2 + $0x238] sm:$0xff] %vm19, 0.0
    %92 = vst.msk [vmem:[#allocation2 + $0x240] sm:$0xff] %vm19, 0.0
    %93 = vst.msk [vmem:[#allocation2 + $0x248] sm:$0xff] %vm19, 0.0
    %94 = vst.msk [vmem:[#allocation2 + $0x250] sm:$0xff] %vm19, 0.0
    %95 = vst.msk [vmem:[#allocation2 + $0x258] sm:$0xff] %vm19, 0.0
    %96 = vst.msk [vmem:[#allocation2 + $0x260] sm:$0xff] %vm19, 0.0
    %97 = vst.msk [vmem:[#allocation2 + $0x268] sm:$0xff] %vm19, 0.0
    %98 = vst.msk [vmem:[#allocation2 + $0x270] sm:$0xff] %vm19, 0.0
    %99 = vst.msk [vmem:[#allocation2 + $0x278] sm:$0xff] %vm19, 0.0
    %100 = vst.msk [vmem:[#allocation2 + $0x280] sm:$0xff] %vm19, 0.0
    %101 = vst.msk [vmem:[#allocation2 + $0x288] sm:$0xff] %vm19, 0.0
    %102 = vst.msk [vmem:[#allocation2 + $0x290] sm:$0xff] %vm19, 0.0
    %103 = vst.msk [vmem:[#allocation2 + $0x298] sm:$0xff] %vm19, 0.0
    %104 = vst.msk [vmem:[#allocation2 + $0x2a0] sm:$0xff] %vm19, 0.0
    %105 = vst.msk [vmem:[#allocation2 + $0x2a8] sm:$0xff] %vm19, 0.0
    %106 = vst.msk [vmem:[#allocation2 + $0x2b0] sm:$0xff] %vm19, 0.0
    %107 = vst.msk [vmem:[#allocation2 + $0x2b8] sm:$0xff] %vm19, 0.0
    %108 = vst.msk [vmem:[#allocation2 + $0x2c0] sm:$0xff] %vm19, 0.0
    %109 = vst.msk [vmem:[#allocation2 + $0x2c8] sm:$0xff] %vm19, 0.0
    %110 = vst.msk [vmem:[#allocation2 + $0x2d0] sm:$0xff] %vm19, 0.0
    %111 = vst.msk [vmem:[#allocation2 + $0x2d8] sm:$0xff] %vm19, 0.0
    %112 = vst.msk [vmem:[#allocation2 + $0x2e0] sm:$0xff] %vm19, 0.0
    %113 = vst.msk [vmem:[#allocation2 + $0x2e8] sm:$0xff] %vm19, 0.0
    %114 = vst.msk [vmem:[#allocation2 + $0x2f0] sm:$0xff] %vm19, 0.0
    %115 = vst.msk [vmem:[#allocation2 + $0x2f8] sm:$0xff] %vm19, 0.0
    %116 = vst.msk [vmem:[#allocation2 + $0x300] sm:$0xff] %vm19, 0.0
    %117 = vst.msk [vmem:[#allocation2 + $0x308] sm:$0xff] %vm19, 0.0
    %118 = vst.msk [vmem:[#allocation2 + $0x310] sm:$0xff] %vm19, 0.0
    %119 = vst.msk [vmem:[#allocation2 + $0x318] sm:$0xff] %vm19, 0.0
    %120 = vst.msk [vmem:[#allocation2 + $0x320] sm:$0xff] %vm19, 0.0
    %121 = vst.msk [vmem:[#allocation2 + $0x328] sm:$0xff] %vm19, 0.0
    %122 = vst.msk [vmem:[#allocation2 + $0x330] sm:$0xff] %vm19, 0.0
    %123 = vst.msk [vmem:[#allocation2 + $0x338] sm:$0xff] %vm19, 0.0
    %124 = vst.msk [vmem:[#allocation2 + $0x340] sm:$0xff] %vm19, 0.0
    %125 = vst.msk [vmem:[#allocation2 + $0x348] sm:$0xff] %vm19, 0.0
    %126 = vst.msk [vmem:[#allocation2 + $0x350] sm:$0xff] %vm19, 0.0
    %127 = vst.msk [vmem:[#allocation2 + $0x358] sm:$0xff] %vm19, 0.0
    %128 = vst.msk [vmem:[#allocation2 + $0x360] sm:$0xff] %vm19, 0.0
    %129 = vst.msk [vmem:[#allocation2 + $0x368] sm:$0xff] %vm19, 0.0
    %130 = vst.msk [vmem:[#allocation2 + $0x370] sm:$0xff] %vm19, 0.0
    %131 = vst.msk [vmem:[#allocation2 + $0x378] sm:$0xff] %vm19, 0.0
    %132 = vst.msk [vmem:[#allocation2 + $0x380] sm:$0xff] %vm19, 0.0
    %133 = vst.msk [vmem:[#allocation2 + $0x388] sm:$0xff] %vm19, 0.0
    %134 = vst.msk [vmem:[#allocation2 + $0x390] sm:$0xff] %vm19, 0.0
    %135 = vst.msk [vmem:[#allocation2 + $0x398] sm:$0xff] %vm19, 0.0
    %136 = vst.msk [vmem:[#allocation2 + $0x3a0] sm:$0xff] %vm19, 0.0
    %137 = vst.msk [vmem:[#allocation2 + $0x3a8] sm:$0xff] %vm19, 0.0
    %138 = vst.msk [vmem:[#allocation2 + $0x3b0] sm:$0xff] %vm19, 0.0
    %139 = vst.msk [vmem:[#allocation2 + $0x3b8] sm:$0xff] %vm19, 0.0
    %140 = vst.msk [vmem:[#allocation2 + $0x3c0] sm:$0xff] %vm19, 0.0
    %141 = vst.msk [vmem:[#allocation2 + $0x3c8] sm:$0xff] %vm19, 0.0
    %142 = vst.msk [vmem:[#allocation2 + $0x3d0] sm:$0xff] %vm19, 0.0
    %143 = vst.msk [vmem:[#allocation2 + $0x3d8] sm:$0xff] %vm19, 0.0
    %144 = vst.msk [vmem:[#allocation2 + $0x3e0] sm:$0xff] %vm19, 0.0
    %145 = vst.msk [vmem:[#allocation2 + $0x3e8] sm:$0xff] %vm19, 0.0
    %146 = vst.msk [vmem:[#allocation2 + $0x3f0] sm:$0xff] %vm19, 0.0
    %147 = vst.msk [vmem:[#allocation2 + $0x3f8] sm:$0xff] %vm19, 0.0
  $region13: #{net_up_block_di_forward.8} parent=0 // pred_fallthru
    _
  %v148 = vld [vmem:[#allocation2] sm:$0xff]
  %v149 = vld [vmem:[#allocation2 + $0x8] sm:$0xff]
  %v150 = vld [vmem:[#allocation2 + $0x10] sm:$0xff]
  %v151 = vld [vmem:[#allocation2 + $0x18] sm:$0xff]
  %v152 = vld [vmem:[#allocation2 + $0x20] sm:$0xff]
  %v153 = vld [vmem:[#allocation2 + $0x28] sm:$0xff]
  %v154 = vld [vmem:[#allocation2 + $0x30] sm:$0xff]
  %v155 = vld [vmem:[#allocation2 + $0x38] sm:$0xff]
  %v156 = vld [vmem:[#allocation2 + $0x40] sm:$0xff]
  %v157 = vld [vmem:[#allocation2 + $0x48] sm:$0xff]
  %v158 = vld [vmem:[#allocation2 + $0x50] sm:$0xff]
  %v159 = vld [vmem:[#allocation2 + $0x58] sm:$0xff]
  %v160 = vld [vmem:[#allocation2 + $0x60] sm:$0xff]
  %v161 = vld [vmem:[#allocation2 + $0x68] sm:$0xff]
  %v162 = vld [vmem:[#allocation2 + $0x70] sm:$0xff]
  %v163 = vld [vmem:[#allocation2 + $0x78] sm:$0xff]
  %v164 = vld [vmem:[#allocation2 + $0x80] sm:$0xff]
  %v165 = vld [vmem:[#allocation2 + $0x88] sm:$0xff]
  %v166 = vld [vmem:[#allocation2 + $0x90] sm:$0xff]
  %v167 = vld [vmem:[#allocation2 + $0x98] sm:$0xff]
  %v168 = vld [vmem:[#allocation2 + $0xa0] sm:$0xff]
  %v169 = vld [vmem:[#allocation2 + $0xa8] sm:$0xff]
  %v170 = vld [vmem:[#allocation2 + $0xb0] sm:$0xff]
  %v171 = vld [vmem:[#allocation2 + $0xb8] sm:$0xff]
  %v172 = vld [vmem:[#allocation2 + $0xc0] sm:$0xff]
  %v173 = vld [vmem:[#allocation2 + $0xc8] sm:$0xff]
  %v174 = vld [vmem:[#allocation2 + $0xd0] sm:$0xff]
  %v175 = vld [vmem:[#allocation2 + $0xd8] sm:$0xff]
  %v176 = vld [vmem:[#allocation2 + $0xe0] sm:$0xff]
  %v177 = vld [vmem:[#allocation2 + $0xe8] sm:$0xff]
  %v178 = vld [vmem:[#allocation2 + $0xf0] sm:$0xff]
  %v179 = vld [vmem:[#allocation2 + $0xf8] sm:$0xff]
  %v180 = vld [vmem:[#allocation2 + $0x100] sm:$0xff]
  %v181 = vld [vmem:[#allocation2 + $0x108] sm:$0xff]
  %v182 = vld [vmem:[#allocation2 + $0x110] sm:$0xff]
  %v183 = vld [vmem:[#allocation2 + $0x118] sm:$0xff]
  %v184 = vld [vmem:[#allocation2 + $0x120] sm:$0xff]
  %v185 = vld [vmem:[#allocation2 + $0x128] sm:$0xff]
  %v186 = vld [vmem:[#allocation2 + $0x130] sm:$0xff]
  %v187 = vld [vmem:[#allocation2 + $0x138] sm:$0xff]
  %v188 = vld [vmem:[#allocation2 + $0x140] sm:$0xff]
  %v189 = vld [vmem:[#allocation2 + $0x148] sm:$0xff]
  %v190 = vld [vmem:[#allocation2 + $0x150] sm:$0xff]
  %v191 = vld [vmem:[#allocation2 + $0x158] sm:$0xff]
  %v192 = vld [vmem:[#allocation2 + $0x160] sm:$0xff]
  %v193 = vld [vmem:[#allocation2 + $0x168] sm:$0xff]
  %v194 = vld [vmem:[#allocation2 + $0x170] sm:$0xff]
  %v195 = vld [vmem:[#allocation2 + $0x178] sm:$0xff]
  %v196 = vld [vmem:[#allocation2 + $0x180] sm:$0xff]
  %v197 = vld [vmem:[#allocation2 + $0x188] sm:$0xff]
  %v198 = vld [vmem:[#allocation2 + $0x190] sm:$0xff]
  %v199 = vld [vmem:[#allocation2 + $0x198] sm:$0xff]
  %v200 = vld [vmem:[#allocation2 + $0x1a0] sm:$0xff]
  %v201 = vld [vmem:[#allocation2 + $0x1a8] sm:$0xff]
  %v202 = vld [vmem:[#allocation2 + $0x1b0] sm:$0xff]
  %v203 = vld [vmem:[#allocation2 + $0x1b8] sm:$0xff]
  %v204 = vld [vmem:[#allocation2 + $0x1c0] sm:$0xff]
  %v205 = vld [vmem:[#allocation2 + $0x1c8] sm:$0xff]
  %v206 = vld [vmem:[#allocation2 + $0x1d0] sm:$0xff]
  %v207 = vld [vmem:[#allocation2 + $0x1d8] sm:$0xff]
  %v208 = vld [vmem:[#allocation2 + $0x1e0] sm:$0xff]
  %v209 = vld [vmem:[#allocation2 + $0x1e8] sm:$0xff]
  %v210 = vld [vmem:[#allocation2 + $0x1f0] sm:$0xff]
  %v211 = vld [vmem:[#allocation2 + $0x1f8] sm:$0xff]
  %v212 = vld [vmem:[#allocation2 + $0x200] sm:$0xff]
  %v213 = vld [vmem:[#allocation2 + $0x208] sm:$0xff]
  %v214 = vld [vmem:[#allocation2 + $0x210] sm:$0xff]
  %v215 = vld [vmem:[#allocation2 + $0x218] sm:$0xff]
  %v216 = vld [vmem:[#allocation2 + $0x220] sm:$0xff]
  %v217 = vld [vmem:[#allocation2 + $0x228] sm:$0xff]
  %v218 = vld [vmem:[#allocation2 + $0x230] sm:$0xff]
  %v219 = vld [vmem:[#allocation2 + $0x238] sm:$0xff]
  %v220 = vld [vmem:[#allocation2 + $0x240] sm:$0xff]
  %v221 = vld [vmem:[#allocation2 + $0x248] sm:$0xff]
  %v222 = vld [vmem:[#allocation2 + $0x250] sm:$0xff]
  %v223 = vld [vmem:[#allocation2 + $0x258] sm:$0xff]
  %v224 = vld [vmem:[#allocation2 + $0x260] sm:$0xff]
  %v225 = vld [vmem:[#allocation2 + $0x268] sm:$0xff]
  %v226 = vld [vmem:[#allocation2 + $0x270] sm:$0xff]
  %v227 = vld [vmem:[#allocation2 + $0x278] sm:$0xff]
  %v228 = vld [vmem:[#allocation2 + $0x280] sm:$0xff]
  %v229 = vld [vmem:[#allocation2 + $0x288] sm:$0xff]
  %v230 = vld [vmem:[#allocation2 + $0x290] sm:$0xff]
  %v231 = vld [vmem:[#allocation2 + $0x298] sm:$0xff]
  %v232 = vld [vmem:[#allocation2 + $0x2a0] sm:$0xff]
  %v233 = vld [vmem:[#allocation2 + $0x2a8] sm:$0xff]
  %v234 = vld [vmem:[#allocation2 + $0x2b0] sm:$0xff]
  %v235 = vld [vmem:[#allocation2 + $0x2b8] sm:$0xff]
  %v236 = vld [vmem:[#allocation2 + $0x2c0] sm:$0xff]
  %v237 = vld [vmem:[#allocation2 + $0x2c8] sm:$0xff]
  %v238 = vld [vmem:[#allocation2 + $0x2d0] sm:$0xff]
  %v239 = vld [vmem:[#allocation2 + $0x2d8] sm:$0xff]
  %v240 = vld [vmem:[#allocation2 + $0x2e0] sm:$0xff]
  %v241 = vld [vmem:[#allocation2 + $0x2e8] sm:$0xff]
  %v242 = vld [vmem:[#allocation2 + $0x2f0] sm:$0xff]
  %v243 = vld [vmem:[#allocation2 + $0x2f8] sm:$0xff]
  %v244 = vld [vmem:[#allocation2 + $0x300] sm:$0xff]
  %v245 = vld [vmem:[#allocation2 + $0x308] sm:$0xff]
  %v246 = vld [vmem:[#allocation2 + $0x310] sm:$0xff]
  %v247 = vld [vmem:[#allocation2 + $0x318] sm:$0xff]
  %v248 = vld [vmem:[#allocation2 + $0x320] sm:$0xff]
  %v249 = vld [vmem:[#allocation2 + $0x328] sm:$0xff]
  %v250 = vld [vmem:[#allocation2 + $0x330] sm:$0xff]
  %v251 = vld [vmem:[#allocation2 + $0x338] sm:$0xff]
  %v252 = vld [vmem:[#allocation2 + $0x340] sm:$0xff]
  %v253 = vld [vmem:[#allocation2 + $0x348] sm:$0xff]
  %v254 = vld [vmem:[#allocation2 + $0x350] sm:$0xff]
  %v255 = vld [vmem:[#allocation2 + $0x358] sm:$0xff]
  %v256 = vld [vmem:[#allocation2 + $0x360] sm:$0xff]
  %v257 = vld [vmem:[#allocation2 + $0x368] sm:$0xff]
  %v258 = vld [vmem:[#allocation2 + $0x370] sm:$0xff]
  %v259 = vld [vmem:[#allocation2 + $0x378] sm:$0xff]
  %v260 = vld [vmem:[#allocation2 + $0x380] sm:$0xff]
  %v261 = vld [vmem:[#allocation2 + $0x388] sm:$0xff]
  %v262 = vld [vmem:[#allocation2 + $0x390] sm:$0xff]
  %v263 = vld [vmem:[#allocation2 + $0x398] sm:$0xff]
  %v264 = vld [vmem:[#allocation2 + $0x3a0] sm:$0xff]
  %v265 = vld [vmem:[#allocation2 + $0x3a8] sm:$0xff]
  %v266 = vld [vmem:[#allocation2 + $0x3b0] sm:$0xff]
  %v267 = vld [vmem:[#allocation2 + $0x3b8] sm:$0xff]
  %v268 = vld [vmem:[#allocation2 + $0x3c0] sm:$0xff]
  %v269 = vld [vmem:[#allocation2 + $0x3c8] sm:$0xff]
  %v270 = vld [vmem:[#allocation2 + $0x3d0] sm:$0xff]
  %v271 = vld [vmem:[#allocation2 + $0x3d8] sm:$0xff]
  %v272 = vld [vmem:[#allocation2 + $0x3e0] sm:$0xff]
  %v273 = vld [vmem:[#allocation2 + $0x3e8] sm:$0xff]
  %v274 = vld [vmem:[#allocation2 + $0x3f0] sm:$0xff]
  %v275 = vld [vmem:[#allocation2 + $0x3f8] sm:$0xff]
  %v276 = vld [vmem:[%s0] sm:$0xff]
  %v277 = vld [vmem:[%s0 + $0x8] sm:$0xff]
  %v278 = vld [vmem:[%s0 + $0x10] sm:$0xff]
  %v279 = vld [vmem:[%s0 + $0x18] sm:$0xff]
  %v280 = vld [vmem:[%s0 + $0x20] sm:$0xff]
  %v281 = vld [vmem:[%s0 + $0x28] sm:$0xff]
  %v282 = vld [vmem:[%s0 + $0x30] sm:$0xff]
  %v283 = vld [vmem:[%s0 + $0x38] sm:$0xff]
  %v284 = vld [vmem:[%s0 + $0x40] sm:$0xff]
  %v285 = vld [vmem:[%s0 + $0x48] sm:$0xff]
  %v286 = vld [vmem:[%s0 + $0x50] sm:$0xff]
  %v287 = vld [vmem:[%s0 + $0x58] sm:$0xff]
  %v288 = vld [vmem:[%s0 + $0x60] sm:$0xff]
  %v289 = vld [vmem:[%s0 + $0x68] sm:$0xff]
  %v290 = vld [vmem:[%s0 + $0x70] sm:$0xff]
  %v291 = vld [vmem:[%s0 + $0x78] sm:$0xff]
  %v292 = vld [vmem:[%s0 + $0x80] sm:$0xff]
  %v293 = vld [vmem:[%s0 + $0x88] sm:$0xff]
  %v294 = vld [vmem:[%s0 + $0x90] sm:$0xff]
  %v295 = vld [vmem:[%s0 + $0x98] sm:$0xff]
  %v296 = vld [vmem:[%s0 + $0xa0] sm:$0xff]
  %v297 = vld [vmem:[%s0 + $0xa8] sm:$0xff]
  %v298 = vld [vmem:[%s0 + $0xb0] sm:$0xff]
  %v299 = vld [vmem:[%s0 + $0xb8] sm:$0xff]
  %v300 = vld [vmem:[%s0 + $0xc0] sm:$0xff]
  %v301 = vld [vmem:[%s0 + $0xc8] sm:$0xff]
  %v302 = vld [vmem:[%s0 + $0xd0] sm:$0xff]
  %v303 = vld [vmem:[%s0 + $0xd8] sm:$0xff]
  %v304 = vld [vmem:[%s0 + $0xe0] sm:$0xff]
  %v305 = vld [vmem:[%s0 + $0xe8] sm:$0xff]
  %v306 = vld [vmem:[%s0 + $0xf0] sm:$0xff]
  %v307 = vld [vmem:[%s0 + $0xf8] sm:$0xff]
  %v308 = vld [vmem:[%s0 + $0x100] sm:$0xff]
  %v309 = vld [vmem:[%s0 + $0x108] sm:$0xff]
  %v310 = vld [vmem:[%s0 + $0x110] sm:$0xff]
  %v311 = vld [vmem:[%s0 + $0x118] sm:$0xff]
  %v312 = vld [vmem:[%s0 + $0x120] sm:$0xff]
  %v313 = vld [vmem:[%s0 + $0x128] sm:$0xff]
  %v314 = vld [vmem:[%s0 + $0x130] sm:$0xff]
  %v315 = vld [vmem:[%s0 + $0x138] sm:$0xff]
  %v316 = vld [vmem:[%s0 + $0x140] sm:$0xff]
  %v317 = vld [vmem:[%s0 + $0x148] sm:$0xff]
  %v318 = vld [vmem:[%s0 + $0x150] sm:$0xff]
  %v319 = vld [vmem:[%s0 + $0x158] sm:$0xff]
  %v320 = vld [vmem:[%s0 + $0x160] sm:$0xff]
  %v321 = vld [vmem:[%s0 + $0x168] sm:$0xff]
  %v322 = vld [vmem:[%s0 + $0x170] sm:$0xff]
  %v323 = vld [vmem:[%s0 + $0x178] sm:$0xff]
  %v324 = vld [vmem:[%s0 + $0x180] sm:$0xff]
  %v325 = vld [vmem:[%s0 + $0x188] sm:$0xff]
  %v326 = vld [vmem:[%s0 + $0x190] sm:$0xff]
  %v327 = vld [vmem:[%s0 + $0x198] sm:$0xff]
  %v328 = vld [vmem:[%s0 + $0x1a0] sm:$0xff]
  %v329 = vld [vmem:[%s0 + $0x1a8] sm:$0xff]
  %v330 = vld [vmem:[%s0 + $0x1b0] sm:$0xff]
  %v331 = vld [vmem:[%s0 + $0x1b8] sm:$0xff]
  %v332 = vld [vmem:[%s0 + $0x1c0] sm:$0xff]
  %v333 = vld [vmem:[%s0 + $0x1c8] sm:$0xff]
  %v334 = vld [vmem:[%s0 + $0x1d0] sm:$0xff]
  %v335 = vld [vmem:[%s0 + $0x1d8] sm:$0xff]
  %v336 = vld [vmem:[%s0 + $0x1e0] sm:$0xff]
  %v337 = vld [vmem:[%s0 + $0x1e8] sm:$0xff]
  %v338 = vld [vmem:[%s0 + $0x1f0] sm:$0xff]
  %v339 = vld [vmem:[%s0 + $0x1f8] sm:$0xff]
  %v340 = vld [vmem:[%s0 + $0x200] sm:$0xff]
  %v341 = vld [vmem:[%s0 + $0x208] sm:$0xff]
  %v342 = vld [vmem:[%s0 + $0x210] sm:$0xff]
  %v343 = vld [vmem:[%s0 + $0x218] sm:$0xff]
  %v344 = vld [vmem:[%s0 + $0x220] sm:$0xff]
  %v345 = vld [vmem:[%s0 + $0x228] sm:$0xff]
  %v346 = vld [vmem:[%s0 + $0x230] sm:$0xff]
  %v347 = vld [vmem:[%s0 + $0x238] sm:$0xff]
  %v348 = vld [vmem:[%s0 + $0x240] sm:$0xff]
  %v349 = vld [vmem:[%s0 + $0x248] sm:$0xff]
  %v350 = vld [vmem:[%s0 + $0x250] sm:$0xff]
  %v351 = vld [vmem:[%s0 + $0x258] sm:$0xff]
  %v352 = vld [vmem:[%s0 + $0x260] sm:$0xff]
  %v353 = vld [vmem:[%s0 + $0x268] sm:$0xff]
  %v354 = vld [vmem:[%s0 + $0x270] sm:$0xff]
  %v355 = vld [vmem:[%s0 + $0x278] sm:$0xff]
  %v356 = vld [vmem:[%s0 + $0x280] sm:$0xff]
  %v357 = vld [vmem:[%s0 + $0x288] sm:$0xff]
  %v358 = vld [vmem:[%s0 + $0x290] sm:$0xff]
  %v359 = vld [vmem:[%s0 + $0x298] sm:$0xff]
  %v360 = vld [vmem:[%s0 + $0x2a0] sm:$0xff]
  %v361 = vld [vmem:[%s0 + $0x2a8] sm:$0xff]
  %v362 = vld [vmem:[%s0 + $0x2b0] sm:$0xff]
  %v363 = vld [vmem:[%s0 + $0x2b8] sm:$0xff]
  %v364 = vld [vmem:[%s0 + $0x2c0] sm:$0xff]
  %v365 = vld [vmem:[%s0 + $0x2c8] sm:$0xff]
  %v366 = vld [vmem:[%s0 + $0x2d0] sm:$0xff]
  %v367 = vld [vmem:[%s0 + $0x2d8] sm:$0xff]
  %v368 = vld [vmem:[%s0 + $0x2e0] sm:$0xff]
  %v369 = vld [vmem:[%s0 + $0x2e8] sm:$0xff]
  %v370 = vld [vmem:[%s0 + $0x2f0] sm:$0xff]
  %v371 = vld [vmem:[%s0 + $0x2f8] sm:$0xff]
  %v372 = vld [vmem:[%s0 + $0x300] sm:$0xff]
  %v373 = vld [vmem:[%s0 + $0x308] sm:$0xff]
  %v374 = vld [vmem:[%s0 + $0x310] sm:$0xff]
  %v375 = vld [vmem:[%s0 + $0x318] sm:$0xff]
  %v376 = vld [vmem:[%s0 + $0x320] sm:$0xff]
  %v377 = vld [vmem:[%s0 + $0x328] sm:$0xff]
  %v378 = vld [vmem:[%s0 + $0x330] sm:$0xff]
  %v379 = vld [vmem:[%s0 + $0x338] sm:$0xff]
  %v380 = vld [vmem:[%s0 + $0x340] sm:$0xff]
  %v381 = vld [vmem:[%s0 + $0x348] sm:$0xff]
  %v382 = vld [vmem:[%s0 + $0x350] sm:$0xff]
  %v383 = vld [vmem:[%s0 + $0x358] sm:$0xff]
  %v384 = vld [vmem:[%s0 + $0x360] sm:$0xff]
  %v385 = vld [vmem:[%s0 + $0x368] sm:$0xff]
  %v386 = vld [vmem:[%s0 + $0x370] sm:$0xff]
  %v387 = vld [vmem:[%s0 + $0x378] sm:$0xff]
  %v388 = vld [vmem:[%s0 + $0x380] sm:$0xff]
  %v389 = vld [vmem:[%s0 + $0x388] sm:$0xff]
  %v390 = vld [vmem:[%s0 + $0x390] sm:$0xff]
  %v391 = vld [vmem:[%s0 + $0x398] sm:$0xff]
  %v392 = vld [vmem:[%s0 + $0x3a0] sm:$0xff]
  %v393 = vld [vmem:[%s0 + $0x3a8] sm:$0xff]
  %v394 = vld [vmem:[%s0 + $0x3b0] sm:$0xff]
  %v395 = vld [vmem:[%s0 + $0x3b8] sm:$0xff]
  %v396 = vld [vmem:[%s0 + $0x3c0] sm:$0xff]
  %v397 = vld [vmem:[%s0 + $0x3c8] sm:$0xff]
  %v398 = vld [vmem:[%s0 + $0x3d0] sm:$0xff]
  %v399 = vld [vmem:[%s0 + $0x3d8] sm:$0xff]
  %v400 = vld [vmem:[%s0 + $0x3e0] sm:$0xff]
  %v401 = vld [vmem:[%s0 + $0x3e8] sm:$0xff]
  %v402 = vld [vmem:[%s0 + $0x3f0] sm:$0xff]
  %v403 = vld [vmem:[%s0 + $0x3f8] sm:$0xff]
  %v404 = vld [vmem:[%s0 + $0x400] sm:$0xff]
  %v405 = vld [vmem:[%s0 + $0x408] sm:$0xff]
  %v406 = vld [vmem:[%s0 + $0x410] sm:$0xff]
  %v407 = vld [vmem:[%s0 + $0x418] sm:$0xff]
  %v408 = vld [vmem:[%s0 + $0x420] sm:$0xff]
  %v409 = vld [vmem:[%s0 + $0x428] sm:$0xff]
  %v410 = vld [vmem:[%s0 + $0x430] sm:$0xff]
  %v411 = vld [vmem:[%s0 + $0x438] sm:$0xff]
  %v412 = vld [vmem:[%s0 + $0x440] sm:$0xff]
  %v413 = vld [vmem:[%s0 + $0x448] sm:$0xff]
  %v414 = vld [vmem:[%s0 + $0x450] sm:$0xff]
  %v415 = vld [vmem:[%s0 + $0x458] sm:$0xff]
  %v416 = vld [vmem:[%s0 + $0x460] sm:$0xff]
  %v417 = vld [vmem:[%s0 + $0x468] sm:$0xff]
  %v418 = vld [vmem:[%s0 + $0x470] sm:$0xff]
  %v419 = vld [vmem:[%s0 + $0x478] sm:$0xff]
  %v420 = vld [vmem:[%s0 + $0x480] sm:$0xff]
  %v421 = vld [vmem:[%s0 + $0x488] sm:$0xff]
  %v422 = vld [vmem:[%s0 + $0x490] sm:$0xff]
  %v423 = vld [vmem:[%s0 + $0x498] sm:$0xff]
  %v424 = vld [vmem:[%s0 + $0x4a0] sm:$0xff]
  %v425 = vld [vmem:[%s0 + $0x4a8] sm:$0xff]
  %v426 = vld [vmem:[%s0 + $0x4b0] sm:$0xff]
  %v427 = vld [vmem:[%s0 + $0x4b8] sm:$0xff]
  %v428 = vld [vmem:[%s0 + $0x4c0] sm:$0xff]
  %v429 = vld [vmem:[%s0 + $0x4c8] sm:$0xff]
  %v430 = vld [vmem:[%s0 + $0x4d0] sm:$0xff]
  %v431 = vld [vmem:[%s0 + $0x4d8] sm:$0xff]
  %v432 = vld [vmem:[%s0 + $0x4e0] sm:$0xff]
  %v433 = vld [vmem:[%s0 + $0x4e8] sm:$0xff]
  %v434 = vld [vmem:[%s0 + $0x4f0] sm:$0xff]
  %v435 = vld [vmem:[%s0 + $0x4f8] sm:$0xff]
  %v436 = vld [vmem:[%s0 + $0x500] sm:$0xff]
  %v437 = vld [vmem:[%s0 + $0x508] sm:$0xff]
  %v438 = vld [vmem:[%s0 + $0x510] sm:$0xff]
  %v439 = vld [vmem:[%s0 + $0x518] sm:$0xff]
  %v440 = vld [vmem:[%s0 + $0x520] sm:$0xff]
  %v441 = vld [vmem:[%s0 + $0x528] sm:$0xff]
  %v442 = vld [vmem:[%s0 + $0x530] sm:$0xff]
  %v443 = vld [vmem:[%s0 + $0x538] sm:$0xff]
  %v444 = vld [vmem:[%s0 + $0x540] sm:$0xff]
  %v445 = vld [vmem:[%s0 + $0x548] sm:$0xff]
  %v446 = vld [vmem:[%s0 + $0x550] sm:$0xff]
  %v447 = vld [vmem:[%s0 + $0x558] sm:$0xff]
  %v448 = vld [vmem:[%s0 + $0x560] sm:$0xff]
  %v449 = vld [vmem:[%s0 + $0x568] sm:$0xff]
  %v450 = vld [vmem:[%s0 + $0x570] sm:$0xff]
  %v451 = vld [vmem:[%s0 + $0x578] sm:$0xff]
  %v452 = vld [vmem:[%s0 + $0x580] sm:$0xff]
  %v453 = vld [vmem:[%s0 + $0x588] sm:$0xff]
  %v454 = vld [vmem:[%s0 + $0x590] sm:$0xff]
  %v455 = vld [vmem:[%s0 + $0x598] sm:$0xff]
  %v456 = vld [vmem:[%s0 + $0x5a0] sm:$0xff]
  %v457 = vld [vmem:[%s0 + $0x5a8] sm:$0xff]
  %v458 = vld [vmem:[%s0 + $0x5b0] sm:$0xff]
  %v459 = vld [vmem:[%s0 + $0x5b8] sm:$0xff]
  %v460 = vld [vmem:[%s0 + $0x5c0] sm:$0xff]
  %v461 = vld [vmem:[%s0 + $0x5c8] sm:$0xff]
  %v462 = vld [vmem:[%s0 + $0x5d0] sm:$0xff]
  %v463 = vld [vmem:[%s0 + $0x5d8] sm:$0xff]
  %v464 = vld [vmem:[%s0 + $0x5e0] sm:$0xff]
  %v465 = vld [vmem:[%s0 + $0x5e8] sm:$0xff]
  %v466 = vld [vmem:[%s0 + $0x5f0] sm:$0xff]
  %v467 = vld [vmem:[%s0 + $0x5f8] sm:$0xff]
  %v468 = vld [vmem:[%s0 + $0x600] sm:$0xff]
  %v469 = vld [vmem:[%s0 + $0x608] sm:$0xff]
  %v470 = vld [vmem:[%s0 + $0x610] sm:$0xff]
  %v471 = vld [vmem:[%s0 + $0x618] sm:$0xff]
  %v472 = vld [vmem:[%s0 + $0x620] sm:$0xff]
  %v473 = vld [vmem:[%s0 + $0x628] sm:$0xff]
  %v474 = vld [vmem:[%s0 + $0x630] sm:$0xff]
  %v475 = vld [vmem:[%s0 + $0x638] sm:$0xff]
  %v476 = vld [vmem:[%s0 + $0x640] sm:$0xff]
  %v477 = vld [vmem:[%s0 + $0x648] sm:$0xff]
  %v478 = vld [vmem:[%s0 + $0x650] sm:$0xff]
  %v479 = vld [vmem:[%s0 + $0x658] sm:$0xff]
  %v480 = vld [vmem:[%s0 + $0x660] sm:$0xff]
  %v481 = vld [vmem:[%s0 + $0x668] sm:$0xff]
  %v482 = vld [vmem:[%s0 + $0x670] sm:$0xff]
  %v483 = vld [vmem:[%s0 + $0x678] sm:$0xff]
  %v484 = vld [vmem:[%s0 + $0x680] sm:$0xff]
  %v485 = vld [vmem:[%s0 + $0x688] sm:$0xff]
  %v486 = vld [vmem:[%s0 + $0x690] sm:$0xff]
  %v487 = vld [vmem:[%s0 + $0x698] sm:$0xff]
  %v488 = vld [vmem:[%s0 + $0x6a0] sm:$0xff]
  %v489 = vld [vmem:[%s0 + $0x6a8] sm:$0xff]
  %v490 = vld [vmem:[%s0 + $0x6b0] sm:$0xff]
  %v491 = vld [vmem:[%s0 + $0x6b8] sm:$0xff]
  %v492 = vld [vmem:[%s0 + $0x6c0] sm:$0xff]
  %v493 = vld [vmem:[%s0 + $0x6c8] sm:$0xff]
  %v494 = vld [vmem:[%s0 + $0x6d0] sm:$0xff]
  %v495 = vld [vmem:[%s0 + $0x6d8] sm:$0xff]
  %v496 = vld [vmem:[%s0 + $0x6e0] sm:$0xff]
  %v497 = vld [vmem:[%s0 + $0x6e8] sm:$0xff]
  %v498 = vld [vmem:[%s0 + $0x6f0] sm:$0xff]
  %v499 = vld [vmem:[%s0 + $0x6f8] sm:$0xff]
  %v500 = vld [vmem:[%s0 + $0x700] sm:$0xff]
  %v501 = vld [vmem:[%s0 + $0x708] sm:$0xff]
  %v502 = vld [vmem:[%s0 + $0x710] sm:$0xff]
  %v503 = vld [vmem:[%s0 + $0x718] sm:$0xff]
  %v504 = vld [vmem:[%s0 + $0x720] sm:$0xff]
  %v505 = vld [vmem:[%s0 + $0x728] sm:$0xff]
  %v506 = vld [vmem:[%s0 + $0x730] sm:$0xff]
  %v507 = vld [vmem:[%s0 + $0x738] sm:$0xff]
  %v508 = vld [vmem:[%s0 + $0x740] sm:$0xff]
  %v509 = vld [vmem:[%s0 + $0x748] sm:$0xff]
  %v510 = vld [vmem:[%s0 + $0x750] sm:$0xff]
  %v511 = vld [vmem:[%s0 + $0x758] sm:$0xff]
  %v512 = vld [vmem:[%s0 + $0x760] sm:$0xff]
  %v513 = vld [vmem:[%s0 + $0x768] sm:$0xff]
  %v514 = vld [vmem:[%s0 + $0x770] sm:$0xff]
  %v515 = vld [vmem:[%s0 + $0x778] sm:$0xff]
  %v516 = vld [vmem:[%s0 + $0x780] sm:$0xff]
  %v517 = vld [vmem:[%s0 + $0x788] sm:$0xff]
  %v518 = vld [vmem:[%s0 + $0x790] sm:$0xff]
  %v519 = vld [vmem:[%s0 + $0x798] sm:$0xff]
  %v520 = vld [vmem:[%s0 + $0x7a0] sm:$0xff]
  %v521 = vld [vmem:[%s0 + $0x7a8] sm:$0xff]
  %v522 = vld [vmem:[%s0 + $0x7b0] sm:$0xff]
  %v523 = vld [vmem:[%s0 + $0x7b8] sm:$0xff]
  %v524 = vld [vmem:[%s0 + $0x7c0] sm:$0xff]
  %v525 = vld [vmem:[%s0 + $0x7c8] sm:$0xff]
  %v526 = vld [vmem:[%s0 + $0x7d0] sm:$0xff]
  %v527 = vld [vmem:[%s0 + $0x7d8] sm:$0xff]
  %v528 = vld [vmem:[%s0 + $0x7e0] sm:$0xff]
  %v529 = vld [vmem:[%s0 + $0x7e8] sm:$0xff]
  %v530 = vld [vmem:[%s0 + $0x7f0] sm:$0xff]
  %v531 = vld [vmem:[%s0 + $0x7f8] sm:$0xff]
  %v532 = vld [vmem:[%s1] sm:$0xf]
  %v533 = vld [vmem:[%s1 + $0x4] sm:$0xf]
  %v534 = vld [vmem:[%s1 + $0x8] sm:$0xf]
  %v535 = vld [vmem:[%s1 + $0xc] sm:$0xf]
  %v536 = vld [vmem:[%s1 + $0x10] sm:$0xf]
  %v537 = vld [vmem:[%s1 + $0x14] sm:$0xf]
  %v538 = vld [vmem:[%s1 + $0x18] sm:$0xf]
  %v539 = vld [vmem:[%s1 + $0x1c] sm:$0xf]
  %v540 = vld [vmem:[%s1 + $0x20] sm:$0xf]
  %v541 = vld [vmem:[%s1 + $0x24] sm:$0xf]
  %v542 = vld [vmem:[%s1 + $0x28] sm:$0xf]
  %v543 = vld [vmem:[%s1 + $0x2c] sm:$0xf]
  %v544 = vld [vmem:[%s1 + $0x30] sm:$0xf]
  %v545 = vld [vmem:[%s1 + $0x34] sm:$0xf]
  %v546 = vld [vmem:[%s1 + $0x38] sm:$0xf]
  %v547 = vld [vmem:[%s1 + $0x3c] sm:$0xf]
  %v548 = vld [vmem:[%s1 + $0x40] sm:$0xf]
  %v549 = vld [vmem:[%s1 + $0x44] sm:$0xf]
  %v550 = vld [vmem:[%s1 + $0x48] sm:$0xf]
  %v551 = vld [vmem:[%s1 + $0x4c] sm:$0xf]
  %v552 = vld [vmem:[%s1 + $0x50] sm:$0xf]
  %v553 = vld [vmem:[%s1 + $0x54] sm:$0xf]
  %v554 = vld [vmem:[%s1 + $0x58] sm:$0xf]
  %v555 = vld [vmem:[%s1 + $0x5c] sm:$0xf]
  %v556 = vld [vmem:[%s1 + $0x60] sm:$0xf]
  %v557 = vld [vmem:[%s1 + $0x64] sm:$0xf]
  %v558 = vld [vmem:[%s1 + $0x68] sm:$0xf]
  %v559 = vld [vmem:[%s1 + $0x6c] sm:$0xf]
  %v560 = vld [vmem:[%s1 + $0x70] sm:$0xf]
  %v561 = vld [vmem:[%s1 + $0x74] sm:$0xf]
  %v562 = vld [vmem:[%s1 + $0x78] sm:$0xf]
  %v563 = vld [vmem:[%s1 + $0x7c] sm:$0xf]
  %v564 = vld [vmem:[%s1 + $0x80] sm:$0xf]
  %v565 = vld [vmem:[%s1 + $0x84] sm:$0xf]
  %v566 = vld [vmem:[%s1 + $0x88] sm:$0xf]
  %v567 = vld [vmem:[%s1 + $0x8c] sm:$0xf]
  %v568 = vld [vmem:[%s1 + $0x90] sm:$0xf]
  %v569 = vld [vmem:[%s1 + $0x94] sm:$0xf]
  %v570 = vld [vmem:[%s1 + $0x98] sm:$0xf]
  %v571 = vld [vmem:[%s1 + $0x9c] sm:$0xf]
  %v572 = vld [vmem:[%s1 + $0xa0] sm:$0xf]
  %v573 = vld [vmem:[%s1 + $0xa4] sm:$0xf]
  %v574 = vld [vmem:[%s1 + $0xa8] sm:$0xf]
  %v575 = vld [vmem:[%s1 + $0xac] sm:$0xf]
  %v576 = vld [vmem:[%s1 + $0xb0] sm:$0xf]
  %v577 = vld [vmem:[%s1 + $0xb4] sm:$0xf]
  %v578 = vld [vmem:[%s1 + $0xb8] sm:$0xf]
  %v579 = vld [vmem:[%s1 + $0xbc] sm:$0xf]
  %v580 = vld [vmem:[%s1 + $0xc0] sm:$0xf]
  %v581 = vld [vmem:[%s1 + $0xc4] sm:$0xf]
  %v582 = vld [vmem:[%s1 + $0xc8] sm:$0xf]
  %v583 = vld [vmem:[%s1 + $0xcc] sm:$0xf]
  %v584 = vld [vmem:[%s1 + $0xd0] sm:$0xf]
  %v585 = vld [vmem:[%s1 + $0xd4] sm:$0xf]
  %v842 = vunpack.c.l.b16 %v276
  %v843 = vunpack.c.h.b16 %v276
  %v844 = vunpack.c.l.b16 %v277
  %v845 = vunpack.c.h.b16 %v277
  %v846 = vunpack.c.l.b16 %v278
  %v847 = vunpack.c.h.b16 %v278
  %v848 = vunpack.c.l.b16 %v279
  %v849 = vunpack.c.h.b16 %v279
  %v850 = vunpack.c.l.b16 %v280
  %v851 = vunpack.c.h.b16 %v280
  %v852 = vunpack.c.l.b16 %v281
  %v853 = vunpack.c.h.b16 %v281
  %v854 = vunpack.c.l.b16 %v282
  %v855 = vunpack.c.h.b16 %v282
  %v856 = vunpack.c.l.b16 %v283
  %v857 = vunpack.c.h.b16 %v283
  %v858 = vunpack.c.l.b16 %v284
  %v859 = vunpack.c.h.b16 %v284
  %v860 = vunpack.c.l.b16 %v285
  %v861 = vunpack.c.h.b16 %v285
  %v862 = vunpack.c.l.b16 %v286
  %v863 = vunpack.c.h.b16 %v286
  %v864 = vunpack.c.l.b16 %v287
  %v865 = vunpack.c.h.b16 %v287
  %v866 = vunpack.c.l.b16 %v288
  %v867 = vunpack.c.h.b16 %v288
  %v868 = vunpack.c.l.b16 %v289
  %v869 = vunpack.c.h.b16 %v289
  %v870 = vunpack.c.l.b16 %v290
  %v871 = vunpack.c.h.b16 %v290
  %v872 = vunpack.c.l.b16 %v291
  %v873 = vunpack.c.h.b16 %v291
  %v874 = vunpack.c.l.b16 %v292
  %v875 = vunpack.c.h.b16 %v292
  %v876 = vunpack.c.l.b16 %v293
  %v877 = vunpack.c.h.b16 %v293
  %v878 = vunpack.c.l.b16 %v294
  %v879 = vunpack.c.h.b16 %v294
  %v880 = vunpack.c.l.b16 %v295
  %v881 = vunpack.c.h.b16 %v295
  %v882 = vunpack.c.l.b16 %v296
  %v883 = vunpack.c.h.b16 %v296
  %v884 = vunpack.c.l.b16 %v297
  %v885 = vunpack.c.h.b16 %v297
  %v886 = vunpack.c.l.b16 %v298
  %v887 = vunpack.c.h.b16 %v298
  %v888 = vunpack.c.l.b16 %v299
  %v889 = vunpack.c.h.b16 %v299
  %v890 = vunpack.c.l.b16 %v300
  %v891 = vunpack.c.h.b16 %v300
  %v892 = vunpack.c.l.b16 %v301
  %v893 = vunpack.c.h.b16 %v301
  %v894 = vunpack.c.l.b16 %v302
  %v895 = vunpack.c.h.b16 %v302
  %v896 = vunpack.c.l.b16 %v303
  %v897 = vunpack.c.h.b16 %v303
  %v898 = vunpack.c.l.b16 %v304
  %v899 = vunpack.c.h.b16 %v304
  %v900 = vunpack.c.l.b16 %v305
  %v901 = vunpack.c.h.b16 %v305
  %v902 = vunpack.c.l.b16 %v306
  %v903 = vunpack.c.h.b16 %v306
  %v904 = vunpack.c.l.b16 %v307
  %v905 = vunpack.c.h.b16 %v307
  %v906 = vunpack.c.l.b16 %v308
  %v907 = vunpack.c.h.b16 %v308
  %v908 = vunpack.c.l.b16 %v309
  %v909 = vunpack.c.h.b16 %v309
  %v910 = vunpack.c.l.b16 %v310
  %v911 = vunpack.c.h.b16 %v310
  %v912 = vunpack.c.l.b16 %v311
  %v913 = vunpack.c.h.b16 %v311
  %v914 = vunpack.c.l.b16 %v312
  %v915 = vunpack.c.h.b16 %v312
  %v916 = vunpack.c.l.b16 %v313
  %v917 = vunpack.c.h.b16 %v313
  %v918 = vunpack.c.l.b16 %v314
  %v919 = vunpack.c.h.b16 %v314
  %v920 = vunpack.c.l.b16 %v315
  %v921 = vunpack.c.h.b16 %v315
  %v922 = vunpack.c.l.b16 %v316
  %v923 = vunpack.c.h.b16 %v316
  %v924 = vunpack.c.l.b16 %v317
  %v925 = vunpack.c.h.b16 %v317
  %v926 = vunpack.c.l.b16 %v318
  %v927 = vunpack.c.h.b16 %v318
  %v928 = vunpack.c.l.b16 %v319
  %v929 = vunpack.c.h.b16 %v319
  %v930 = vunpack.c.l.b16 %v320
  %v931 = vunpack.c.h.b16 %v320
  %v932 = vunpack.c.l.b16 %v321
  %v933 = vunpack.c.h.b16 %v321
  %v934 = vunpack.c.l.b16 %v322
  %v935 = vunpack.c.h.b16 %v322
  %v936 = vunpack.c.l.b16 %v323
  %v937 = vunpack.c.h.b16 %v323
  %v938 = vunpack.c.l.b16 %v324
  %v939 = vunpack.c.h.b16 %v324
  %v940 = vunpack.c.l.b16 %v325
  %v941 = vunpack.c.h.b16 %v325
  %v942 = vunpack.c.l.b16 %v326
  %v943 = vunpack.c.h.b16 %v326
  %v944 = vunpack.c.l.b16 %v327
  %v945 = vunpack.c.h.b16 %v327
  %v946 = vunpack.c.l.b16 %v328
  %v947 = vunpack.c.h.b16 %v328
  %v948 = vunpack.c.l.b16 %v329
  %v949 = vunpack.c.h.b16 %v329
  %v950 = vunpack.c.l.b16 %v330
  %v951 = vunpack.c.h.b16 %v330
  %v952 = vunpack.c.l.b16 %v331
  %v953 = vunpack.c.h.b16 %v331
  %v954 = vunpack.c.l.b16 %v332
  %v955 = vunpack.c.h.b16 %v332
  %v956 = vunpack.c.l.b16 %v333
  %v957 = vunpack.c.h.b16 %v333
  %v958 = vunpack.c.l.b16 %v334
  %v959 = vunpack.c.h.b16 %v334
  %v960 = vunpack.c.l.b16 %v335
  %v961 = vunpack.c.h.b16 %v335
  %v962 = vunpack.c.l.b16 %v336
  %v963 = vunpack.c.h.b16 %v336
  %v964 = vunpack.c.l.b16 %v337
  %v965 = vunpack.c.h.b16 %v337
  %v966 = vunpack.c.l.b16 %v338
  %v967 = vunpack.c.h.b16 %v338
  %v968 = vunpack.c.l.b16 %v339
  %v969 = vunpack.c.h.b16 %v339
  %v970 = vunpack.c.l.b16 %v340
  %v971 = vunpack.c.h.b16 %v340
  %v972 = vunpack.c.l.b16 %v341
  %v973 = vunpack.c.h.b16 %v341
  %v974 = vunpack.c.l.b16 %v342
  %v975 = vunpack.c.h.b16 %v342
  %v976 = vunpack.c.l.b16 %v343
  %v977 = vunpack.c.h.b16 %v343
  %v978 = vunpack.c.l.b16 %v344
  %v979 = vunpack.c.h.b16 %v344
  %v980 = vunpack.c.l.b16 %v345
  %v981 = vunpack.c.h.b16 %v345
  %v982 = vunpack.c.l.b16 %v346
  %v983 = vunpack.c.h.b16 %v346
  %v984 = vunpack.c.l.b16 %v347
  %v985 = vunpack.c.h.b16 %v347
  %v986 = vunpack.c.l.b16 %v348
  %v987 = vunpack.c.h.b16 %v348
  %v988 = vunpack.c.l.b16 %v349
  %v989 = vunpack.c.h.b16 %v349
  %v990 = vunpack.c.l.b16 %v350
  %v991 = vunpack.c.h.b16 %v350
  %v992 = vunpack.c.l.b16 %v351
  %v993 = vunpack.c.h.b16 %v351
  %v994 = vunpack.c.l.b16 %v352
  %v995 = vunpack.c.h.b16 %v352
  %v996 = vunpack.c.l.b16 %v353
  %v997 = vunpack.c.h.b16 %v353
  %v998 = vunpack.c.l.b16 %v354
  %v999 = vunpack.c.h.b16 %v354
  %v1000 = vunpack.c.l.b16 %v355
  %v1001 = vunpack.c.h.b16 %v355
  %v1002 = vunpack.c.l.b16 %v356
  %v1003 = vunpack.c.h.b16 %v356
  %v1004 = vunpack.c.l.b16 %v357
  %v1005 = vunpack.c.h.b16 %v357
  %v1006 = vunpack.c.l.b16 %v358
  %v1007 = vunpack.c.h.b16 %v358
  %v1008 = vunpack.c.l.b16 %v359
  %v1009 = vunpack.c.h.b16 %v359
  %v1010 = vunpack.c.l.b16 %v360
  %v1011 = vunpack.c.h.b16 %v360
  %v1012 = vunpack.c.l.b16 %v361
  %v1013 = vunpack.c.h.b16 %v361
  %v1014 = vunpack.c.l.b16 %v362
  %v1015 = vunpack.c.h.b16 %v362
  %v1016 = vunpack.c.l.b16 %v363
  %v1017 = vunpack.c.h.b16 %v363
  %v1018 = vunpack.c.l.b16 %v364
  %v1019 = vunpack.c.h.b16 %v364
  %v1020 = vunpack.c.l.b16 %v365
  %v1021 = vunpack.c.h.b16 %v365
  %v1022 = vunpack.c.l.b16 %v366
  %v1023 = vunpack.c.h.b16 %v366
  %v1024 = vunpack.c.l.b16 %v367
  %v1025 = vunpack.c.h.b16 %v367
  %v1026 = vunpack.c.l.b16 %v368
  %v1027 = vunpack.c.h.b16 %v368
  %v1028 = vunpack.c.l.b16 %v369
  %v1029 = vunpack.c.h.b16 %v369
  %v1030 = vunpack.c.l.b16 %v370
  %v1031 = vunpack.c.h.b16 %v370
  %v1032 = vunpack.c.l.b16 %v371
  %v1033 = vunpack.c.h.b16 %v371
  %v1034 = vunpack.c.l.b16 %v372
  %v1035 = vunpack.c.h.b16 %v372
  %v1036 = vunpack.c.l.b16 %v373
  %v1037 = vunpack.c.h.b16 %v373
  %v1038 = vunpack.c.l.b16 %v374
  %v1039 = vunpack.c.h.b16 %v374
  %v1040 = vunpack.c.l.b16 %v375
  %v1041 = vunpack.c.h.b16 %v375
  %v1042 = vunpack.c.l.b16 %v376
  %v1043 = vunpack.c.h.b16 %v376
  %v1044 = vunpack.c.l.b16 %v377
  %v1045 = vunpack.c.h.b16 %v377
  %v1046 = vunpack.c.l.b16 %v378
  %v1047 = vunpack.c.h.b16 %v378
  %v1048 = vunpack.c.l.b16 %v379
  %v1049 = vunpack.c.h.b16 %v379
  %v1050 = vunpack.c.l.b16 %v380
  %v1051 = vunpack.c.h.b16 %v380
  %v1052 = vunpack.c.l.b16 %v381
  %v1053 = vunpack.c.h.b16 %v381
  %v1054 = vunpack.c.l.b16 %v382
  %v1055 = vunpack.c.h.b16 %v382
  %v1056 = vunpack.c.l.b16 %v383
  %v1057 = vunpack.c.h.b16 %v383
  %v1058 = vunpack.c.l.b16 %v384
  %v1059 = vunpack.c.h.b16 %v384
  %v1060 = vunpack.c.l.b16 %v385
  %v1061 = vunpack.c.h.b16 %v385
  %v1062 = vunpack.c.l.b16 %v386
  %v1063 = vunpack.c.h.b16 %v386
  %v1064 = vunpack.c.l.b16 %v387
  %v1065 = vunpack.c.h.b16 %v387
  %v1066 = vunpack.c.l.b16 %v388
  %v1067 = vunpack.c.h.b16 %v388
  %v1068 = vunpack.c.l.b16 %v389
  %v1069 = vunpack.c.h.b16 %v389
  %v1070 = vunpack.c.l.b16 %v390
  %v1071 = vunpack.c.h.b16 %v390
  %v1072 = vunpack.c.l.b16 %v391
  %v1073 = vunpack.c.h.b16 %v391
  %v1074 = vunpack.c.l.b16 %v392
  %v1075 = vunpack.c.h.b16 %v392
  %v1076 = vunpack.c.l.b16 %v393
  %v1077 = vunpack.c.h.b16 %v393
  %v1078 = vunpack.c.l.b16 %v394
  %v1079 = vunpack.c.h.b16 %v394
  %v1080 = vunpack.c.l.b16 %v395
  %v1081 = vunpack.c.h.b16 %v395
  %v1082 = vunpack.c.l.b16 %v396
  %v1083 = vunpack.c.h.b16 %v396
  %v1084 = vunpack.c.l.b16 %v397
  %v1085 = vunpack.c.h.b16 %v397
  %v1086 = vunpack.c.l.b16 %v398
  %v1087 = vunpack.c.h.b16 %v398
  %v1088 = vunpack.c.l.b16 %v399
  %v1089 = vunpack.c.h.b16 %v399
  %v1090 = vunpack.c.l.b16 %v400
  %v1091 = vunpack.c.h.b16 %v400
  %v1092 = vunpack.c.l.b16 %v401
  %v1093 = vunpack.c.h.b16 %v401
  %v1094 = vunpack.c.l.b16 %v402
  %v1095 = vunpack.c.h.b16 %v402
  %v1096 = vunpack.c.l.b16 %v403
  %v1097 = vunpack.c.h.b16 %v403
  %v1098 = vunpack.c.l.b16 %v404
  %v1099 = vunpack.c.h.b16 %v404
  %v1100 = vunpack.c.l.b16 %v405
  %v1101 = vunpack.c.h.b16 %v405
  %v1102 = vunpack.c.l.b16 %v406
  %v1103 = vunpack.c.h.b16 %v406
  %v1104 = vunpack.c.l.b16 %v407
  %v1105 = vunpack.c.h.b16 %v407
  %v1106 = vunpack.c.l.b16 %v408
  %v1107 = vunpack.c.h.b16 %v408
  %v1108 = vunpack.c.l.b16 %v409
  %v1109 = vunpack.c.h.b16 %v409
  %v1110 = vunpack.c.l.b16 %v410
  %v1111 = vunpack.c.h.b16 %v410
  %v1112 = vunpack.c.l.b16 %v411
  %v1113 = vunpack.c.h.b16 %v411
  %v1114 = vunpack.c.l.b16 %v412
  %v1115 = vunpack.c.h.b16 %v412
  %v1116 = vunpack.c.l.b16 %v413
  %v1117 = vunpack.c.h.b16 %v413
  %v1118 = vunpack.c.l.b16 %v414
  %v1119 = vunpack.c.h.b16 %v414
  %v1120 = vunpack.c.l.b16 %v415
  %v1121 = vunpack.c.h.b16 %v415
  %v1122 = vunpack.c.l.b16 %v416
  %v1123 = vunpack.c.h.b16 %v416
  %v1124 = vunpack.c.l.b16 %v417
  %v1125 = vunpack.c.h.b16 %v417
  %v1126 = vunpack.c.l.b16 %v418
  %v1127 = vunpack.c.h.b16 %v418
  %v1128 = vunpack.c.l.b16 %v419
  %v1129 = vunpack.c.h.b16 %v419
  %v1130 = vunpack.c.l.b16 %v420
  %v1131 = vunpack.c.h.b16 %v420
  %v1132 = vunpack.c.l.b16 %v421
  %v1133 = vunpack.c.h.b16 %v421
  %v1134 = vunpack.c.l.b16 %v422
  %v1135 = vunpack.c.h.b16 %v422
  %v1136 = vunpack.c.l.b16 %v423
  %v1137 = vunpack.c.h.b16 %v423
  %v1138 = vunpack.c.l.b16 %v424
  %v1139 = vunpack.c.h.b16 %v424
  %v1140 = vunpack.c.l.b16 %v425
  %v1141 = vunpack.c.h.b16 %v425
  %v1142 = vunpack.c.l.b16 %v426
  %v1143 = vunpack.c.h.b16 %v426
  %v1144 = vunpack.c.l.b16 %v427
  %v1145 = vunpack.c.h.b16 %v427
  %v1146 = vunpack.c.l.b16 %v428
  %v1147 = vunpack.c.h.b16 %v428
  %v1148 = vunpack.c.l.b16 %v429
  %v1149 = vunpack.c.h.b16 %v429
  %v1150 = vunpack.c.l.b16 %v430
  %v1151 = vunpack.c.h.b16 %v430
  %v1152 = vunpack.c.l.b16 %v431
  %v1153 = vunpack.c.h.b16 %v431
  %v1154 = vunpack.c.l.b16 %v432
  %v1155 = vunpack.c.h.b16 %v432
  %v1156 = vunpack.c.l.b16 %v433
  %v1157 = vunpack.c.h.b16 %v433
  %v1158 = vunpack.c.l.b16 %v434
  %v1159 = vunpack.c.h.b16 %v434
  %v1160 = vunpack.c.l.b16 %v435
  %v1161 = vunpack.c.h.b16 %v435
  %v1162 = vunpack.c.l.b16 %v436
  %v1163 = vunpack.c.h.b16 %v436
  %v1164 = vunpack.c.l.b16 %v437
  %v1165 = vunpack.c.h.b16 %v437
  %v1166 = vunpack.c.l.b16 %v438
  %v1167 = vunpack.c.h.b16 %v438
  %v1168 = vunpack.c.l.b16 %v439
  %v1169 = vunpack.c.h.b16 %v439
  %v1170 = vunpack.c.l.b16 %v440
  %v1171 = vunpack.c.h.b16 %v440
  %v1172 = vunpack.c.l.b16 %v441
  %v1173 = vunpack.c.h.b16 %v441
  %v1174 = vunpack.c.l.b16 %v442
  %v1175 = vunpack.c.h.b16 %v442
  %v1176 = vunpack.c.l.b16 %v443
  %v1177 = vunpack.c.h.b16 %v443
  %v1178 = vunpack.c.l.b16 %v444
  %v1179 = vunpack.c.h.b16 %v444
  %v1180 = vunpack.c.l.b16 %v445
  %v1181 = vunpack.c.h.b16 %v445
  %v1182 = vunpack.c.l.b16 %v446
  %v1183 = vunpack.c.h.b16 %v446
  %v1184 = vunpack.c.l.b16 %v447
  %v1185 = vunpack.c.h.b16 %v447
  %v1186 = vunpack.c.l.b16 %v448
  %v1187 = vunpack.c.h.b16 %v448
  %v1188 = vunpack.c.l.b16 %v449
  %v1189 = vunpack.c.h.b16 %v449
  %v1190 = vunpack.c.l.b16 %v450
  %v1191 = vunpack.c.h.b16 %v450
  %v1192 = vunpack.c.l.b16 %v451
  %v1193 = vunpack.c.h.b16 %v451
  %v1194 = vunpack.c.l.b16 %v452
  %v1195 = vunpack.c.h.b16 %v452
  %v1196 = vunpack.c.l.b16 %v453
  %v1197 = vunpack.c.h.b16 %v453
  %v1198 = vunpack.c.l.b16 %v454
  %v1199 = vunpack.c.h.b16 %v454
  %v1200 = vunpack.c.l.b16 %v455
  %v1201 = vunpack.c.h.b16 %v455
  %v1202 = vunpack.c.l.b16 %v456
  %v1203 = vunpack.c.h.b16 %v456
  %v1204 = vunpack.c.l.b16 %v457
  %v1205 = vunpack.c.h.b16 %v457
  %v1206 = vunpack.c.l.b16 %v458
  %v1207 = vunpack.c.h.b16 %v458
  %v1208 = vunpack.c.l.b16 %v459
  %v1209 = vunpack.c.h.b16 %v459
  %v1210 = vunpack.c.l.b16 %v460
  %v1211 = vunpack.c.h.b16 %v460
  %v1212 = vunpack.c.l.b16 %v461
  %v1213 = vunpack.c.h.b16 %v461
  %v1214 = vunpack.c.l.b16 %v462
  %v1215 = vunpack.c.h.b16 %v462
  %v1216 = vunpack.c.l.b16 %v463
  %v1217 = vunpack.c.h.b16 %v463
  %v1218 = vunpack.c.l.b16 %v464
  %v1219 = vunpack.c.h.b16 %v464
  %v1220 = vunpack.c.l.b16 %v465
  %v1221 = vunpack.c.h.b16 %v465
  %v1222 = vunpack.c.l.b16 %v466
  %v1223 = vunpack.c.h.b16 %v466
  %v1224 = vunpack.c.l.b16 %v467
  %v1225 = vunpack.c.h.b16 %v467
  %v1226 = vunpack.c.l.b16 %v468
  %v1227 = vunpack.c.h.b16 %v468
  %v1228 = vunpack.c.l.b16 %v469
  %v1229 = vunpack.c.h.b16 %v469
  %v1230 = vunpack.c.l.b16 %v470
  %v1231 = vunpack.c.h.b16 %v470
  %v1232 = vunpack.c.l.b16 %v471
  %v1233 = vunpack.c.h.b16 %v471
  %v1234 = vunpack.c.l.b16 %v472
  %v1235 = vunpack.c.h.b16 %v472
  %v1236 = vunpack.c.l.b16 %v473
  %v1237 = vunpack.c.h.b16 %v473
  %v1238 = vunpack.c.l.b16 %v474
  %v1239 = vunpack.c.h.b16 %v474
  %v1240 = vunpack.c.l.b16 %v475
  %v1241 = vunpack.c.h.b16 %v475
  %v1242 = vunpack.c.l.b16 %v476
  %v1243 = vunpack.c.h.b16 %v476
  %v1244 = vunpack.c.l.b16 %v477
  %v1245 = vunpack.c.h.b16 %v477
  %v1246 = vunpack.c.l.b16 %v478
  %v1247 = vunpack.c.h.b16 %v478
  %v1248 = vunpack.c.l.b16 %v479
  %v1249 = vunpack.c.h.b16 %v479
  %v1250 = vunpack.c.l.b16 %v480
  %v1251 = vunpack.c.h.b16 %v480
  %v1252 = vunpack.c.l.b16 %v481
  %v1253 = vunpack.c.h.b16 %v481
  %v1254 = vunpack.c.l.b16 %v482
  %v1255 = vunpack.c.h.b16 %v482
  %v1256 = vunpack.c.l.b16 %v483
  %v1257 = vunpack.c.h.b16 %v483
  %v1258 = vunpack.c.l.b16 %v484
  %v1259 = vunpack.c.h.b16 %v484
  %v1260 = vunpack.c.l.b16 %v485
  %v1261 = vunpack.c.h.b16 %v485
  %v1262 = vunpack.c.l.b16 %v486
  %v1263 = vunpack.c.h.b16 %v486
  %v1264 = vunpack.c.l.b16 %v487
  %v1265 = vunpack.c.h.b16 %v487
  %v1266 = vunpack.c.l.b16 %v488
  %v1267 = vunpack.c.h.b16 %v488
  %v1268 = vunpack.c.l.b16 %v489
  %v1269 = vunpack.c.h.b16 %v489
  %v1270 = vunpack.c.l.b16 %v490
  %v1271 = vunpack.c.h.b16 %v490
  %v1272 = vunpack.c.l.b16 %v491
  %v1273 = vunpack.c.h.b16 %v491
  %v1274 = vunpack.c.l.b16 %v492
  %v1275 = vunpack.c.h.b16 %v492
  %v1276 = vunpack.c.l.b16 %v493
  %v1277 = vunpack.c.h.b16 %v493
  %v1278 = vunpack.c.l.b16 %v494
  %v1279 = vunpack.c.h.b16 %v494
  %v1280 = vunpack.c.l.b16 %v495
  %v1281 = vunpack.c.h.b16 %v495
  %v1282 = vunpack.c.l.b16 %v496
  %v1283 = vunpack.c.h.b16 %v496
  %v1284 = vunpack.c.l.b16 %v497
  %v1285 = vunpack.c.h.b16 %v497
  %v1286 = vunpack.c.l.b16 %v498
  %v1287 = vunpack.c.h.b16 %v498
  %v1288 = vunpack.c.l.b16 %v499
  %v1289 = vunpack.c.h.b16 %v499
  %v1290 = vunpack.c.l.b16 %v500
  %v1291 = vunpack.c.h.b16 %v500
  %v1292 = vunpack.c.l.b16 %v501
  %v1293 = vunpack.c.h.b16 %v501
  %v1294 = vunpack.c.l.b16 %v502
  %v1295 = vunpack.c.h.b16 %v502
  %v1296 = vunpack.c.l.b16 %v503
  %v1297 = vunpack.c.h.b16 %v503
  %v1298 = vunpack.c.l.b16 %v504
  %v1299 = vunpack.c.h.b16 %v504
  %v1300 = vunpack.c.l.b16 %v505
  %v1301 = vunpack.c.h.b16 %v505
  %v1302 = vunpack.c.l.b16 %v506
  %v1303 = vunpack.c.h.b16 %v506
  %v1304 = vunpack.c.l.b16 %v507
  %v1305 = vunpack.c.h.b16 %v507
  %v1306 = vunpack.c.l.b16 %v508
  %v1307 = vunpack.c.h.b16 %v508
  %v1308 = vunpack.c.l.b16 %v509
  %v1309 = vunpack.c.h.b16 %v509
  %v1310 = vunpack.c.l.b16 %v510
  %v1311 = vunpack.c.h.b16 %v510
  %v1312 = vunpack.c.l.b16 %v511
  %v1313 = vunpack.c.h.b16 %v511
  %v1314 = vunpack.c.l.b16 %v512
  %v1315 = vunpack.c.h.b16 %v512
  %v1316 = vunpack.c.l.b16 %v513
  %v1317 = vunpack.c.h.b16 %v513
  %v1318 = vunpack.c.l.b16 %v514
  %v1319 = vunpack.c.h.b16 %v514
  %v1320 = vunpack.c.l.b16 %v515
  %v1321 = vunpack.c.h.b16 %v515
  %v1322 = vunpack.c.l.b16 %v516
  %v1323 = vunpack.c.h.b16 %v516
  %v1324 = vunpack.c.l.b16 %v517
  %v1325 = vunpack.c.h.b16 %v517
  %v1326 = vunpack.c.l.b16 %v518
  %v1327 = vunpack.c.h.b16 %v518
  %v1328 = vunpack.c.l.b16 %v519
  %v1329 = vunpack.c.h.b16 %v519
  %v1330 = vunpack.c.l.b16 %v520
  %v1331 = vunpack.c.h.b16 %v520
  %v1332 = vunpack.c.l.b16 %v521
  %v1333 = vunpack.c.h.b16 %v521
  %v1334 = vunpack.c.l.b16 %v522
  %v1335 = vunpack.c.h.b16 %v522
  %v1336 = vunpack.c.l.b16 %v523
  %v1337 = vunpack.c.h.b16 %v523
  %v1338 = vunpack.c.l.b16 %v524
  %v1339 = vunpack.c.h.b16 %v524
  %v1340 = vunpack.c.l.b16 %v525
  %v1341 = vunpack.c.h.b16 %v525
  %v1342 = vunpack.c.l.b16 %v526
  %v1343 = vunpack.c.h.b16 %v526
  %v1344 = vunpack.c.l.b16 %v527
  %v1345 = vunpack.c.h.b16 %v527
  %v1346 = vunpack.c.l.b16 %v528
  %v1347 = vunpack.c.h.b16 %v528
  %v1348 = vunpack.c.l.b16 %v529
  %v1349 = vunpack.c.h.b16 %v529
  %v1350 = vunpack.c.l.b16 %v530
  %v1351 = vunpack.c.h.b16 %v530
  %v1352 = vunpack.c.l.b16 %v531
  %v1353 = vunpack.c.h.b16 %v531
  %v1354 = vpack.c.b16 %v846, %v842
  %v1355 = vpack.c.b16 %v847, %v843
  %v1356 = vpack.c.b16 %v848, %v844
  %v1357 = vpack.c.b16 %v849, %v845
  %v1358 = vpack.c.b16 %v854, %v850
  %v1359 = vpack.c.b16 %v855, %v851
  %v1360 = vpack.c.b16 %v856, %v852
  %v1361 = vpack.c.b16 %v857, %v853
  %v1362 = vpack.c.b16 %v862, %v858
  %v1363 = vpack.c.b16 %v863, %v859
  %v1364 = vpack.c.b16 %v864, %v860
  %v1365 = vpack.c.b16 %v865, %v861
  %v1366 = vpack.c.b16 %v870, %v866
  %v1367 = vpack.c.b16 %v871, %v867
  %v1368 = vpack.c.b16 %v872, %v868
  %v1369 = vpack.c.b16 %v873, %v869
  %v1370 = vpack.c.b16 %v878, %v874
  %v1371 = vpack.c.b16 %v879, %v875
  %v1372 = vpack.c.b16 %v880, %v876
  %v1373 = vpack.c.b16 %v881, %v877
  %v1374 = vpack.c.b16 %v886, %v882
  %v1375 = vpack.c.b16 %v887, %v883
  %v1376 = vpack.c.b16 %v888, %v884
  %v1377 = vpack.c.b16 %v889, %v885
  %v1378 = vpack.c.b16 %v894, %v890
  %v1379 = vpack.c.b16 %v895, %v891
  %v1380 = vpack.c.b16 %v896, %v892
  %v1381 = vpack.c.b16 %v897, %v893
  %v1382 = vpack.c.b16 %v902, %v898
  %v1383 = vpack.c.b16 %v903, %v899
  %v1384 = vpack.c.b16 %v904, %v900
  %v1385 = vpack.c.b16 %v905, %v901
  %v1386 = vpack.c.b16 %v910, %v906
  %v1387 = vpack.c.b16 %v911, %v907
  %v1388 = vpack.c.b16 %v912, %v908
  %v1389 = vpack.c.b16 %v913, %v909
  %v1390 = vpack.c.b16 %v918, %v914
  %v1391 = vpack.c.b16 %v919, %v915
  %v1392 = vpack.c.b16 %v920, %v916
  %v1393 = vpack.c.b16 %v921, %v917
  %v1394 = vpack.c.b16 %v926, %v922
  %v1395 = vpack.c.b16 %v927, %v923
  %v1396 = vpack.c.b16 %v928, %v924
  %v1397 = vpack.c.b16 %v929, %v925
  %v1398 = vpack.c.b16 %v934, %v930
  %v1399 = vpack.c.b16 %v935, %v931
  %v1400 = vpack.c.b16 %v936, %v932
  %v1401 = vpack.c.b16 %v937, %v933
  %v1402 = vpack.c.b16 %v942, %v938
  %v1403 = vpack.c.b16 %v943, %v939
  %v1404 = vpack.c.b16 %v944, %v940
  %v1405 = vpack.c.b16 %v945, %v941
  %v1406 = vpack.c.b16 %v950, %v946
  %v1407 = vpack.c.b16 %v951, %v947
  %v1408 = vpack.c.b16 %v952, %v948
  %v1409 = vpack.c.b16 %v953, %v949
  %v1410 = vpack.c.b16 %v958, %v954
  %v1411 = vpack.c.b16 %v959, %v955
  %v1412 = vpack.c.b16 %v960, %v956
  %v1413 = vpack.c.b16 %v961, %v957
  %v1414 = vpack.c.b16 %v966, %v962
  %v1415 = vpack.c.b16 %v967, %v963
  %v1416 = vpack.c.b16 %v968, %v964
  %v1417 = vpack.c.b16 %v969, %v965
  %v1418 = vpack.c.b16 %v974, %v970
  %v1419 = vpack.c.b16 %v975, %v971
  %v1420 = vpack.c.b16 %v976, %v972
  %v1421 = vpack.c.b16 %v977, %v973
  %v1422 = vpack.c.b16 %v982, %v978
  %v1423 = vpack.c.b16 %v983, %v979
  %v1424 = vpack.c.b16 %v984, %v980
  %v1425 = vpack.c.b16 %v985, %v981
  %v1426 = vpack.c.b16 %v990, %v986
  %v1427 = vpack.c.b16 %v991, %v987
  %v1428 = vpack.c.b16 %v992, %v988
  %v1429 = vpack.c.b16 %v993, %v989
  %v1430 = vpack.c.b16 %v998, %v994
  %v1431 = vpack.c.b16 %v999, %v995
  %v1432 = vpack.c.b16 %v1000, %v996
  %v1433 = vpack.c.b16 %v1001, %v997
  %v1434 = vpack.c.b16 %v1006, %v1002
  %v1435 = vpack.c.b16 %v1007, %v1003
  %v1436 = vpack.c.b16 %v1008, %v1004
  %v1437 = vpack.c.b16 %v1009, %v1005
  %v1438 = vpack.c.b16 %v1014, %v1010
  %v1439 = vpack.c.b16 %v1015, %v1011
  %v1440 = vpack.c.b16 %v1016, %v1012
  %v1441 = vpack.c.b16 %v1017, %v1013
  %v1442 = vpack.c.b16 %v1022, %v1018
  %v1443 = vpack.c.b16 %v1023, %v1019
  %v1444 = vpack.c.b16 %v1024, %v1020
  %v1445 = vpack.c.b16 %v1025, %v1021
  %v1446 = vpack.c.b16 %v1030, %v1026
  %v1447 = vpack.c.b16 %v1031, %v1027
  %v1448 = vpack.c.b16 %v1032, %v1028
  %v1449 = vpack.c.b16 %v1033, %v1029
  %v1450 = vpack.c.b16 %v1038, %v1034
  %v1451 = vpack.c.b16 %v1039, %v1035
  %v1452 = vpack.c.b16 %v1040, %v1036
  %v1453 = vpack.c.b16 %v1041, %v1037
  %v1454 = vpack.c.b16 %v1046, %v1042
  %v1455 = vpack.c.b16 %v1047, %v1043
  %v1456 = vpack.c.b16 %v1048, %v1044
  %v1457 = vpack.c.b16 %v1049, %v1045
  %v1458 = vpack.c.b16 %v1054, %v1050
  %v1459 = vpack.c.b16 %v1055, %v1051
  %v1460 = vpack.c.b16 %v1056, %v1052
  %v1461 = vpack.c.b16 %v1057, %v1053
  %v1462 = vpack.c.b16 %v1062, %v1058
  %v1463 = vpack.c.b16 %v1063, %v1059
  %v1464 = vpack.c.b16 %v1064, %v1060
  %v1465 = vpack.c.b16 %v1065, %v1061
  %v1466 = vpack.c.b16 %v1070, %v1066
  %v1467 = vpack.c.b16 %v1071, %v1067
  %v1468 = vpack.c.b16 %v1072, %v1068
  %v1469 = vpack.c.b16 %v1073, %v1069
  %v1470 = vpack.c.b16 %v1078, %v1074
  %v1471 = vpack.c.b16 %v1079, %v1075
  %v1472 = vpack.c.b16 %v1080, %v1076
  %v1473 = vpack.c.b16 %v1081, %v1077
  %v1474 = vpack.c.b16 %v1086, %v1082
  %v1475 = vpack.c.b16 %v1087, %v1083
  %v1476 = vpack.c.b16 %v1088, %v1084
  %v1477 = vpack.c.b16 %v1089, %v1085
  %v1478 = vpack.c.b16 %v1094, %v1090
  %v1479 = vpack.c.b16 %v1095, %v1091
  %v1480 = vpack.c.b16 %v1096, %v1092
  %v1481 = vpack.c.b16 %v1097, %v1093
  %v1482 = vpack.c.b16 %v1102, %v1098
  %v1483 = vpack.c.b16 %v1103, %v1099
  %v1484 = vpack.c.b16 %v1104, %v1100
  %v1485 = vpack.c.b16 %v1105, %v1101
  %v1486 = vpack.c.b16 %v1110, %v1106
  %v1487 = vpack.c.b16 %v1111, %v1107
  %v1488 = vpack.c.b16 %v1112, %v1108
  %v1489 = vpack.c.b16 %v1113, %v1109
  %v1490 = vpack.c.b16 %v1118, %v1114
  %v1491 = vpack.c.b16 %v1119, %v1115
  %v1492 = vpack.c.b16 %v1120, %v1116
  %v1493 = vpack.c.b16 %v1121, %v1117
  %v1494 = vpack.c.b16 %v1126, %v1122
  %v1495 = vpack.c.b16 %v1127, %v1123
  %v1496 = vpack.c.b16 %v1128, %v1124
  %v1497 = vpack.c.b16 %v1129, %v1125
  %v1498 = vpack.c.b16 %v1134, %v1130
  %v1499 = vpack.c.b16 %v1135, %v1131
  %v1500 = vpack.c.b16 %v1136, %v1132
  %v1501 = vpack.c.b16 %v1137, %v1133
  %v1502 = vpack.c.b16 %v1142, %v1138
  %v1503 = vpack.c.b16 %v1143, %v1139
  %v1504 = vpack.c.b16 %v1144, %v1140
  %v1505 = vpack.c.b16 %v1145, %v1141
  %v1506 = vpack.c.b16 %v1150, %v1146
  %v1507 = vpack.c.b16 %v1151, %v1147
  %v1508 = vpack.c.b16 %v1152, %v1148
  %v1509 = vpack.c.b16 %v1153, %v1149
  %v1510 = vpack.c.b16 %v1158, %v1154
  %v1511 = vpack.c.b16 %v1159, %v1155
  %v1512 = vpack.c.b16 %v1160, %v1156
  %v1513 = vpack.c.b16 %v1161, %v1157
  %v1514 = vpack.c.b16 %v1166, %v1162
  %v1515 = vpack.c.b16 %v1167, %v1163
  %v1516 = vpack.c.b16 %v1168, %v1164
  %v1517 = vpack.c.b16 %v1169, %v1165
  %v1518 = vpack.c.b16 %v1174, %v1170
  %v1519 = vpack.c.b16 %v1175, %v1171
  %v1520 = vpack.c.b16 %v1176, %v1172
  %v1521 = vpack.c.b16 %v1177, %v1173
  %v1522 = vpack.c.b16 %v1182, %v1178
  %v1523 = vpack.c.b16 %v1183, %v1179
  %v1524 = vpack.c.b16 %v1184, %v1180
  %v1525 = vpack.c.b16 %v1185, %v1181
  %v1526 = vpack.c.b16 %v1190, %v1186
  %v1527 = vpack.c.b16 %v1191, %v1187
  %v1528 = vpack.c.b16 %v1192, %v1188
  %v1529 = vpack.c.b16 %v1193, %v1189
  %v1530 = vpack.c.b16 %v1198, %v1194
  %v1531 = vpack.c.b16 %v1199, %v1195
  %v1532 = vpack.c.b16 %v1200, %v1196
  %v1533 = vpack.c.b16 %v1201, %v1197
  %v1534 = vpack.c.b16 %v1206, %v1202
  %v1535 = vpack.c.b16 %v1207, %v1203
  %v1536 = vpack.c.b16 %v1208, %v1204
  %v1537 = vpack.c.b16 %v1209, %v1205
  %v1538 = vpack.c.b16 %v1214, %v1210
  %v1539 = vpack.c.b16 %v1215, %v1211
  %v1540 = vpack.c.b16 %v1216, %v1212
  %v1541 = vpack.c.b16 %v1217, %v1213
  %v1542 = vpack.c.b16 %v1222, %v1218
  %v1543 = vpack.c.b16 %v1223, %v1219
  %v1544 = vpack.c.b16 %v1224, %v1220
  %v1545 = vpack.c.b16 %v1225, %v1221
  %v1546 = vpack.c.b16 %v1230, %v1226
  %v1547 = vpack.c.b16 %v1231, %v1227
  %v1548 = vpack.c.b16 %v1232, %v1228
  %v1549 = vpack.c.b16 %v1233, %v1229
  %v1550 = vpack.c.b16 %v1238, %v1234
  %v1551 = vpack.c.b16 %v1239, %v1235
  %v1552 = vpack.c.b16 %v1240, %v1236
  %v1553 = vpack.c.b16 %v1241, %v1237
  %v1554 = vpack.c.b16 %v1246, %v1242
  %v1555 = vpack.c.b16 %v1247, %v1243
  %v1556 = vpack.c.b16 %v1248, %v1244
  %v1557 = vpack.c.b16 %v1249, %v1245
  %v1558 = vpack.c.b16 %v1254, %v1250
  %v1559 = vpack.c.b16 %v1255, %v1251
  %v1560 = vpack.c.b16 %v1256, %v1252
  %v1561 = vpack.c.b16 %v1257, %v1253
  %v1562 = vpack.c.b16 %v1262, %v1258
  %v1563 = vpack.c.b16 %v1263, %v1259
  %v1564 = vpack.c.b16 %v1264, %v1260
  %v1565 = vpack.c.b16 %v1265, %v1261
  %v1566 = vpack.c.b16 %v1270, %v1266
  %v1567 = vpack.c.b16 %v1271, %v1267
  %v1568 = vpack.c.b16 %v1272, %v1268
  %v1569 = vpack.c.b16 %v1273, %v1269
  %v1570 = vpack.c.b16 %v1278, %v1274
  %v1571 = vpack.c.b16 %v1279, %v1275
  %v1572 = vpack.c.b16 %v1280, %v1276
  %v1573 = vpack.c.b16 %v1281, %v1277
  %v1574 = vpack.c.b16 %v1286, %v1282
  %v1575 = vpack.c.b16 %v1287, %v1283
  %v1576 = vpack.c.b16 %v1288, %v1284
  %v1577 = vpack.c.b16 %v1289, %v1285
  %v1578 = vpack.c.b16 %v1294, %v1290
  %v1579 = vpack.c.b16 %v1295, %v1291
  %v1580 = vpack.c.b16 %v1296, %v1292
  %v1581 = vpack.c.b16 %v1297, %v1293
  %v1582 = vpack.c.b16 %v1302, %v1298
  %v1583 = vpack.c.b16 %v1303, %v1299
  %v1584 = vpack.c.b16 %v1304, %v1300
  %v1585 = vpack.c.b16 %v1305, %v1301
  %v1586 = vpack.c.b16 %v1310, %v1306
  %v1587 = vpack.c.b16 %v1311, %v1307
  %v1588 = vpack.c.b16 %v1312, %v1308
  %v1589 = vpack.c.b16 %v1313, %v1309
  %v1590 = vpack.c.b16 %v1318, %v1314
  %v1591 = vpack.c.b16 %v1319, %v1315
  %v1592 = vpack.c.b16 %v1320, %v1316
  %v1593 = vpack.c.b16 %v1321, %v1317
  %v1594 = vpack.c.b16 %v1326, %v1322
  %v1595 = vpack.c.b16 %v1327, %v1323
  %v1596 = vpack.c.b16 %v1328, %v1324
  %v1597 = vpack.c.b16 %v1329, %v1325
  %v1598 = vpack.c.b16 %v1334, %v1330
  %v1599 = vpack.c.b16 %v1335, %v1331
  %v1600 = vpack.c.b16 %v1336, %v1332
  %v1601 = vpack.c.b16 %v1337, %v1333
  %v1602 = vpack.c.b16 %v1342, %v1338
  %v1603 = vpack.c.b16 %v1343, %v1339
  %v1604 = vpack.c.b16 %v1344, %v1340
  %v1605 = vpack.c.b16 %v1345, %v1341
  %v1606 = vpack.c.b16 %v1350, %v1346
  %v1607 = vpack.c.b16 %v1351, %v1347
  %v1608 = vpack.c.b16 %v1352, %v1348
  %v1609 = vpack.c.b16 %v1353, %v1349
  %v1856 = vunpack.c.l.b16 %v532
  %v1857 = vunpack.c.l.b16 %v533
  %v1858 = vunpack.c.l.b16 %v534
  %v1859 = vunpack.c.l.b16 %v535
  %v1860 = vunpack.c.l.b16 %v536
  %v1861 = vunpack.c.l.b16 %v537
  %v1862 = vunpack.c.l.b16 %v538
  %v1863 = vunpack.c.l.b16 %v539
  %v1864 = vunpack.c.l.b16 %v540
  %v1865 = vunpack.c.l.b16 %v541
  %v1866 = vunpack.c.l.b16 %v542
  %v1867 = vunpack.c.l.b16 %v543
  %v1868 = vunpack.c.l.b16 %v544
  %v1869 = vunpack.c.l.b16 %v545
  %v1870 = vunpack.c.l.b16 %v546
  %v1871 = vunpack.c.l.b16 %v547
  %v1872 = vunpack.c.l.b16 %v548
  %v1873 = vunpack.c.l.b16 %v549
  %v1874 = vunpack.c.l.b16 %v550
  %v1875 = vunpack.c.l.b16 %v551
  %v1876 = vunpack.c.l.b16 %v552
  %v1877 = vunpack.c.l.b16 %v553
  %v1878 = vunpack.c.l.b16 %v554
  %v1879 = vunpack.c.l.b16 %v555
  %v1880 = vunpack.c.l.b16 %v556
  %v1881 = vunpack.c.l.b16 %v557
  %v1882 = vunpack.c.l.b16 %v558
  %v1883 = vunpack.c.l.b16 %v559
  %v1884 = vunpack.c.l.b16 %v560
  %v1885 = vunpack.c.l.b16 %v561
  %v1886 = vunpack.c.l.b16 %v562
  %v1887 = vunpack.c.l.b16 %v563
  %v1888 = vunpack.c.l.b16 %v564
  %v1889 = vunpack.c.l.b16 %v565
  %v1890 = vunpack.c.l.b16 %v566
  %v1891 = vunpack.c.l.b16 %v567
  %v1892 = vunpack.c.l.b16 %v568
  %v1893 = vunpack.c.l.b16 %v569
  %v1894 = vunpack.c.l.b16 %v570
  %v1895 = vunpack.c.l.b16 %v571
  %v1896 = vunpack.c.l.b16 %v572
  %v1897 = vunpack.c.l.b16 %v573
  %v1898 = vunpack.c.l.b16 %v574
  %v1899 = vunpack.c.l.b16 %v575
  %v1900 = vunpack.c.l.b16 %v576
  %v1901 = vunpack.c.l.b16 %v577
  %v1902 = vunpack.c.l.b16 %v578
  %v1903 = vunpack.c.l.b16 %v579
  %v1904 = vunpack.c.l.b16 %v580
  %v1905 = vunpack.c.l.b16 %v581
  %v1906 = vunpack.c.l.b16 %v582
  %v1907 = vunpack.c.l.b16 %v583
  %v1908 = vunpack.c.l.b16 %v584
  %v1909 = vunpack.c.l.b16 %v585
  %v1910 = vpack.c.b16 %v1857, %v1856
  %v1911 = vpack.c.b16 %v1859, %v1858
  %v1912 = vpack.c.b16 %v1861, %v1860
  %v1913 = vpack.c.b16 %v1863, %v1862
  %v1914 = vpack.c.b16 %v1865, %v1864
  %v1915 = vpack.c.b16 %v1867, %v1866
  %v1916 = vpack.c.b16 %v1869, %v1868
  %v1917 = vpack.c.b16 %v1871, %v1870
  %v1918 = vpack.c.b16 %v1873, %v1872
  %v1919 = vpack.c.b16 %v1875, %v1874
  %v1920 = vpack.c.b16 %v1877, %v1876
  %v1921 = vpack.c.b16 %v1879, %v1878
  %v1922 = vpack.c.b16 %v1881, %v1880
  %v1923 = vpack.c.b16 %v1883, %v1882
  %v1924 = vpack.c.b16 %v1885, %v1884
  %v1925 = vpack.c.b16 %v1887, %v1886
  %v1926 = vpack.c.b16 %v1889, %v1888
  %v1927 = vpack.c.b16 %v1891, %v1890
  %v1928 = vpack.c.b16 %v1893, %v1892
  %v1929 = vpack.c.b16 %v1895, %v1894
  %v1930 = vpack.c.b16 %v1897, %v1896
  %v1931 = vpack.c.b16 %v1899, %v1898
  %v1932 = vpack.c.b16 %v1901, %v1900
  %v1933 = vpack.c.b16 %v1903, %v1902
  %v1934 = vpack.c.b16 %v1905, %v1904
  %v1935 = vpack.c.b16 %v1907, %v1906
  %v1936 = vpack.c.b16 %v1909, %v1908
  %vm1964 = vcmask 392192
  %v1966 = vsel %vm1964, %v1357, 0
  %v1969 = vsel %vm1964, %v1361, 0
  %v1972 = vsel %vm1964, %v1365, 0
  %v1975 = vsel %vm1964, %v1369, 0
  %v1978 = vsel %vm1964, %v1373, 0
  %v1981 = vsel %vm1964, %v1377, 0
  %v1984 = vsel %vm1964, %v1381, 0
  %v1987 = vsel %vm1964, %v1385, 0
  %v1990 = vsel %vm1964, %v1389, 0
  %v1993 = vsel %vm1964, %v1393, 0
  %v1996 = vsel %vm1964, %v1397, 0
  %v1999 = vsel %vm1964, %v1401, 0
  %v2002 = vsel %vm1964, %v1405, 0
  %v2005 = vsel %vm1964, %v1409, 0
  %v2008 = vsel %vm1964, %v1413, 0
  %v2011 = vsel %vm1964, %v1417, 0
  %v2014 = vsel %vm1964, %v1421, 0
  %v2017 = vsel %vm1964, %v1425, 0
  %v2020 = vsel %vm1964, %v1429, 0
  %v2023 = vsel %vm1964, %v1433, 0
  %v2026 = vsel %vm1964, %v1437, 0
  %v2029 = vsel %vm1964, %v1441, 0
  %v2032 = vsel %vm1964, %v1445, 0
  %v2035 = vsel %vm1964, %v1449, 0
  %v2038 = vsel %vm1964, %v1453, 0
  %v2041 = vsel %vm1964, %v1457, 0
  %v2044 = vsel %vm1964, %v1461, 0
  %v2047 = vsel %vm1964, %v1465, 0
  %v2050 = vsel %vm1964, %v1469, 0
  %v2053 = vsel %vm1964, %v1473, 0
  %v2056 = vsel %vm1964, %v1477, 0
  %v2059 = vsel %vm1964, %v1481, 0
  %v2062 = vsel %vm1964, %v1485, 0
  %v2065 = vsel %vm1964, %v1489, 0
  %v2068 = vsel %vm1964, %v1493, 0
  %v2071 = vsel %vm1964, %v1497, 0
  %v2074 = vsel %vm1964, %v1501, 0
  %v2077 = vsel %vm1964, %v1505, 0
  %v2080 = vsel %vm1964, %v1509, 0
  %v2083 = vsel %vm1964, %v1513, 0
  %v2086 = vsel %vm1964, %v1517, 0
  %v2089 = vsel %vm1964, %v1521, 0
  %v2092 = vsel %vm1964, %v1525, 0
  %v2095 = vsel %vm1964, %v1529, 0
  %v2098 = vsel %vm1964, %v1533, 0
  %v2101 = vsel %vm1964, %v1537, 0
  %v2104 = vsel %vm1964, %v1541, 0
  %v2107 = vsel %vm1964, %v1545, 0
  %v2110 = vsel %vm1964, %v1549, 0
  %v2113 = vsel %vm1964, %v1553, 0
  %v2116 = vsel %vm1964, %v1557, 0
  %v2119 = vsel %vm1964, %v1561, 0
  %v2122 = vsel %vm1964, %v1565, 0
  %v2125 = vsel %vm1964, %v1569, 0
  %v2128 = vsel %vm1964, %v1573, 0
  %v2131 = vsel %vm1964, %v1577, 0
  %v2134 = vsel %vm1964, %v1581, 0
  %v2137 = vsel %vm1964, %v1585, 0
  %v2140 = vsel %vm1964, %v1589, 0
  %v2143 = vsel %vm1964, %v1593, 0
  %v2146 = vsel %vm1964, %v1597, 0
  %v2149 = vsel %vm1964, %v1601, 0
  %v2152 = vsel %vm1964, %v1605, 0
  %v2155 = vsel %vm1964, %v1609, 0
  %2157 = vmatprep.subr.bf16.mxu0 0
  %2158 = vmatpush1.bf16.msra.mxu0 %v1910
  %2159 = vmatprep.subr.bf16.mxu0 0
  %2160 = vmatpush1.bf16.msra.mxu0 %v1911
  %2161 = vmatprep.subr.bf16.mxu0 0
  %2162 = vmatpush1.bf16.msra.mxu0 %v1912
  %2163 = vmatprep.subr.bf16.mxu0 0
  %2164 = vmatpush1.bf16.msra.mxu0 %v1913
  %2165 = vmatprep.subr.bf16.mxu0 0
  %2166 = vmatpush1.bf16.msra.mxu0 %v1914
  %2167 = vmatprep.subr.bf16.mxu0 0
  %2168 = vmatpush1.bf16.msra.mxu0 %v1915
  %2169 = vmatprep.subr.bf16.mxu0 0
  %2170 = vmatpush1.bf16.msra.mxu0 %v1916
  %2171 = vmatprep.subr.bf16.mxu0 0
  %2172 = vmatpush1.bf16.msra.mxu0 %v1917
  %2173 = vmatprep.subr.bf16.mxu0 0
  %2174 = vmatpush1.bf16.msra.mxu0 %v1918
  %2175 = vmatprep.subr.bf16.mxu0 0
  %2176 = vmatpush1.bf16.msra.mxu0 %v1919
  %2177 = vmatprep.subr.bf16.mxu0 0
  %2178 = vmatpush1.bf16.msra.mxu0 %v1920
  %2179 = vmatprep.subr.bf16.mxu0 0
  %2180 = vmatpush1.bf16.msra.mxu0 %v1921
  %2181 = vmatprep.subr.bf16.mxu0 0
  %2182 = vmatpush1.bf16.msra.mxu0 %v1922
  %2183 = vmatprep.subr.bf16.mxu0 0
  %2184 = vmatpush1.bf16.msra.mxu0 %v1923
  %2185 = vmatprep.subr.bf16.mxu0 0
  %2186 = vmatpush1.bf16.msra.mxu0 %v1924
  %2187 = vmatprep.subr.bf16.mxu0 0
  %2188 = vmatpush1.bf16.msra.mxu0 %v1925
  %2189 = vmatprep.mubr.bf16.mxu0 %v1355
  %2190 = vmatmul.mubr.bf16.gmra.mrb[0].mxu0 %v1354
  %v2191 = vpop.f32.mrb[0].mxu0
  %v2192 = vadd.f32 0.0, %v2191
  %v2193 = vpop.f32.mrb[0].mxu0
  %v2194 = vpop.f32.mrb[0].mxu0
  %v2195 = vadd.f32 0.0, %v2194
  %v2196 = vpop.f32.mrb[0].mxu0
  %2197 = vmatprep.mubr.bf16.mxu0 %v1359
  %2198 = vmatmul.mubr.bf16.gmra.mrb[0].mxu0 %v1358
  %v2199 = vpop.f32.mrb[0].mxu0
  %v2200 = vadd.f32 0.0, %v2199
  %v2201 = vpop.f32.mrb[0].mxu0
  %v2202 = vpop.f32.mrb[0].mxu0
  %v2203 = vadd.f32 0.0, %v2202
  %v2204 = vpop.f32.mrb[0].mxu0
  %2205 = vmatprep.mubr.bf16.mxu0 %v1363
  %2206 = vmatmul.mubr.bf16.gmra.mrb[0].mxu0 %v1362
  %v2207 = vpop.f32.mrb[0].mxu0
  %v2208 = vadd.f32 0.0, %v2207
  %v2209 = vpop.f32.mrb[0].mxu0
  %v2210 = vpop.f32.mrb[0].mxu0
  %v2211 = vadd.f32 0.0, %v2210
  %v2212 = vpop.f32.mrb[0].mxu0
  %2213 = vmatprep.mubr.bf16.mxu0 %v1367
  %2214 = vmatmul.mubr.bf16.gmra.mrb[0].mxu0 %v1366
  %v2215 = vpop.f32.mrb[0].mxu0
  %v2216 = vadd.f32 0.0, %v2215
  %v2217 = vpop.f32.mrb[0].mxu0
  %v2218 = vpop.f32.mrb[0].mxu0
  %v2219 = vadd.f32 0.0, %v2218
  %v2220 = vpop.f32.mrb[0].mxu0
  %2221 = vmatprep.mubr.bf16.mxu0 %v1371
  %2222 = vmatmul.mubr.bf16.gmra.mrb[0].mxu0 %v1370
  %v2223 = vpop.f32.mrb[0].mxu0
  %v2224 = vadd.f32 0.0, %v2223
  %v2225 = vpop.f32.mrb[0].mxu0
  %v2226 = vpop.f32.mrb[0].mxu0
  %v2227 = vadd.f32 0.0, %v2226
  %v2228 = vpop.f32.mrb[0].mxu0
  %2229 = vmatprep.mubr.bf16.mxu0 %v1375
  %2230 = vmatmul.mubr.bf16.gmra.mrb[0].mxu0 %v1374
  %v2231 = vpop.f32.mrb[0].mxu0
  %v2232 = vadd.f32 0.0, %v2231
  %v2233 = vpop.f32.mrb[0].mxu0
  %v2234 = vpop.f32.mrb[0].mxu0
  %v2235 = vadd.f32 0.0, %v2234
  %v2236 = vpop.f32.mrb[0].mxu0
  %2237 = vmatprep.mubr.bf16.mxu0 %v1379
  %2238 = vmatmul.mubr.bf16.gmra.mrb[0].mxu0 %v1378
  %v2239 = vpop.f32.mrb[0].mxu0
  %v2240 = vadd.f32 0.0, %v2239
  %v2241 = vpop.f32.mrb[0].mxu0
  %v2242 = vpop.f32.mrb[0].mxu0
  %v2243 = vadd.f32 0.0, %v2242
  %v2244 = vpop.f32.mrb[0].mxu0
  %2245 = vmatprep.mubr.bf16.mxu0 %v1383
  %2246 = vmatmul.mubr.bf16.gmra.mrb[0].mxu0 %v1382
  %v2247 = vpop.f32.mrb[0].mxu0
  %v2248 = vadd.f32 0.0, %v2247
  %v2249 = vpop.f32.mrb[0].mxu0
  %v2250 = vpop.f32.mrb[0].mxu0
  %v2251 = vadd.f32 0.0, %v2250
  %v2252 = vpop.f32.mrb[0].mxu0
  %2253 = vmatprep.mubr.bf16.mxu0 %v1387
  %2254 = vmatmul.mubr.bf16.gmra.mrb[0].mxu0 %v1386
  %v2255 = vpop.f32.mrb[0].mxu0
  %v2256 = vadd.f32 0.0, %v2255
  %v2257 = vpop.f32.mrb[0].mxu0
  %v2258 = vpop.f32.mrb[0].mxu0
  %v2259 = vadd.f32 0.0, %v2258
  %v2260 = vpop.f32.mrb[0].mxu0
  %2261 = vmatprep.mubr.bf16.mxu0 %v1391
  %2262 = vmatmul.mubr.bf16.gmra.mrb[0].mxu0 %v1390
  %v2263 = vpop.f32.mrb[0].mxu0
  %v2264 = vadd.f32 0.0, %v2263
  %v2265 = vpop.f32.mrb[0].mxu0
  %v2266 = vpop.f32.mrb[0].mxu0
  %v2267 = vadd.f32 0.0, %v2266
  %v2268 = vpop.f32.mrb[0].mxu0
  %2269 = vmatprep.mubr.bf16.mxu0 %v1395
  %2270 = vmatmul.mubr.bf16.gmra.mrb[0].mxu0 %v1394
  %v2271 = vpop.f32.mrb[0].mxu0
  %v2272 = vadd.f32 0.0, %v2271
  %v2273 = vpop.f32.mrb[0].mxu0
  %v2274 = vpop.f32.mrb[0].mxu0
  %v2275 = vadd.f32 0.0, %v2274
  %v2276 = vpop.f32.mrb[0].mxu0
  %2277 = vmatprep.mubr.bf16.mxu0 %v1399
  %2278 = vmatmul.mubr.bf16.gmra.mrb[0].mxu0 %v1398
  %v2279 = vpop.f32.mrb[0].mxu0
  %v2280 = vadd.f32 0.0, %v2279
  %v2281 = vpop.f32.mrb[0].mxu0
  %v2282 = vpop.f32.mrb[0].mxu0
  %v2283 = vadd.f32 0.0, %v2282
  %v2284 = vpop.f32.mrb[0].mxu0
  %2285 = vmatprep.mubr.bf16.mxu0 %v1403
  %2286 = vmatmul.mubr.bf16.gmra.mrb[0].mxu0 %v1402
  %v2287 = vpop.f32.mrb[0].mxu0
  %v2288 = vadd.f32 0.0, %v2287
  %v2289 = vpop.f32.mrb[0].mxu0
  %v2290 = vpop.f32.mrb[0].mxu0
  %v2291 = vadd.f32 0.0, %v2290
  %v2292 = vpop.f32.mrb[0].mxu0
  %2293 = vmatprep.mubr.bf16.mxu0 %v1407
  %2294 = vmatmul.mubr.bf16.gmra.mrb[0].mxu0 %v1406
  %v2295 = vpop.f32.mrb[0].mxu0
  %v2296 = vadd.f32 0.0, %v2295
  %v2297 = vpop.f32.mrb[0].mxu0
  %v2298 = vpop.f32.mrb[0].mxu0
  %v2299 = vadd.f32 0.0, %v2298
  %v2300 = vpop.f32.mrb[0].mxu0
  %2301 = vmatprep.mubr.bf16.mxu0 %v1411
  %2302 = vmatmul.mubr.bf16.gmra.mrb[0].mxu0 %v1410
  %v2303 = vpop.f32.mrb[0].mxu0
  %v2304 = vadd.f32 0.0, %v2303
  %v2305 = vpop.f32.mrb[0].mxu0
  %v2306 = vpop.f32.mrb[0].mxu0
  %v2307 = vadd.f32 0.0, %v2306
  %v2308 = vpop.f32.mrb[0].mxu0
  %2309 = vmatprep.mubr.bf16.mxu0 %v1415
  %2310 = vmatmul.mubr.bf16.gmra.mrb[0].mxu0 %v1414
  %v2311 = vpop.f32.mrb[0].mxu0
  %v2312 = vadd.f32 0.0, %v2311
  %v2313 = vpop.f32.mrb[0].mxu0
  %v2314 = vpop.f32.mrb[0].mxu0
  %v2315 = vadd.f32 0.0, %v2314
  %v2316 = vpop.f32.mrb[0].mxu0
  %2317 = vmatprep.mubr.bf16.mxu0 %v1419
  %2318 = vmatmul.mubr.bf16.gmra.mrb[0].mxu0 %v1418
  %v2319 = vpop.f32.mrb[0].mxu0
  %v2320 = vadd.f32 0.0, %v2319
  %v2321 = vpop.f32.mrb[0].mxu0
  %v2322 = vpop.f32.mrb[0].mxu0
  %v2323 = vadd.f32 0.0, %v2322
  %v2324 = vpop.f32.mrb[0].mxu0
  %2325 = vmatprep.mubr.bf16.mxu0 %v1423
  %2326 = vmatmul.mubr.bf16.gmra.mrb[0].mxu0 %v1422
  %v2327 = vpop.f32.mrb[0].mxu0
  %v2328 = vadd.f32 0.0, %v2327
  %v2329 = vpop.f32.mrb[0].mxu0
  %v2330 = vpop.f32.mrb[0].mxu0
  %v2331 = vadd.f32 0.0, %v2330
  %v2332 = vpop.f32.mrb[0].mxu0
  %2333 = vmatprep.mubr.bf16.mxu0 %v1427
  %2334 = vmatmul.mubr.bf16.gmra.mrb[0].mxu0 %v1426
  %v2335 = vpop.f32.mrb[0].mxu0
  %v2336 = vadd.f32 0.0, %v2335
  %v2337 = vpop.f32.mrb[0].mxu0
  %v2338 = vpop.f32.mrb[0].mxu0
  %v2339 = vadd.f32 0.0, %v2338
  %v2340 = vpop.f32.mrb[0].mxu0
  %2341 = vmatprep.mubr.bf16.mxu0 %v1431
  %2342 = vmatmul.mubr.bf16.gmra.mrb[0].mxu0 %v1430
  %v2343 = vpop.f32.mrb[0].mxu0
  %v2344 = vadd.f32 0.0, %v2343
  %v2345 = vpop.f32.mrb[0].mxu0
  %v2346 = vpop.f32.mrb[0].mxu0
  %v2347 = vadd.f32 0.0, %v2346
  %v2348 = vpop.f32.mrb[0].mxu0
  %2349 = vmatprep.mubr.bf16.mxu0 %v1435
  %2350 = vmatmul.mubr.bf16.gmra.mrb[0].mxu0 %v1434
  %v2351 = vpop.f32.mrb[0].mxu0
  %v2352 = vadd.f32 0.0, %v2351
  %v2353 = vpop.f32.mrb[0].mxu0
  %v2354 = vpop.f32.mrb[0].mxu0
  %v2355 = vadd.f32 0.0, %v2354
  %v2356 = vpop.f32.mrb[0].mxu0
  %2357 = vmatprep.mubr.bf16.mxu0 %v1439
  %2358 = vmatmul.mubr.bf16.gmra.mrb[0].mxu0 %v1438
  %v2359 = vpop.f32.mrb[0].mxu0
  %v2360 = vadd.f32 0.0, %v2359
  %v2361 = vpop.f32.mrb[0].mxu0
  %v2362 = vpop.f32.mrb[0].mxu0
  %v2363 = vadd.f32 0.0, %v2362
  %v2364 = vpop.f32.mrb[0].mxu0
  %2365 = vmatprep.mubr.bf16.mxu0 %v1443
  %2366 = vmatmul.mubr.bf16.gmra.mrb[0].mxu0 %v1442
  %v2367 = vpop.f32.mrb[0].mxu0
  %v2368 = vadd.f32 0.0, %v2367
  %v2369 = vpop.f32.mrb[0].mxu0
  %v2370 = vpop.f32.mrb[0].mxu0
  %v2371 = vadd.f32 0.0, %v2370
  %v2372 = vpop.f32.mrb[0].mxu0
  %2373 = vmatprep.mubr.bf16.mxu0 %v1447
  %2374 = vmatmul.mubr.bf16.gmra.mrb[0].mxu0 %v1446
  %v2375 = vpop.f32.mrb[0].mxu0
  %v2376 = vadd.f32 0.0, %v2375
  %v2377 = vpop.f32.mrb[0].mxu0
  %v2378 = vpop.f32.mrb[0].mxu0
  %v2379 = vadd.f32 0.0, %v2378
  %v2380 = vpop.f32.mrb[0].mxu0
  %2381 = vmatprep.mubr.bf16.mxu0 %v1451
  %2382 = vmatmul.mubr.bf16.gmra.mrb[0].mxu0 %v1450
  %v2383 = vpop.f32.mrb[0].mxu0
  %v2384 = vadd.f32 0.0, %v2383
  %v2385 = vpop.f32.mrb[0].mxu0
  %v2386 = vpop.f32.mrb[0].mxu0
  %v2387 = vadd.f32 0.0, %v2386
  %v2388 = vpop.f32.mrb[0].mxu0
  %2389 = vmatprep.mubr.bf16.mxu0 %v1455
  %2390 = vmatmul.mubr.bf16.gmra.mrb[0].mxu0 %v1454
  %v2391 = vpop.f32.mrb[0].mxu0
  %v2392 = vadd.f32 0.0, %v2391
  %v2393 = vpop.f32.mrb[0].mxu0
  %v2394 = vpop.f32.mrb[0].mxu0
  %v2395 = vadd.f32 0.0, %v2394
  %v2396 = vpop.f32.mrb[0].mxu0
  %2397 = vmatprep.mubr.bf16.mxu0 %v1459
  %2398 = vmatmul.mubr.bf16.gmra.mrb[0].mxu0 %v1458
  %v2399 = vpop.f32.mrb[0].mxu0
  %v2400 = vadd.f32 0.0, %v2399
  %v2401 = vpop.f32.mrb[0].mxu0
  %v2402 = vpop.f32.mrb[0].mxu0
  %v2403 = vadd.f32 0.0, %v2402
  %v2404 = vpop.f32.mrb[0].mxu0
  %2405 = vmatprep.mubr.bf16.mxu0 %v1463
  %2406 = vmatmul.mubr.bf16.gmra.mrb[0].mxu0 %v1462
  %v2407 = vpop.f32.mrb[0].mxu0
  %v2408 = vadd.f32 0.0, %v2407
  %v2409 = vpop.f32.mrb[0].mxu0
  %v2410 = vpop.f32.mrb[0].mxu0
  %v2411 = vadd.f32 0.0, %v2410
  %v2412 = vpop.f32.mrb[0].mxu0
  %2413 = vmatprep.mubr.bf16.mxu0 %v1467
  %2414 = vmatmul.mubr.bf16.gmra.mrb[0].mxu0 %v1466
  %v2415 = vpop.f32.mrb[0].mxu0
  %v2416 = vadd.f32 0.0, %v2415
  %v2417 = vpop.f32.mrb[0].mxu0
  %v2418 = vpop.f32.mrb[0].mxu0
  %v2419 = vadd.f32 0.0, %v2418
  %v2420 = vpop.f32.mrb[0].mxu0
  %2421 = vmatprep.mubr.bf16.mxu0 %v1471
  %2422 = vmatmul.mubr.bf16.gmra.mrb[0].mxu0 %v1470
  %v2423 = vpop.f32.mrb[0].mxu0
  %v2424 = vadd.f32 0.0, %v2423
  %v2425 = vpop.f32.mrb[0].mxu0
  %v2426 = vpop.f32.mrb[0].mxu0
  %v2427 = vadd.f32 0.0, %v2426
  %v2428 = vpop.f32.mrb[0].mxu0
  %2429 = vmatprep.mubr.bf16.mxu0 %v1475
  %2430 = vmatmul.mubr.bf16.gmra.mrb[0].mxu0 %v1474
  %v2431 = vpop.f32.mrb[0].mxu0
  %v2432 = vadd.f32 0.0, %v2431
  %v2433 = vpop.f32.mrb[0].mxu0
  %v2434 = vpop.f32.mrb[0].mxu0
  %v2435 = vadd.f32 0.0, %v2434
  %v2436 = vpop.f32.mrb[0].mxu0
  %2437 = vmatprep.mubr.bf16.mxu0 %v1479
  %2438 = vmatmul.mubr.bf16.gmra.mrb[0].mxu0 %v1478
  %v2439 = vpop.f32.mrb[0].mxu0
  %v2440 = vadd.f32 0.0, %v2439
  %v2441 = vpop.f32.mrb[0].mxu0
  %v2442 = vpop.f32.mrb[0].mxu0
  %v2443 = vadd.f32 0.0, %v2442
  %v2444 = vpop.f32.mrb[0].mxu0
  %2445 = vmatprep.mubr.bf16.mxu0 %v1483
  %2446 = vmatmul.mubr.bf16.gmra.mrb[0].mxu0 %v1482
  %v2447 = vpop.f32.mrb[0].mxu0
  %v2448 = vadd.f32 0.0, %v2447
  %v2449 = vpop.f32.mrb[0].mxu0
  %v2450 = vpop.f32.mrb[0].mxu0
  %v2451 = vadd.f32 0.0, %v2450
  %v2452 = vpop.f32.mrb[0].mxu0
  %2453 = vmatprep.mubr.bf16.mxu0 %v1487
  %2454 = vmatmul.mubr.bf16.gmra.mrb[0].mxu0 %v1486
  %v2455 = vpop.f32.mrb[0].mxu0
  %v2456 = vadd.f32 0.0, %v2455
  %v2457 = vpop.f32.mrb[0].mxu0
  %v2458 = vpop.f32.mrb[0].mxu0
  %v2459 = vadd.f32 0.0, %v2458
  %v2460 = vpop.f32.mrb[0].mxu0
  %2461 = vmatprep.mubr.bf16.mxu0 %v1491
  %2462 = vmatmul.mubr.bf16.gmra.mrb[0].mxu0 %v1490
  %v2463 = vpop.f32.mrb[0].mxu0
  %v2464 = vadd.f32 0.0, %v2463
  %v2465 = vpop.f32.mrb[0].mxu0
  %v2466 = vpop.f32.mrb[0].mxu0
  %v2467 = vadd.f32 0.0, %v2466
  %v2468 = vpop.f32.mrb[0].mxu0
  %2469 = vmatprep.mubr.bf16.mxu0 %v1495
  %2470 = vmatmul.mubr.bf16.gmra.mrb[0].mxu0 %v1494
  %v2471 = vpop.f32.mrb[0].mxu0
  %v2472 = vadd.f32 0.0, %v2471
  %v2473 = vpop.f32.mrb[0].mxu0
  %v2474 = vpop.f32.mrb[0].mxu0
  %v2475 = vadd.f32 0.0, %v2474
  %v2476 = vpop.f32.mrb[0].mxu0
  %2477 = vmatprep.mubr.bf16.mxu0 %v1499
  %2478 = vmatmul.mubr.bf16.gmra.mrb[0].mxu0 %v1498
  %v2479 = vpop.f32.mrb[0].mxu0
  %v2480 = vadd.f32 0.0, %v2479
  %v2481 = vpop.f32.mrb[0].mxu0
  %v2482 = vpop.f32.mrb[0].mxu0
  %v2483 = vadd.f32 0.0, %v2482
  %v2484 = vpop.f32.mrb[0].mxu0
  %2485 = vmatprep.mubr.bf16.mxu0 %v1503
  %2486 = vmatmul.mubr.bf16.gmra.mrb[0].mxu0 %v1502
  %v2487 = vpop.f32.mrb[0].mxu0
  %v2488 = vadd.f32 0.0, %v2487
  %v2489 = vpop.f32.mrb[0].mxu0
  %v2490 = vpop.f32.mrb[0].mxu0
  %v2491 = vadd.f32 0.0, %v2490
  %v2492 = vpop.f32.mrb[0].mxu0
  %2493 = vmatprep.mubr.bf16.mxu0 %v1507
  %2494 = vmatmul.mubr.bf16.gmra.mrb[0].mxu0 %v1506
  %v2495 = vpop.f32.mrb[0].mxu0
  %v2496 = vadd.f32 0.0, %v2495
  %v2497 = vpop.f32.mrb[0].mxu0
  %v2498 = vpop.f32.mrb[0].mxu0
  %v2499 = vadd.f32 0.0, %v2498
  %v2500 = vpop.f32.mrb[0].mxu0
  %2501 = vmatprep.mubr.bf16.mxu0 %v1511
  %2502 = vmatmul.mubr.bf16.gmra.mrb[0].mxu0 %v1510
  %v2503 = vpop.f32.mrb[0].mxu0
  %v2504 = vadd.f32 0.0, %v2503
  %v2505 = vpop.f32.mrb[0].mxu0
  %v2506 = vpop.f32.mrb[0].mxu0
  %v2507 = vadd.f32 0.0, %v2506
  %v2508 = vpop.f32.mrb[0].mxu0
  %2509 = vmatprep.mubr.bf16.mxu0 %v1515
  %2510 = vmatmul.mubr.bf16.gmra.mrb[0].mxu0 %v1514
  %v2511 = vpop.f32.mrb[0].mxu0
  %v2512 = vadd.f32 0.0, %v2511
  %v2513 = vpop.f32.mrb[0].mxu0
  %v2514 = vpop.f32.mrb[0].mxu0
  %v2515 = vadd.f32 0.0, %v2514
  %v2516 = vpop.f32.mrb[0].mxu0
  %2517 = vmatprep.mubr.bf16.mxu0 %v1519
  %2518 = vmatmul.mubr.bf16.gmra.mrb[0].mxu0 %v1518
  %v2519 = vpop.f32.mrb[0].mxu0
  %v2520 = vadd.f32 0.0, %v2519
  %v2521 = vpop.f32.mrb[0].mxu0
  %v2522 = vpop.f32.mrb[0].mxu0
  %v2523 = vadd.f32 0.0, %v2522
  %v2524 = vpop.f32.mrb[0].mxu0
  %2525 = vmatprep.mubr.bf16.mxu0 %v1523
  %2526 = vmatmul.mubr.bf16.gmra.mrb[0].mxu0 %v1522
  %v2527 = vpop.f32.mrb[0].mxu0
  %v2528 = vadd.f32 0.0, %v2527
  %v2529 = vpop.f32.mrb[0].mxu0
  %v2530 = vpop.f32.mrb[0].mxu0
  %v2531 = vadd.f32 0.0, %v2530
  %v2532 = vpop.f32.mrb[0].mxu0
  %2533 = vmatprep.mubr.bf16.mxu0 %v1527
  %2534 = vmatmul.mubr.bf16.gmra.mrb[0].mxu0 %v1526
  %v2535 = vpop.f32.mrb[0].mxu0
  %v2536 = vadd.f32 0.0, %v2535
  %v2537 = vpop.f32.mrb[0].mxu0
  %v2538 = vpop.f32.mrb[0].mxu0
  %v2539 = vadd.f32 0.0, %v2538
  %v2540 = vpop.f32.mrb[0].mxu0
  %2541 = vmatprep.mubr.bf16.mxu0 %v1531
  %2542 = vmatmul.mubr.bf16.gmra.mrb[0].mxu0 %v1530
  %v2543 = vpop.f32.mrb[0].mxu0
  %v2544 = vadd.f32 0.0, %v2543
  %v2545 = vpop.f32.mrb[0].mxu0
  %v2546 = vpop.f32.mrb[0].mxu0
  %v2547 = vadd.f32 0.0, %v2546
  %v2548 = vpop.f32.mrb[0].mxu0
  %2549 = vmatprep.mubr.bf16.mxu0 %v1535
  %2550 = vmatmul.mubr.bf16.gmra.mrb[0].mxu0 %v1534
  %v2551 = vpop.f32.mrb[0].mxu0
  %v2552 = vadd.f32 0.0, %v2551
  %v2553 = vpop.f32.mrb[0].mxu0
  %v2554 = vpop.f32.mrb[0].mxu0
  %v2555 = vadd.f32 0.0, %v2554
  %v2556 = vpop.f32.mrb[0].mxu0
  %2557 = vmatprep.mubr.bf16.mxu0 %v1539
  %2558 = vmatmul.mubr.bf16.gmra.mrb[0].mxu0 %v1538
  %v2559 = vpop.f32.mrb[0].mxu0
  %v2560 = vadd.f32 0.0, %v2559
  %v2561 = vpop.f32.mrb[0].mxu0
  %v2562 = vpop.f32.mrb[0].mxu0
  %v2563 = vadd.f32 0.0, %v2562
  %v2564 = vpop.f32.mrb[0].mxu0
  %2565 = vmatprep.mubr.bf16.mxu0 %v1543
  %2566 = vmatmul.mubr.bf16.gmra.mrb[0].mxu0 %v1542
  %v2567 = vpop.f32.mrb[0].mxu0
  %v2568 = vadd.f32 0.0, %v2567
  %v2569 = vpop.f32.mrb[0].mxu0
  %v2570 = vpop.f32.mrb[0].mxu0
  %v2571 = vadd.f32 0.0, %v2570
  %v2572 = vpop.f32.mrb[0].mxu0
  %2573 = vmatprep.mubr.bf16.mxu0 %v1547
  %2574 = vmatmul.mubr.bf16.gmra.mrb[0].mxu0 %v1546
  %v2575 = vpop.f32.mrb[0].mxu0
  %v2576 = vadd.f32 0.0, %v2575
  %v2577 = vpop.f32.mrb[0].mxu0
  %v2578 = vpop.f32.mrb[0].mxu0
  %v2579 = vadd.f32 0.0, %v2578
  %v2580 = vpop.f32.mrb[0].mxu0
  %2581 = vmatprep.mubr.bf16.mxu0 %v1551
  %2582 = vmatmul.mubr.bf16.gmra.mrb[0].mxu0 %v1550
  %v2583 = vpop.f32.mrb[0].mxu0
  %v2584 = vadd.f32 0.0, %v2583
  %v2585 = vpop.f32.mrb[0].mxu0
  %v2586 = vpop.f32.mrb[0].mxu0
  %v2587 = vadd.f32 0.0, %v2586
  %v2588 = vpop.f32.mrb[0].mxu0
  %2589 = vmatprep.mubr.bf16.mxu0 %v1555
  %2590 = vmatmul.mubr.bf16.gmra.mrb[0].mxu0 %v1554
  %v2591 = vpop.f32.mrb[0].mxu0
  %v2592 = vadd.f32 0.0, %v2591
  %v2593 = vpop.f32.mrb[0].mxu0
  %v2594 = vpop.f32.mrb[0].mxu0
  %v2595 = vadd.f32 0.0, %v2594
  %v2596 = vpop.f32.mrb[0].mxu0
  %2597 = vmatprep.mubr.bf16.mxu0 %v1559
  %2598 = vmatmul.mubr.bf16.gmra.mrb[0].mxu0 %v1558
  %v2599 = vpop.f32.mrb[0].mxu0
  %v2600 = vadd.f32 0.0, %v2599
  %v2601 = vpop.f32.mrb[0].mxu0
  %v2602 = vpop.f32.mrb[0].mxu0
  %v2603 = vadd.f32 0.0, %v2602
  %v2604 = vpop.f32.mrb[0].mxu0
  %2605 = vmatprep.mubr.bf16.mxu0 %v1563
  %2606 = vmatmul.mubr.bf16.gmra.mrb[0].mxu0 %v1562
  %v2607 = vpop.f32.mrb[0].mxu0
  %v2608 = vadd.f32 0.0, %v2607
  %v2609 = vpop.f32.mrb[0].mxu0
  %v2610 = vpop.f32.mrb[0].mxu0
  %v2611 = vadd.f32 0.0, %v2610
  %v2612 = vpop.f32.mrb[0].mxu0
  %2613 = vmatprep.mubr.bf16.mxu0 %v1567
  %2614 = vmatmul.mubr.bf16.gmra.mrb[0].mxu0 %v1566
  %v2615 = vpop.f32.mrb[0].mxu0
  %v2616 = vadd.f32 0.0, %v2615
  %v2617 = vpop.f32.mrb[0].mxu0
  %v2618 = vpop.f32.mrb[0].mxu0
  %v2619 = vadd.f32 0.0, %v2618
  %v2620 = vpop.f32.mrb[0].mxu0
  %2621 = vmatprep.mubr.bf16.mxu0 %v1571
  %2622 = vmatmul.mubr.bf16.gmra.mrb[0].mxu0 %v1570
  %v2623 = vpop.f32.mrb[0].mxu0
  %v2624 = vadd.f32 0.0, %v2623
  %v2625 = vpop.f32.mrb[0].mxu0
  %v2626 = vpop.f32.mrb[0].mxu0
  %v2627 = vadd.f32 0.0, %v2626
  %v2628 = vpop.f32.mrb[0].mxu0
  %2629 = vmatprep.mubr.bf16.mxu0 %v1575
  %2630 = vmatmul.mubr.bf16.gmra.mrb[0].mxu0 %v1574
  %v2631 = vpop.f32.mrb[0].mxu0
  %v2632 = vadd.f32 0.0, %v2631
  %v2633 = vpop.f32.mrb[0].mxu0
  %v2634 = vpop.f32.mrb[0].mxu0
  %v2635 = vadd.f32 0.0, %v2634
  %v2636 = vpop.f32.mrb[0].mxu0
  %2637 = vmatprep.mubr.bf16.mxu0 %v1579
  %2638 = vmatmul.mubr.bf16.gmra.mrb[0].mxu0 %v1578
  %v2639 = vpop.f32.mrb[0].mxu0
  %v2640 = vadd.f32 0.0, %v2639
  %v2641 = vpop.f32.mrb[0].mxu0
  %v2642 = vpop.f32.mrb[0].mxu0
  %v2643 = vadd.f32 0.0, %v2642
  %v2644 = vpop.f32.mrb[0].mxu0
  %2645 = vmatprep.mubr.bf16.mxu0 %v1583
  %2646 = vmatmul.mubr.bf16.gmra.mrb[0].mxu0 %v1582
  %v2647 = vpop.f32.mrb[0].mxu0
  %v2648 = vadd.f32 0.0, %v2647
  %v2649 = vpop.f32.mrb[0].mxu0
  %v2650 = vpop.f32.mrb[0].mxu0
  %v2651 = vadd.f32 0.0, %v2650
  %v2652 = vpop.f32.mrb[0].mxu0
  %2653 = vmatprep.mubr.bf16.mxu0 %v1587
  %2654 = vmatmul.mubr.bf16.gmra.mrb[0].mxu0 %v1586
  %v2655 = vpop.f32.mrb[0].mxu0
  %v2656 = vadd.f32 0.0, %v2655
  %v2657 = vpop.f32.mrb[0].mxu0
  %v2658 = vpop.f32.mrb[0].mxu0
  %v2659 = vadd.f32 0.0, %v2658
  %v2660 = vpop.f32.mrb[0].mxu0
  %2661 = vmatprep.mubr.bf16.mxu0 %v1591
  %2662 = vmatmul.mubr.bf16.gmra.mrb[0].mxu0 %v1590
  %v2663 = vpop.f32.mrb[0].mxu0
  %v2664 = vadd.f32 0.0, %v2663
  %v2665 = vpop.f32.mrb[0].mxu0
  %v2666 = vpop.f32.mrb[0].mxu0
  %v2667 = vadd.f32 0.0, %v2666
  %v2668 = vpop.f32.mrb[0].mxu0
  %2669 = vmatprep.mubr.bf16.mxu0 %v1595
  %2670 = vmatmul.mubr.bf16.gmra.mrb[0].mxu0 %v1594
  %v2671 = vpop.f32.mrb[0].mxu0
  %v2672 = vadd.f32 0.0, %v2671
  %v2673 = vpop.f32.mrb[0].mxu0
  %v2674 = vpop.f32.mrb[0].mxu0
  %v2675 = vadd.f32 0.0, %v2674
  %v2676 = vpop.f32.mrb[0].mxu0
  %2677 = vmatprep.mubr.bf16.mxu0 %v1599
  %2678 = vmatmul.mubr.bf16.gmra.mrb[0].mxu0 %v1598
  %v2679 = vpop.f32.mrb[0].mxu0
  %v2680 = vadd.f32 0.0, %v2679
  %v2681 = vpop.f32.mrb[0].mxu0
  %v2682 = vpop.f32.mrb[0].mxu0
  %v2683 = vadd.f32 0.0, %v2682
  %v2684 = vpop.f32.mrb[0].mxu0
  %2685 = vmatprep.mubr.bf16.mxu0 %v1603
  %2686 = vmatmul.mubr.bf16.gmra.mrb[0].mxu0 %v1602
  %v2687 = vpop.f32.mrb[0].mxu0
  %v2688 = vadd.f32 0.0, %v2687
  %v2689 = vpop.f32.mrb[0].mxu0
  %v2690 = vpop.f32.mrb[0].mxu0
  %v2691 = vadd.f32 0.0, %v2690
  %v2692 = vpop.f32.mrb[0].mxu0
  %2693 = vmatprep.mubr.bf16.mxu0 %v1607
  %2694 = vmatmul.mubr.bf16.gmra.mrb[0].mxu0 %v1606
  %v2695 = vpop.f32.mrb[0].mxu0
  %v2696 = vadd.f32 0.0, %v2695
  %v2697 = vpop.f32.mrb[0].mxu0
  %v2698 = vpop.f32.mrb[0].mxu0
  %v2699 = vadd.f32 0.0, %v2698
  %v2700 = vpop.f32.mrb[0].mxu0
  %2701 = vdwg.mxu0
  %2702 = vmatprep.subr.bf16.mxu0 0
  %2703 = vmatpush1.bf16.msra.mxu0 %v1926
  %2704 = vmatprep.subr.bf16.mxu0 0
  %2705 = vmatpush1.bf16.msra.mxu0 %v1927
  %2706 = vmatprep.subr.bf16.mxu0 0
  %2707 = vmatpush1.bf16.msra.mxu0 %v1928
  %2708 = vmatprep.subr.bf16.mxu0 0
  %2709 = vmatpush1.bf16.msra.mxu0 %v1929
  %2710 = vmatprep.subr.bf16.mxu0 0
  %2711 = vmatpush1.bf16.msra.mxu0 %v1930
  %2712 = vmatprep.subr.bf16.mxu0 0
  %2713 = vmatpush1.bf16.msra.mxu0 %v1931
  %2714 = vmatprep.subr.bf16.mxu0 0
  %2715 = vmatpush1.bf16.msra.mxu0 %v1932
  %2716 = vmatprep.subr.bf16.mxu0 0
  %2717 = vmatpush1.bf16.msra.mxu0 %v1933
  %2718 = vmatprep.subr.bf16.mxu0 0
  %2719 = vmatpush1.bf16.msra.mxu0 %v1934
  %2720 = vmatprep.subr.bf16.mxu0 0
  %2721 = vmatpush1.bf16.msra.mxu0 %v1935
  %2722 = vmatprep.subr.bf16.mxu0 0
  %2723 = vmatpush1.bf16.msra.mxu0 %v1936
  %2724 = vmatprep.subr.bf16.mxu0 0
  %2725 = vmatpush1.bf16.msra.mxu0 0
  %2726 = vmatprep.subr.bf16.mxu0 0
  %2727 = vmatpush1.bf16.msra.mxu0 0
  %2728 = vmatprep.subr.bf16.mxu0 0
  %2729 = vmatpush1.bf16.msra.mxu0 0
  %2730 = vmatprep.subr.bf16.mxu0 0
  %2731 = vmatpush1.bf16.msra.mxu0 0
  %2732 = vmatprep.subr.bf16.mxu0 0
  %2733 = vmatpush1.bf16.msra.mxu0 0
  %2734 = vmatprep.mubr.bf16.mxu0 %v1966
  %2735 = vmatmul.mubr.bf16.gmra.mrb[0].mxu0 %v1356
  %v2736 = vpop.f32.mrb[0].mxu0
  %v2737 = vadd.f32 %v2192, %v2736
  %v2738 = vpop.f32.mrb[0].mxu0
  %v2739 = vpop.f32.mrb[0].mxu0
  %v2740 = vadd.f32 %v2195, %v2739
  %v2741 = vpop.f32.mrb[0].mxu0
  %2742 = vmatprep.mubr.bf16.mxu0 %v1969
  %2743 = vmatmul.mubr.bf16.gmra.mrb[0].mxu0 %v1360
  %v2744 = vpop.f32.mrb[0].mxu0
  %v2745 = vadd.f32 %v2200, %v2744
  %v2746 = vpop.f32.mrb[0].mxu0
  %v2747 = vpop.f32.mrb[0].mxu0
  %v2748 = vadd.f32 %v2203, %v2747
  %v2749 = vpop.f32.mrb[0].mxu0
  %2750 = vmatprep.mubr.bf16.mxu0 %v1972
  %2751 = vmatmul.mubr.bf16.gmra.mrb[0].mxu0 %v1364
  %v2752 = vpop.f32.mrb[0].mxu0
  %v2753 = vadd.f32 %v2208, %v2752
  %v2754 = vpop.f32.mrb[0].mxu0
  %v2755 = vpop.f32.mrb[0].mxu0
  %v2756 = vadd.f32 %v2211, %v2755
  %v2757 = vpop.f32.mrb[0].mxu0
  %2758 = vmatprep.mubr.bf16.mxu0 %v1975
  %2759 = vmatmul.mubr.bf16.gmra.mrb[0].mxu0 %v1368
  %v2760 = vpop.f32.mrb[0].mxu0
  %v2761 = vadd.f32 %v2216, %v2760
  %v2762 = vpop.f32.mrb[0].mxu0
  %v2763 = vpop.f32.mrb[0].mxu0
  %v2764 = vadd.f32 %v2219, %v2763
  %v2765 = vpop.f32.mrb[0].mxu0
  %2766 = vmatprep.mubr.bf16.mxu0 %v1978
  %2767 = vmatmul.mubr.bf16.gmra.mrb[0].mxu0 %v1372
  %v2768 = vpop.f32.mrb[0].mxu0
  %v2769 = vadd.f32 %v2224, %v2768
  %v2770 = vpop.f32.mrb[0].mxu0
  %v2771 = vpop.f32.mrb[0].mxu0
  %v2772 = vadd.f32 %v2227, %v2771
  %v2773 = vpop.f32.mrb[0].mxu0
  %2774 = vmatprep.mubr.bf16.mxu0 %v1981
  %2775 = vmatmul.mubr.bf16.gmra.mrb[0].mxu0 %v1376
  %v2776 = vpop.f32.mrb[0].mxu0
  %v2777 = vadd.f32 %v2232, %v2776
  %v2778 = vpop.f32.mrb[0].mxu0
  %v2779 = vpop.f32.mrb[0].mxu0
  %v2780 = vadd.f32 %v2235, %v2779
  %v2781 = vpop.f32.mrb[0].mxu0
  %2782 = vmatprep.mubr.bf16.mxu0 %v1984
  %2783 = vmatmul.mubr.bf16.gmra.mrb[0].mxu0 %v1380
  %v2784 = vpop.f32.mrb[0].mxu0
  %v2785 = vadd.f32 %v2240, %v2784
  %v2786 = vpop.f32.mrb[0].mxu0
  %v2787 = vpop.f32.mrb[0].mxu0
  %v2788 = vadd.f32 %v2243, %v2787
  %v2789 = vpop.f32.mrb[0].mxu0
  %2790 = vmatprep.mubr.bf16.mxu0 %v1987
  %2791 = vmatmul.mubr.bf16.gmra.mrb[0].mxu0 %v1384
  %v2792 = vpop.f32.mrb[0].mxu0
  %v2793 = vadd.f32 %v2248, %v2792
  %v2794 = vpop.f32.mrb[0].mxu0
  %v2795 = vpop.f32.mrb[0].mxu0
  %v2796 = vadd.f32 %v2251, %v2795
  %v2797 = vpop.f32.mrb[0].mxu0
  %2798 = vmatprep.mubr.bf16.mxu0 %v1990
  %2799 = vmatmul.mubr.bf16.gmra.mrb[0].mxu0 %v1388
  %v2800 = vpop.f32.mrb[0].mxu0
  %v2801 = vadd.f32 %v2256, %v2800
  %v2802 = vpop.f32.mrb[0].mxu0
  %v2803 = vpop.f32.mrb[0].mxu0
  %v2804 = vadd.f32 %v2259, %v2803
  %v2805 = vpop.f32.mrb[0].mxu0
  %2806 = vmatprep.mubr.bf16.mxu0 %v1993
  %2807 = vmatmul.mubr.bf16.gmra.mrb[0].mxu0 %v1392
  %v2808 = vpop.f32.mrb[0].mxu0
  %v2809 = vadd.f32 %v2264, %v2808
  %v2810 = vpop.f32.mrb[0].mxu0
  %v2811 = vpop.f32.mrb[0].mxu0
  %v2812 = vadd.f32 %v2267, %v2811
  %v2813 = vpop.f32.mrb[0].mxu0
  %2814 = vmatprep.mubr.bf16.mxu0 %v1996
  %2815 = vmatmul.mubr.bf16.gmra.mrb[0].mxu0 %v1396
  %v2816 = vpop.f32.mrb[0].mxu0
  %v2817 = vadd.f32 %v2272, %v2816
  %v2818 = vpop.f32.mrb[0].mxu0
  %v2819 = vpop.f32.mrb[0].mxu0
  %v2820 = vadd.f32 %v2275, %v2819
  %v2821 = vpop.f32.mrb[0].mxu0
  %2822 = vmatprep.mubr.bf16.mxu0 %v1999
  %2823 = vmatmul.mubr.bf16.gmra.mrb[0].mxu0 %v1400
  %v2824 = vpop.f32.mrb[0].mxu0
  %v2825 = vadd.f32 %v2280, %v2824
  %v2826 = vpop.f32.mrb[0].mxu0
  %v2827 = vpop.f32.mrb[0].mxu0
  %v2828 = vadd.f32 %v2283, %v2827
  %v2829 = vpop.f32.mrb[0].mxu0
  %2830 = vmatprep.mubr.bf16.mxu0 %v2002
  %2831 = vmatmul.mubr.bf16.gmra.mrb[0].mxu0 %v1404
  %v2832 = vpop.f32.mrb[0].mxu0
  %v2833 = vadd.f32 %v2288, %v2832
  %v2834 = vpop.f32.mrb[0].mxu0
  %v2835 = vpop.f32.mrb[0].mxu0
  %v2836 = vadd.f32 %v2291, %v2835
  %v2837 = vpop.f32.mrb[0].mxu0
  %2838 = vmatprep.mubr.bf16.mxu0 %v2005
  %2839 = vmatmul.mubr.bf16.gmra.mrb[0].mxu0 %v1408
  %v2840 = vpop.f32.mrb[0].mxu0
  %v2841 = vadd.f32 %v2296, %v2840
  %v2842 = vpop.f32.mrb[0].mxu0
  %v2843 = vpop.f32.mrb[0].mxu0
  %v2844 = vadd.f32 %v2299, %v2843
  %v2845 = vpop.f32.mrb[0].mxu0
  %2846 = vmatprep.mubr.bf16.mxu0 %v2008
  %2847 = vmatmul.mubr.bf16.gmra.mrb[0].mxu0 %v1412
  %v2848 = vpop.f32.mrb[0].mxu0
  %v2849 = vadd.f32 %v2304, %v2848
  %v2850 = vpop.f32.mrb[0].mxu0
  %v2851 = vpop.f32.mrb[0].mxu0
  %v2852 = vadd.f32 %v2307, %v2851
  %v2853 = vpop.f32.mrb[0].mxu0
  %2854 = vmatprep.mubr.bf16.mxu0 %v2011
  %2855 = vmatmul.mubr.bf16.gmra.mrb[0].mxu0 %v1416
  %v2856 = vpop.f32.mrb[0].mxu0
  %v2857 = vadd.f32 %v2312, %v2856
  %v2858 = vpop.f32.mrb[0].mxu0
  %v2859 = vpop.f32.mrb[0].mxu0
  %v2860 = vadd.f32 %v2315, %v2859
  %v2861 = vpop.f32.mrb[0].mxu0
  %2862 = vmatprep.mubr.bf16.mxu0 %v2014
  %2863 = vmatmul.mubr.bf16.gmra.mrb[0].mxu0 %v1420
  %v2864 = vpop.f32.mrb[0].mxu0
  %v2865 = vadd.f32 %v2320, %v2864
  %v2866 = vpop.f32.mrb[0].mxu0
  %v2867 = vpop.f32.mrb[0].mxu0
  %v2868 = vadd.f32 %v2323, %v2867
  %v2869 = vpop.f32.mrb[0].mxu0
  %2870 = vmatprep.mubr.bf16.mxu0 %v2017
  %2871 = vmatmul.mubr.bf16.gmra.mrb[0].mxu0 %v1424
  %v2872 = vpop.f32.mrb[0].mxu0
  %v2873 = vadd.f32 %v2328, %v2872
  %v2874 = vpop.f32.mrb[0].mxu0
  %v2875 = vpop.f32.mrb[0].mxu0
  %v2876 = vadd.f32 %v2331, %v2875
  %v2877 = vpop.f32.mrb[0].mxu0
  %2878 = vmatprep.mubr.bf16.mxu0 %v2020
  %2879 = vmatmul.mubr.bf16.gmra.mrb[0].mxu0 %v1428
  %v2880 = vpop.f32.mrb[0].mxu0
  %v2881 = vadd.f32 %v2336, %v2880
  %v2882 = vpop.f32.mrb[0].mxu0
  %v2883 = vpop.f32.mrb[0].mxu0
  %v2884 = vadd.f32 %v2339, %v2883
  %v2885 = vpop.f32.mrb[0].mxu0
  %2886 = vmatprep.mubr.bf16.mxu0 %v2023
  %2887 = vmatmul.mubr.bf16.gmra.mrb[0].mxu0 %v1432
  %v2888 = vpop.f32.mrb[0].mxu0
  %v2889 = vadd.f32 %v2344, %v2888
  %v2890 = vpop.f32.mrb[0].mxu0
  %v2891 = vpop.f32.mrb[0].mxu0
  %v2892 = vadd.f32 %v2347, %v2891
  %v2893 = vpop.f32.mrb[0].mxu0
  %2894 = vmatprep.mubr.bf16.mxu0 %v2026
  %2895 = vmatmul.mubr.bf16.gmra.mrb[0].mxu0 %v1436
  %v2896 = vpop.f32.mrb[0].mxu0
  %v2897 = vadd.f32 %v2352, %v2896
  %v2898 = vpop.f32.mrb[0].mxu0
  %v2899 = vpop.f32.mrb[0].mxu0
  %v2900 = vadd.f32 %v2355, %v2899
  %v2901 = vpop.f32.mrb[0].mxu0
  %2902 = vmatprep.mubr.bf16.mxu0 %v2029
  %2903 = vmatmul.mubr.bf16.gmra.mrb[0].mxu0 %v1440
  %v2904 = vpop.f32.mrb[0].mxu0
  %v2905 = vadd.f32 %v2360, %v2904
  %v2906 = vpop.f32.mrb[0].mxu0
  %v2907 = vpop.f32.mrb[0].mxu0
  %v2908 = vadd.f32 %v2363, %v2907
  %v2909 = vpop.f32.mrb[0].mxu0
  %2910 = vmatprep.mubr.bf16.mxu0 %v2032
  %2911 = vmatmul.mubr.bf16.gmra.mrb[0].mxu0 %v1444
  %v2912 = vpop.f32.mrb[0].mxu0
  %v2913 = vadd.f32 %v2368, %v2912
  %v2914 = vpop.f32.mrb[0].mxu0
  %v2915 = vpop.f32.mrb[0].mxu0
  %v2916 = vadd.f32 %v2371, %v2915
  %v2917 = vpop.f32.mrb[0].mxu0
  %2918 = vmatprep.mubr.bf16.mxu0 %v2035
  %2919 = vmatmul.mubr.bf16.gmra.mrb[0].mxu0 %v1448
  %v2920 = vpop.f32.mrb[0].mxu0
  %v2921 = vadd.f32 %v2376, %v2920
  %v2922 = vpop.f32.mrb[0].mxu0
  %v2923 = vpop.f32.mrb[0].mxu0
  %v2924 = vadd.f32 %v2379, %v2923
  %v2925 = vpop.f32.mrb[0].mxu0
  %2926 = vmatprep.mubr.bf16.mxu0 %v2038
  %2927 = vmatmul.mubr.bf16.gmra.mrb[0].mxu0 %v1452
  %v2928 = vpop.f32.mrb[0].mxu0
  %v2929 = vadd.f32 %v2384, %v2928
  %v2930 = vpop.f32.mrb[0].mxu0
  %v2931 = vpop.f32.mrb[0].mxu0
  %v2932 = vadd.f32 %v2387, %v2931
  %v2933 = vpop.f32.mrb[0].mxu0
  %2934 = vmatprep.mubr.bf16.mxu0 %v2041
  %2935 = vmatmul.mubr.bf16.gmra.mrb[0].mxu0 %v1456
  %v2936 = vpop.f32.mrb[0].mxu0
  %v2937 = vadd.f32 %v2392, %v2936
  %v2938 = vpop.f32.mrb[0].mxu0
  %v2939 = vpop.f32.mrb[0].mxu0
  %v2940 = vadd.f32 %v2395, %v2939
  %v2941 = vpop.f32.mrb[0].mxu0
  %2942 = vmatprep.mubr.bf16.mxu0 %v2044
  %2943 = vmatmul.mubr.bf16.gmra.mrb[0].mxu0 %v1460
  %v2944 = vpop.f32.mrb[0].mxu0
  %v2945 = vadd.f32 %v2400, %v2944
  %v2946 = vpop.f32.mrb[0].mxu0
  %v2947 = vpop.f32.mrb[0].mxu0
  %v2948 = vadd.f32 %v2403, %v2947
  %v2949 = vpop.f32.mrb[0].mxu0
  %2950 = vmatprep.mubr.bf16.mxu0 %v2047
  %2951 = vmatmul.mubr.bf16.gmra.mrb[0].mxu0 %v1464
  %v2952 = vpop.f32.mrb[0].mxu0
  %v2953 = vadd.f32 %v2408, %v2952
  %v2954 = vpop.f32.mrb[0].mxu0
  %v2955 = vpop.f32.mrb[0].mxu0
  %v2956 = vadd.f32 %v2411, %v2955
  %v2957 = vpop.f32.mrb[0].mxu0
  %2958 = vmatprep.mubr.bf16.mxu0 %v2050
  %2959 = vmatmul.mubr.bf16.gmra.mrb[0].mxu0 %v1468
  %v2960 = vpop.f32.mrb[0].mxu0
  %v2961 = vadd.f32 %v2416, %v2960
  %v2962 = vpop.f32.mrb[0].mxu0
  %v2963 = vpop.f32.mrb[0].mxu0
  %v2964 = vadd.f32 %v2419, %v2963
  %v2965 = vpop.f32.mrb[0].mxu0
  %2966 = vmatprep.mubr.bf16.mxu0 %v2053
  %2967 = vmatmul.mubr.bf16.gmra.mrb[0].mxu0 %v1472
  %v2968 = vpop.f32.mrb[0].mxu0
  %v2969 = vadd.f32 %v2424, %v2968
  %v2970 = vpop.f32.mrb[0].mxu0
  %v2971 = vpop.f32.mrb[0].mxu0
  %v2972 = vadd.f32 %v2427, %v2971
  %v2973 = vpop.f32.mrb[0].mxu0
  %2974 = vmatprep.mubr.bf16.mxu0 %v2056
  %2975 = vmatmul.mubr.bf16.gmra.mrb[0].mxu0 %v1476
  %v2976 = vpop.f32.mrb[0].mxu0
  %v2977 = vadd.f32 %v2432, %v2976
  %v2978 = vpop.f32.mrb[0].mxu0
  %v2979 = vpop.f32.mrb[0].mxu0
  %v2980 = vadd.f32 %v2435, %v2979
  %v2981 = vpop.f32.mrb[0].mxu0
  %2982 = vmatprep.mubr.bf16.mxu0 %v2059
  %2983 = vmatmul.mubr.bf16.gmra.mrb[0].mxu0 %v1480
  %v2984 = vpop.f32.mrb[0].mxu0
  %v2985 = vadd.f32 %v2440, %v2984
  %v2986 = vpop.f32.mrb[0].mxu0
  %v2987 = vpop.f32.mrb[0].mxu0
  %v2988 = vadd.f32 %v2443, %v2987
  %v2989 = vpop.f32.mrb[0].mxu0
  %2990 = vmatprep.mubr.bf16.mxu0 %v2062
  %2991 = vmatmul.mubr.bf16.gmra.mrb[0].mxu0 %v1484
  %v2992 = vpop.f32.mrb[0].mxu0
  %v2993 = vadd.f32 %v2448, %v2992
  %v2994 = vpop.f32.mrb[0].mxu0
  %v2995 = vpop.f32.mrb[0].mxu0
  %v2996 = vadd.f32 %v2451, %v2995
  %v2997 = vpop.f32.mrb[0].mxu0
  %2998 = vmatprep.mubr.bf16.mxu0 %v2065
  %2999 = vmatmul.mubr.bf16.gmra.mrb[0].mxu0 %v1488
  %v3000 = vpop.f32.mrb[0].mxu0
  %v3001 = vadd.f32 %v2456, %v3000
  %v3002 = vpop.f32.mrb[0].mxu0
  %v3003 = vpop.f32.mrb[0].mxu0
  %v3004 = vadd.f32 %v2459, %v3003
  %v3005 = vpop.f32.mrb[0].mxu0
  %3006 = vmatprep.mubr.bf16.mxu0 %v2068
  %3007 = vmatmul.mubr.bf16.gmra.mrb[0].mxu0 %v1492
  %v3008 = vpop.f32.mrb[0].mxu0
  %v3009 = vadd.f32 %v2464, %v3008
  %v3010 = vpop.f32.mrb[0].mxu0
  %v3011 = vpop.f32.mrb[0].mxu0
  %v3012 = vadd.f32 %v2467, %v3011
  %v3013 = vpop.f32.mrb[0].mxu0
  %3014 = vmatprep.mubr.bf16.mxu0 %v2071
  %3015 = vmatmul.mubr.bf16.gmra.mrb[0].mxu0 %v1496
  %v3016 = vpop.f32.mrb[0].mxu0
  %v3017 = vadd.f32 %v2472, %v3016
  %v3018 = vpop.f32.mrb[0].mxu0
  %v3019 = vpop.f32.mrb[0].mxu0
  %v3020 = vadd.f32 %v2475, %v3019
  %v3021 = vpop.f32.mrb[0].mxu0
  %3022 = vmatprep.mubr.bf16.mxu0 %v2074
  %3023 = vmatmul.mubr.bf16.gmra.mrb[0].mxu0 %v1500
  %v3024 = vpop.f32.mrb[0].mxu0
  %v3025 = vadd.f32 %v2480, %v3024
  %v3026 = vpop.f32.mrb[0].mxu0
  %v3027 = vpop.f32.mrb[0].mxu0
  %v3028 = vadd.f32 %v2483, %v3027
  %v3029 = vpop.f32.mrb[0].mxu0
  %3030 = vmatprep.mubr.bf16.mxu0 %v2077
  %3031 = vmatmul.mubr.bf16.gmra.mrb[0].mxu0 %v1504
  %v3032 = vpop.f32.mrb[0].mxu0
  %v3033 = vadd.f32 %v2488, %v3032
  %v3034 = vpop.f32.mrb[0].mxu0
  %v3035 = vpop.f32.mrb[0].mxu0
  %v3036 = vadd.f32 %v2491, %v3035
  %v3037 = vpop.f32.mrb[0].mxu0
  %3038 = vmatprep.mubr.bf16.mxu0 %v2080
  %3039 = vmatmul.mubr.bf16.gmra.mrb[0].mxu0 %v1508
  %v3040 = vpop.f32.mrb[0].mxu0
  %v3041 = vadd.f32 %v2496, %v3040
  %v3042 = vpop.f32.mrb[0].mxu0
  %v3043 = vpop.f32.mrb[0].mxu0
  %v3044 = vadd.f32 %v2499, %v3043
  %v3045 = vpop.f32.mrb[0].mxu0
  %3046 = vmatprep.mubr.bf16.mxu0 %v2083
  %3047 = vmatmul.mubr.bf16.gmra.mrb[0].mxu0 %v1512
  %v3048 = vpop.f32.mrb[0].mxu0
  %v3049 = vadd.f32 %v2504, %v3048
  %v3050 = vpop.f32.mrb[0].mxu0
  %v3051 = vpop.f32.mrb[0].mxu0
  %v3052 = vadd.f32 %v2507, %v3051
  %v3053 = vpop.f32.mrb[0].mxu0
  %3054 = vmatprep.mubr.bf16.mxu0 %v2086
  %3055 = vmatmul.mubr.bf16.gmra.mrb[0].mxu0 %v1516
  %v3056 = vpop.f32.mrb[0].mxu0
  %v3057 = vadd.f32 %v2512, %v3056
  %v3058 = vpop.f32.mrb[0].mxu0
  %v3059 = vpop.f32.mrb[0].mxu0
  %v3060 = vadd.f32 %v2515, %v3059
  %v3061 = vpop.f32.mrb[0].mxu0
  %3062 = vmatprep.mubr.bf16.mxu0 %v2089
  %3063 = vmatmul.mubr.bf16.gmra.mrb[0].mxu0 %v1520
  %v3064 = vpop.f32.mrb[0].mxu0
  %v3065 = vadd.f32 %v2520, %v3064
  %v3066 = vpop.f32.mrb[0].mxu0
  %v3067 = vpop.f32.mrb[0].mxu0
  %v3068 = vadd.f32 %v2523, %v3067
  %v3069 = vpop.f32.mrb[0].mxu0
  %3070 = vmatprep.mubr.bf16.mxu0 %v2092
  %3071 = vmatmul.mubr.bf16.gmra.mrb[0].mxu0 %v1524
  %v3072 = vpop.f32.mrb[0].mxu0
  %v3073 = vadd.f32 %v2528, %v3072
  %v3074 = vpop.f32.mrb[0].mxu0
  %v3075 = vpop.f32.mrb[0].mxu0
  %v3076 = vadd.f32 %v2531, %v3075
  %v3077 = vpop.f32.mrb[0].mxu0
  %3078 = vmatprep.mubr.bf16.mxu0 %v2095
  %3079 = vmatmul.mubr.bf16.gmra.mrb[0].mxu0 %v1528
  %v3080 = vpop.f32.mrb[0].mxu0
  %v3081 = vadd.f32 %v2536, %v3080
  %v3082 = vpop.f32.mrb[0].mxu0
  %v3083 = vpop.f32.mrb[0].mxu0
  %v3084 = vadd.f32 %v2539, %v3083
  %v3085 = vpop.f32.mrb[0].mxu0
  %3086 = vmatprep.mubr.bf16.mxu0 %v2098
  %3087 = vmatmul.mubr.bf16.gmra.mrb[0].mxu0 %v1532
  %v3088 = vpop.f32.mrb[0].mxu0
  %v3089 = vadd.f32 %v2544, %v3088
  %v3090 = vpop.f32.mrb[0].mxu0
  %v3091 = vpop.f32.mrb[0].mxu0
  %v3092 = vadd.f32 %v2547, %v3091
  %v3093 = vpop.f32.mrb[0].mxu0
  %3094 = vmatprep.mubr.bf16.mxu0 %v2101
  %3095 = vmatmul.mubr.bf16.gmra.mrb[0].mxu0 %v1536
  %v3096 = vpop.f32.mrb[0].mxu0
  %v3097 = vadd.f32 %v2552, %v3096
  %v3098 = vpop.f32.mrb[0].mxu0
  %v3099 = vpop.f32.mrb[0].mxu0
  %v3100 = vadd.f32 %v2555, %v3099
  %v3101 = vpop.f32.mrb[0].mxu0
  %3102 = vmatprep.mubr.bf16.mxu0 %v2104
  %3103 = vmatmul.mubr.bf16.gmra.mrb[0].mxu0 %v1540
  %v3104 = vpop.f32.mrb[0].mxu0
  %v3105 = vadd.f32 %v2560, %v3104
  %v3106 = vpop.f32.mrb[0].mxu0
  %v3107 = vpop.f32.mrb[0].mxu0
  %v3108 = vadd.f32 %v2563, %v3107
  %v3109 = vpop.f32.mrb[0].mxu0
  %3110 = vmatprep.mubr.bf16.mxu0 %v2107
  %3111 = vmatmul.mubr.bf16.gmra.mrb[0].mxu0 %v1544
  %v3112 = vpop.f32.mrb[0].mxu0
  %v3113 = vadd.f32 %v2568, %v3112
  %v3114 = vpop.f32.mrb[0].mxu0
  %v3115 = vpop.f32.mrb[0].mxu0
  %v3116 = vadd.f32 %v2571, %v3115
  %v3117 = vpop.f32.mrb[0].mxu0
  %3118 = vmatprep.mubr.bf16.mxu0 %v2110
  %3119 = vmatmul.mubr.bf16.gmra.mrb[0].mxu0 %v1548
  %v3120 = vpop.f32.mrb[0].mxu0
  %v3121 = vadd.f32 %v2576, %v3120
  %v3122 = vpop.f32.mrb[0].mxu0
  %v3123 = vpop.f32.mrb[0].mxu0
  %v3124 = vadd.f32 %v2579, %v3123
  %v3125 = vpop.f32.mrb[0].mxu0
  %3126 = vmatprep.mubr.bf16.mxu0 %v2113
  %3127 = vmatmul.mubr.bf16.gmra.mrb[0].mxu0 %v1552
  %v3128 = vpop.f32.mrb[0].mxu0
  %v3129 = vadd.f32 %v2584, %v3128
  %v3130 = vpop.f32.mrb[0].mxu0
  %v3131 = vpop.f32.mrb[0].mxu0
  %v3132 = vadd.f32 %v2587, %v3131
  %v3133 = vpop.f32.mrb[0].mxu0
  %3134 = vmatprep.mubr.bf16.mxu0 %v2116
  %3135 = vmatmul.mubr.bf16.gmra.mrb[0].mxu0 %v1556
  %v3136 = vpop.f32.mrb[0].mxu0
  %v3137 = vadd.f32 %v2592, %v3136
  %v3138 = vpop.f32.mrb[0].mxu0
  %v3139 = vpop.f32.mrb[0].mxu0
  %v3140 = vadd.f32 %v2595, %v3139
  %v3141 = vpop.f32.mrb[0].mxu0
  %3142 = vmatprep.mubr.bf16.mxu0 %v2119
  %3143 = vmatmul.mubr.bf16.gmra.mrb[0].mxu0 %v1560
  %v3144 = vpop.f32.mrb[0].mxu0
  %v3145 = vadd.f32 %v2600, %v3144
  %v3146 = vpop.f32.mrb[0].mxu0
  %v3147 = vpop.f32.mrb[0].mxu0
  %v3148 = vadd.f32 %v2603, %v3147
  %v3149 = vpop.f32.mrb[0].mxu0
  %3150 = vmatprep.mubr.bf16.mxu0 %v2122
  %3151 = vmatmul.mubr.bf16.gmra.mrb[0].mxu0 %v1564
  %v3152 = vpop.f32.mrb[0].mxu0
  %v3153 = vadd.f32 %v2608, %v3152
  %v3154 = vpop.f32.mrb[0].mxu0
  %v3155 = vpop.f32.mrb[0].mxu0
  %v3156 = vadd.f32 %v2611, %v3155
  %v3157 = vpop.f32.mrb[0].mxu0
  %3158 = vmatprep.mubr.bf16.mxu0 %v2125
  %3159 = vmatmul.mubr.bf16.gmra.mrb[0].mxu0 %v1568
  %v3160 = vpop.f32.mrb[0].mxu0
  %v3161 = vadd.f32 %v2616, %v3160
  %v3162 = vpop.f32.mrb[0].mxu0
  %v3163 = vpop.f32.mrb[0].mxu0
  %v3164 = vadd.f32 %v2619, %v3163
  %v3165 = vpop.f32.mrb[0].mxu0
  %3166 = vmatprep.mubr.bf16.mxu0 %v2128
  %3167 = vmatmul.mubr.bf16.gmra.mrb[0].mxu0 %v1572
  %v3168 = vpop.f32.mrb[0].mxu0
  %v3169 = vadd.f32 %v2624, %v3168
  %v3170 = vpop.f32.mrb[0].mxu0
  %v3171 = vpop.f32.mrb[0].mxu0
  %v3172 = vadd.f32 %v2627, %v3171
  %v3173 = vpop.f32.mrb[0].mxu0
  %3174 = vmatprep.mubr.bf16.mxu0 %v2131
  %3175 = vmatmul.mubr.bf16.gmra.mrb[0].mxu0 %v1576
  %v3176 = vpop.f32.mrb[0].mxu0
  %v3177 = vadd.f32 %v2632, %v3176
  %v3178 = vpop.f32.mrb[0].mxu0
  %v3179 = vpop.f32.mrb[0].mxu0
  %v3180 = vadd.f32 %v2635, %v3179
  %v3181 = vpop.f32.mrb[0].mxu0
  %3182 = vmatprep.mubr.bf16.mxu0 %v2134
  %3183 = vmatmul.mubr.bf16.gmra.mrb[0].mxu0 %v1580
  %v3184 = vpop.f32.mrb[0].mxu0
  %v3185 = vadd.f32 %v2640, %v3184
  %v3186 = vpop.f32.mrb[0].mxu0
  %v3187 = vpop.f32.mrb[0].mxu0
  %v3188 = vadd.f32 %v2643, %v3187
  %v3189 = vpop.f32.mrb[0].mxu0
  %3190 = vmatprep.mubr.bf16.mxu0 %v2137
  %3191 = vmatmul.mubr.bf16.gmra.mrb[0].mxu0 %v1584
  %v3192 = vpop.f32.mrb[0].mxu0
  %v3193 = vadd.f32 %v2648, %v3192
  %v3194 = vpop.f32.mrb[0].mxu0
  %v3195 = vpop.f32.mrb[0].mxu0
  %v3196 = vadd.f32 %v2651, %v3195
  %v3197 = vpop.f32.mrb[0].mxu0
  %3198 = vmatprep.mubr.bf16.mxu0 %v2140
  %3199 = vmatmul.mubr.bf16.gmra.mrb[0].mxu0 %v1588
  %v3200 = vpop.f32.mrb[0].mxu0
  %v3201 = vadd.f32 %v2656, %v3200
  %v3202 = vpop.f32.mrb[0].mxu0
  %v3203 = vpop.f32.mrb[0].mxu0
  %v3204 = vadd.f32 %v2659, %v3203
  %v3205 = vpop.f32.mrb[0].mxu0
  %3206 = vmatprep.mubr.bf16.mxu0 %v2143
  %3207 = vmatmul.mubr.bf16.gmra.mrb[0].mxu0 %v1592
  %v3208 = vpop.f32.mrb[0].mxu0
  %v3209 = vadd.f32 %v2664, %v3208
  %v3210 = vpop.f32.mrb[0].mxu0
  %v3211 = vpop.f32.mrb[0].mxu0
  %v3212 = vadd.f32 %v2667, %v3211
  %v3213 = vpop.f32.mrb[0].mxu0
  %3214 = vmatprep.mubr.bf16.mxu0 %v2146
  %3215 = vmatmul.mubr.bf16.gmra.mrb[0].mxu0 %v1596
  %v3216 = vpop.f32.mrb[0].mxu0
  %v3217 = vadd.f32 %v2672, %v3216
  %v3218 = vpop.f32.mrb[0].mxu0
  %v3219 = vpop.f32.mrb[0].mxu0
  %v3220 = vadd.f32 %v2675, %v3219
  %v3221 = vpop.f32.mrb[0].mxu0
  %3222 = vmatprep.mubr.bf16.mxu0 %v2149
  %3223 = vmatmul.mubr.bf16.gmra.mrb[0].mxu0 %v1600
  %v3224 = vpop.f32.mrb[0].mxu0
  %v3225 = vadd.f32 %v2680, %v3224
  %v3226 = vpop.f32.mrb[0].mxu0
  %v3227 = vpop.f32.mrb[0].mxu0
  %v3228 = vadd.f32 %v2683, %v3227
  %v3229 = vpop.f32.mrb[0].mxu0
  %3230 = vmatprep.mubr.bf16.mxu0 %v2152
  %3231 = vmatmul.mubr.bf16.gmra.mrb[0].mxu0 %v1604
  %v3232 = vpop.f32.mrb[0].mxu0
  %v3233 = vadd.f32 %v2688, %v3232
  %v3234 = vpop.f32.mrb[0].mxu0
  %v3235 = vpop.f32.mrb[0].mxu0
  %v3236 = vadd.f32 %v2691, %v3235
  %v3237 = vpop.f32.mrb[0].mxu0
  %3238 = vmatprep.mubr.bf16.mxu0 %v2155
  %3239 = vmatmul.mubr.bf16.gmra.mrb[0].mxu0 %v1608
  %v3240 = vpop.f32.mrb[0].mxu0
  %v3241 = vadd.f32 %v2696, %v3240
  %v3242 = vpop.f32.mrb[0].mxu0
  %v3243 = vpop.f32.mrb[0].mxu0
  %v3244 = vadd.f32 %v2699, %v3243
  %v3245 = vpop.f32.mrb[0].mxu0
  %3246 = vdwg.mxu0
  %v3247 = vadd.f32 %v148, %v2737
  %v3248 = vadd.f32 %v149, %v2740
  %v3249 = vadd.f32 %v150, %v2745
  %v3250 = vadd.f32 %v151, %v2748
  %v3251 = vadd.f32 %v152, %v2753
  %v3252 = vadd.f32 %v153, %v2756
  %v3253 = vadd.f32 %v154, %v2761
  %v3254 = vadd.f32 %v155, %v2764
  %v3255 = vadd.f32 %v156, %v2769
  %v3256 = vadd.f32 %v157, %v2772
  %v3257 = vadd.f32 %v158, %v2777
  %v3258 = vadd.f32 %v159, %v2780
  %v3259 = vadd.f32 %v160, %v2785
  %v3260 = vadd.f32 %v161, %v2788
  %v3261 = vadd.f32 %v162, %v2793
  %v3262 = vadd.f32 %v163, %v2796
  %v3263 = vadd.f32 %v164, %v2801
  %v3264 = vadd.f32 %v165, %v2804
  %v3265 = vadd.f32 %v166, %v2809
  %v3266 = vadd.f32 %v167, %v2812
  %v3267 = vadd.f32 %v168, %v2817
  %v3268 = vadd.f32 %v169, %v2820
  %v3269 = vadd.f32 %v170, %v2825
  %v3270 = vadd.f32 %v171, %v2828
  %v3271 = vadd.f32 %v172, %v2833
  %v3272 = vadd.f32 %v173, %v2836
  %v3273 = vadd.f32 %v174, %v2841
  %v3274 = vadd.f32 %v175, %v2844
  %v3275 = vadd.f32 %v176, %v2849
  %v3276 = vadd.f32 %v177, %v2852
  %v3277 = vadd.f32 %v178, %v2857
  %v3278 = vadd.f32 %v179, %v2860
  %v3279 = vadd.f32 %v180, %v2865
  %v3280 = vadd.f32 %v181, %v2868
  %v3281 = vadd.f32 %v182, %v2873
  %v3282 = vadd.f32 %v183, %v2876
  %v3283 = vadd.f32 %v184, %v2881
  %v3284 = vadd.f32 %v185, %v2884
  %v3285 = vadd.f32 %v186, %v2889
  %v3286 = vadd.f32 %v187, %v2892
  %v3287 = vadd.f32 %v188, %v2897
  %v3288 = vadd.f32 %v189, %v2900
  %v3289 = vadd.f32 %v190, %v2905
  %v3290 = vadd.f32 %v191, %v2908
  %v3291 = vadd.f32 %v192, %v2913
  %v3292 = vadd.f32 %v193, %v2916
  %v3293 = vadd.f32 %v194, %v2921
  %v3294 = vadd.f32 %v195, %v2924
  %v3295 = vadd.f32 %v196, %v2929
  %v3296 = vadd.f32 %v197, %v2932
  %v3297 = vadd.f32 %v198, %v2937
  %v3298 = vadd.f32 %v199, %v2940
  %v3299 = vadd.f32 %v200, %v2945
  %v3300 = vadd.f32 %v201, %v2948
  %v3301 = vadd.f32 %v202, %v2953
  %v3302 = vadd.f32 %v203, %v2956
  %v3303 = vadd.f32 %v204, %v2961
  %v3304 = vadd.f32 %v205, %v2964
  %v3305 = vadd.f32 %v206, %v2969
  %v3306 = vadd.f32 %v207, %v2972
  %v3307 = vadd.f32 %v208, %v2977
  %v3308 = vadd.f32 %v209, %v2980
  %v3309 = vadd.f32 %v210, %v2985
  %v3310 = vadd.f32 %v211, %v2988
  %v3311 = vadd.f32 %v212, %v2993
  %v3312 = vadd.f32 %v213, %v2996
  %v3313 = vadd.f32 %v214, %v3001
  %v3314 = vadd.f32 %v215, %v3004
  %v3315 = vadd.f32 %v216, %v3009
  %v3316 = vadd.f32 %v217, %v3012
  %v3317 = vadd.f32 %v218, %v3017
  %v3318 = vadd.f32 %v219, %v3020
  %v3319 = vadd.f32 %v220, %v3025
  %v3320 = vadd.f32 %v221, %v3028
  %v3321 = vadd.f32 %v222, %v3033
  %v3322 = vadd.f32 %v223, %v3036
  %v3323 = vadd.f32 %v224, %v3041
  %v3324 = vadd.f32 %v225, %v3044
  %v3325 = vadd.f32 %v226, %v3049
  %v3326 = vadd.f32 %v227, %v3052
  %v3327 = vadd.f32 %v228, %v3057
  %v3328 = vadd.f32 %v229, %v3060
  %v3329 = vadd.f32 %v230, %v3065
  %v3330 = vadd.f32 %v231, %v3068
  %v3331 = vadd.f32 %v232, %v3073
  %v3332 = vadd.f32 %v233, %v3076
  %v3333 = vadd.f32 %v234, %v3081
  %v3334 = vadd.f32 %v235, %v3084
  %v3335 = vadd.f32 %v236, %v3089
  %v3336 = vadd.f32 %v237, %v3092
  %v3337 = vadd.f32 %v238, %v3097
  %v3338 = vadd.f32 %v239, %v3100
  %v3339 = vadd.f32 %v240, %v3105
  %v3340 = vadd.f32 %v241, %v3108
  %v3341 = vadd.f32 %v242, %v3113
  %v3342 = vadd.f32 %v243, %v3116
  %v3343 = vadd.f32 %v244, %v3121
  %v3344 = vadd.f32 %v245, %v3124
  %v3345 = vadd.f32 %v246, %v3129
  %v3346 = vadd.f32 %v247, %v3132
  %v3347 = vadd.f32 %v248, %v3137
  %v3348 = vadd.f32 %v249, %v3140
  %v3349 = vadd.f32 %v250, %v3145
  %v3350 = vadd.f32 %v251, %v3148
  %v3351 = vadd.f32 %v252, %v3153
  %v3352 = vadd.f32 %v253, %v3156
  %v3353 = vadd.f32 %v254, %v3161
  %v3354 = vadd.f32 %v255, %v3164
  %v3355 = vadd.f32 %v256, %v3169
  %v3356 = vadd.f32 %v257, %v3172
  %v3357 = vadd.f32 %v258, %v3177
  %v3358 = vadd.f32 %v259, %v3180
  %v3359 = vadd.f32 %v260, %v3185
  %v3360 = vadd.f32 %v261, %v3188
  %v3361 = vadd.f32 %v262, %v3193
  %v3362 = vadd.f32 %v263, %v3196
  %v3363 = vadd.f32 %v264, %v3201
  %v3364 = vadd.f32 %v265, %v3204
  %v3365 = vadd.f32 %v266, %v3209
  %v3366 = vadd.f32 %v267, %v3212
  %v3367 = vadd.f32 %v268, %v3217
  %v3368 = vadd.f32 %v269, %v3220
  %v3369 = vadd.f32 %v270, %v3225
  %v3370 = vadd.f32 %v271, %v3228
  %v3371 = vadd.f32 %v272, %v3233
  %v3372 = vadd.f32 %v273, %v3236
  %v3373 = vadd.f32 %v274, %v3241
  %v3374 = vadd.f32 %v275, %v3244
  %vm3375 = vcmask 64512
  %3376 = vst.msk [vmem:[#allocation2] sm:$0xff] %vm3375, %v3247
  %3377 = vst.msk [vmem:[#allocation2 + $0x8] sm:$0xff] %vm3375, %v3248
  %3378 = vst.msk [vmem:[#allocation2 + $0x10] sm:$0xff] %vm3375, %v3249
  %3379 = vst.msk [vmem:[#allocation2 + $0x18] sm:$0xff] %vm3375, %v3250
  %3380 = vst.msk [vmem:[#allocation2 + $0x20] sm:$0xff] %vm3375, %v3251
  %3381 = vst.msk [vmem:[#allocation2 + $0x28] sm:$0xff] %vm3375, %v3252
  %3382 = vst.msk [vmem:[#allocation2 + $0x30] sm:$0xff] %vm3375, %v3253
  %3383 = vst.msk [vmem:[#allocation2 + $0x38] sm:$0xff] %vm3375, %v3254
  %3384 = vst.msk [vmem:[#allocation2 + $0x40] sm:$0xff] %vm3375, %v3255
  %3385 = vst.msk [vmem:[#allocation2 + $0x48] sm:$0xff] %vm3375, %v3256
  %3386 = vst.msk [vmem:[#allocation2 + $0x50] sm:$0xff] %vm3375, %v3257
  %3387 = vst.msk [vmem:[#allocation2 + $0x58] sm:$0xff] %vm3375, %v3258
  %3388 = vst.msk [vmem:[#allocation2 + $0x60] sm:$0xff] %vm3375, %v3259
  %3389 = vst.msk [vmem:[#allocation2 + $0x68] sm:$0xff] %vm3375, %v3260
  %3390 = vst.msk [vmem:[#allocation2 + $0x70] sm:$0xff] %vm3375, %v3261
  %3391 = vst.msk [vmem:[#allocation2 + $0x78] sm:$0xff] %vm3375, %v3262
  %3392 = vst.msk [vmem:[#allocation2 + $0x80] sm:$0xff] %vm3375, %v3263
  %3393 = vst.msk [vmem:[#allocation2 + $0x88] sm:$0xff] %vm3375, %v3264
  %3394 = vst.msk [vmem:[#allocation2 + $0x90] sm:$0xff] %vm3375, %v3265
  %3395 = vst.msk [vmem:[#allocation2 + $0x98] sm:$0xff] %vm3375, %v3266
  %3396 = vst.msk [vmem:[#allocation2 + $0xa0] sm:$0xff] %vm3375, %v3267
  %3397 = vst.msk [vmem:[#allocation2 + $0xa8] sm:$0xff] %vm3375, %v3268
  %3398 = vst.msk [vmem:[#allocation2 + $0xb0] sm:$0xff] %vm3375, %v3269
  %3399 = vst.msk [vmem:[#allocation2 + $0xb8] sm:$0xff] %vm3375, %v3270
  %3400 = vst.msk [vmem:[#allocation2 + $0xc0] sm:$0xff] %vm3375, %v3271
  %3401 = vst.msk [vmem:[#allocation2 + $0xc8] sm:$0xff] %vm3375, %v3272
  %3402 = vst.msk [vmem:[#allocation2 + $0xd0] sm:$0xff] %vm3375, %v3273
  %3403 = vst.msk [vmem:[#allocation2 + $0xd8] sm:$0xff] %vm3375, %v3274
  %3404 = vst.msk [vmem:[#allocation2 + $0xe0] sm:$0xff] %vm3375, %v3275
  %3405 = vst.msk [vmem:[#allocation2 + $0xe8] sm:$0xff] %vm3375, %v3276
  %3406 = vst.msk [vmem:[#allocation2 + $0xf0] sm:$0xff] %vm3375, %v3277
  %3407 = vst.msk [vmem:[#allocation2 + $0xf8] sm:$0xff] %vm3375, %v3278
  %3408 = vst.msk [vmem:[#allocation2 + $0x100] sm:$0xff] %vm3375, %v3279
  %3409 = vst.msk [vmem:[#allocation2 + $0x108] sm:$0xff] %vm3375, %v3280
  %3410 = vst.msk [vmem:[#allocation2 + $0x110] sm:$0xff] %vm3375, %v3281
  %3411 = vst.msk [vmem:[#allocation2 + $0x118] sm:$0xff] %vm3375, %v3282
  %3412 = vst.msk [vmem:[#allocation2 + $0x120] sm:$0xff] %vm3375, %v3283
  %3413 = vst.msk [vmem:[#allocation2 + $0x128] sm:$0xff] %vm3375, %v3284
  %3414 = vst.msk [vmem:[#allocation2 + $0x130] sm:$0xff] %vm3375, %v3285
  %3415 = vst.msk [vmem:[#allocation2 + $0x138] sm:$0xff] %vm3375, %v3286
  %3416 = vst.msk [vmem:[#allocation2 + $0x140] sm:$0xff] %vm3375, %v3287
  %3417 = vst.msk [vmem:[#allocation2 + $0x148] sm:$0xff] %vm3375, %v3288
  %3418 = vst.msk [vmem:[#allocation2 + $0x150] sm:$0xff] %vm3375, %v3289
  %3419 = vst.msk [vmem:[#allocation2 + $0x158] sm:$0xff] %vm3375, %v3290
  %3420 = vst.msk [vmem:[#allocation2 + $0x160] sm:$0xff] %vm3375, %v3291
  %3421 = vst.msk [vmem:[#allocation2 + $0x168] sm:$0xff] %vm3375, %v3292
  %3422 = vst.msk [vmem:[#allocation2 + $0x170] sm:$0xff] %vm3375, %v3293
  %3423 = vst.msk [vmem:[#allocation2 + $0x178] sm:$0xff] %vm3375, %v3294
  %3424 = vst.msk [vmem:[#allocation2 + $0x180] sm:$0xff] %vm3375, %v3295
  %3425 = vst.msk [vmem:[#allocation2 + $0x188] sm:$0xff] %vm3375, %v3296
  %3426 = vst.msk [vmem:[#allocation2 + $0x190] sm:$0xff] %vm3375, %v3297
  %3427 = vst.msk [vmem:[#allocation2 + $0x198] sm:$0xff] %vm3375, %v3298
  %3428 = vst.msk [vmem:[#allocation2 + $0x1a0] sm:$0xff] %vm3375, %v3299
  %3429 = vst.msk [vmem:[#allocation2 + $0x1a8] sm:$0xff] %vm3375, %v3300
  %3430 = vst.msk [vmem:[#allocation2 + $0x1b0] sm:$0xff] %vm3375, %v3301
  %3431 = vst.msk [vmem:[#allocation2 + $0x1b8] sm:$0xff] %vm3375, %v3302
  %3432 = vst.msk [vmem:[#allocation2 + $0x1c0] sm:$0xff] %vm3375, %v3303
  %3433 = vst.msk [vmem:[#allocation2 + $0x1c8] sm:$0xff] %vm3375, %v3304
  %3434 = vst.msk [vmem:[#allocation2 + $0x1d0] sm:$0xff] %vm3375, %v3305
  %3435 = vst.msk [vmem:[#allocation2 + $0x1d8] sm:$0xff] %vm3375, %v3306
  %3436 = vst.msk [vmem:[#allocation2 + $0x1e0] sm:$0xff] %vm3375, %v3307
  %3437 = vst.msk [vmem:[#allocation2 + $0x1e8] sm:$0xff] %vm3375, %v3308
  %3438 = vst.msk [vmem:[#allocation2 + $0x1f0] sm:$0xff] %vm3375, %v3309
  %3439 = vst.msk [vmem:[#allocation2 + $0x1f8] sm:$0xff] %vm3375, %v3310
  %3440 = vst.msk [vmem:[#allocation2 + $0x200] sm:$0xff] %vm3375, %v3311
  %3441 = vst.msk [vmem:[#allocation2 + $0x208] sm:$0xff] %vm3375, %v3312
  %3442 = vst.msk [vmem:[#allocation2 + $0x210] sm:$0xff] %vm3375, %v3313
  %3443 = vst.msk [vmem:[#allocation2 + $0x218] sm:$0xff] %vm3375, %v3314
  %3444 = vst.msk [vmem:[#allocation2 + $0x220] sm:$0xff] %vm3375, %v3315
  %3445 = vst.msk [vmem:[#allocation2 + $0x228] sm:$0xff] %vm3375, %v3316
  %3446 = vst.msk [vmem:[#allocation2 + $0x230] sm:$0xff] %vm3375, %v3317
  %3447 = vst.msk [vmem:[#allocation2 + $0x238] sm:$0xff] %vm3375, %v3318
  %3448 = vst.msk [vmem:[#allocation2 + $0x240] sm:$0xff] %vm3375, %v3319
  %3449 = vst.msk [vmem:[#allocation2 + $0x248] sm:$0xff] %vm3375, %v3320
  %3450 = vst.msk [vmem:[#allocation2 + $0x250] sm:$0xff] %vm3375, %v3321
  %3451 = vst.msk [vmem:[#allocation2 + $0x258] sm:$0xff] %vm3375, %v3322
  %3452 = vst.msk [vmem:[#allocation2 + $0x260] sm:$0xff] %vm3375, %v3323
  %3453 = vst.msk [vmem:[#allocation2 + $0x268] sm:$0xff] %vm3375, %v3324
  %3454 = vst.msk [vmem:[#allocation2 + $0x270] sm:$0xff] %vm3375, %v3325
  %3455 = vst.msk [vmem:[#allocation2 + $0x278] sm:$0xff] %vm3375, %v3326
  %3456 = vst.msk [vmem:[#allocation2 + $0x280] sm:$0xff] %vm3375, %v3327
  %3457 = vst.msk [vmem:[#allocation2 + $0x288] sm:$0xff] %vm3375, %v3328
  %3458 = vst.msk [vmem:[#allocation2 + $0x290] sm:$0xff] %vm3375, %v3329
  %3459 = vst.msk [vmem:[#allocation2 + $0x298] sm:$0xff] %vm3375, %v3330
  %3460 = vst.msk [vmem:[#allocation2 + $0x2a0] sm:$0xff] %vm3375, %v3331
  %3461 = vst.msk [vmem:[#allocation2 + $0x2a8] sm:$0xff] %vm3375, %v3332
  %3462 = vst.msk [vmem:[#allocation2 + $0x2b0] sm:$0xff] %vm3375, %v3333
  %3463 = vst.msk [vmem:[#allocation2 + $0x2b8] sm:$0xff] %vm3375, %v3334
  %3464 = vst.msk [vmem:[#allocation2 + $0x2c0] sm:$0xff] %vm3375, %v3335
  %3465 = vst.msk [vmem:[#allocation2 + $0x2c8] sm:$0xff] %vm3375, %v3336
  %3466 = vst.msk [vmem:[#allocation2 + $0x2d0] sm:$0xff] %vm3375, %v3337
  %3467 = vst.msk [vmem:[#allocation2 + $0x2d8] sm:$0xff] %vm3375, %v3338
  %3468 = vst.msk [vmem:[#allocation2 + $0x2e0] sm:$0xff] %vm3375, %v3339
  %3469 = vst.msk [vmem:[#allocation2 + $0x2e8] sm:$0xff] %vm3375, %v3340
  %3470 = vst.msk [vmem:[#allocation2 + $0x2f0] sm:$0xff] %vm3375, %v3341
  %3471 = vst.msk [vmem:[#allocation2 + $0x2f8] sm:$0xff] %vm3375, %v3342
  %3472 = vst.msk [vmem:[#allocation2 + $0x300] sm:$0xff] %vm3375, %v3343
  %3473 = vst.msk [vmem:[#allocation2 + $0x308] sm:$0xff] %vm3375, %v3344
  %3474 = vst.msk [vmem:[#allocation2 + $0x310] sm:$0xff] %vm3375, %v3345
  %3475 = vst.msk [vmem:[#allocation2 + $0x318] sm:$0xff] %vm3375, %v3346
  %3476 = vst.msk [vmem:[#allocation2 + $0x320] sm:$0xff] %vm3375, %v3347
  %3477 = vst.msk [vmem:[#allocation2 + $0x328] sm:$0xff] %vm3375, %v3348
  %3478 = vst.msk [vmem:[#allocation2 + $0x330] sm:$0xff] %vm3375, %v3349
  %3479 = vst.msk [vmem:[#allocation2 + $0x338] sm:$0xff] %vm3375, %v3350
  %3480 = vst.msk [vmem:[#allocation2 + $0x340] sm:$0xff] %vm3375, %v3351
  %3481 = vst.msk [vmem:[#allocation2 + $0x348] sm:$0xff] %vm3375, %v3352
  %3482 = vst.msk [vmem:[#allocation2 + $0x350] sm:$0xff] %vm3375, %v3353
  %3483 = vst.msk [vmem:[#allocation2 + $0x358] sm:$0xff] %vm3375, %v3354
  %3484 = vst.msk [vmem:[#allocation2 + $0x360] sm:$0xff] %vm3375, %v3355
  %3485 = vst.msk [vmem:[#allocation2 + $0x368] sm:$0xff] %vm3375, %v3356
  %3486 = vst.msk [vmem:[#allocation2 + $0x370] sm:$0xff] %vm3375, %v3357
  %3487 = vst.msk [vmem:[#allocation2 + $0x378] sm:$0xff] %vm3375, %v3358
  %3488 = vst.msk [vmem:[#allocation2 + $0x380] sm:$0xff] %vm3375, %v3359
  %3489 = vst.msk [vmem:[#allocation2 + $0x388] sm:$0xff] %vm3375, %v3360
  %3490 = vst.msk [vmem:[#allocation2 + $0x390] sm:$0xff] %vm3375, %v3361
  %3491 = vst.msk [vmem:[#allocation2 + $0x398] sm:$0xff] %vm3375, %v3362
  %3492 = vst.msk [vmem:[#allocation2 + $0x3a0] sm:$0xff] %vm3375, %v3363
  %3493 = vst.msk [vmem:[#allocation2 + $0x3a8] sm:$0xff] %vm3375, %v3364
  %3494 = vst.msk [vmem:[#allocation2 + $0x3b0] sm:$0xff] %vm3375, %v3365
  %3495 = vst.msk [vmem:[#allocation2 + $0x3b8] sm:$0xff] %vm3375, %v3366
  %3496 = vst.msk [vmem:[#allocation2 + $0x3c0] sm:$0xff] %vm3375, %v3367
  %3497 = vst.msk [vmem:[#allocation2 + $0x3c8] sm:$0xff] %vm3375, %v3368
  %3498 = vst.msk [vmem:[#allocation2 + $0x3d0] sm:$0xff] %vm3375, %v3369
  %3499 = vst.msk [vmem:[#allocation2 + $0x3d8] sm:$0xff] %vm3375, %v3370
  %3500 = vst.msk [vmem:[#allocation2 + $0x3e0] sm:$0xff] %vm3375, %v3371
  %3501 = vst.msk [vmem:[#allocation2 + $0x3e8] sm:$0xff] %vm3375, %v3372
  %3502 = vst.msk [vmem:[#allocation2 + $0x3f0] sm:$0xff] %vm3375, %v3373
  %3503 = vst.msk [vmem:[#allocation2 + $0x3f8] sm:$0xff] %vm3375, %v3374
  // Predicated region
  $region14: #{net_up_block_di_forward.8} parent=0 // pred_check
    %p3504 = pneg %p15
  $region15: #{net_up_block_di_forward.8} parent=0 // pred_check_branch
    %3506 = sbr.rel (%p3504) target = $region17
  $region16: #{net_up_block_di_forward.8} parent=0 // pred_region
    %v3507 = vld [vmem:[#allocation2] sm:$0xff]
    %v3508 = vld [vmem:[#allocation2 + $0x8] sm:$0xff]
    %v3509 = vld [vmem:[#allocation2 + $0x10] sm:$0xff]
    %v3510 = vld [vmem:[#allocation2 + $0x18] sm:$0xff]
    %v3511 = vld [vmem:[#allocation2 + $0x20] sm:$0xff]
    %v3512 = vld [vmem:[#allocation2 + $0x28] sm:$0xff]
    %v3513 = vld [vmem:[#allocation2 + $0x30] sm:$0xff]
    %v3514 = vld [vmem:[#allocation2 + $0x38] sm:$0xff]
    %v3515 = vld [vmem:[#allocation2 + $0x40] sm:$0xff]
    %v3516 = vld [vmem:[#allocation2 + $0x48] sm:$0xff]
    %v3517 = vld [vmem:[#allocation2 + $0x50] sm:$0xff]
    %v3518 = vld [vmem:[#allocation2 + $0x58] sm:$0xff]
    %v3519 = vld [vmem:[#allocation2 + $0x60] sm:$0xff]
    %v3520 = vld [vmem:[#allocation2 + $0x68] sm:$0xff]
    %v3521 = vld [vmem:[#allocation2 + $0x70] sm:$0xff]
    %v3522 = vld [vmem:[#allocation2 + $0x78] sm:$0xff]
    %v3523 = vld [vmem:[#allocation2 + $0x80] sm:$0xff]
    %v3524 = vld [vmem:[#allocation2 + $0x88] sm:$0xff]
    %v3525 = vld [vmem:[#allocation2 + $0x90] sm:$0xff]
    %v3526 = vld [vmem:[#allocation2 + $0x98] sm:$0xff]
    %v3527 = vld [vmem:[#allocation2 + $0xa0] sm:$0xff]
    %v3528 = vld [vmem:[#allocation2 + $0xa8] sm:$0xff]
    %v3529 = vld [vmem:[#allocation2 + $0xb0] sm:$0xff]
    %v3530 = vld [vmem:[#allocation2 + $0xb8] sm:$0xff]
    %v3531 = vld [vmem:[#allocation2 + $0xc0] sm:$0xff]
    %v3532 = vld [vmem:[#allocation2 + $0xc8] sm:$0xff]
    %v3533 = vld [vmem:[#allocation2 + $0xd0] sm:$0xff]
    %v3534 = vld [vmem:[#allocation2 + $0xd8] sm:$0xff]
    %v3535 = vld [vmem:[#allocation2 + $0xe0] sm:$0xff]
    %v3536 = vld [vmem:[#allocation2 + $0xe8] sm:$0xff]
    %v3537 = vld [vmem:[#allocation2 + $0xf0] sm:$0xff]
    %v3538 = vld [vmem:[#allocation2 + $0xf8] sm:$0xff]
    %v3539 = vld [vmem:[#allocation2 + $0x100] sm:$0xff]
    %v3540 = vld [vmem:[#allocation2 + $0x108] sm:$0xff]
    %v3541 = vld [vmem:[#allocation2 + $0x110] sm:$0xff]
    %v3542 = vld [vmem:[#allocation2 + $0x118] sm:$0xff]
    %v3543 = vld [vmem:[#allocation2 + $0x120] sm:$0xff]
    %v3544 = vld [vmem:[#allocation2 + $0x128] sm:$0xff]
    %v3545 = vld [vmem:[#allocation2 + $0x130] sm:$0xff]
    %v3546 = vld [vmem:[#allocation2 + $0x138] sm:$0xff]
    %v3547 = vld [vmem:[#allocation2 + $0x140] sm:$0xff]
    %v3548 = vld [vmem:[#allocation2 + $0x148] sm:$0xff]
    %v3549 = vld [vmem:[#allocation2 + $0x150] sm:$0xff]
    %v3550 = vld [vmem:[#allocation2 + $0x158] sm:$0xff]
    %v3551 = vld [vmem:[#allocation2 + $0x160] sm:$0xff]
    %v3552 = vld [vmem:[#allocation2 + $0x168] sm:$0xff]
    %v3553 = vld [vmem:[#allocation2 + $0x170] sm:$0xff]
    %v3554 = vld [vmem:[#allocation2 + $0x178] sm:$0xff]
    %v3555 = vld [vmem:[#allocation2 + $0x180] sm:$0xff]
    %v3556 = vld [vmem:[#allocation2 + $0x188] sm:$0xff]
    %v3557 = vld [vmem:[#allocation2 + $0x190] sm:$0xff]
    %v3558 = vld [vmem:[#allocation2 + $0x198] sm:$0xff]
    %v3559 = vld [vmem:[#allocation2 + $0x1a0] sm:$0xff]
    %v3560 = vld [vmem:[#allocation2 + $0x1a8] sm:$0xff]
    %v3561 = vld [vmem:[#allocation2 + $0x1b0] sm:$0xff]
    %v3562 = vld [vmem:[#allocation2 + $0x1b8] sm:$0xff]
    %v3563 = vld [vmem:[#allocation2 + $0x1c0] sm:$0xff]
    %v3564 = vld [vmem:[#allocation2 + $0x1c8] sm:$0xff]
    %v3565 = vld [vmem:[#allocation2 + $0x1d0] sm:$0xff]
    %v3566 = vld [vmem:[#allocation2 + $0x1d8] sm:$0xff]
    %v3567 = vld [vmem:[#allocation2 + $0x1e0] sm:$0xff]
    %v3568 = vld [vmem:[#allocation2 + $0x1e8] sm:$0xff]
    %v3569 = vld [vmem:[#allocation2 + $0x1f0] sm:$0xff]
    %v3570 = vld [vmem:[#allocation2 + $0x1f8] sm:$0xff]
    %v3571 = vld [vmem:[#allocation2 + $0x200] sm:$0xff]
    %v3572 = vld [vmem:[#allocation2 + $0x208] sm:$0xff]
    %v3573 = vld [vmem:[#allocation2 + $0x210] sm:$0xff]
    %v3574 = vld [vmem:[#allocation2 + $0x218] sm:$0xff]
    %v3575 = vld [vmem:[#allocation2 + $0x220] sm:$0xff]
    %v3576 = vld [vmem:[#allocation2 + $0x228] sm:$0xff]
    %v3577 = vld [vmem:[#allocation2 + $0x230] sm:$0xff]
    %v3578 = vld [vmem:[#allocation2 + $0x238] sm:$0xff]
    %v3579 = vld [vmem:[#allocation2 + $0x240] sm:$0xff]
    %v3580 = vld [vmem:[#allocation2 + $0x248] sm:$0xff]
    %v3581 = vld [vmem:[#allocation2 + $0x250] sm:$0xff]
    %v3582 = vld [vmem:[#allocation2 + $0x258] sm:$0xff]
    %v3583 = vld [vmem:[#allocation2 + $0x260] sm:$0xff]
    %v3584 = vld [vmem:[#allocation2 + $0x268] sm:$0xff]
    %v3585 = vld [vmem:[#allocation2 + $0x270] sm:$0xff]
    %v3586 = vld [vmem:[#allocation2 + $0x278] sm:$0xff]
    %v3587 = vld [vmem:[#allocation2 + $0x280] sm:$0xff]
    %v3588 = vld [vmem:[#allocation2 + $0x288] sm:$0xff]
    %v3589 = vld [vmem:[#allocation2 + $0x290] sm:$0xff]
    %v3590 = vld [vmem:[#allocation2 + $0x298] sm:$0xff]
    %v3591 = vld [vmem:[#allocation2 + $0x2a0] sm:$0xff]
    %v3592 = vld [vmem:[#allocation2 + $0x2a8] sm:$0xff]
    %v3593 = vld [vmem:[#allocation2 + $0x2b0] sm:$0xff]
    %v3594 = vld [vmem:[#allocation2 + $0x2b8] sm:$0xff]
    %v3595 = vld [vmem:[#allocation2 + $0x2c0] sm:$0xff]
    %v3596 = vld [vmem:[#allocation2 + $0x2c8] sm:$0xff]
    %v3597 = vld [vmem:[#allocation2 + $0x2d0] sm:$0xff]
    %v3598 = vld [vmem:[#allocation2 + $0x2d8] sm:$0xff]
    %v3599 = vld [vmem:[#allocation2 + $0x2e0] sm:$0xff]
    %v3600 = vld [vmem:[#allocation2 + $0x2e8] sm:$0xff]
    %v3601 = vld [vmem:[#allocation2 + $0x2f0] sm:$0xff]
    %v3602 = vld [vmem:[#allocation2 + $0x2f8] sm:$0xff]
    %v3603 = vld [vmem:[#allocation2 + $0x300] sm:$0xff]
    %v3604 = vld [vmem:[#allocation2 + $0x308] sm:$0xff]
    %v3605 = vld [vmem:[#allocation2 + $0x310] sm:$0xff]
    %v3606 = vld [vmem:[#allocation2 + $0x318] sm:$0xff]
    %v3607 = vld [vmem:[#allocation2 + $0x320] sm:$0xff]
    %v3608 = vld [vmem:[#allocation2 + $0x328] sm:$0xff]
    %v3609 = vld [vmem:[#allocation2 + $0x330] sm:$0xff]
    %v3610 = vld [vmem:[#allocation2 + $0x338] sm:$0xff]
    %v3611 = vld [vmem:[#allocation2 + $0x340] sm:$0xff]
    %v3612 = vld [vmem:[#allocation2 + $0x348] sm:$0xff]
    %v3613 = vld [vmem:[#allocation2 + $0x350] sm:$0xff]
    %v3614 = vld [vmem:[#allocation2 + $0x358] sm:$0xff]
    %v3615 = vld [vmem:[#allocation2 + $0x360] sm:$0xff]
    %v3616 = vld [vmem:[#allocation2 + $0x368] sm:$0xff]
    %v3617 = vld [vmem:[#allocation2 + $0x370] sm:$0xff]
    %v3618 = vld [vmem:[#allocation2 + $0x378] sm:$0xff]
    %v3619 = vld [vmem:[#allocation2 + $0x380] sm:$0xff]
    %v3620 = vld [vmem:[#allocation2 + $0x388] sm:$0xff]
    %v3621 = vld [vmem:[#allocation2 + $0x390] sm:$0xff]
    %v3622 = vld [vmem:[#allocation2 + $0x398] sm:$0xff]
    %v3623 = vld [vmem:[#allocation2 + $0x3a0] sm:$0xff]
    %v3624 = vld [vmem:[#allocation2 + $0x3a8] sm:$0xff]
    %v3625 = vld [vmem:[#allocation2 + $0x3b0] sm:$0xff]
    %v3626 = vld [vmem:[#allocation2 + $0x3b8] sm:$0xff]
    %v3627 = vld [vmem:[#allocation2 + $0x3c0] sm:$0xff]
    %v3628 = vld [vmem:[#allocation2 + $0x3c8] sm:$0xff]
    %v3629 = vld [vmem:[#allocation2 + $0x3d0] sm:$0xff]
    %v3630 = vld [vmem:[#allocation2 + $0x3d8] sm:$0xff]
    %v3631 = vld [vmem:[#allocation2 + $0x3e0] sm:$0xff]
    %v3632 = vld [vmem:[#allocation2 + $0x3e8] sm:$0xff]
    %v3633 = vld [vmem:[#allocation2 + $0x3f0] sm:$0xff]
    %v3634 = vld [vmem:[#allocation2 + $0x3f8] sm:$0xff]
    %3635 = vst.msk [vmem:[%s2] sm:$0xff] %vm3375, %v3507
    %3636 = vst.msk [vmem:[%s2 + $0x8] sm:$0xff] %vm3375, %v3508
    %3637 = vst.msk [vmem:[%s2 + $0x10] sm:$0xff] %vm3375, %v3509
    %3638 = vst.msk [vmem:[%s2 + $0x18] sm:$0xff] %vm3375, %v3510
    %3639 = vst.msk [vmem:[%s2 + $0x20] sm:$0xff] %vm3375, %v3511
    %3640 = vst.msk [vmem:[%s2 + $0x28] sm:$0xff] %vm3375, %v3512
    %3641 = vst.msk [vmem:[%s2 + $0x30] sm:$0xff] %vm3375, %v3513
    %3642 = vst.msk [vmem:[%s2 + $0x38] sm:$0xff] %vm3375, %v3514
    %3643 = vst.msk [vmem:[%s2 + $0x40] sm:$0xff] %vm3375, %v3515
    %3644 = vst.msk [vmem:[%s2 + $0x48] sm:$0xff] %vm3375, %v3516
    %3645 = vst.msk [vmem:[%s2 + $0x50] sm:$0xff] %vm3375, %v3517
    %3646 = vst.msk [vmem:[%s2 + $0x58] sm:$0xff] %vm3375, %v3518
    %3647 = vst.msk [vmem:[%s2 + $0x60] sm:$0xff] %vm3375, %v3519
    %3648 = vst.msk [vmem:[%s2 + $0x68] sm:$0xff] %vm3375, %v3520
    %3649 = vst.msk [vmem:[%s2 + $0x70] sm:$0xff] %vm3375, %v3521
    %3650 = vst.msk [vmem:[%s2 + $0x78] sm:$0xff] %vm3375, %v3522
    %3651 = vst.msk [vmem:[%s2 + $0x80] sm:$0xff] %vm3375, %v3523
    %3652 = vst.msk [vmem:[%s2 + $0x88] sm:$0xff] %vm3375, %v3524
    %3653 = vst.msk [vmem:[%s2 + $0x90] sm:$0xff] %vm3375, %v3525
    %3654 = vst.msk [vmem:[%s2 + $0x98] sm:$0xff] %vm3375, %v3526
    %3655 = vst.msk [vmem:[%s2 + $0xa0] sm:$0xff] %vm3375, %v3527
    %3656 = vst.msk [vmem:[%s2 + $0xa8] sm:$0xff] %vm3375, %v3528
    %3657 = vst.msk [vmem:[%s2 + $0xb0] sm:$0xff] %vm3375, %v3529
    %3658 = vst.msk [vmem:[%s2 + $0xb8] sm:$0xff] %vm3375, %v3530
    %3659 = vst.msk [vmem:[%s2 + $0xc0] sm:$0xff] %vm3375, %v3531
    %3660 = vst.msk [vmem:[%s2 + $0xc8] sm:$0xff] %vm3375, %v3532
    %3661 = vst.msk [vmem:[%s2 + $0xd0] sm:$0xff] %vm3375, %v3533
    %3662 = vst.msk [vmem:[%s2 + $0xd8] sm:$0xff] %vm3375, %v3534
    %3663 = vst.msk [vmem:[%s2 + $0xe0] sm:$0xff] %vm3375, %v3535
    %3664 = vst.msk [vmem:[%s2 + $0xe8] sm:$0xff] %vm3375, %v3536
    %3665 = vst.msk [vmem:[%s2 + $0xf0] sm:$0xff] %vm3375, %v3537
    %3666 = vst.msk [vmem:[%s2 + $0xf8] sm:$0xff] %vm3375, %v3538
    %3667 = vst.msk [vmem:[%s2 + $0x100] sm:$0xff] %vm3375, %v3539
    %3668 = vst.msk [vmem:[%s2 + $0x108] sm:$0xff] %vm3375, %v3540
    %3669 = vst.msk [vmem:[%s2 + $0x110] sm:$0xff] %vm3375, %v3541
    %3670 = vst.msk [vmem:[%s2 + $0x118] sm:$0xff] %vm3375, %v3542
    %3671 = vst.msk [vmem:[%s2 + $0x120] sm:$0xff] %vm3375, %v3543
    %3672 = vst.msk [vmem:[%s2 + $0x128] sm:$0xff] %vm3375, %v3544
    %3673 = vst.msk [vmem:[%s2 + $0x130] sm:$0xff] %vm3375, %v3545
    %3674 = vst.msk [vmem:[%s2 + $0x138] sm:$0xff] %vm3375, %v3546
    %3675 = vst.msk [vmem:[%s2 + $0x140] sm:$0xff] %vm3375, %v3547
    %3676 = vst.msk [vmem:[%s2 + $0x148] sm:$0xff] %vm3375, %v3548
    %3677 = vst.msk [vmem:[%s2 + $0x150] sm:$0xff] %vm3375, %v3549
    %3678 = vst.msk [vmem:[%s2 + $0x158] sm:$0xff] %vm3375, %v3550
    %3679 = vst.msk [vmem:[%s2 + $0x160] sm:$0xff] %vm3375, %v3551
    %3680 = vst.msk [vmem:[%s2 + $0x168] sm:$0xff] %vm3375, %v3552
    %3681 = vst.msk [vmem:[%s2 + $0x170] sm:$0xff] %vm3375, %v3553
    %3682 = vst.msk [vmem:[%s2 + $0x178] sm:$0xff] %vm3375, %v3554
    %3683 = vst.msk [vmem:[%s2 + $0x180] sm:$0xff] %vm3375, %v3555
    %3684 = vst.msk [vmem:[%s2 + $0x188] sm:$0xff] %vm3375, %v3556
    %3685 = vst.msk [vmem:[%s2 + $0x190] sm:$0xff] %vm3375, %v3557
    %3686 = vst.msk [vmem:[%s2 + $0x198] sm:$0xff] %vm3375, %v3558
    %3687 = vst.msk [vmem:[%s2 + $0x1a0] sm:$0xff] %vm3375, %v3559
    %3688 = vst.msk [vmem:[%s2 + $0x1a8] sm:$0xff] %vm3375, %v3560
    %3689 = vst.msk [vmem:[%s2 + $0x1b0] sm:$0xff] %vm3375, %v3561
    %3690 = vst.msk [vmem:[%s2 + $0x1b8] sm:$0xff] %vm3375, %v3562
    %3691 = vst.msk [vmem:[%s2 + $0x1c0] sm:$0xff] %vm3375, %v3563
    %3692 = vst.msk [vmem:[%s2 + $0x1c8] sm:$0xff] %vm3375, %v3564
    %3693 = vst.msk [vmem:[%s2 + $0x1d0] sm:$0xff] %vm3375, %v3565
    %3694 = vst.msk [vmem:[%s2 + $0x1d8] sm:$0xff] %vm3375, %v3566
    %3695 = vst.msk [vmem:[%s2 + $0x1e0] sm:$0xff] %vm3375, %v3567
    %3696 = vst.msk [vmem:[%s2 + $0x1e8] sm:$0xff] %vm3375, %v3568
    %3697 = vst.msk [vmem:[%s2 + $0x1f0] sm:$0xff] %vm3375, %v3569
    %3698 = vst.msk [vmem:[%s2 + $0x1f8] sm:$0xff] %vm3375, %v3570
    %3699 = vst.msk [vmem:[%s2 + $0x200] sm:$0xff] %vm3375, %v3571
    %3700 = vst.msk [vmem:[%s2 + $0x208] sm:$0xff] %vm3375, %v3572
    %3701 = vst.msk [vmem:[%s2 + $0x210] sm:$0xff] %vm3375, %v3573
    %3702 = vst.msk [vmem:[%s2 + $0x218] sm:$0xff] %vm3375, %v3574
    %3703 = vst.msk [vmem:[%s2 + $0x220] sm:$0xff] %vm3375, %v3575
    %3704 = vst.msk [vmem:[%s2 + $0x228] sm:$0xff] %vm3375, %v3576
    %3705 = vst.msk [vmem:[%s2 + $0x230] sm:$0xff] %vm3375, %v3577
    %3706 = vst.msk [vmem:[%s2 + $0x238] sm:$0xff] %vm3375, %v3578
    %3707 = vst.msk [vmem:[%s2 + $0x240] sm:$0xff] %vm3375, %v3579
    %3708 = vst.msk [vmem:[%s2 + $0x248] sm:$0xff] %vm3375, %v3580
    %3709 = vst.msk [vmem:[%s2 + $0x250] sm:$0xff] %vm3375, %v3581
    %3710 = vst.msk [vmem:[%s2 + $0x258] sm:$0xff] %vm3375, %v3582
    %3711 = vst.msk [vmem:[%s2 + $0x260] sm:$0xff] %vm3375, %v3583
    %3712 = vst.msk [vmem:[%s2 + $0x268] sm:$0xff] %vm3375, %v3584
    %3713 = vst.msk [vmem:[%s2 + $0x270] sm:$0xff] %vm3375, %v3585
    %3714 = vst.msk [vmem:[%s2 + $0x278] sm:$0xff] %vm3375, %v3586
    %3715 = vst.msk [vmem:[%s2 + $0x280] sm:$0xff] %vm3375, %v3587
    %3716 = vst.msk [vmem:[%s2 + $0x288] sm:$0xff] %vm3375, %v3588
    %3717 = vst.msk [vmem:[%s2 + $0x290] sm:$0xff] %vm3375, %v3589
    %3718 = vst.msk [vmem:[%s2 + $0x298] sm:$0xff] %vm3375, %v3590
    %3719 = vst.msk [vmem:[%s2 + $0x2a0] sm:$0xff] %vm3375, %v3591
    %3720 = vst.msk [vmem:[%s2 + $0x2a8] sm:$0xff] %vm3375, %v3592
    %3721 = vst.msk [vmem:[%s2 + $0x2b0] sm:$0xff] %vm3375, %v3593
    %3722 = vst.msk [vmem:[%s2 + $0x2b8] sm:$0xff] %vm3375, %v3594
    %3723 = vst.msk [vmem:[%s2 + $0x2c0] sm:$0xff] %vm3375, %v3595
    %3724 = vst.msk [vmem:[%s2 + $0x2c8] sm:$0xff] %vm3375, %v3596
    %3725 = vst.msk [vmem:[%s2 + $0x2d0] sm:$0xff] %vm3375, %v3597
    %3726 = vst.msk [vmem:[%s2 + $0x2d8] sm:$0xff] %vm3375, %v3598
    %3727 = vst.msk [vmem:[%s2 + $0x2e0] sm:$0xff] %vm3375, %v3599
    %3728 = vst.msk [vmem:[%s2 + $0x2e8] sm:$0xff] %vm3375, %v3600
    %3729 = vst.msk [vmem:[%s2 + $0x2f0] sm:$0xff] %vm3375, %v3601
    %3730 = vst.msk [vmem:[%s2 + $0x2f8] sm:$0xff] %vm3375, %v3602
    %3731 = vst.msk [vmem:[%s2 + $0x300] sm:$0xff] %vm3375, %v3603
    %3732 = vst.msk [vmem:[%s2 + $0x308] sm:$0xff] %vm3375, %v3604
    %3733 = vst.msk [vmem:[%s2 + $0x310] sm:$0xff] %vm3375, %v3605
    %3734 = vst.msk [vmem:[%s2 + $0x318] sm:$0xff] %vm3375, %v3606
    %3735 = vst.msk [vmem:[%s2 + $0x320] sm:$0xff] %vm3375, %v3607
    %3736 = vst.msk [vmem:[%s2 + $0x328] sm:$0xff] %vm3375, %v3608
    %3737 = vst.msk [vmem:[%s2 + $0x330] sm:$0xff] %vm3375, %v3609
    %3738 = vst.msk [vmem:[%s2 + $0x338] sm:$0xff] %vm3375, %v3610
    %3739 = vst.msk [vmem:[%s2 + $0x340] sm:$0xff] %vm3375, %v3611
    %3740 = vst.msk [vmem:[%s2 + $0x348] sm:$0xff] %vm3375, %v3612
    %3741 = vst.msk [vmem:[%s2 + $0x350] sm:$0xff] %vm3375, %v3613
    %3742 = vst.msk [vmem:[%s2 + $0x358] sm:$0xff] %vm3375, %v3614
    %3743 = vst.msk [vmem:[%s2 + $0x360] sm:$0xff] %vm3375, %v3615
    %3744 = vst.msk [vmem:[%s2 + $0x368] sm:$0xff] %vm3375, %v3616
    %3745 = vst.msk [vmem:[%s2 + $0x370] sm:$0xff] %vm3375, %v3617
    %3746 = vst.msk [vmem:[%s2 + $0x378] sm:$0xff] %vm3375, %v3618
    %3747 = vst.msk [vmem:[%s2 + $0x380] sm:$0xff] %vm3375, %v3619
    %3748 = vst.msk [vmem:[%s2 + $0x388] sm:$0xff] %vm3375, %v3620
    %3749 = vst.msk [vmem:[%s2 + $0x390] sm:$0xff] %vm3375, %v3621
    %3750 = vst.msk [vmem:[%s2 + $0x398] sm:$0xff] %vm3375, %v3622
    %3751 = vst.msk [vmem:[%s2 + $0x3a0] sm:$0xff] %vm3375, %v3623
    %3752 = vst.msk [vmem:[%s2 + $0x3a8] sm:$0xff] %vm3375, %v3624
    %3753 = vst.msk [vmem:[%s2 + $0x3b0] sm:$0xff] %vm3375, %v3625
    %3754 = vst.msk [vmem:[%s2 + $0x3b8] sm:$0xff] %vm3375, %v3626
    %3755 = vst.msk [vmem:[%s2 + $0x3c0] sm:$0xff] %vm3375, %v3627
    %3756 = vst.msk [vmem:[%s2 + $0x3c8] sm:$0xff] %vm3375, %v3628
    %3757 = vst.msk [vmem:[%s2 + $0x3d0] sm:$0xff] %vm3375, %v3629
    %3758 = vst.msk [vmem:[%s2 + $0x3d8] sm:$0xff] %vm3375, %v3630
    %3759 = vst.msk [vmem:[%s2 + $0x3e0] sm:$0xff] %vm3375, %v3631
    %3760 = vst.msk [vmem:[%s2 + $0x3e8] sm:$0xff] %vm3375, %v3632
    %3761 = vst.msk [vmem:[%s2 + $0x3f0] sm:$0xff] %vm3375, %v3633
    %3762 = vst.msk [vmem:[%s2 + $0x3f8] sm:$0xff] %vm3375, %v3634
    %v3763 = vsel %vm3375, %v3507, 0.0
    %v3764 = vsel %vm3375, %v3508, 0.0
    %v3765 = vadd.f32 %v3763, %v3764
    %v3766 = vsel %vm3375, %v3509, 0.0
    %v3767 = vadd.f32 %v3765, %v3766
    %v3768 = vsel %vm3375, %v3510, 0.0
    %v3769 = vadd.f32 %v3767, %v3768
    %v3770 = vsel %vm3375, %v3511, 0.0
    %v3771 = vadd.f32 %v3769, %v3770
    %v3772 = vsel %vm3375, %v3512, 0.0
    %v3773 = vadd.f32 %v3771, %v3772
    %v3774 = vsel %vm3375, %v3513, 0.0
    %v3775 = vadd.f32 %v3773, %v3774
    %v3776 = vsel %vm3375, %v3514, 0.0
    %v3777 = vadd.f32 %v3775, %v3776
    %v3778 = vsel %vm3375, %v3515, 0.0
    %v3779 = vadd.f32 %v3777, %v3778
    %v3780 = vsel %vm3375, %v3516, 0.0
    %v3781 = vadd.f32 %v3779, %v3780
    %v3782 = vsel %vm3375, %v3517, 0.0
    %v3783 = vadd.f32 %v3781, %v3782
    %v3784 = vsel %vm3375, %v3518, 0.0
    %v3785 = vadd.f32 %v3783, %v3784
    %v3786 = vsel %vm3375, %v3519, 0.0
    %v3787 = vadd.f32 %v3785, %v3786
    %v3788 = vsel %vm3375, %v3520, 0.0
    %v3789 = vadd.f32 %v3787, %v3788
    %v3790 = vsel %vm3375, %v3521, 0.0
    %v3791 = vadd.f32 %v3789, %v3790
    %v3792 = vsel %vm3375, %v3522, 0.0
    %v3793 = vadd.f32 %v3791, %v3792
    %v3794 = vsel %vm3375, %v3523, 0.0
    %v3795 = vadd.f32 %v3793, %v3794
    %v3796 = vsel %vm3375, %v3524, 0.0
    %v3797 = vadd.f32 %v3795, %v3796
    %v3798 = vsel %vm3375, %v3525, 0.0
    %v3799 = vadd.f32 %v3797, %v3798
    %v3800 = vsel %vm3375, %v3526, 0.0
    %v3801 = vadd.f32 %v3799, %v3800
    %v3802 = vsel %vm3375, %v3527, 0.0
    %v3803 = vadd.f32 %v3801, %v3802
    %v3804 = vsel %vm3375, %v3528, 0.0
    %v3805 = vadd.f32 %v3803, %v3804
    %v3806 = vsel %vm3375, %v3529, 0.0
    %v3807 = vadd.f32 %v3805, %v3806
    %v3808 = vsel %vm3375, %v3530, 0.0
    %v3809 = vadd.f32 %v3807, %v3808
    %v3810 = vsel %vm3375, %v3531, 0.0
    %v3811 = vadd.f32 %v3809, %v3810
    %v3812 = vsel %vm3375, %v3532, 0.0
    %v3813 = vadd.f32 %v3811, %v3812
    %v3814 = vsel %vm3375, %v3533, 0.0
    %v3815 = vadd.f32 %v3813, %v3814
    %v3816 = vsel %vm3375, %v3534, 0.0
    %v3817 = vadd.f32 %v3815, %v3816
    %v3818 = vsel %vm3375, %v3535, 0.0
    %v3819 = vadd.f32 %v3817, %v3818
    %v3820 = vsel %vm3375, %v3536, 0.0
    %v3821 = vadd.f32 %v3819, %v3820
    %v3822 = vsel %vm3375, %v3537, 0.0
    %v3823 = vadd.f32 %v3821, %v3822
    %v3824 = vsel %vm3375, %v3538, 0.0
    %v3825 = vadd.f32 %v3823, %v3824
    %v3826 = vsel %vm3375, %v3539, 0.0
    %v3827 = vadd.f32 %v3825, %v3826
    %v3828 = vsel %vm3375, %v3540, 0.0
    %v3829 = vadd.f32 %v3827, %v3828
    %v3830 = vsel %vm3375, %v3541, 0.0
    %v3831 = vadd.f32 %v3829, %v3830
    %v3832 = vsel %vm3375, %v3542, 0.0
    %v3833 = vadd.f32 %v3831, %v3832
    %v3834 = vsel %vm3375, %v3543, 0.0
    %v3835 = vadd.f32 %v3833, %v3834
    %v3836 = vsel %vm3375, %v3544, 0.0
    %v3837 = vadd.f32 %v3835, %v3836
    %v3838 = vsel %vm3375, %v3545, 0.0
    %v3839 = vadd.f32 %v3837, %v3838
    %v3840 = vsel %vm3375, %v3546, 0.0
    %v3841 = vadd.f32 %v3839, %v3840
    %v3842 = vsel %vm3375, %v3547, 0.0
    %v3843 = vadd.f32 %v3841, %v3842
    %v3844 = vsel %vm3375, %v3548, 0.0
    %v3845 = vadd.f32 %v3843, %v3844
    %v3846 = vsel %vm3375, %v3549, 0.0
    %v3847 = vadd.f32 %v3845, %v3846
    %v3848 = vsel %vm3375, %v3550, 0.0
    %v3849 = vadd.f32 %v3847, %v3848
    %v3850 = vsel %vm3375, %v3551, 0.0
    %v3851 = vadd.f32 %v3849, %v3850
    %v3852 = vsel %vm3375, %v3552, 0.0
    %v3853 = vadd.f32 %v3851, %v3852
    %v3854 = vsel %vm3375, %v3553, 0.0
    %v3855 = vadd.f32 %v3853, %v3854
    %v3856 = vsel %vm3375, %v3554, 0.0
    %v3857 = vadd.f32 %v3855, %v3856
    %v3858 = vsel %vm3375, %v3555, 0.0
    %v3859 = vadd.f32 %v3857, %v3858
    %v3860 = vsel %vm3375, %v3556, 0.0
    %v3861 = vadd.f32 %v3859, %v3860
    %v3862 = vsel %vm3375, %v3557, 0.0
    %v3863 = vadd.f32 %v3861, %v3862
    %v3864 = vsel %vm3375, %v3558, 0.0
    %v3865 = vadd.f32 %v3863, %v3864
    %v3866 = vsel %vm3375, %v3559, 0.0
    %v3867 = vadd.f32 %v3865, %v3866
    %v3868 = vsel %vm3375, %v3560, 0.0
    %v3869 = vadd.f32 %v3867, %v3868
    %v3870 = vsel %vm3375, %v3561, 0.0
    %v3871 = vadd.f32 %v3869, %v3870
    %v3872 = vsel %vm3375, %v3562, 0.0
    %v3873 = vadd.f32 %v3871, %v3872
    %v3874 = vsel %vm3375, %v3563, 0.0
    %v3875 = vadd.f32 %v3873, %v3874
    %v3876 = vsel %vm3375, %v3564, 0.0
    %v3877 = vadd.f32 %v3875, %v3876
    %v3878 = vsel %vm3375, %v3565, 0.0
    %v3879 = vadd.f32 %v3877, %v3878
    %v3880 = vsel %vm3375, %v3566, 0.0
    %v3881 = vadd.f32 %v3879, %v3880
    %v3882 = vsel %vm3375, %v3567, 0.0
    %v3883 = vadd.f32 %v3881, %v3882
    %v3884 = vsel %vm3375, %v3568, 0.0
    %v3885 = vadd.f32 %v3883, %v3884
    %v3886 = vsel %vm3375, %v3569, 0.0
    %v3887 = vadd.f32 %v3885, %v3886
    %v3888 = vsel %vm3375, %v3570, 0.0
    %v3889 = vadd.f32 %v3887, %v3888
    %v3890 = vsel %vm3375, %v3571, 0.0
    %v3891 = vadd.f32 %v3889, %v3890
    %v3892 = vsel %vm3375, %v3572, 0.0
    %v3893 = vadd.f32 %v3891, %v3892
    %v3894 = vsel %vm3375, %v3573, 0.0
    %v3895 = vadd.f32 %v3893, %v3894
    %v3896 = vsel %vm3375, %v3574, 0.0
    %v3897 = vadd.f32 %v3895, %v3896
    %v3898 = vsel %vm3375, %v3575, 0.0
    %v3899 = vadd.f32 %v3897, %v3898
    %v3900 = vsel %vm3375, %v3576, 0.0
    %v3901 = vadd.f32 %v3899, %v3900
    %v3902 = vsel %vm3375, %v3577, 0.0
    %v3903 = vadd.f32 %v3901, %v3902
    %v3904 = vsel %vm3375, %v3578, 0.0
    %v3905 = vadd.f32 %v3903, %v3904
    %v3906 = vsel %vm3375, %v3579, 0.0
    %v3907 = vadd.f32 %v3905, %v3906
    %v3908 = vsel %vm3375, %v3580, 0.0
    %v3909 = vadd.f32 %v3907, %v3908
    %v3910 = vsel %vm3375, %v3581, 0.0
    %v3911 = vadd.f32 %v3909, %v3910
    %v3912 = vsel %vm3375, %v3582, 0.0
    %v3913 = vadd.f32 %v3911, %v3912
    %v3914 = vsel %vm3375, %v3583, 0.0
    %v3915 = vadd.f32 %v3913, %v3914
    %v3916 = vsel %vm3375, %v3584, 0.0
    %v3917 = vadd.f32 %v3915, %v3916
    %v3918 = vsel %vm3375, %v3585, 0.0
    %v3919 = vadd.f32 %v3917, %v3918
    %v3920 = vsel %vm3375, %v3586, 0.0
    %v3921 = vadd.f32 %v3919, %v3920
    %v3922 = vsel %vm3375, %v3587, 0.0
    %v3923 = vadd.f32 %v3921, %v3922
    %v3924 = vsel %vm3375, %v3588, 0.0
    %v3925 = vadd.f32 %v3923, %v3924
    %v3926 = vsel %vm3375, %v3589, 0.0
    %v3927 = vadd.f32 %v3925, %v3926
    %v3928 = vsel %vm3375, %v3590, 0.0
    %v3929 = vadd.f32 %v3927, %v3928
    %v3930 = vsel %vm3375, %v3591, 0.0
    %v3931 = vadd.f32 %v3929, %v3930
    %v3932 = vsel %vm3375, %v3592, 0.0
    %v3933 = vadd.f32 %v3931, %v3932
    %v3934 = vsel %vm3375, %v3593, 0.0
    %v3935 = vadd.f32 %v3933, %v3934
    %v3936 = vsel %vm3375, %v3594, 0.0
    %v3937 = vadd.f32 %v3935, %v3936
    %v3938 = vsel %vm3375, %v3595, 0.0
    %v3939 = vadd.f32 %v3937, %v3938
    %v3940 = vsel %vm3375, %v3596, 0.0
    %v3941 = vadd.f32 %v3939, %v3940
    %v3942 = vsel %vm3375, %v3597, 0.0
    %v3943 = vadd.f32 %v3941, %v3942
    %v3944 = vsel %vm3375, %v3598, 0.0
    %v3945 = vadd.f32 %v3943, %v3944
    %v3946 = vsel %vm3375, %v3599, 0.0
    %v3947 = vadd.f32 %v3945, %v3946
    %v3948 = vsel %vm3375, %v3600, 0.0
    %v3949 = vadd.f32 %v3947, %v3948
    %v3950 = vsel %vm3375, %v3601, 0.0
    %v3951 = vadd.f32 %v3949, %v3950
    %v3952 = vsel %vm3375, %v3602, 0.0
    %v3953 = vadd.f32 %v3951, %v3952
    %v3954 = vsel %vm3375, %v3603, 0.0
    %v3955 = vadd.f32 %v3953, %v3954
    %v3956 = vsel %vm3375, %v3604, 0.0
    %v3957 = vadd.f32 %v3955, %v3956
    %v3958 = vsel %vm3375, %v3605, 0.0
    %v3959 = vadd.f32 %v3957, %v3958
    %v3960 = vsel %vm3375, %v3606, 0.0
    %v3961 = vadd.f32 %v3959, %v3960
    %v3962 = vsel %vm3375, %v3607, 0.0
    %v3963 = vadd.f32 %v3961, %v3962
    %v3964 = vsel %vm3375, %v3608, 0.0
    %v3965 = vadd.f32 %v3963, %v3964
    %v3966 = vsel %vm3375, %v3609, 0.0
    %v3967 = vadd.f32 %v3965, %v3966
    %v3968 = vsel %vm3375, %v3610, 0.0
    %v3969 = vadd.f32 %v3967, %v3968
    %v3970 = vsel %vm3375, %v3611, 0.0
    %v3971 = vadd.f32 %v3969, %v3970
    %v3972 = vsel %vm3375, %v3612, 0.0
    %v3973 = vadd.f32 %v3971, %v3972
    %v3974 = vsel %vm3375, %v3613, 0.0
    %v3975 = vadd.f32 %v3973, %v3974
    %v3976 = vsel %vm3375, %v3614, 0.0
    %v3977 = vadd.f32 %v3975, %v3976
    %v3978 = vsel %vm3375, %v3615, 0.0
    %v3979 = vadd.f32 %v3977, %v3978
    %v3980 = vsel %vm3375, %v3616, 0.0
    %v3981 = vadd.f32 %v3979, %v3980
    %v3982 = vsel %vm3375, %v3617, 0.0
    %v3983 = vadd.f32 %v3981, %v3982
    %v3984 = vsel %vm3375, %v3618, 0.0
    %v3985 = vadd.f32 %v3983, %v3984
    %v3986 = vsel %vm3375, %v3619, 0.0
    %v3987 = vadd.f32 %v3985, %v3986
    %v3988 = vsel %vm3375, %v3620, 0.0
    %v3989 = vadd.f32 %v3987, %v3988
    %v3990 = vsel %vm3375, %v3621, 0.0
    %v3991 = vadd.f32 %v3989, %v3990
    %v3992 = vsel %vm3375, %v3622, 0.0
    %v3993 = vadd.f32 %v3991, %v3992
    %v3994 = vsel %vm3375, %v3623, 0.0
    %v3995 = vadd.f32 %v3993, %v3994
    %v3996 = vsel %vm3375, %v3624, 0.0
    %v3997 = vadd.f32 %v3995, %v3996
    %v3998 = vsel %vm3375, %v3625, 0.0
    %v3999 = vadd.f32 %v3997, %v3998
    %v4000 = vsel %vm3375, %v3626, 0.0
    %v4001 = vadd.f32 %v3999, %v4000
    %v4002 = vsel %vm3375, %v3627, 0.0
    %v4003 = vadd.f32 %v4001, %v4002
    %v4004 = vsel %vm3375, %v3628, 0.0
    %v4005 = vadd.f32 %v4003, %v4004
    %v4006 = vsel %vm3375, %v3629, 0.0
    %v4007 = vadd.f32 %v4005, %v4006
    %v4008 = vsel %vm3375, %v3630, 0.0
    %v4009 = vadd.f32 %v4007, %v4008
    %v4010 = vsel %vm3375, %v3631, 0.0
    %v4011 = vadd.f32 %v4009, %v4010
    %v4012 = vsel %vm3375, %v3632, 0.0
    %v4013 = vadd.f32 %v4011, %v4012
    %v4014 = vsel %vm3375, %v3633, 0.0
    %v4015 = vadd.f32 %v4013, %v4014
    %v4016 = vsel %vm3375, %v3634, 0.0
    %v4017 = vadd.f32 %v4015, %v4016
    %v4018 = vrot.slane %v4017, 4
    %v4019 = vadd.f32 %v4017, %v4018
    %v4020 = vrot.slane %v4019, 2
    %v4021 = vadd.f32 %v4019, %v4020
    %v4022 = vrot.slane %v4021, 1
    %v4023 = vadd.f32 %v4021, %v4022
    %4024 = vst.msk [vmem:[%s3] sm:$0xff] %vm3375, %v4023
    %v4025 = vmul.f32 %v3507, %v3507
    %v4026 = vmul.f32 %v3508, %v3508
    %v4027 = vmul.f32 %v3509, %v3509
    %v4028 = vmul.f32 %v3510, %v3510
    %v4029 = vmul.f32 %v3511, %v3511
    %v4030 = vmul.f32 %v3512, %v3512
    %v4031 = vmul.f32 %v3513, %v3513
    %v4032 = vmul.f32 %v3514, %v3514
    %v4033 = vmul.f32 %v3515, %v3515
    %v4034 = vmul.f32 %v3516, %v3516
    %v4035 = vmul.f32 %v3517, %v3517
    %v4036 = vmul.f32 %v3518, %v3518
    %v4037 = vmul.f32 %v3519, %v3519
    %v4038 = vmul.f32 %v3520, %v3520
    %v4039 = vmul.f32 %v3521, %v3521
    %v4040 = vmul.f32 %v3522, %v3522
    %v4041 = vmul.f32 %v3523, %v3523
    %v4042 = vmul.f32 %v3524, %v3524
    %v4043 = vmul.f32 %v3525, %v3525
    %v4044 = vmul.f32 %v3526, %v3526
    %v4045 = vmul.f32 %v3527, %v3527
    %v4046 = vmul.f32 %v3528, %v3528
    %v4047 = vmul.f32 %v3529, %v3529
    %v4048 = vmul.f32 %v3530, %v3530
    %v4049 = vmul.f32 %v3531, %v3531
    %v4050 = vmul.f32 %v3532, %v3532
    %v4051 = vmul.f32 %v3533, %v3533
    %v4052 = vmul.f32 %v3534, %v3534
    %v4053 = vmul.f32 %v3535, %v3535
    %v4054 = vmul.f32 %v3536, %v3536
    %v4055 = vmul.f32 %v3537, %v3537
    %v4056 = vmul.f32 %v3538, %v3538
    %v4057 = vmul.f32 %v3539, %v3539
    %v4058 = vmul.f32 %v3540, %v3540
    %v4059 = vmul.f32 %v3541, %v3541
    %v4060 = vmul.f32 %v3542, %v3542
    %v4061 = vmul.f32 %v3543, %v3543
    %v4062 = vmul.f32 %v3544, %v3544
    %v4063 = vmul.f32 %v3545, %v3545
    %v4064 = vmul.f32 %v3546, %v3546
    %v4065 = vmul.f32 %v3547, %v3547
    %v4066 = vmul.f32 %v3548, %v3548
    %v4067 = vmul.f32 %v3549, %v3549
    %v4068 = vmul.f32 %v3550, %v3550
    %v4069 = vmul.f32 %v3551, %v3551
    %v4070 = vmul.f32 %v3552, %v3552
    %v4071 = vmul.f32 %v3553, %v3553
    %v4072 = vmul.f32 %v3554, %v3554
    %v4073 = vmul.f32 %v3555, %v3555
    %v4074 = vmul.f32 %v3556, %v3556
    %v4075 = vmul.f32 %v3557, %v3557
    %v4076 = vmul.f32 %v3558, %v3558
    %v4077 = vmul.f32 %v3559, %v3559
    %v4078 = vmul.f32 %v3560, %v3560
    %v4079 = vmul.f32 %v3561, %v3561
    %v4080 = vmul.f32 %v3562, %v3562
    %v4081 = vmul.f32 %v3563, %v3563
    %v4082 = vmul.f32 %v3564, %v3564
    %v4083 = vmul.f32 %v3565, %v3565
    %v4084 = vmul.f32 %v3566, %v3566
    %v4085 = vmul.f32 %v3567, %v3567
    %v4086 = vmul.f32 %v3568, %v3568
    %v4087 = vmul.f32 %v3569, %v3569
    %v4088 = vmul.f32 %v3570, %v3570
    %v4089 = vmul.f32 %v3571, %v3571
    %v4090 = vmul.f32 %v3572, %v3572
    %v4091 = vmul.f32 %v3573, %v3573
    %v4092 = vmul.f32 %v3574, %v3574
    %v4093 = vmul.f32 %v3575, %v3575
    %v4094 = vmul.f32 %v3576, %v3576
    %v4095 = vmul.f32 %v3577, %v3577
    %v4096 = vmul.f32 %v3578, %v3578
    %v4097 = vmul.f32 %v3579, %v3579
    %v4098 = vmul.f32 %v3580, %v3580
    %v4099 = vmul.f32 %v3581, %v3581
    %v4100 = vmul.f32 %v3582, %v3582
    %v4101 = vmul.f32 %v3583, %v3583
    %v4102 = vmul.f32 %v3584, %v3584
    %v4103 = vmul.f32 %v3585, %v3585
    %v4104 = vmul.f32 %v3586, %v3586
    %v4105 = vmul.f32 %v3587, %v3587
    %v4106 = vmul.f32 %v3588, %v3588
    %v4107 = vmul.f32 %v3589, %v3589
    %v4108 = vmul.f32 %v3590, %v3590
    %v4109 = vmul.f32 %v3591, %v3591
    %v4110 = vmul.f32 %v3592, %v3592
    %v4111 = vmul.f32 %v3593, %v3593
    %v4112 = vmul.f32 %v3594, %v3594
    %v4113 = vmul.f32 %v3595, %v3595
    %v4114 = vmul.f32 %v3596, %v3596
    %v4115 = vmul.f32 %v3597, %v3597
    %v4116 = vmul.f32 %v3598, %v3598
    %v4117 = vmul.f32 %v3599, %v3599
    %v4118 = vmul.f32 %v3600, %v3600
    %v4119 = vmul.f32 %v3601, %v3601
    %v4120 = vmul.f32 %v3602, %v3602
    %v4121 = vmul.f32 %v3603, %v3603
    %v4122 = vmul.f32 %v3604, %v3604
    %v4123 = vmul.f32 %v3605, %v3605
    %v4124 = vmul.f32 %v3606, %v3606
    %v4125 = vmul.f32 %v3607, %v3607
    %v4126 = vmul.f32 %v3608, %v3608
    %v4127 = vmul.f32 %v3609, %v3609
    %v4128 = vmul.f32 %v3610, %v3610
    %v4129 = vmul.f32 %v3611, %v3611
    %v4130 = vmul.f32 %v3612, %v3612
    %v4131 = vmul.f32 %v3613, %v3613
    %v4132 = vmul.f32 %v3614, %v3614
    %v4133 = vmul.f32 %v3615, %v3615
    %v4134 = vmul.f32 %v3616, %v3616
    %v4135 = vmul.f32 %v3617, %v3617
    %v4136 = vmul.f32 %v3618, %v3618
    %v4137 = vmul.f32 %v3619, %v3619
    %v4138 = vmul.f32 %v3620, %v3620
    %v4139 = vmul.f32 %v3621, %v3621
    %v4140 = vmul.f32 %v3622, %v3622
    %v4141 = vmul.f32 %v3623, %v3623
    %v4142 = vmul.f32 %v3624, %v3624
    %v4143 = vmul.f32 %v3625, %v3625
    %v4144 = vmul.f32 %v3626, %v3626
    %v4145 = vmul.f32 %v3627, %v3627
    %v4146 = vmul.f32 %v3628, %v3628
    %v4147 = vmul.f32 %v3629, %v3629
    %v4148 = vmul.f32 %v3630, %v3630
    %v4149 = vmul.f32 %v3631, %v3631
    %v4150 = vmul.f32 %v3632, %v3632
    %v4151 = vmul.f32 %v3633, %v3633
    %v4152 = vmul.f32 %v3634, %v3634
    %v4153 = vsel %vm3375, %v4025, 0.0
    %v4154 = vsel %vm3375, %v4026, 0.0
    %v4155 = vadd.f32 %v4153, %v4154
    %v4156 = vsel %vm3375, %v4027, 0.0
    %v4157 = vadd.f32 %v4155, %v4156
    %v4158 = vsel %vm3375, %v4028, 0.0
    %v4159 = vadd.f32 %v4157, %v4158
    %v4160 = vsel %vm3375, %v4029, 0.0
    %v4161 = vadd.f32 %v4159, %v4160
    %v4162 = vsel %vm3375, %v4030, 0.0
    %v4163 = vadd.f32 %v4161, %v4162
    %v4164 = vsel %vm3375, %v4031, 0.0
    %v4165 = vadd.f32 %v4163, %v4164
    %v4166 = vsel %vm3375, %v4032, 0.0
    %v4167 = vadd.f32 %v4165, %v4166
    %v4168 = vsel %vm3375, %v4033, 0.0
    %v4169 = vadd.f32 %v4167, %v4168
    %v4170 = vsel %vm3375, %v4034, 0.0
    %v4171 = vadd.f32 %v4169, %v4170
    %v4172 = vsel %vm3375, %v4035, 0.0
    %v4173 = vadd.f32 %v4171, %v4172
    %v4174 = vsel %vm3375, %v4036, 0.0
    %v4175 = vadd.f32 %v4173, %v4174
    %v4176 = vsel %vm3375, %v4037, 0.0
    %v4177 = vadd.f32 %v4175, %v4176
    %v4178 = vsel %vm3375, %v4038, 0.0
    %v4179 = vadd.f32 %v4177, %v4178
    %v4180 = vsel %vm3375, %v4039, 0.0
    %v4181 = vadd.f32 %v4179, %v4180
    %v4182 = vsel %vm3375, %v4040, 0.0
    %v4183 = vadd.f32 %v4181, %v4182
    %v4184 = vsel %vm3375, %v4041, 0.0
    %v4185 = vadd.f32 %v4183, %v4184
    %v4186 = vsel %vm3375, %v4042, 0.0
    %v4187 = vadd.f32 %v4185, %v4186
    %v4188 = vsel %vm3375, %v4043, 0.0
    %v4189 = vadd.f32 %v4187, %v4188
    %v4190 = vsel %vm3375, %v4044, 0.0
    %v4191 = vadd.f32 %v4189, %v4190
    %v4192 = vsel %vm3375, %v4045, 0.0
    %v4193 = vadd.f32 %v4191, %v4192
    %v4194 = vsel %vm3375, %v4046, 0.0
    %v4195 = vadd.f32 %v4193, %v4194
    %v4196 = vsel %vm3375, %v4047, 0.0
    %v4197 = vadd.f32 %v4195, %v4196
    %v4198 = vsel %vm3375, %v4048, 0.0
    %v4199 = vadd.f32 %v4197, %v4198
    %v4200 = vsel %vm3375, %v4049, 0.0
    %v4201 = vadd.f32 %v4199, %v4200
    %v4202 = vsel %vm3375, %v4050, 0.0
    %v4203 = vadd.f32 %v4201, %v4202
    %v4204 = vsel %vm3375, %v4051, 0.0
    %v4205 = vadd.f32 %v4203, %v4204
    %v4206 = vsel %vm3375, %v4052, 0.0
    %v4207 = vadd.f32 %v4205, %v4206
    %v4208 = vsel %vm3375, %v4053, 0.0
    %v4209 = vadd.f32 %v4207, %v4208
    %v4210 = vsel %vm3375, %v4054, 0.0
    %v4211 = vadd.f32 %v4209, %v4210
    %v4212 = vsel %vm3375, %v4055, 0.0
    %v4213 = vadd.f32 %v4211, %v4212
    %v4214 = vsel %vm3375, %v4056, 0.0
    %v4215 = vadd.f32 %v4213, %v4214
    %v4216 = vsel %vm3375, %v4057, 0.0
    %v4217 = vadd.f32 %v4215, %v4216
    %v4218 = vsel %vm3375, %v4058, 0.0
    %v4219 = vadd.f32 %v4217, %v4218
    %v4220 = vsel %vm3375, %v4059, 0.0
    %v4221 = vadd.f32 %v4219, %v4220
    %v4222 = vsel %vm3375, %v4060, 0.0
    %v4223 = vadd.f32 %v4221, %v4222
    %v4224 = vsel %vm3375, %v4061, 0.0
    %v4225 = vadd.f32 %v4223, %v4224
    %v4226 = vsel %vm3375, %v4062, 0.0
    %v4227 = vadd.f32 %v4225, %v4226
    %v4228 = vsel %vm3375, %v4063, 0.0
    %v4229 = vadd.f32 %v4227, %v4228
    %v4230 = vsel %vm3375, %v4064, 0.0
    %v4231 = vadd.f32 %v4229, %v4230
    %v4232 = vsel %vm3375, %v4065, 0.0
    %v4233 = vadd.f32 %v4231, %v4232
    %v4234 = vsel %vm3375, %v4066, 0.0
    %v4235 = vadd.f32 %v4233, %v4234
    %v4236 = vsel %vm3375, %v4067, 0.0
    %v4237 = vadd.f32 %v4235, %v4236
    %v4238 = vsel %vm3375, %v4068, 0.0
    %v4239 = vadd.f32 %v4237, %v4238
    %v4240 = vsel %vm3375, %v4069, 0.0
    %v4241 = vadd.f32 %v4239, %v4240
    %v4242 = vsel %vm3375, %v4070, 0.0
    %v4243 = vadd.f32 %v4241, %v4242
    %v4244 = vsel %vm3375, %v4071, 0.0
    %v4245 = vadd.f32 %v4243, %v4244
    %v4246 = vsel %vm3375, %v4072, 0.0
    %v4247 = vadd.f32 %v4245, %v4246
    %v4248 = vsel %vm3375, %v4073, 0.0
    %v4249 = vadd.f32 %v4247, %v4248
    %v4250 = vsel %vm3375, %v4074, 0.0
    %v4251 = vadd.f32 %v4249, %v4250
    %v4252 = vsel %vm3375, %v4075, 0.0
    %v4253 = vadd.f32 %v4251, %v4252
    %v4254 = vsel %vm3375, %v4076, 0.0
    %v4255 = vadd.f32 %v4253, %v4254
    %v4256 = vsel %vm3375, %v4077, 0.0
    %v4257 = vadd.f32 %v4255, %v4256
    %v4258 = vsel %vm3375, %v4078, 0.0
    %v4259 = vadd.f32 %v4257, %v4258
    %v4260 = vsel %vm3375, %v4079, 0.0
    %v4261 = vadd.f32 %v4259, %v4260
    %v4262 = vsel %vm3375, %v4080, 0.0
    %v4263 = vadd.f32 %v4261, %v4262
    %v4264 = vsel %vm3375, %v4081, 0.0
    %v4265 = vadd.f32 %v4263, %v4264
    %v4266 = vsel %vm3375, %v4082, 0.0
    %v4267 = vadd.f32 %v4265, %v4266
    %v4268 = vsel %vm3375, %v4083, 0.0
    %v4269 = vadd.f32 %v4267, %v4268
    %v4270 = vsel %vm3375, %v4084, 0.0
    %v4271 = vadd.f32 %v4269, %v4270
    %v4272 = vsel %vm3375, %v4085, 0.0
    %v4273 = vadd.f32 %v4271, %v4272
    %v4274 = vsel %vm3375, %v4086, 0.0
    %v4275 = vadd.f32 %v4273, %v4274
    %v4276 = vsel %vm3375, %v4087, 0.0
    %v4277 = vadd.f32 %v4275, %v4276
    %v4278 = vsel %vm3375, %v4088, 0.0
    %v4279 = vadd.f32 %v4277, %v4278
    %v4280 = vsel %vm3375, %v4089, 0.0
    %v4281 = vadd.f32 %v4279, %v4280
    %v4282 = vsel %vm3375, %v4090, 0.0
    %v4283 = vadd.f32 %v4281, %v4282
    %v4284 = vsel %vm3375, %v4091, 0.0
    %v4285 = vadd.f32 %v4283, %v4284
    %v4286 = vsel %vm3375, %v4092, 0.0
    %v4287 = vadd.f32 %v4285, %v4286
    %v4288 = vsel %vm3375, %v4093, 0.0
    %v4289 = vadd.f32 %v4287, %v4288
    %v4290 = vsel %vm3375, %v4094, 0.0
    %v4291 = vadd.f32 %v4289, %v4290
    %v4292 = vsel %vm3375, %v4095, 0.0
    %v4293 = vadd.f32 %v4291, %v4292
    %v4294 = vsel %vm3375, %v4096, 0.0
    %v4295 = vadd.f32 %v4293, %v4294
    %v4296 = vsel %vm3375, %v4097, 0.0
    %v4297 = vadd.f32 %v4295, %v4296
    %v4298 = vsel %vm3375, %v4098, 0.0
    %v4299 = vadd.f32 %v4297, %v4298
    %v4300 = vsel %vm3375, %v4099, 0.0
    %v4301 = vadd.f32 %v4299, %v4300
    %v4302 = vsel %vm3375, %v4100, 0.0
    %v4303 = vadd.f32 %v4301, %v4302
    %v4304 = vsel %vm3375, %v4101, 0.0
    %v4305 = vadd.f32 %v4303, %v4304
    %v4306 = vsel %vm3375, %v4102, 0.0
    %v4307 = vadd.f32 %v4305, %v4306
    %v4308 = vsel %vm3375, %v4103, 0.0
    %v4309 = vadd.f32 %v4307, %v4308
    %v4310 = vsel %vm3375, %v4104, 0.0
    %v4311 = vadd.f32 %v4309, %v4310
    %v4312 = vsel %vm3375, %v4105, 0.0
    %v4313 = vadd.f32 %v4311, %v4312
    %v4314 = vsel %vm3375, %v4106, 0.0
    %v4315 = vadd.f32 %v4313, %v4314
    %v4316 = vsel %vm3375, %v4107, 0.0
    %v4317 = vadd.f32 %v4315, %v4316
    %v4318 = vsel %vm3375, %v4108, 0.0
    %v4319 = vadd.f32 %v4317, %v4318
    %v4320 = vsel %vm3375, %v4109, 0.0
    %v4321 = vadd.f32 %v4319, %v4320
    %v4322 = vsel %vm3375, %v4110, 0.0
    %v4323 = vadd.f32 %v4321, %v4322
    %v4324 = vsel %vm3375, %v4111, 0.0
    %v4325 = vadd.f32 %v4323, %v4324
    %v4326 = vsel %vm3375, %v4112, 0.0
    %v4327 = vadd.f32 %v4325, %v4326
    %v4328 = vsel %vm3375, %v4113, 0.0
    %v4329 = vadd.f32 %v4327, %v4328
    %v4330 = vsel %vm3375, %v4114, 0.0
    %v4331 = vadd.f32 %v4329, %v4330
    %v4332 = vsel %vm3375, %v4115, 0.0
    %v4333 = vadd.f32 %v4331, %v4332
    %v4334 = vsel %vm3375, %v4116, 0.0
    %v4335 = vadd.f32 %v4333, %v4334
    %v4336 = vsel %vm3375, %v4117, 0.0
    %v4337 = vadd.f32 %v4335, %v4336
    %v4338 = vsel %vm3375, %v4118, 0.0
    %v4339 = vadd.f32 %v4337, %v4338
    %v4340 = vsel %vm3375, %v4119, 0.0
    %v4341 = vadd.f32 %v4339, %v4340
    %v4342 = vsel %vm3375, %v4120, 0.0
    %v4343 = vadd.f32 %v4341, %v4342
    %v4344 = vsel %vm3375, %v4121, 0.0
    %v4345 = vadd.f32 %v4343, %v4344
    %v4346 = vsel %vm3375, %v4122, 0.0
    %v4347 = vadd.f32 %v4345, %v4346
    %v4348 = vsel %vm3375, %v4123, 0.0
    %v4349 = vadd.f32 %v4347, %v4348
    %v4350 = vsel %vm3375, %v4124, 0.0
    %v4351 = vadd.f32 %v4349, %v4350
    %v4352 = vsel %vm3375, %v4125, 0.0
    %v4353 = vadd.f32 %v4351, %v4352
    %v4354 = vsel %vm3375, %v4126, 0.0
    %v4355 = vadd.f32 %v4353, %v4354
    %v4356 = vsel %vm3375, %v4127, 0.0
    %v4357 = vadd.f32 %v4355, %v4356
    %v4358 = vsel %vm3375, %v4128, 0.0
    %v4359 = vadd.f32 %v4357, %v4358
    %v4360 = vsel %vm3375, %v4129, 0.0
    %v4361 = vadd.f32 %v4359, %v4360
    %v4362 = vsel %vm3375, %v4130, 0.0
    %v4363 = vadd.f32 %v4361, %v4362
    %v4364 = vsel %vm3375, %v4131, 0.0
    %v4365 = vadd.f32 %v4363, %v4364
    %v4366 = vsel %vm3375, %v4132, 0.0
    %v4367 = vadd.f32 %v4365, %v4366
    %v4368 = vsel %vm3375, %v4133, 0.0
    %v4369 = vadd.f32 %v4367, %v4368
    %v4370 = vsel %vm3375, %v4134, 0.0
    %v4371 = vadd.f32 %v4369, %v4370
    %v4372 = vsel %vm3375, %v4135, 0.0
    %v4373 = vadd.f32 %v4371, %v4372
    %v4374 = vsel %vm3375, %v4136, 0.0
    %v4375 = vadd.f32 %v4373, %v4374
    %v4376 = vsel %vm3375, %v4137, 0.0
    %v4377 = vadd.f32 %v4375, %v4376
    %v4378 = vsel %vm3375, %v4138, 0.0
    %v4379 = vadd.f32 %v4377, %v4378
    %v4380 = vsel %vm3375, %v4139, 0.0
    %v4381 = vadd.f32 %v4379, %v4380
    %v4382 = vsel %vm3375, %v4140, 0.0
    %v4383 = vadd.f32 %v4381, %v4382
    %v4384 = vsel %vm3375, %v4141, 0.0
    %v4385 = vadd.f32 %v4383, %v4384
    %v4386 = vsel %vm3375, %v4142, 0.0
    %v4387 = vadd.f32 %v4385, %v4386
    %v4388 = vsel %vm3375, %v4143, 0.0
    %v4389 = vadd.f32 %v4387, %v4388
    %v4390 = vsel %vm3375, %v4144, 0.0
    %v4391 = vadd.f32 %v4389, %v4390
    %v4392 = vsel %vm3375, %v4145, 0.0
    %v4393 = vadd.f32 %v4391, %v4392
    %v4394 = vsel %vm3375, %v4146, 0.0
    %v4395 = vadd.f32 %v4393, %v4394
    %v4396 = vsel %vm3375, %v4147, 0.0
    %v4397 = vadd.f32 %v4395, %v4396
    %v4398 = vsel %vm3375, %v4148, 0.0
    %v4399 = vadd.f32 %v4397, %v4398
    %v4400 = vsel %vm3375, %v4149, 0.0
    %v4401 = vadd.f32 %v4399, %v4400
    %v4402 = vsel %vm3375, %v4150, 0.0
    %v4403 = vadd.f32 %v4401, %v4402
    %v4404 = vsel %vm3375, %v4151, 0.0
    %v4405 = vadd.f32 %v4403, %v4404
    %v4406 = vsel %vm3375, %v4152, 0.0
    %v4407 = vadd.f32 %v4405, %v4406
    %v4408 = vrot.slane %v4407, 4
    %v4409 = vadd.f32 %v4407, %v4408
    %v4410 = vrot.slane %v4409, 2
    %v4411 = vadd.f32 %v4409, %v4410
    %v4412 = vrot.slane %v4411, 1
    %v4413 = vadd.f32 %v4411, %v4412
    %4414 = vst.msk [vmem:[%s4] sm:$0xff] %vm3375, %v4413
  $region17: #{net_up_block_di_forward.8} parent=0 // pred_fallthru
    _
  // Predicated region
  $region18: #{net_up_block_di_forward.8} parent=0 // pred_check
    _
  $region19: #{net_up_block_di_forward.8} parent=0 // pred_check_branch
    %4416 = sbr.rel (0) target = $region21
  $region20: #{net_up_block_di_forward.8} parent=0 // pred_region
    _
  $region21: #{net_up_block_di_forward.8} parent=0 // pred_fallthru
    _
  // Predicated region
  $region22: #{net_up_block_di_forward.8} parent=0 // pred_check
    _
  $region23: #{net_up_block_di_forward.8} parent=0 // pred_check_branch
    %4418 = sbr.rel (0) target = $region25
  $region24: #{net_up_block_di_forward.8} parent=0 // pred_region
    _
  $region25: #{net_up_block_di_forward.8} parent=0 // pred_fallthru
    _
  // Predicated region
  $region26: #{net_up_block_di_forward.8} parent=0 // pred_check
    _
  $region27: #{net_up_block_di_forward.8} parent=0 // pred_check_branch
    %4420 = sbr.rel (0) target = $region29
  $region28: #{net_up_block_di_forward.8} parent=0 // pred_region
    _
  $region29: #{net_up_block_di_forward.8} parent=0 // pred_fallthru
    _
  // Predicated region
  $region30: #{net_up_block_di_forward.8} parent=0 // pred_check
    _
  $region31: #{net_up_block_di_forward.8} parent=0 // pred_check_branch
    %4422 = sbr.rel (0) target = $region33
  $region32: #{net_up_block_di_forward.8} parent=0 // pred_region
    _
  $region33: #{net_up_block_di_forward.8} parent=0 // pred_fallthru
    _
  // Predicated region
  $region34: #{net_up_block_di_forward.8} parent=0 // pred_check
    _
  $region35: #{net_up_block_di_forward.8} parent=0 // pred_check_branch
    %4424 = sbr.rel (0) target = $region37
  $region36: #{net_up_block_di_forward.8} parent=0 // pred_region
    _
  $region37: #{net_up_block_di_forward.8} parent=0 // pred_fallthru
    _
  // Predicated region
  $region38: #{net_up_block_di_forward.8} parent=0 // pred_check
    _
  $region39: #{net_up_block_di_forward.8} parent=0 // pred_check_branch
    %4426 = sbr.rel (0) target = $region41
  $region40: #{net_up_block_di_forward.8} parent=0 // pred_region
    _
  $region41: #{net_up_block_di_forward.8} parent=0 // pred_fallthru
    _

// kernel: net_up_block_di_forward.11
$region0: #{net_up_block_di_forward.11}
  #allocation0 [shape = 'u32[]', space=smem, size = 0x4, offset = 0x4, fixed_abs, tag = 'smem constant byte address 0x4 - core index']
  #allocation1 [shape = 'u32[144,128]{1,0:T(1,128)}', space=vmem, size = 0x12000, scoped, tag = 'internal scratch']
  %s0 = inlined_call_operand.vmem [shape: f32[64,128], index: 0, kind: input, shape index: {}]
  %s1 = inlined_call_operand.vmem [shape: f32[1,128], index: 1, kind: input, shape index: {}]
  %s2 = inlined_call_operand.vmem [shape: f32[1,128], index: 2, kind: input, shape index: {}]
  %s3 = inlined_call_operand.vmem [shape: f32[1,128], index: 3, kind: input, shape index: {}]
  %s4 = inlined_call_operand.vmem [shape: f32[64,128], index: 4, kind: input, shape index: {}]
  %s5 = inlined_call_operand.vmem [shape: f32[64,128], index: 5, kind: output, shape index: {}]
  %s6 = sld [smem:[#allocation0]]
  $region30: #{net_up_block_di_forward.11} parent=0
    _
  %s8 = ssub.s32 1, %s6
  %s9 = scalar_select 0, %s8, %s6
  // Predicated region
  $region2: #{net_up_block_di_forward.11} parent=0 // pred_check
    _
  $region3: #{net_up_block_di_forward.11} parent=0 // pred_check_branch
    %11 = sbr.rel (0) target = $region5
  $region4: #{net_up_block_di_forward.11} parent=0 // pred_region
    _
  $region5: #{net_up_block_di_forward.11} parent=0 // pred_fallthru
    _
  // Predicated region
  $region6: #{net_up_block_di_forward.11} parent=0 // pred_check
    _
  $region7: #{net_up_block_di_forward.11} parent=0 // pred_check_branch
    %13 = sbr.rel (0) target = $region9
  $region8: #{net_up_block_di_forward.11} parent=0 // pred_region
    _
  $region9: #{net_up_block_di_forward.11} parent=0 // pred_fallthru
    _
  // Predicated region
  $region10: #{net_up_block_di_forward.11} parent=0 // pred_check
    _
  $region11: #{net_up_block_di_forward.11} parent=0 // pred_check_branch
    %15 = sbr.rel (0) target = $region13
  $region12: #{net_up_block_di_forward.11} parent=0 // pred_region
    _
  $region13: #{net_up_block_di_forward.11} parent=0 // pred_fallthru
    _
  // Predicated region
  $region14: #{net_up_block_di_forward.11} parent=0 // pred_check
    _
  $region15: #{net_up_block_di_forward.11} parent=0 // pred_check_branch
    %17 = sbr.rel (0) target = $region17
  $region16: #{net_up_block_di_forward.11} parent=0 // pred_region
    _
  $region17: #{net_up_block_di_forward.11} parent=0 // pred_fallthru
    _
  // Predicated region
  $region18: #{net_up_block_di_forward.11} parent=0 // pred_check
    _
  $region19: #{net_up_block_di_forward.11} parent=0 // pred_check_branch
    %19 = sbr.rel (0) target = $region21
  $region20: #{net_up_block_di_forward.11} parent=0 // pred_region
    _
  $region21: #{net_up_block_di_forward.11} parent=0 // pred_fallthru
    _
  %v20 = vld [vmem:[%s0] sm:$0xff]
  %v21 = vld [vmem:[%s0 + $0x8] sm:$0xff]
  %v22 = vld [vmem:[%s0 + $0x10] sm:$0xff]
  %v23 = vld [vmem:[%s0 + $0x18] sm:$0xff]
  %v24 = vld [vmem:[%s0 + $0x20] sm:$0xff]
  %v25 = vld [vmem:[%s0 + $0x28] sm:$0xff]
  %v26 = vld [vmem:[%s0 + $0x30] sm:$0xff]
  %v27 = vld [vmem:[%s0 + $0x38] sm:$0xff]
  %v28 = vld [vmem:[%s1] sm:$0x1]
  %v30 = vlaneseq
  %v31 = vshrl.u32 %v30, 7
  %v32 = vsub.s32 0, %v31
  %v33 = vrot.slane %v28, %v32
  %v35 = vmul.f32 %v20, %v33
  %v36 = vmul.f32 %v21, %v33
  %v37 = vmul.f32 %v22, %v33
  %v38 = vmul.f32 %v23, %v33
  %v39 = vmul.f32 %v24, %v33
  %v40 = vmul.f32 %v25, %v33
  %v41 = vmul.f32 %v26, %v33
  %v42 = vmul.f32 %v27, %v33
  %v43 = vld [vmem:[%s2] sm:$0x1]
  %v45 = vlaneseq
  %v46 = vshrl.u32 %v45, 7
  %v47 = vsub.s32 0, %v46
  %v48 = vrot.slane %v43, %v47
  %v50 = vadd.f32 %v35, %v48
  %v51 = vadd.f32 %v36, %v48
  %v52 = vadd.f32 %v37, %v48
  %v53 = vadd.f32 %v38, %v48
  %v54 = vadd.f32 %v39, %v48
  %v55 = vadd.f32 %v40, %v48
  %v56 = vadd.f32 %v41, %v48
  %v57 = vadd.f32 %v42, %v48
  %vm58 = vcmp.ge.f32.partialorder %v50, 0.0
  %vm59 = vcmp.ge.f32.partialorder %v51, 0.0
  %vm60 = vcmp.ge.f32.partialorder %v52, 0.0
  %vm61 = vcmp.ge.f32.partialorder %v53, 0.0
  %vm62 = vcmp.ge.f32.partialorder %v54, 0.0
  %vm63 = vcmp.ge.f32.partialorder %v55, 0.0
  %vm64 = vcmp.ge.f32.partialorder %v56, 0.0
  %vm65 = vcmp.ge.f32.partialorder %v57, 0.0
  %v66 = vld [vmem:[%s3] sm:$0x1]
  %v68 = vlaneseq
  %v69 = vshrl.u32 %v68, 7
  %v70 = vsub.s32 0, %v69
  %v71 = vrot.slane %v66, %v70
  %v73 = vmul.f32 %v71, %v50
  %v74 = vmul.f32 %v71, %v51
  %v75 = vmul.f32 %v71, %v52
  %v76 = vmul.f32 %v71, %v53
  %v77 = vmul.f32 %v71, %v54
  %v78 = vmul.f32 %v71, %v55
  %v79 = vmul.f32 %v71, %v56
  %v80 = vmul.f32 %v71, %v57
  %v81 = vsel %vm58, %v50, %v73
  %v82 = vsel %vm59, %v51, %v74
  %v83 = vsel %vm60, %v52, %v75
  %v84 = vsel %vm61, %v53, %v76
  %v85 = vsel %vm62, %v54, %v77
  %v86 = vsel %vm63, %v55, %v78
  %v87 = vsel %vm64, %v56, %v79
  %v88 = vsel %vm65, %v57, %v80
  %v89 = vld [vmem:[%s4] sm:$0xff]
  %v90 = vld [vmem:[%s4 + $0x8] sm:$0xff]
  %v91 = vld [vmem:[%s4 + $0x10] sm:$0xff]
  %v92 = vld [vmem:[%s4 + $0x18] sm:$0xff]
  %v93 = vld [vmem:[%s4 + $0x20] sm:$0xff]
  %v94 = vld [vmem:[%s4 + $0x28] sm:$0xff]
  %v95 = vld [vmem:[%s4 + $0x30] sm:$0xff]
  %v96 = vld [vmem:[%s4 + $0x38] sm:$0xff]
  %v97 = vadd.f32 %v81, %v89
  %v98 = vadd.f32 %v82, %v90
  %v99 = vadd.f32 %v83, %v91
  %v100 = vadd.f32 %v84, %v92
  %v101 = vadd.f32 %v85, %v93
  %v102 = vadd.f32 %v86, %v94
  %v103 = vadd.f32 %v87, %v95
  %v104 = vadd.f32 %v88, %v96
  %105 = vst [vmem:[%s5] sm:$0xff] %v97
  %106 = vst [vmem:[%s5 + $0x8] sm:$0xff] %v98
  %107 = vst [vmem:[%s5 + $0x10] sm:$0xff] %v99
  %108 = vst [vmem:[%s5 + $0x18] sm:$0xff] %v100
  %109 = vst [vmem:[%s5 + $0x20] sm:$0xff] %v101
  %110 = vst [vmem:[%s5 + $0x28] sm:$0xff] %v102
  %111 = vst [vmem:[%s5 + $0x30] sm:$0xff] %v103
  %112 = vst [vmem:[%s5 + $0x38] sm:$0xff] %v104
  // Predicated region
  $region22: #{net_up_block_di_forward.11} parent=0 // pred_check
    _
  $region23: #{net_up_block_di_forward.11} parent=0 // pred_check_branch
    %114 = sbr.rel (0) target = $region25
  $region24: #{net_up_block_di_forward.11} parent=0 // pred_region
    _
  $region25: #{net_up_block_di_forward.11} parent=0 // pred_fallthru
    _
  // Predicated region
  $region26: #{net_up_block_di_forward.11} parent=0 // pred_check
    _
  $region27: #{net_up_block_di_forward.11} parent=0 // pred_check_branch
    %116 = sbr.rel (0) target = $region29
  $region28: #{net_up_block_di_forward.11} parent=0 // pred_region
    _
  $region29: #{net_up_block_di_forward.11} parent=0 // pred_fallthru
    _

// kernel: net_up_block_di_forward.10
$region0: #{net_up_block_di_forward.10}
  #allocation0 [shape = 'u32[]', space=smem, size = 0x4, offset = 0x4, fixed_abs, tag = 'smem constant byte address 0x4 - core index']
  #allocation1 [shape = 'u32[144,128]{1,0:T(1,128)}', space=vmem, size = 0x12000, scoped, tag = 'internal scratch']
  #allocation2 [shape = 'f32[1024,8]{1,0:T(8,128)}', space=vmem, size = 0x80000, scoped, tag = 'scratch operand']
  %s0 = inlined_call_operand.vmem [shape: bf16[1024,216], index: 0, kind: input, shape index: {}]
  %s1 = inlined_call_operand.vmem [shape: bf16[216,8], index: 1, kind: input, shape index: {}]
  %s2 = inlined_call_operand.vmem [shape: f32[1024,8], index: 2, kind: output, shape index: {0}]
  %s3 = inlined_call_operand.vmem [shape: f32[8,8], index: 3, kind: output, shape index: {1}]
  %s4 = inlined_call_operand.vmem [shape: f32[8,8], index: 4, kind: output, shape index: {2}]
  %5 = xla_tuple %s2, %s3, %s4
  %s6 = sld [smem:[#allocation0]]
  $region42: #{net_up_block_di_forward.10} parent=0
    _
  %s8 = ssub.s32 1, %s6
  %s9 = scalar_select 0, %s8, %s6
  // Predicated region
  $region2: #{net_up_block_di_forward.10} parent=0 // pred_check
    _
  $region3: #{net_up_block_di_forward.10} parent=0 // pred_check_branch
    %11 = sbr.rel (0) target = $region5
  $region4: #{net_up_block_di_forward.10} parent=0 // pred_region
    _
  $region5: #{net_up_block_di_forward.10} parent=0 // pred_fallthru
    _
  // Predicated region
  $region6: #{net_up_block_di_forward.10} parent=0 // pred_check
    _
  $region7: #{net_up_block_di_forward.10} parent=0 // pred_check_branch
    %13 = sbr.rel (0) target = $region9
  $region8: #{net_up_block_di_forward.10} parent=0 // pred_region
    _
  $region9: #{net_up_block_di_forward.10} parent=0 // pred_fallthru
    _
  %p15 = scmp.eq.s32.totalorder 0, 0
  // Predicated region
  $region10: #{net_up_block_di_forward.10} parent=0 // pred_check
    %p16 = pneg %p15
  $region11: #{net_up_block_di_forward.10} parent=0 // pred_check_branch
    %18 = sbr.rel (%p16) target = $region13
  $region12: #{net_up_block_di_forward.10} parent=0 // pred_region
    %vm19 = vcmask 64512
    %20 = vst.msk [vmem:[#allocation2] sm:$0xff] %vm19, 0.0
    %21 = vst.msk [vmem:[#allocation2 + $0x8] sm:$0xff] %vm19, 0.0
    %22 = vst.msk [vmem:[#allocation2 + $0x10] sm:$0xff] %vm19, 0.0
    %23 = vst.msk [vmem:[#allocation2 + $0x18] sm:$0xff] %vm19, 0.0
    %24 = vst.msk [vmem:[#allocation2 + $0x20] sm:$0xff] %vm19, 0.0
    %25 = vst.msk [vmem:[#allocation2 + $0x28] sm:$0xff] %vm19, 0.0
    %26 = vst.msk [vmem:[#allocation2 + $0x30] sm:$0xff] %vm19, 0.0
    %27 = vst.msk [vmem:[#allocation2 + $0x38] sm:$0xff] %vm19, 0.0
    %28 = vst.msk [vmem:[#allocation2 + $0x40] sm:$0xff] %vm19, 0.0
    %29 = vst.msk [vmem:[#allocation2 + $0x48] sm:$0xff] %vm19, 0.0
    %30 = vst.msk [vmem:[#allocation2 + $0x50] sm:$0xff] %vm19, 0.0
    %31 = vst.msk [vmem:[#allocation2 + $0x58] sm:$0xff] %vm19, 0.0
    %32 = vst.msk [vmem:[#allocation2 + $0x60] sm:$0xff] %vm19, 0.0
    %33 = vst.msk [vmem:[#allocation2 + $0x68] sm:$0xff] %vm19, 0.0
    %34 = vst.msk [vmem:[#allocation2 + $0x70] sm:$0xff] %vm19, 0.0
    %35 = vst.msk [vmem:[#allocation2 + $0x78] sm:$0xff] %vm19, 0.0
    %36 = vst.msk [vmem:[#allocation2 + $0x80] sm:$0xff] %vm19, 0.0
    %37 = vst.msk [vmem:[#allocation2 + $0x88] sm:$0xff] %vm19, 0.0
    %38 = vst.msk [vmem:[#allocation2 + $0x90] sm:$0xff] %vm19, 0.0
    %39 = vst.msk [vmem:[#allocation2 + $0x98] sm:$0xff] %vm19, 0.0
    %40 = vst.msk [vmem:[#allocation2 + $0xa0] sm:$0xff] %vm19, 0.0
    %41 = vst.msk [vmem:[#allocation2 + $0xa8] sm:$0xff] %vm19, 0.0
    %42 = vst.msk [vmem:[#allocation2 + $0xb0] sm:$0xff] %vm19, 0.0
    %43 = vst.msk [vmem:[#allocation2 + $0xb8] sm:$0xff] %vm19, 0.0
    %44 = vst.msk [vmem:[#allocation2 + $0xc0] sm:$0xff] %vm19, 0.0
    %45 = vst.msk [vmem:[#allocation2 + $0xc8] sm:$0xff] %vm19, 0.0
    %46 = vst.msk [vmem:[#allocation2 + $0xd0] sm:$0xff] %vm19, 0.0
    %47 = vst.msk [vmem:[#allocation2 + $0xd8] sm:$0xff] %vm19, 0.0
    %48 = vst.msk [vmem:[#allocation2 + $0xe0] sm:$0xff] %vm19, 0.0
    %49 = vst.msk [vmem:[#allocation2 + $0xe8] sm:$0xff] %vm19, 0.0
    %50 = vst.msk [vmem:[#allocation2 + $0xf0] sm:$0xff] %vm19, 0.0
    %51 = vst.msk [vmem:[#allocation2 + $0xf8] sm:$0xff] %vm19, 0.0
    %52 = vst.msk [vmem:[#allocation2 + $0x100] sm:$0xff] %vm19, 0.0
    %53 = vst.msk [vmem:[#allocation2 + $0x108] sm:$0xff] %vm19, 0.0
    %54 = vst.msk [vmem:[#allocation2 + $0x110] sm:$0xff] %vm19, 0.0
    %55 = vst.msk [vmem:[#allocation2 + $0x118] sm:$0xff] %vm19, 0.0
    %56 = vst.msk [vmem:[#allocation2 + $0x120] sm:$0xff] %vm19, 0.0
    %57 = vst.msk [vmem:[#allocation2 + $0x128] sm:$0xff] %vm19, 0.0
    %58 = vst.msk [vmem:[#allocation2 + $0x130] sm:$0xff] %vm19, 0.0
    %59 = vst.msk [vmem:[#allocation2 + $0x138] sm:$0xff] %vm19, 0.0
    %60 = vst.msk [vmem:[#allocation2 + $0x140] sm:$0xff] %vm19, 0.0
    %61 = vst.msk [vmem:[#allocation2 + $0x148] sm:$0xff] %vm19, 0.0
    %62 = vst.msk [vmem:[#allocation2 + $0x150] sm:$0xff] %vm19, 0.0
    %63 = vst.msk [vmem:[#allocation2 + $0x158] sm:$0xff] %vm19, 0.0
    %64 = vst.msk [vmem:[#allocation2 + $0x160] sm:$0xff] %vm19, 0.0
    %65 = vst.msk [vmem:[#allocation2 + $0x168] sm:$0xff] %vm19, 0.0
    %66 = vst.msk [vmem:[#allocation2 + $0x170] sm:$0xff] %vm19, 0.0
    %67 = vst.msk [vmem:[#allocation2 + $0x178] sm:$0xff] %vm19, 0.0
    %68 = vst.msk [vmem:[#allocation2 + $0x180] sm:$0xff] %vm19, 0.0
    %69 = vst.msk [vmem:[#allocation2 + $0x188] sm:$0xff] %vm19, 0.0
    %70 = vst.msk [vmem:[#allocation2 + $0x190] sm:$0xff] %vm19, 0.0
    %71 = vst.msk [vmem:[#allocation2 + $0x198] sm:$0xff] %vm19, 0.0
    %72 = vst.msk [vmem:[#allocation2 + $0x1a0] sm:$0xff] %vm19, 0.0
    %73 = vst.msk [vmem:[#allocation2 + $0x1a8] sm:$0xff] %vm19, 0.0
    %74 = vst.msk [vmem:[#allocation2 + $0x1b0] sm:$0xff] %vm19, 0.0
    %75 = vst.msk [vmem:[#allocation2 + $0x1b8] sm:$0xff] %vm19, 0.0
    %76 = vst.msk [vmem:[#allocation2 + $0x1c0] sm:$0xff] %vm19, 0.0
    %77 = vst.msk [vmem:[#allocation2 + $0x1c8] sm:$0xff] %vm19, 0.0
    %78 = vst.msk [vmem:[#allocation2 + $0x1d0] sm:$0xff] %vm19, 0.0
    %79 = vst.msk [vmem:[#allocation2 + $0x1d8] sm:$0xff] %vm19, 0.0
    %80 = vst.msk [vmem:[#allocation2 + $0x1e0] sm:$0xff] %vm19, 0.0
    %81 = vst.msk [vmem:[#allocation2 + $0x1e8] sm:$0xff] %vm19, 0.0
    %82 = vst.msk [vmem:[#allocation2 + $0x1f0] sm:$0xff] %vm19, 0.0
    %83 = vst.msk [vmem:[#allocation2 + $0x1f8] sm:$0xff] %vm19, 0.0
    %84 = vst.msk [vmem:[#allocation2 + $0x200] sm:$0xff] %vm19, 0.0
    %85 = vst.msk [vmem:[#allocation2 + $0x208] sm:$0xff] %vm19, 0.0
    %86 = vst.msk [vmem:[#allocation2 + $0x210] sm:$0xff] %vm19, 0.0
    %87 = vst.msk [vmem:[#allocation2 + $0x218] sm:$0xff] %vm19, 0.0
    %88 = vst.msk [vmem:[#allocation2 + $0x220] sm:$0xff] %vm19, 0.0
    %89 = vst.msk [vmem:[#allocation2 + $0x228] sm:$0xff] %vm19, 0.0
    %90 = vst.msk [vmem:[#allocation2 + $0x230] sm:$0xff] %vm19, 0.0
    %91 = vst.msk [vmem:[#allocation2 + $0x238] sm:$0xff] %vm19, 0.0
    %92 = vst.msk [vmem:[#allocation2 + $0x240] sm:$0xff] %vm19, 0.0
    %93 = vst.msk [vmem:[#allocation2 + $0x248] sm:$0xff] %vm19, 0.0
    %94 = vst.msk [vmem:[#allocation2 + $0x250] sm:$0xff] %vm19, 0.0
    %95 = vst.msk [vmem:[#allocation2 + $0x258] sm:$0xff] %vm19, 0.0
    %96 = vst.msk [vmem:[#allocation2 + $0x260] sm:$0xff] %vm19, 0.0
    %97 = vst.msk [vmem:[#allocation2 + $0x268] sm:$0xff] %vm19, 0.0
    %98 = vst.msk [vmem:[#allocation2 + $0x270] sm:$0xff] %vm19, 0.0
    %99 = vst.msk [vmem:[#allocation2 + $0x278] sm:$0xff] %vm19, 0.0
    %100 = vst.msk [vmem:[#allocation2 + $0x280] sm:$0xff] %vm19, 0.0
    %101 = vst.msk [vmem:[#allocation2 + $0x288] sm:$0xff] %vm19, 0.0
    %102 = vst.msk [vmem:[#allocation2 + $0x290] sm:$0xff] %vm19, 0.0
    %103 = vst.msk [vmem:[#allocation2 + $0x298] sm:$0xff] %vm19, 0.0
    %104 = vst.msk [vmem:[#allocation2 + $0x2a0] sm:$0xff] %vm19, 0.0
    %105 = vst.msk [vmem:[#allocation2 + $0x2a8] sm:$0xff] %vm19, 0.0
    %106 = vst.msk [vmem:[#allocation2 + $0x2b0] sm:$0xff] %vm19, 0.0
    %107 = vst.msk [vmem:[#allocation2 + $0x2b8] sm:$0xff] %vm19, 0.0
    %108 = vst.msk [vmem:[#allocation2 + $0x2c0] sm:$0xff] %vm19, 0.0
    %109 = vst.msk [vmem:[#allocation2 + $0x2c8] sm:$0xff] %vm19, 0.0
    %110 = vst.msk [vmem:[#allocation2 + $0x2d0] sm:$0xff] %vm19, 0.0
    %111 = vst.msk [vmem:[#allocation2 + $0x2d8] sm:$0xff] %vm19, 0.0
    %112 = vst.msk [vmem:[#allocation2 + $0x2e0] sm:$0xff] %vm19, 0.0
    %113 = vst.msk [vmem:[#allocation2 + $0x2e8] sm:$0xff] %vm19, 0.0
    %114 = vst.msk [vmem:[#allocation2 + $0x2f0] sm:$0xff] %vm19, 0.0
    %115 = vst.msk [vmem:[#allocation2 + $0x2f8] sm:$0xff] %vm19, 0.0
    %116 = vst.msk [vmem:[#allocation2 + $0x300] sm:$0xff] %vm19, 0.0
    %117 = vst.msk [vmem:[#allocation2 + $0x308] sm:$0xff] %vm19, 0.0
    %118 = vst.msk [vmem:[#allocation2 + $0x310] sm:$0xff] %vm19, 0.0
    %119 = vst.msk [vmem:[#allocation2 + $0x318] sm:$0xff] %vm19, 0.0
    %120 = vst.msk [vmem:[#allocation2 + $0x320] sm:$0xff] %vm19, 0.0
    %121 = vst.msk [vmem:[#allocation2 + $0x328] sm:$0xff] %vm19, 0.0
    %122 = vst.msk [vmem:[#allocation2 + $0x330] sm:$0xff] %vm19, 0.0
    %123 = vst.msk [vmem:[#allocation2 + $0x338] sm:$0xff] %vm19, 0.0
    %124 = vst.msk [vmem:[#allocation2 + $0x340] sm:$0xff] %vm19, 0.0
    %125 = vst.msk [vmem:[#allocation2 + $0x348] sm:$0xff] %vm19, 0.0
    %126 = vst.msk [vmem:[#allocation2 + $0x350] sm:$0xff] %vm19, 0.0
    %127 = vst.msk [vmem:[#allocation2 + $0x358] sm:$0xff] %vm19, 0.0
    %128 = vst.msk [vmem:[#allocation2 + $0x360] sm:$0xff] %vm19, 0.0
    %129 = vst.msk [vmem:[#allocation2 + $0x368] sm:$0xff] %vm19, 0.0
    %130 = vst.msk [vmem:[#allocation2 + $0x370] sm:$0xff] %vm19, 0.0
    %131 = vst.msk [vmem:[#allocation2 + $0x378] sm:$0xff] %vm19, 0.0
    %132 = vst.msk [vmem:[#allocation2 + $0x380] sm:$0xff] %vm19, 0.0
    %133 = vst.msk [vmem:[#allocation2 + $0x388] sm:$0xff] %vm19, 0.0
    %134 = vst.msk [vmem:[#allocation2 + $0x390] sm:$0xff] %vm19, 0.0
    %135 = vst.msk [vmem:[#allocation2 + $0x398] sm:$0xff] %vm19, 0.0
    %136 = vst.msk [vmem:[#allocation2 + $0x3a0] sm:$0xff] %vm19, 0.0
    %137 = vst.msk [vmem:[#allocation2 + $0x3a8] sm:$0xff] %vm19, 0.0
    %138 = vst.msk [vmem:[#allocation2 + $0x3b0] sm:$0xff] %vm19, 0.0
    %139 = vst.msk [vmem:[#allocation2 + $0x3b8] sm:$0xff] %vm19, 0.0
    %140 = vst.msk [vmem:[#allocation2 + $0x3c0] sm:$0xff] %vm19, 0.0
    %141 = vst.msk [vmem:[#allocation2 + $0x3c8] sm:$0xff] %vm19, 0.0
    %142 = vst.msk [vmem:[#allocation2 + $0x3d0] sm:$0xff] %vm19, 0.0
    %143 = vst.msk [vmem:[#allocation2 + $0x3d8] sm:$0xff] %vm19, 0.0
    %144 = vst.msk [vmem:[#allocation2 + $0x3e0] sm:$0xff] %vm19, 0.0
    %145 = vst.msk [vmem:[#allocation2 + $0x3e8] sm:$0xff] %vm19, 0.0
    %146 = vst.msk [vmem:[#allocation2 + $0x3f0] sm:$0xff] %vm19, 0.0
    %147 = vst.msk [vmem:[#allocation2 + $0x3f8] sm:$0xff] %vm19, 0.0
  $region13: #{net_up_block_di_forward.10} parent=0 // pred_fallthru
    _
  %v148 = vld [vmem:[#allocation2] sm:$0xff]
  %v149 = vld [vmem:[#allocation2 + $0x8] sm:$0xff]
  %v150 = vld [vmem:[#allocation2 + $0x10] sm:$0xff]
  %v151 = vld [vmem:[#allocation2 + $0x18] sm:$0xff]
  %v152 = vld [vmem:[#allocation2 + $0x20] sm:$0xff]
  %v153 = vld [vmem:[#allocation2 + $0x28] sm:$0xff]
  %v154 = vld [vmem:[#allocation2 + $0x30] sm:$0xff]
  %v155 = vld [vmem:[#allocation2 + $0x38] sm:$0xff]
  %v156 = vld [vmem:[#allocation2 + $0x40] sm:$0xff]
  %v157 = vld [vmem:[#allocation2 + $0x48] sm:$0xff]
  %v158 = vld [vmem:[#allocation2 + $0x50] sm:$0xff]
  %v159 = vld [vmem:[#allocation2 + $0x58] sm:$0xff]
  %v160 = vld [vmem:[#allocation2 + $0x60] sm:$0xff]
  %v161 = vld [vmem:[#allocation2 + $0x68] sm:$0xff]
  %v162 = vld [vmem:[#allocation2 + $0x70] sm:$0xff]
  %v163 = vld [vmem:[#allocation2 + $0x78] sm:$0xff]
  %v164 = vld [vmem:[#allocation2 + $0x80] sm:$0xff]
  %v165 = vld [vmem:[#allocation2 + $0x88] sm:$0xff]
  %v166 = vld [vmem:[#allocation2 + $0x90] sm:$0xff]
  %v167 = vld [vmem:[#allocation2 + $0x98] sm:$0xff]
  %v168 = vld [vmem:[#allocation2 + $0xa0] sm:$0xff]
  %v169 = vld [vmem:[#allocation2 + $0xa8] sm:$0xff]
  %v170 = vld [vmem:[#allocation2 + $0xb0] sm:$0xff]
  %v171 = vld [vmem:[#allocation2 + $0xb8] sm:$0xff]
  %v172 = vld [vmem:[#allocation2 + $0xc0] sm:$0xff]
  %v173 = vld [vmem:[#allocation2 + $0xc8] sm:$0xff]
  %v174 = vld [vmem:[#allocation2 + $0xd0] sm:$0xff]
  %v175 = vld [vmem:[#allocation2 + $0xd8] sm:$0xff]
  %v176 = vld [vmem:[#allocation2 + $0xe0] sm:$0xff]
  %v177 = vld [vmem:[#allocation2 + $0xe8] sm:$0xff]
  %v178 = vld [vmem:[#allocation2 + $0xf0] sm:$0xff]
  %v179 = vld [vmem:[#allocation2 + $0xf8] sm:$0xff]
  %v180 = vld [vmem:[#allocation2 + $0x100] sm:$0xff]
  %v181 = vld [vmem:[#allocation2 + $0x108] sm:$0xff]
  %v182 = vld [vmem:[#allocation2 + $0x110] sm:$0xff]
  %v183 = vld [vmem:[#allocation2 + $0x118] sm:$0xff]
  %v184 = vld [vmem:[#allocation2 + $0x120] sm:$0xff]
  %v185 = vld [vmem:[#allocation2 + $0x128] sm:$0xff]
  %v186 = vld [vmem:[#allocation2 + $0x130] sm:$0xff]
  %v187 = vld [vmem:[#allocation2 + $0x138] sm:$0xff]
  %v188 = vld [vmem:[#allocation2 + $0x140] sm:$0xff]
  %v189 = vld [vmem:[#allocation2 + $0x148] sm:$0xff]
  %v190 = vld [vmem:[#allocation2 + $0x150] sm:$0xff]
  %v191 = vld [vmem:[#allocation2 + $0x158] sm:$0xff]
  %v192 = vld [vmem:[#allocation2 + $0x160] sm:$0xff]
  %v193 = vld [vmem:[#allocation2 + $0x168] sm:$0xff]
  %v194 = vld [vmem:[#allocation2 + $0x170] sm:$0xff]
  %v195 = vld [vmem:[#allocation2 + $0x178] sm:$0xff]
  %v196 = vld [vmem:[#allocation2 + $0x180] sm:$0xff]
  %v197 = vld [vmem:[#allocation2 + $0x188] sm:$0xff]
  %v198 = vld [vmem:[#allocation2 + $0x190] sm:$0xff]
  %v199 = vld [vmem:[#allocation2 + $0x198] sm:$0xff]
  %v200 = vld [vmem:[#allocation2 + $0x1a0] sm:$0xff]
  %v201 = vld [vmem:[#allocation2 + $0x1a8] sm:$0xff]
  %v202 = vld [vmem:[#allocation2 + $0x1b0] sm:$0xff]
  %v203 = vld [vmem:[#allocation2 + $0x1b8] sm:$0xff]
  %v204 = vld [vmem:[#allocation2 + $0x1c0] sm:$0xff]
  %v205 = vld [vmem:[#allocation2 + $0x1c8] sm:$0xff]
  %v206 = vld [vmem:[#allocation2 + $0x1d0] sm:$0xff]
  %v207 = vld [vmem:[#allocation2 + $0x1d8] sm:$0xff]
  %v208 = vld [vmem:[#allocation2 + $0x1e0] sm:$0xff]
  %v209 = vld [vmem:[#allocation2 + $0x1e8] sm:$0xff]
  %v210 = vld [vmem:[#allocation2 + $0x1f0] sm:$0xff]
  %v211 = vld [vmem:[#allocation2 + $0x1f8] sm:$0xff]
  %v212 = vld [vmem:[#allocation2 + $0x200] sm:$0xff]
  %v213 = vld [vmem:[#allocation2 + $0x208] sm:$0xff]
  %v214 = vld [vmem:[#allocation2 + $0x210] sm:$0xff]
  %v215 = vld [vmem:[#allocation2 + $0x218] sm:$0xff]
  %v216 = vld [vmem:[#allocation2 + $0x220] sm:$0xff]
  %v217 = vld [vmem:[#allocation2 + $0x228] sm:$0xff]
  %v218 = vld [vmem:[#allocation2 + $0x230] sm:$0xff]
  %v219 = vld [vmem:[#allocation2 + $0x238] sm:$0xff]
  %v220 = vld [vmem:[#allocation2 + $0x240] sm:$0xff]
  %v221 = vld [vmem:[#allocation2 + $0x248] sm:$0xff]
  %v222 = vld [vmem:[#allocation2 + $0x250] sm:$0xff]
  %v223 = vld [vmem:[#allocation2 + $0x258] sm:$0xff]
  %v224 = vld [vmem:[#allocation2 + $0x260] sm:$0xff]
  %v225 = vld [vmem:[#allocation2 + $0x268] sm:$0xff]
  %v226 = vld [vmem:[#allocation2 + $0x270] sm:$0xff]
  %v227 = vld [vmem:[#allocation2 + $0x278] sm:$0xff]
  %v228 = vld [vmem:[#allocation2 + $0x280] sm:$0xff]
  %v229 = vld [vmem:[#allocation2 + $0x288] sm:$0xff]
  %v230 = vld [vmem:[#allocation2 + $0x290] sm:$0xff]
  %v231 = vld [vmem:[#allocation2 + $0x298] sm:$0xff]
  %v232 = vld [vmem:[#allocation2 + $0x2a0] sm:$0xff]
  %v233 = vld [vmem:[#allocation2 + $0x2a8] sm:$0xff]
  %v234 = vld [vmem:[#allocation2 + $0x2b0] sm:$0xff]
  %v235 = vld [vmem:[#allocation2 + $0x2b8] sm:$0xff]
  %v236 = vld [vmem:[#allocation2 + $0x2c0] sm:$0xff]
  %v237 = vld [vmem:[#allocation2 + $0x2c8] sm:$0xff]
  %v238 = vld [vmem:[#allocation2 + $0x2d0] sm:$0xff]
  %v239 = vld [vmem:[#allocation2 + $0x2d8] sm:$0xff]
  %v240 = vld [vmem:[#allocation2 + $0x2e0] sm:$0xff]
  %v241 = vld [vmem:[#allocation2 + $0x2e8] sm:$0xff]
  %v242 = vld [vmem:[#allocation2 + $0x2f0] sm:$0xff]
  %v243 = vld [vmem:[#allocation2 + $0x2f8] sm:$0xff]
  %v244 = vld [vmem:[#allocation2 + $0x300] sm:$0xff]
  %v245 = vld [vmem:[#allocation2 + $0x308] sm:$0xff]
  %v246 = vld [vmem:[#allocation2 + $0x310] sm:$0xff]
  %v247 = vld [vmem:[#allocation2 + $0x318] sm:$0xff]
  %v248 = vld [vmem:[#allocation2 + $0x320] sm:$0xff]
  %v249 = vld [vmem:[#allocation2 + $0x328] sm:$0xff]
  %v250 = vld [vmem:[#allocation2 + $0x330] sm:$0xff]
  %v251 = vld [vmem:[#allocation2 + $0x338] sm:$0xff]
  %v252 = vld [vmem:[#allocation2 + $0x340] sm:$0xff]
  %v253 = vld [vmem:[#allocation2 + $0x348] sm:$0xff]
  %v254 = vld [vmem:[#allocation2 + $0x350] sm:$0xff]
  %v255 = vld [vmem:[#allocation2 + $0x358] sm:$0xff]
  %v256 = vld [vmem:[#allocation2 + $0x360] sm:$0xff]
  %v257 = vld [vmem:[#allocation2 + $0x368] sm:$0xff]
  %v258 = vld [vmem:[#allocation2 + $0x370] sm:$0xff]
  %v259 = vld [vmem:[#allocation2 + $0x378] sm:$0xff]
  %v260 = vld [vmem:[#allocation2 + $0x380] sm:$0xff]
  %v261 = vld [vmem:[#allocation2 + $0x388] sm:$0xff]
  %v262 = vld [vmem:[#allocation2 + $0x390] sm:$0xff]
  %v263 = vld [vmem:[#allocation2 + $0x398] sm:$0xff]
  %v264 = vld [vmem:[#allocation2 + $0x3a0] sm:$0xff]
  %v265 = vld [vmem:[#allocation2 + $0x3a8] sm:$0xff]
  %v266 = vld [vmem:[#allocation2 + $0x3b0] sm:$0xff]
  %v267 = vld [vmem:[#allocation2 + $0x3b8] sm:$0xff]
  %v268 = vld [vmem:[#allocation2 + $0x3c0] sm:$0xff]
  %v269 = vld [vmem:[#allocation2 + $0x3c8] sm:$0xff]
  %v270 = vld [vmem:[#allocation2 + $0x3d0] sm:$0xff]
  %v271 = vld [vmem:[#allocation2 + $0x3d8] sm:$0xff]
  %v272 = vld [vmem:[#allocation2 + $0x3e0] sm:$0xff]
  %v273 = vld [vmem:[#allocation2 + $0x3e8] sm:$0xff]
  %v274 = vld [vmem:[#allocation2 + $0x3f0] sm:$0xff]
  %v275 = vld [vmem:[#allocation2 + $0x3f8] sm:$0xff]
  %v276 = vld [vmem:[%s0] sm:$0xff]
  %v277 = vld [vmem:[%s0 + $0x8] sm:$0xff]
  %v278 = vld [vmem:[%s0 + $0x10] sm:$0xff]
  %v279 = vld [vmem:[%s0 + $0x18] sm:$0xff]
  %v280 = vld [vmem:[%s0 + $0x20] sm:$0xff]
  %v281 = vld [vmem:[%s0 + $0x28] sm:$0xff]
  %v282 = vld [vmem:[%s0 + $0x30] sm:$0xff]
  %v283 = vld [vmem:[%s0 + $0x38] sm:$0xff]
  %v284 = vld [vmem:[%s0 + $0x40] sm:$0xff]
  %v285 = vld [vmem:[%s0 + $0x48] sm:$0xff]
  %v286 = vld [vmem:[%s0 + $0x50] sm:$0xff]
  %v287 = vld [vmem:[%s0 + $0x58] sm:$0xff]
  %v288 = vld [vmem:[%s0 + $0x60] sm:$0xff]
  %v289 = vld [vmem:[%s0 + $0x68] sm:$0xff]
  %v290 = vld [vmem:[%s0 + $0x70] sm:$0xff]
  %v291 = vld [vmem:[%s0 + $0x78] sm:$0xff]
  %v292 = vld [vmem:[%s0 + $0x80] sm:$0xff]
  %v293 = vld [vmem:[%s0 + $0x88] sm:$0xff]
  %v294 = vld [vmem:[%s0 + $0x90] sm:$0xff]
  %v295 = vld [vmem:[%s0 + $0x98] sm:$0xff]
  %v296 = vld [vmem:[%s0 + $0xa0] sm:$0xff]
  %v297 = vld [vmem:[%s0 + $0xa8] sm:$0xff]
  %v298 = vld [vmem:[%s0 + $0xb0] sm:$0xff]
  %v299 = vld [vmem:[%s0 + $0xb8] sm:$0xff]
  %v300 = vld [vmem:[%s0 + $0xc0] sm:$0xff]
  %v301 = vld [vmem:[%s0 + $0xc8] sm:$0xff]
  %v302 = vld [vmem:[%s0 + $0xd0] sm:$0xff]
  %v303 = vld [vmem:[%s0 + $0xd8] sm:$0xff]
  %v304 = vld [vmem:[%s0 + $0xe0] sm:$0xff]
  %v305 = vld [vmem:[%s0 + $0xe8] sm:$0xff]
  %v306 = vld [vmem:[%s0 + $0xf0] sm:$0xff]
  %v307 = vld [vmem:[%s0 + $0xf8] sm:$0xff]
  %v308 = vld [vmem:[%s0 + $0x100] sm:$0xff]
  %v309 = vld [vmem:[%s0 + $0x108] sm:$0xff]
  %v310 = vld [vmem:[%s0 + $0x110] sm:$0xff]
  %v311 = vld [vmem:[%s0 + $0x118] sm:$0xff]
  %v312 = vld [vmem:[%s0 + $0x120] sm:$0xff]
  %v313 = vld [vmem:[%s0 + $0x128] sm:$0xff]
  %v314 = vld [vmem:[%s0 + $0x130] sm:$0xff]
  %v315 = vld [vmem:[%s0 + $0x138] sm:$0xff]
  %v316 = vld [vmem:[%s0 + $0x140] sm:$0xff]
  %v317 = vld [vmem:[%s0 + $0x148] sm:$0xff]
  %v318 = vld [vmem:[%s0 + $0x150] sm:$0xff]
  %v319 = vld [vmem:[%s0 + $0x158] sm:$0xff]
  %v320 = vld [vmem:[%s0 + $0x160] sm:$0xff]
  %v321 = vld [vmem:[%s0 + $0x168] sm:$0xff]
  %v322 = vld [vmem:[%s0 + $0x170] sm:$0xff]
  %v323 = vld [vmem:[%s0 + $0x178] sm:$0xff]
  %v324 = vld [vmem:[%s0 + $0x180] sm:$0xff]
  %v325 = vld [vmem:[%s0 + $0x188] sm:$0xff]
  %v326 = vld [vmem:[%s0 + $0x190] sm:$0xff]
  %v327 = vld [vmem:[%s0 + $0x198] sm:$0xff]
  %v328 = vld [vmem:[%s0 + $0x1a0] sm:$0xff]
  %v329 = vld [vmem:[%s0 + $0x1a8] sm:$0xff]
  %v330 = vld [vmem:[%s0 + $0x1b0] sm:$0xff]
  %v331 = vld [vmem:[%s0 + $0x1b8] sm:$0xff]
  %v332 = vld [vmem:[%s0 + $0x1c0] sm:$0xff]
  %v333 = vld [vmem:[%s0 + $0x1c8] sm:$0xff]
  %v334 = vld [vmem:[%s0 + $0x1d0] sm:$0xff]
  %v335 = vld [vmem:[%s0 + $0x1d8] sm:$0xff]
  %v336 = vld [vmem:[%s0 + $0x1e0] sm:$0xff]
  %v337 = vld [vmem:[%s0 + $0x1e8] sm:$0xff]
  %v338 = vld [vmem:[%s0 + $0x1f0] sm:$0xff]
  %v339 = vld [vmem:[%s0 + $0x1f8] sm:$0xff]
  %v340 = vld [vmem:[%s0 + $0x200] sm:$0xff]
  %v341 = vld [vmem:[%s0 + $0x208] sm:$0xff]
  %v342 = vld [vmem:[%s0 + $0x210] sm:$0xff]
  %v343 = vld [vmem:[%s0 + $0x218] sm:$0xff]
  %v344 = vld [vmem:[%s0 + $0x220] sm:$0xff]
  %v345 = vld [vmem:[%s0 + $0x228] sm:$0xff]
  %v346 = vld [vmem:[%s0 + $0x230] sm:$0xff]
  %v347 = vld [vmem:[%s0 + $0x238] sm:$0xff]
  %v348 = vld [vmem:[%s0 + $0x240] sm:$0xff]
  %v349 = vld [vmem:[%s0 + $0x248] sm:$0xff]
  %v350 = vld [vmem:[%s0 + $0x250] sm:$0xff]
  %v351 = vld [vmem:[%s0 + $0x258] sm:$0xff]
  %v352 = vld [vmem:[%s0 + $0x260] sm:$0xff]
  %v353 = vld [vmem:[%s0 + $0x268] sm:$0xff]
  %v354 = vld [vmem:[%s0 + $0x270] sm:$0xff]
  %v355 = vld [vmem:[%s0 + $0x278] sm:$0xff]
  %v356 = vld [vmem:[%s0 + $0x280] sm:$0xff]
  %v357 = vld [vmem:[%s0 + $0x288] sm:$0xff]
  %v358 = vld [vmem:[%s0 + $0x290] sm:$0xff]
  %v359 = vld [vmem:[%s0 + $0x298] sm:$0xff]
  %v360 = vld [vmem:[%s0 + $0x2a0] sm:$0xff]
  %v361 = vld [vmem:[%s0 + $0x2a8] sm:$0xff]
  %v362 = vld [vmem:[%s0 + $0x2b0] sm:$0xff]
  %v363 = vld [vmem:[%s0 + $0x2b8] sm:$0xff]
  %v364 = vld [vmem:[%s0 + $0x2c0] sm:$0xff]
  %v365 = vld [vmem:[%s0 + $0x2c8] sm:$0xff]
  %v366 = vld [vmem:[%s0 + $0x2d0] sm:$0xff]
  %v367 = vld [vmem:[%s0 + $0x2d8] sm:$0xff]
  %v368 = vld [vmem:[%s0 + $0x2e0] sm:$0xff]
  %v369 = vld [vmem:[%s0 + $0x2e8] sm:$0xff]
  %v370 = vld [vmem:[%s0 + $0x2f0] sm:$0xff]
  %v371 = vld [vmem:[%s0 + $0x2f8] sm:$0xff]
  %v372 = vld [vmem:[%s0 + $0x300] sm:$0xff]
  %v373 = vld [vmem:[%s0 + $0x308] sm:$0xff]
  %v374 = vld [vmem:[%s0 + $0x310] sm:$0xff]
  %v375 = vld [vmem:[%s0 + $0x318] sm:$0xff]
  %v376 = vld [vmem:[%s0 + $0x320] sm:$0xff]
  %v377 = vld [vmem:[%s0 + $0x328] sm:$0xff]
  %v378 = vld [vmem:[%s0 + $0x330] sm:$0xff]
  %v379 = vld [vmem:[%s0 + $0x338] sm:$0xff]
  %v380 = vld [vmem:[%s0 + $0x340] sm:$0xff]
  %v381 = vld [vmem:[%s0 + $0x348] sm:$0xff]
  %v382 = vld [vmem:[%s0 + $0x350] sm:$0xff]
  %v383 = vld [vmem:[%s0 + $0x358] sm:$0xff]
  %v384 = vld [vmem:[%s0 + $0x360] sm:$0xff]
  %v385 = vld [vmem:[%s0 + $0x368] sm:$0xff]
  %v386 = vld [vmem:[%s0 + $0x370] sm:$0xff]
  %v387 = vld [vmem:[%s0 + $0x378] sm:$0xff]
  %v388 = vld [vmem:[%s0 + $0x380] sm:$0xff]
  %v389 = vld [vmem:[%s0 + $0x388] sm:$0xff]
  %v390 = vld [vmem:[%s0 + $0x390] sm:$0xff]
  %v391 = vld [vmem:[%s0 + $0x398] sm:$0xff]
  %v392 = vld [vmem:[%s0 + $0x3a0] sm:$0xff]
  %v393 = vld [vmem:[%s0 + $0x3a8] sm:$0xff]
  %v394 = vld [vmem:[%s0 + $0x3b0] sm:$0xff]
  %v395 = vld [vmem:[%s0 + $0x3b8] sm:$0xff]
  %v396 = vld [vmem:[%s0 + $0x3c0] sm:$0xff]
  %v397 = vld [vmem:[%s0 + $0x3c8] sm:$0xff]
  %v398 = vld [vmem:[%s0 + $0x3d0] sm:$0xff]
  %v399 = vld [vmem:[%s0 + $0x3d8] sm:$0xff]
  %v400 = vld [vmem:[%s0 + $0x3e0] sm:$0xff]
  %v401 = vld [vmem:[%s0 + $0x3e8] sm:$0xff]
  %v402 = vld [vmem:[%s0 + $0x3f0] sm:$0xff]
  %v403 = vld [vmem:[%s0 + $0x3f8] sm:$0xff]
  %v404 = vld [vmem:[%s1] sm:$0xf]
  %v405 = vld [vmem:[%s1 + $0x4] sm:$0xf]
  %v406 = vld [vmem:[%s1 + $0x8] sm:$0xf]
  %v407 = vld [vmem:[%s1 + $0xc] sm:$0xf]
  %v408 = vld [vmem:[%s1 + $0x10] sm:$0xf]
  %v409 = vld [vmem:[%s1 + $0x14] sm:$0xf]
  %v410 = vld [vmem:[%s1 + $0x18] sm:$0xf]
  %v411 = vld [vmem:[%s1 + $0x1c] sm:$0xf]
  %v412 = vld [vmem:[%s1 + $0x20] sm:$0xf]
  %v413 = vld [vmem:[%s1 + $0x24] sm:$0xf]
  %v414 = vld [vmem:[%s1 + $0x28] sm:$0xf]
  %v415 = vld [vmem:[%s1 + $0x2c] sm:$0xf]
  %v416 = vld [vmem:[%s1 + $0x30] sm:$0xf]
  %v417 = vld [vmem:[%s1 + $0x34] sm:$0xf]
  %v418 = vld [vmem:[%s1 + $0x38] sm:$0xf]
  %v419 = vld [vmem:[%s1 + $0x3c] sm:$0xf]
  %v420 = vld [vmem:[%s1 + $0x40] sm:$0xf]
  %v421 = vld [vmem:[%s1 + $0x44] sm:$0xf]
  %v422 = vld [vmem:[%s1 + $0x48] sm:$0xf]
  %v423 = vld [vmem:[%s1 + $0x4c] sm:$0xf]
  %v424 = vld [vmem:[%s1 + $0x50] sm:$0xf]
  %v425 = vld [vmem:[%s1 + $0x54] sm:$0xf]
  %v426 = vld [vmem:[%s1 + $0x58] sm:$0xf]
  %v427 = vld [vmem:[%s1 + $0x5c] sm:$0xf]
  %v428 = vld [vmem:[%s1 + $0x60] sm:$0xf]
  %v429 = vld [vmem:[%s1 + $0x64] sm:$0xf]
  %v430 = vld [vmem:[%s1 + $0x68] sm:$0xf]
  %v559 = vunpack.c.l.b16 %v276
  %v560 = vunpack.c.h.b16 %v276
  %v561 = vunpack.c.l.b16 %v277
  %v562 = vunpack.c.h.b16 %v277
  %v563 = vunpack.c.l.b16 %v278
  %v564 = vunpack.c.h.b16 %v278
  %v565 = vunpack.c.l.b16 %v279
  %v566 = vunpack.c.h.b16 %v279
  %v567 = vunpack.c.l.b16 %v280
  %v568 = vunpack.c.h.b16 %v280
  %v569 = vunpack.c.l.b16 %v281
  %v570 = vunpack.c.h.b16 %v281
  %v571 = vunpack.c.l.b16 %v282
  %v572 = vunpack.c.h.b16 %v282
  %v573 = vunpack.c.l.b16 %v283
  %v574 = vunpack.c.h.b16 %v283
  %v575 = vunpack.c.l.b16 %v284
  %v576 = vunpack.c.h.b16 %v284
  %v577 = vunpack.c.l.b16 %v285
  %v578 = vunpack.c.h.b16 %v285
  %v579 = vunpack.c.l.b16 %v286
  %v580 = vunpack.c.h.b16 %v286
  %v581 = vunpack.c.l.b16 %v287
  %v582 = vunpack.c.h.b16 %v287
  %v583 = vunpack.c.l.b16 %v288
  %v584 = vunpack.c.h.b16 %v288
  %v585 = vunpack.c.l.b16 %v289
  %v586 = vunpack.c.h.b16 %v289
  %v587 = vunpack.c.l.b16 %v290
  %v588 = vunpack.c.h.b16 %v290
  %v589 = vunpack.c.l.b16 %v291
  %v590 = vunpack.c.h.b16 %v291
  %v591 = vunpack.c.l.b16 %v292
  %v592 = vunpack.c.h.b16 %v292
  %v593 = vunpack.c.l.b16 %v293
  %v594 = vunpack.c.h.b16 %v293
  %v595 = vunpack.c.l.b16 %v294
  %v596 = vunpack.c.h.b16 %v294
  %v597 = vunpack.c.l.b16 %v295
  %v598 = vunpack.c.h.b16 %v295
  %v599 = vunpack.c.l.b16 %v296
  %v600 = vunpack.c.h.b16 %v296
  %v601 = vunpack.c.l.b16 %v297
  %v602 = vunpack.c.h.b16 %v297
  %v603 = vunpack.c.l.b16 %v298
  %v604 = vunpack.c.h.b16 %v298
  %v605 = vunpack.c.l.b16 %v299
  %v606 = vunpack.c.h.b16 %v299
  %v607 = vunpack.c.l.b16 %v300
  %v608 = vunpack.c.h.b16 %v300
  %v609 = vunpack.c.l.b16 %v301
  %v610 = vunpack.c.h.b16 %v301
  %v611 = vunpack.c.l.b16 %v302
  %v612 = vunpack.c.h.b16 %v302
  %v613 = vunpack.c.l.b16 %v303
  %v614 = vunpack.c.h.b16 %v303
  %v615 = vunpack.c.l.b16 %v304
  %v616 = vunpack.c.h.b16 %v304
  %v617 = vunpack.c.l.b16 %v305
  %v618 = vunpack.c.h.b16 %v305
  %v619 = vunpack.c.l.b16 %v306
  %v620 = vunpack.c.h.b16 %v306
  %v621 = vunpack.c.l.b16 %v307
  %v622 = vunpack.c.h.b16 %v307
  %v623 = vunpack.c.l.b16 %v308
  %v624 = vunpack.c.h.b16 %v308
  %v625 = vunpack.c.l.b16 %v309
  %v626 = vunpack.c.h.b16 %v309
  %v627 = vunpack.c.l.b16 %v310
  %v628 = vunpack.c.h.b16 %v310
  %v629 = vunpack.c.l.b16 %v311
  %v630 = vunpack.c.h.b16 %v311
  %v631 = vunpack.c.l.b16 %v312
  %v632 = vunpack.c.h.b16 %v312
  %v633 = vunpack.c.l.b16 %v313
  %v634 = vunpack.c.h.b16 %v313
  %v635 = vunpack.c.l.b16 %v314
  %v636 = vunpack.c.h.b16 %v314
  %v637 = vunpack.c.l.b16 %v315
  %v638 = vunpack.c.h.b16 %v315
  %v639 = vunpack.c.l.b16 %v316
  %v640 = vunpack.c.h.b16 %v316
  %v641 = vunpack.c.l.b16 %v317
  %v642 = vunpack.c.h.b16 %v317
  %v643 = vunpack.c.l.b16 %v318
  %v644 = vunpack.c.h.b16 %v318
  %v645 = vunpack.c.l.b16 %v319
  %v646 = vunpack.c.h.b16 %v319
  %v647 = vunpack.c.l.b16 %v320
  %v648 = vunpack.c.h.b16 %v320
  %v649 = vunpack.c.l.b16 %v321
  %v650 = vunpack.c.h.b16 %v321
  %v651 = vunpack.c.l.b16 %v322
  %v652 = vunpack.c.h.b16 %v322
  %v653 = vunpack.c.l.b16 %v323
  %v654 = vunpack.c.h.b16 %v323
  %v655 = vunpack.c.l.b16 %v324
  %v656 = vunpack.c.h.b16 %v324
  %v657 = vunpack.c.l.b16 %v325
  %v658 = vunpack.c.h.b16 %v325
  %v659 = vunpack.c.l.b16 %v326
  %v660 = vunpack.c.h.b16 %v326
  %v661 = vunpack.c.l.b16 %v327
  %v662 = vunpack.c.h.b16 %v327
  %v663 = vunpack.c.l.b16 %v328
  %v664 = vunpack.c.h.b16 %v328
  %v665 = vunpack.c.l.b16 %v329
  %v666 = vunpack.c.h.b16 %v329
  %v667 = vunpack.c.l.b16 %v330
  %v668 = vunpack.c.h.b16 %v330
  %v669 = vunpack.c.l.b16 %v331
  %v670 = vunpack.c.h.b16 %v331
  %v671 = vunpack.c.l.b16 %v332
  %v672 = vunpack.c.h.b16 %v332
  %v673 = vunpack.c.l.b16 %v333
  %v674 = vunpack.c.h.b16 %v333
  %v675 = vunpack.c.l.b16 %v334
  %v676 = vunpack.c.h.b16 %v334
  %v677 = vunpack.c.l.b16 %v335
  %v678 = vunpack.c.h.b16 %v335
  %v679 = vunpack.c.l.b16 %v336
  %v680 = vunpack.c.h.b16 %v336
  %v681 = vunpack.c.l.b16 %v337
  %v682 = vunpack.c.h.b16 %v337
  %v683 = vunpack.c.l.b16 %v338
  %v684 = vunpack.c.h.b16 %v338
  %v685 = vunpack.c.l.b16 %v339
  %v686 = vunpack.c.h.b16 %v339
  %v687 = vunpack.c.l.b16 %v340
  %v688 = vunpack.c.h.b16 %v340
  %v689 = vunpack.c.l.b16 %v341
  %v690 = vunpack.c.h.b16 %v341
  %v691 = vunpack.c.l.b16 %v342
  %v692 = vunpack.c.h.b16 %v342
  %v693 = vunpack.c.l.b16 %v343
  %v694 = vunpack.c.h.b16 %v343
  %v695 = vunpack.c.l.b16 %v344
  %v696 = vunpack.c.h.b16 %v344
  %v697 = vunpack.c.l.b16 %v345
  %v698 = vunpack.c.h.b16 %v345
  %v699 = vunpack.c.l.b16 %v346
  %v700 = vunpack.c.h.b16 %v346
  %v701 = vunpack.c.l.b16 %v347
  %v702 = vunpack.c.h.b16 %v347
  %v703 = vunpack.c.l.b16 %v348
  %v704 = vunpack.c.h.b16 %v348
  %v705 = vunpack.c.l.b16 %v349
  %v706 = vunpack.c.h.b16 %v349
  %v707 = vunpack.c.l.b16 %v350
  %v708 = vunpack.c.h.b16 %v350
  %v709 = vunpack.c.l.b16 %v351
  %v710 = vunpack.c.h.b16 %v351
  %v711 = vunpack.c.l.b16 %v352
  %v712 = vunpack.c.h.b16 %v352
  %v713 = vunpack.c.l.b16 %v353
  %v714 = vunpack.c.h.b16 %v353
  %v715 = vunpack.c.l.b16 %v354
  %v716 = vunpack.c.h.b16 %v354
  %v717 = vunpack.c.l.b16 %v355
  %v718 = vunpack.c.h.b16 %v355
  %v719 = vunpack.c.l.b16 %v356
  %v720 = vunpack.c.h.b16 %v356
  %v721 = vunpack.c.l.b16 %v357
  %v722 = vunpack.c.h.b16 %v357
  %v723 = vunpack.c.l.b16 %v358
  %v724 = vunpack.c.h.b16 %v358
  %v725 = vunpack.c.l.b16 %v359
  %v726 = vunpack.c.h.b16 %v359
  %v727 = vunpack.c.l.b16 %v360
  %v728 = vunpack.c.h.b16 %v360
  %v729 = vunpack.c.l.b16 %v361
  %v730 = vunpack.c.h.b16 %v361
  %v731 = vunpack.c.l.b16 %v362
  %v732 = vunpack.c.h.b16 %v362
  %v733 = vunpack.c.l.b16 %v363
  %v734 = vunpack.c.h.b16 %v363
  %v735 = vunpack.c.l.b16 %v364
  %v736 = vunpack.c.h.b16 %v364
  %v737 = vunpack.c.l.b16 %v365
  %v738 = vunpack.c.h.b16 %v365
  %v739 = vunpack.c.l.b16 %v366
  %v740 = vunpack.c.h.b16 %v366
  %v741 = vunpack.c.l.b16 %v367
  %v742 = vunpack.c.h.b16 %v367
  %v743 = vunpack.c.l.b16 %v368
  %v744 = vunpack.c.h.b16 %v368
  %v745 = vunpack.c.l.b16 %v369
  %v746 = vunpack.c.h.b16 %v369
  %v747 = vunpack.c.l.b16 %v370
  %v748 = vunpack.c.h.b16 %v370
  %v749 = vunpack.c.l.b16 %v371
  %v750 = vunpack.c.h.b16 %v371
  %v751 = vunpack.c.l.b16 %v372
  %v752 = vunpack.c.h.b16 %v372
  %v753 = vunpack.c.l.b16 %v373
  %v754 = vunpack.c.h.b16 %v373
  %v755 = vunpack.c.l.b16 %v374
  %v756 = vunpack.c.h.b16 %v374
  %v757 = vunpack.c.l.b16 %v375
  %v758 = vunpack.c.h.b16 %v375
  %v759 = vunpack.c.l.b16 %v376
  %v760 = vunpack.c.h.b16 %v376
  %v761 = vunpack.c.l.b16 %v377
  %v762 = vunpack.c.h.b16 %v377
  %v763 = vunpack.c.l.b16 %v378
  %v764 = vunpack.c.h.b16 %v378
  %v765 = vunpack.c.l.b16 %v379
  %v766 = vunpack.c.h.b16 %v379
  %v767 = vunpack.c.l.b16 %v380
  %v768 = vunpack.c.h.b16 %v380
  %v769 = vunpack.c.l.b16 %v381
  %v770 = vunpack.c.h.b16 %v381
  %v771 = vunpack.c.l.b16 %v382
  %v772 = vunpack.c.h.b16 %v382
  %v773 = vunpack.c.l.b16 %v383
  %v774 = vunpack.c.h.b16 %v383
  %v775 = vunpack.c.l.b16 %v384
  %v776 = vunpack.c.h.b16 %v384
  %v777 = vunpack.c.l.b16 %v385
  %v778 = vunpack.c.h.b16 %v385
  %v779 = vunpack.c.l.b16 %v386
  %v780 = vunpack.c.h.b16 %v386
  %v781 = vunpack.c.l.b16 %v387
  %v782 = vunpack.c.h.b16 %v387
  %v783 = vunpack.c.l.b16 %v388
  %v784 = vunpack.c.h.b16 %v388
  %v785 = vunpack.c.l.b16 %v389
  %v786 = vunpack.c.h.b16 %v389
  %v787 = vunpack.c.l.b16 %v390
  %v788 = vunpack.c.h.b16 %v390
  %v789 = vunpack.c.l.b16 %v391
  %v790 = vunpack.c.h.b16 %v391
  %v791 = vunpack.c.l.b16 %v392
  %v792 = vunpack.c.h.b16 %v392
  %v793 = vunpack.c.l.b16 %v393
  %v794 = vunpack.c.h.b16 %v393
  %v795 = vunpack.c.l.b16 %v394
  %v796 = vunpack.c.h.b16 %v394
  %v797 = vunpack.c.l.b16 %v395
  %v798 = vunpack.c.h.b16 %v395
  %v799 = vunpack.c.l.b16 %v396
  %v800 = vunpack.c.h.b16 %v396
  %v801 = vunpack.c.l.b16 %v397
  %v802 = vunpack.c.h.b16 %v397
  %v803 = vunpack.c.l.b16 %v398
  %v804 = vunpack.c.h.b16 %v398
  %v805 = vunpack.c.l.b16 %v399
  %v806 = vunpack.c.h.b16 %v399
  %v807 = vunpack.c.l.b16 %v400
  %v808 = vunpack.c.h.b16 %v400
  %v809 = vunpack.c.l.b16 %v401
  %v810 = vunpack.c.h.b16 %v401
  %v811 = vunpack.c.l.b16 %v402
  %v812 = vunpack.c.h.b16 %v402
  %v813 = vunpack.c.l.b16 %v403
  %v814 = vunpack.c.h.b16 %v403
  %v815 = vpack.c.b16 %v561, %v559
  %v816 = vpack.c.b16 %v562, %v560
  %v817 = vpack.c.b16 %v565, %v563
  %v818 = vpack.c.b16 %v566, %v564
  %v819 = vpack.c.b16 %v569, %v567
  %v820 = vpack.c.b16 %v570, %v568
  %v821 = vpack.c.b16 %v573, %v571
  %v822 = vpack.c.b16 %v574, %v572
  %v823 = vpack.c.b16 %v577, %v575
  %v824 = vpack.c.b16 %v578, %v576
  %v825 = vpack.c.b16 %v581, %v579
  %v826 = vpack.c.b16 %v582, %v580
  %v827 = vpack.c.b16 %v585, %v583
  %v828 = vpack.c.b16 %v586, %v584
  %v829 = vpack.c.b16 %v589, %v587
  %v830 = vpack.c.b16 %v590, %v588
  %v831 = vpack.c.b16 %v593, %v591
  %v832 = vpack.c.b16 %v594, %v592
  %v833 = vpack.c.b16 %v597, %v595
  %v834 = vpack.c.b16 %v598, %v596
  %v835 = vpack.c.b16 %v601, %v599
  %v836 = vpack.c.b16 %v602, %v600
  %v837 = vpack.c.b16 %v605, %v603
  %v838 = vpack.c.b16 %v606, %v604
  %v839 = vpack.c.b16 %v609, %v607
  %v840 = vpack.c.b16 %v610, %v608
  %v841 = vpack.c.b16 %v613, %v611
  %v842 = vpack.c.b16 %v614, %v612
  %v843 = vpack.c.b16 %v617, %v615
  %v844 = vpack.c.b16 %v618, %v616
  %v845 = vpack.c.b16 %v621, %v619
  %v846 = vpack.c.b16 %v622, %v620
  %v847 = vpack.c.b16 %v625, %v623
  %v848 = vpack.c.b16 %v626, %v624
  %v849 = vpack.c.b16 %v629, %v627
  %v850 = vpack.c.b16 %v630, %v628
  %v851 = vpack.c.b16 %v633, %v631
  %v852 = vpack.c.b16 %v634, %v632
  %v853 = vpack.c.b16 %v637, %v635
  %v854 = vpack.c.b16 %v638, %v636
  %v855 = vpack.c.b16 %v641, %v639
  %v856 = vpack.c.b16 %v642, %v640
  %v857 = vpack.c.b16 %v645, %v643
  %v858 = vpack.c.b16 %v646, %v644
  %v859 = vpack.c.b16 %v649, %v647
  %v860 = vpack.c.b16 %v650, %v648
  %v861 = vpack.c.b16 %v653, %v651
  %v862 = vpack.c.b16 %v654, %v652
  %v863 = vpack.c.b16 %v657, %v655
  %v864 = vpack.c.b16 %v658, %v656
  %v865 = vpack.c.b16 %v661, %v659
  %v866 = vpack.c.b16 %v662, %v660
  %v867 = vpack.c.b16 %v665, %v663
  %v868 = vpack.c.b16 %v666, %v664
  %v869 = vpack.c.b16 %v669, %v667
  %v870 = vpack.c.b16 %v670, %v668
  %v871 = vpack.c.b16 %v673, %v671
  %v872 = vpack.c.b16 %v674, %v672
  %v873 = vpack.c.b16 %v677, %v675
  %v874 = vpack.c.b16 %v678, %v676
  %v875 = vpack.c.b16 %v681, %v679
  %v876 = vpack.c.b16 %v682, %v680
  %v877 = vpack.c.b16 %v685, %v683
  %v878 = vpack.c.b16 %v686, %v684
  %v879 = vpack.c.b16 %v689, %v687
  %v880 = vpack.c.b16 %v690, %v688
  %v881 = vpack.c.b16 %v693, %v691
  %v882 = vpack.c.b16 %v694, %v692
  %v883 = vpack.c.b16 %v697, %v695
  %v884 = vpack.c.b16 %v698, %v696
  %v885 = vpack.c.b16 %v701, %v699
  %v886 = vpack.c.b16 %v702, %v700
  %v887 = vpack.c.b16 %v705, %v703
  %v888 = vpack.c.b16 %v706, %v704
  %v889 = vpack.c.b16 %v709, %v707
  %v890 = vpack.c.b16 %v710, %v708
  %v891 = vpack.c.b16 %v713, %v711
  %v892 = vpack.c.b16 %v714, %v712
  %v893 = vpack.c.b16 %v717, %v715
  %v894 = vpack.c.b16 %v718, %v716
  %v895 = vpack.c.b16 %v721, %v719
  %v896 = vpack.c.b16 %v722, %v720
  %v897 = vpack.c.b16 %v725, %v723
  %v898 = vpack.c.b16 %v726, %v724
  %v899 = vpack.c.b16 %v729, %v727
  %v900 = vpack.c.b16 %v730, %v728
  %v901 = vpack.c.b16 %v733, %v731
  %v902 = vpack.c.b16 %v734, %v732
  %v903 = vpack.c.b16 %v737, %v735
  %v904 = vpack.c.b16 %v738, %v736
  %v905 = vpack.c.b16 %v741, %v739
  %v906 = vpack.c.b16 %v742, %v740
  %v907 = vpack.c.b16 %v745, %v743
  %v908 = vpack.c.b16 %v746, %v744
  %v909 = vpack.c.b16 %v749, %v747
  %v910 = vpack.c.b16 %v750, %v748
  %v911 = vpack.c.b16 %v753, %v751
  %v912 = vpack.c.b16 %v754, %v752
  %v913 = vpack.c.b16 %v757, %v755
  %v914 = vpack.c.b16 %v758, %v756
  %v915 = vpack.c.b16 %v761, %v759
  %v916 = vpack.c.b16 %v762, %v760
  %v917 = vpack.c.b16 %v765, %v763
  %v918 = vpack.c.b16 %v766, %v764
  %v919 = vpack.c.b16 %v769, %v767
  %v920 = vpack.c.b16 %v770, %v768
  %v921 = vpack.c.b16 %v773, %v771
  %v922 = vpack.c.b16 %v774, %v772
  %v923 = vpack.c.b16 %v777, %v775
  %v924 = vpack.c.b16 %v778, %v776
  %v925 = vpack.c.b16 %v781, %v779
  %v926 = vpack.c.b16 %v782, %v780
  %v927 = vpack.c.b16 %v785, %v783
  %v928 = vpack.c.b16 %v786, %v784
  %v929 = vpack.c.b16 %v789, %v787
  %v930 = vpack.c.b16 %v790, %v788
  %v931 = vpack.c.b16 %v793, %v791
  %v932 = vpack.c.b16 %v794, %v792
  %v933 = vpack.c.b16 %v797, %v795
  %v934 = vpack.c.b16 %v798, %v796
  %v935 = vpack.c.b16 %v801, %v799
  %v936 = vpack.c.b16 %v802, %v800
  %v937 = vpack.c.b16 %v805, %v803
  %v938 = vpack.c.b16 %v806, %v804
  %v939 = vpack.c.b16 %v809, %v807
  %v940 = vpack.c.b16 %v810, %v808
  %v941 = vpack.c.b16 %v813, %v811
  %v942 = vpack.c.b16 %v814, %v812
  %v1034 = vunpack.c.l.b16 %v404
  %v1035 = vunpack.c.l.b16 %v405
  %v1036 = vunpack.c.l.b16 %v406
  %v1037 = vunpack.c.l.b16 %v407
  %v1038 = vunpack.c.l.b16 %v408
  %v1039 = vunpack.c.l.b16 %v409
  %v1040 = vunpack.c.l.b16 %v410
  %v1041 = vunpack.c.l.b16 %v411
  %v1042 = vunpack.c.l.b16 %v412
  %v1043 = vunpack.c.l.b16 %v413
  %v1044 = vunpack.c.l.b16 %v414
  %v1045 = vunpack.c.l.b16 %v415
  %v1046 = vunpack.c.l.b16 %v416
  %v1047 = vunpack.c.l.b16 %v417
  %v1048 = vunpack.c.l.b16 %v418
  %v1049 = vunpack.c.l.b16 %v419
  %v1050 = vunpack.c.l.b16 %v420
  %v1051 = vunpack.c.l.b16 %v421
  %v1052 = vunpack.c.l.b16 %v422
  %v1053 = vunpack.c.l.b16 %v423
  %v1054 = vunpack.c.l.b16 %v424
  %v1055 = vunpack.c.l.b16 %v425
  %v1056 = vunpack.c.l.b16 %v426
  %v1057 = vunpack.c.l.b16 %v427
  %v1058 = vunpack.c.l.b16 %v428
  %v1059 = vunpack.c.l.b16 %v429
  %v1060 = vunpack.c.l.b16 %v430
  %v1061 = vpack.c.b16 %v1035, %v1034
  %v1062 = vpack.c.b16 %v1037, %v1036
  %v1063 = vpack.c.b16 %v1039, %v1038
  %v1064 = vpack.c.b16 %v1041, %v1040
  %v1065 = vpack.c.b16 %v1043, %v1042
  %v1066 = vpack.c.b16 %v1045, %v1044
  %v1067 = vpack.c.b16 %v1047, %v1046
  %v1068 = vpack.c.b16 %v1049, %v1048
  %v1069 = vpack.c.b16 %v1051, %v1050
  %v1070 = vpack.c.b16 %v1053, %v1052
  %v1071 = vpack.c.b16 %v1055, %v1054
  %v1072 = vpack.c.b16 %v1057, %v1056
  %v1073 = vpack.c.b16 %v1059, %v1058
  %v1074 = vpack.c.b16 %v1060, %v1060
  %vm1088 = vcmask 719872
  %v1090 = vsel %vm1088, %v816, 0
  %v1093 = vsel %vm1088, %v818, 0
  %v1096 = vsel %vm1088, %v820, 0
  %v1099 = vsel %vm1088, %v822, 0
  %v1102 = vsel %vm1088, %v824, 0
  %v1105 = vsel %vm1088, %v826, 0
  %v1108 = vsel %vm1088, %v828, 0
  %v1111 = vsel %vm1088, %v830, 0
  %v1114 = vsel %vm1088, %v832, 0
  %v1117 = vsel %vm1088, %v834, 0
  %v1120 = vsel %vm1088, %v836, 0
  %v1123 = vsel %vm1088, %v838, 0
  %v1126 = vsel %vm1088, %v840, 0
  %v1129 = vsel %vm1088, %v842, 0
  %v1132 = vsel %vm1088, %v844, 0
  %v1135 = vsel %vm1088, %v846, 0
  %v1138 = vsel %vm1088, %v848, 0
  %v1141 = vsel %vm1088, %v850, 0
  %v1144 = vsel %vm1088, %v852, 0
  %v1147 = vsel %vm1088, %v854, 0
  %v1150 = vsel %vm1088, %v856, 0
  %v1153 = vsel %vm1088, %v858, 0
  %v1156 = vsel %vm1088, %v860, 0
  %v1159 = vsel %vm1088, %v862, 0
  %v1162 = vsel %vm1088, %v864, 0
  %v1165 = vsel %vm1088, %v866, 0
  %v1168 = vsel %vm1088, %v868, 0
  %v1171 = vsel %vm1088, %v870, 0
  %v1174 = vsel %vm1088, %v872, 0
  %v1177 = vsel %vm1088, %v874, 0
  %v1180 = vsel %vm1088, %v876, 0
  %v1183 = vsel %vm1088, %v878, 0
  %v1186 = vsel %vm1088, %v880, 0
  %v1189 = vsel %vm1088, %v882, 0
  %v1192 = vsel %vm1088, %v884, 0
  %v1195 = vsel %vm1088, %v886, 0
  %v1198 = vsel %vm1088, %v888, 0
  %v1201 = vsel %vm1088, %v890, 0
  %v1204 = vsel %vm1088, %v892, 0
  %v1207 = vsel %vm1088, %v894, 0
  %v1210 = vsel %vm1088, %v896, 0
  %v1213 = vsel %vm1088, %v898, 0
  %v1216 = vsel %vm1088, %v900, 0
  %v1219 = vsel %vm1088, %v902, 0
  %v1222 = vsel %vm1088, %v904, 0
  %v1225 = vsel %vm1088, %v906, 0
  %v1228 = vsel %vm1088, %v908, 0
  %v1231 = vsel %vm1088, %v910, 0
  %v1234 = vsel %vm1088, %v912, 0
  %v1237 = vsel %vm1088, %v914, 0
  %v1240 = vsel %vm1088, %v916, 0
  %v1243 = vsel %vm1088, %v918, 0
  %v1246 = vsel %vm1088, %v920, 0
  %v1249 = vsel %vm1088, %v922, 0
  %v1252 = vsel %vm1088, %v924, 0
  %v1255 = vsel %vm1088, %v926, 0
  %v1258 = vsel %vm1088, %v928, 0
  %v1261 = vsel %vm1088, %v930, 0
  %v1264 = vsel %vm1088, %v932, 0
  %v1267 = vsel %vm1088, %v934, 0
  %v1270 = vsel %vm1088, %v936, 0
  %v1273 = vsel %vm1088, %v938, 0
  %v1276 = vsel %vm1088, %v940, 0
  %v1279 = vsel %vm1088, %v942, 0
  %vm1281 = vcmask 1043456
  %v1283 = vsel %vm1281, %v1074, 0
  %1285 = vmatprep.subr.bf16.mxu0 0
  %1286 = vmatpush1.bf16.msra.mxu0 %v1061
  %1287 = vmatprep.subr.bf16.mxu0 0
  %1288 = vmatpush1.bf16.msra.mxu0 %v1062
  %1289 = vmatprep.subr.bf16.mxu0 0
  %1290 = vmatpush1.bf16.msra.mxu0 %v1063
  %1291 = vmatprep.subr.bf16.mxu0 0
  %1292 = vmatpush1.bf16.msra.mxu0 %v1064
  %1293 = vmatprep.subr.bf16.mxu0 0
  %1294 = vmatpush1.bf16.msra.mxu0 %v1065
  %1295 = vmatprep.subr.bf16.mxu0 0
  %1296 = vmatpush1.bf16.msra.mxu0 %v1066
  %1297 = vmatprep.subr.bf16.mxu0 0
  %1298 = vmatpush1.bf16.msra.mxu0 %v1067
  %1299 = vmatprep.subr.bf16.mxu0 0
  %1300 = vmatpush1.bf16.msra.mxu0 %v1068
  %1301 = vmatprep.subr.bf16.mxu0 0
  %1302 = vmatpush1.bf16.msra.mxu0 %v1069
  %1303 = vmatprep.subr.bf16.mxu0 0
  %1304 = vmatpush1.bf16.msra.mxu0 %v1070
  %1305 = vmatprep.subr.bf16.mxu0 0
  %1306 = vmatpush1.bf16.msra.mxu0 %v1071
  %1307 = vmatprep.subr.bf16.mxu0 0
  %1308 = vmatpush1.bf16.msra.mxu0 %v1072
  %1309 = vmatprep.subr.bf16.mxu0 0
  %1310 = vmatpush1.bf16.msra.mxu0 %v1073
  %1311 = vmatprep.subr.bf16.mxu0 0
  %1312 = vmatpush1.bf16.msra.mxu0 %v1283
  %1313 = vmatprep.subr.bf16.mxu0 0
  %1314 = vmatpush1.bf16.msra.mxu0 0
  %1315 = vmatprep.subr.bf16.mxu0 0
  %1316 = vmatpush1.bf16.msra.mxu0 0
  %1317 = vmatprep.mubr.bf16.mxu0 %v1090
  %1318 = vmatmul.mubr.bf16.gmra.mrb[0].mxu0 %v815
  %v1319 = vpop.f32.mrb[0].mxu0
  %v1320 = vadd.f32 0.0, %v1319
  %v1321 = vpop.f32.mrb[0].mxu0
  %v1322 = vpop.f32.mrb[0].mxu0
  %v1323 = vadd.f32 0.0, %v1322
  %v1324 = vpop.f32.mrb[0].mxu0
  %1325 = vmatprep.mubr.bf16.mxu0 %v1093
  %1326 = vmatmul.mubr.bf16.gmra.mrb[0].mxu0 %v817
  %v1327 = vpop.f32.mrb[0].mxu0
  %v1328 = vadd.f32 0.0, %v1327
  %v1329 = vpop.f32.mrb[0].mxu0
  %v1330 = vpop.f32.mrb[0].mxu0
  %v1331 = vadd.f32 0.0, %v1330
  %v1332 = vpop.f32.mrb[0].mxu0
  %1333 = vmatprep.mubr.bf16.mxu0 %v1096
  %1334 = vmatmul.mubr.bf16.gmra.mrb[0].mxu0 %v819
  %v1335 = vpop.f32.mrb[0].mxu0
  %v1336 = vadd.f32 0.0, %v1335
  %v1337 = vpop.f32.mrb[0].mxu0
  %v1338 = vpop.f32.mrb[0].mxu0
  %v1339 = vadd.f32 0.0, %v1338
  %v1340 = vpop.f32.mrb[0].mxu0
  %1341 = vmatprep.mubr.bf16.mxu0 %v1099
  %1342 = vmatmul.mubr.bf16.gmra.mrb[0].mxu0 %v821
  %v1343 = vpop.f32.mrb[0].mxu0
  %v1344 = vadd.f32 0.0, %v1343
  %v1345 = vpop.f32.mrb[0].mxu0
  %v1346 = vpop.f32.mrb[0].mxu0
  %v1347 = vadd.f32 0.0, %v1346
  %v1348 = vpop.f32.mrb[0].mxu0
  %1349 = vmatprep.mubr.bf16.mxu0 %v1102
  %1350 = vmatmul.mubr.bf16.gmra.mrb[0].mxu0 %v823
  %v1351 = vpop.f32.mrb[0].mxu0
  %v1352 = vadd.f32 0.0, %v1351
  %v1353 = vpop.f32.mrb[0].mxu0
  %v1354 = vpop.f32.mrb[0].mxu0
  %v1355 = vadd.f32 0.0, %v1354
  %v1356 = vpop.f32.mrb[0].mxu0
  %1357 = vmatprep.mubr.bf16.mxu0 %v1105
  %1358 = vmatmul.mubr.bf16.gmra.mrb[0].mxu0 %v825
  %v1359 = vpop.f32.mrb[0].mxu0
  %v1360 = vadd.f32 0.0, %v1359
  %v1361 = vpop.f32.mrb[0].mxu0
  %v1362 = vpop.f32.mrb[0].mxu0
  %v1363 = vadd.f32 0.0, %v1362
  %v1364 = vpop.f32.mrb[0].mxu0
  %1365 = vmatprep.mubr.bf16.mxu0 %v1108
  %1366 = vmatmul.mubr.bf16.gmra.mrb[0].mxu0 %v827
  %v1367 = vpop.f32.mrb[0].mxu0
  %v1368 = vadd.f32 0.0, %v1367
  %v1369 = vpop.f32.mrb[0].mxu0
  %v1370 = vpop.f32.mrb[0].mxu0
  %v1371 = vadd.f32 0.0, %v1370
  %v1372 = vpop.f32.mrb[0].mxu0
  %1373 = vmatprep.mubr.bf16.mxu0 %v1111
  %1374 = vmatmul.mubr.bf16.gmra.mrb[0].mxu0 %v829
  %v1375 = vpop.f32.mrb[0].mxu0
  %v1376 = vadd.f32 0.0, %v1375
  %v1377 = vpop.f32.mrb[0].mxu0
  %v1378 = vpop.f32.mrb[0].mxu0
  %v1379 = vadd.f32 0.0, %v1378
  %v1380 = vpop.f32.mrb[0].mxu0
  %1381 = vmatprep.mubr.bf16.mxu0 %v1114
  %1382 = vmatmul.mubr.bf16.gmra.mrb[0].mxu0 %v831
  %v1383 = vpop.f32.mrb[0].mxu0
  %v1384 = vadd.f32 0.0, %v1383
  %v1385 = vpop.f32.mrb[0].mxu0
  %v1386 = vpop.f32.mrb[0].mxu0
  %v1387 = vadd.f32 0.0, %v1386
  %v1388 = vpop.f32.mrb[0].mxu0
  %1389 = vmatprep.mubr.bf16.mxu0 %v1117
  %1390 = vmatmul.mubr.bf16.gmra.mrb[0].mxu0 %v833
  %v1391 = vpop.f32.mrb[0].mxu0
  %v1392 = vadd.f32 0.0, %v1391
  %v1393 = vpop.f32.mrb[0].mxu0
  %v1394 = vpop.f32.mrb[0].mxu0
  %v1395 = vadd.f32 0.0, %v1394
  %v1396 = vpop.f32.mrb[0].mxu0
  %1397 = vmatprep.mubr.bf16.mxu0 %v1120
  %1398 = vmatmul.mubr.bf16.gmra.mrb[0].mxu0 %v835
  %v1399 = vpop.f32.mrb[0].mxu0
  %v1400 = vadd.f32 0.0, %v1399
  %v1401 = vpop.f32.mrb[0].mxu0
  %v1402 = vpop.f32.mrb[0].mxu0
  %v1403 = vadd.f32 0.0, %v1402
  %v1404 = vpop.f32.mrb[0].mxu0
  %1405 = vmatprep.mubr.bf16.mxu0 %v1123
  %1406 = vmatmul.mubr.bf16.gmra.mrb[0].mxu0 %v837
  %v1407 = vpop.f32.mrb[0].mxu0
  %v1408 = vadd.f32 0.0, %v1407
  %v1409 = vpop.f32.mrb[0].mxu0
  %v1410 = vpop.f32.mrb[0].mxu0
  %v1411 = vadd.f32 0.0, %v1410
  %v1412 = vpop.f32.mrb[0].mxu0
  %1413 = vmatprep.mubr.bf16.mxu0 %v1126
  %1414 = vmatmul.mubr.bf16.gmra.mrb[0].mxu0 %v839
  %v1415 = vpop.f32.mrb[0].mxu0
  %v1416 = vadd.f32 0.0, %v1415
  %v1417 = vpop.f32.mrb[0].mxu0
  %v1418 = vpop.f32.mrb[0].mxu0
  %v1419 = vadd.f32 0.0, %v1418
  %v1420 = vpop.f32.mrb[0].mxu0
  %1421 = vmatprep.mubr.bf16.mxu0 %v1129
  %1422 = vmatmul.mubr.bf16.gmra.mrb[0].mxu0 %v841
  %v1423 = vpop.f32.mrb[0].mxu0
  %v1424 = vadd.f32 0.0, %v1423
  %v1425 = vpop.f32.mrb[0].mxu0
  %v1426 = vpop.f32.mrb[0].mxu0
  %v1427 = vadd.f32 0.0, %v1426
  %v1428 = vpop.f32.mrb[0].mxu0
  %1429 = vmatprep.mubr.bf16.mxu0 %v1132
  %1430 = vmatmul.mubr.bf16.gmra.mrb[0].mxu0 %v843
  %v1431 = vpop.f32.mrb[0].mxu0
  %v1432 = vadd.f32 0.0, %v1431
  %v1433 = vpop.f32.mrb[0].mxu0
  %v1434 = vpop.f32.mrb[0].mxu0
  %v1435 = vadd.f32 0.0, %v1434
  %v1436 = vpop.f32.mrb[0].mxu0
  %1437 = vmatprep.mubr.bf16.mxu0 %v1135
  %1438 = vmatmul.mubr.bf16.gmra.mrb[0].mxu0 %v845
  %v1439 = vpop.f32.mrb[0].mxu0
  %v1440 = vadd.f32 0.0, %v1439
  %v1441 = vpop.f32.mrb[0].mxu0
  %v1442 = vpop.f32.mrb[0].mxu0
  %v1443 = vadd.f32 0.0, %v1442
  %v1444 = vpop.f32.mrb[0].mxu0
  %1445 = vmatprep.mubr.bf16.mxu0 %v1138
  %1446 = vmatmul.mubr.bf16.gmra.mrb[0].mxu0 %v847
  %v1447 = vpop.f32.mrb[0].mxu0
  %v1448 = vadd.f32 0.0, %v1447
  %v1449 = vpop.f32.mrb[0].mxu0
  %v1450 = vpop.f32.mrb[0].mxu0
  %v1451 = vadd.f32 0.0, %v1450
  %v1452 = vpop.f32.mrb[0].mxu0
  %1453 = vmatprep.mubr.bf16.mxu0 %v1141
  %1454 = vmatmul.mubr.bf16.gmra.mrb[0].mxu0 %v849
  %v1455 = vpop.f32.mrb[0].mxu0
  %v1456 = vadd.f32 0.0, %v1455
  %v1457 = vpop.f32.mrb[0].mxu0
  %v1458 = vpop.f32.mrb[0].mxu0
  %v1459 = vadd.f32 0.0, %v1458
  %v1460 = vpop.f32.mrb[0].mxu0
  %1461 = vmatprep.mubr.bf16.mxu0 %v1144
  %1462 = vmatmul.mubr.bf16.gmra.mrb[0].mxu0 %v851
  %v1463 = vpop.f32.mrb[0].mxu0
  %v1464 = vadd.f32 0.0, %v1463
  %v1465 = vpop.f32.mrb[0].mxu0
  %v1466 = vpop.f32.mrb[0].mxu0
  %v1467 = vadd.f32 0.0, %v1466
  %v1468 = vpop.f32.mrb[0].mxu0
  %1469 = vmatprep.mubr.bf16.mxu0 %v1147
  %1470 = vmatmul.mubr.bf16.gmra.mrb[0].mxu0 %v853
  %v1471 = vpop.f32.mrb[0].mxu0
  %v1472 = vadd.f32 0.0, %v1471
  %v1473 = vpop.f32.mrb[0].mxu0
  %v1474 = vpop.f32.mrb[0].mxu0
  %v1475 = vadd.f32 0.0, %v1474
  %v1476 = vpop.f32.mrb[0].mxu0
  %1477 = vmatprep.mubr.bf16.mxu0 %v1150
  %1478 = vmatmul.mubr.bf16.gmra.mrb[0].mxu0 %v855
  %v1479 = vpop.f32.mrb[0].mxu0
  %v1480 = vadd.f32 0.0, %v1479
  %v1481 = vpop.f32.mrb[0].mxu0
  %v1482 = vpop.f32.mrb[0].mxu0
  %v1483 = vadd.f32 0.0, %v1482
  %v1484 = vpop.f32.mrb[0].mxu0
  %1485 = vmatprep.mubr.bf16.mxu0 %v1153
  %1486 = vmatmul.mubr.bf16.gmra.mrb[0].mxu0 %v857
  %v1487 = vpop.f32.mrb[0].mxu0
  %v1488 = vadd.f32 0.0, %v1487
  %v1489 = vpop.f32.mrb[0].mxu0
  %v1490 = vpop.f32.mrb[0].mxu0
  %v1491 = vadd.f32 0.0, %v1490
  %v1492 = vpop.f32.mrb[0].mxu0
  %1493 = vmatprep.mubr.bf16.mxu0 %v1156
  %1494 = vmatmul.mubr.bf16.gmra.mrb[0].mxu0 %v859
  %v1495 = vpop.f32.mrb[0].mxu0
  %v1496 = vadd.f32 0.0, %v1495
  %v1497 = vpop.f32.mrb[0].mxu0
  %v1498 = vpop.f32.mrb[0].mxu0
  %v1499 = vadd.f32 0.0, %v1498
  %v1500 = vpop.f32.mrb[0].mxu0
  %1501 = vmatprep.mubr.bf16.mxu0 %v1159
  %1502 = vmatmul.mubr.bf16.gmra.mrb[0].mxu0 %v861
  %v1503 = vpop.f32.mrb[0].mxu0
  %v1504 = vadd.f32 0.0, %v1503
  %v1505 = vpop.f32.mrb[0].mxu0
  %v1506 = vpop.f32.mrb[0].mxu0
  %v1507 = vadd.f32 0.0, %v1506
  %v1508 = vpop.f32.mrb[0].mxu0
  %1509 = vmatprep.mubr.bf16.mxu0 %v1162
  %1510 = vmatmul.mubr.bf16.gmra.mrb[0].mxu0 %v863
  %v1511 = vpop.f32.mrb[0].mxu0
  %v1512 = vadd.f32 0.0, %v1511
  %v1513 = vpop.f32.mrb[0].mxu0
  %v1514 = vpop.f32.mrb[0].mxu0
  %v1515 = vadd.f32 0.0, %v1514
  %v1516 = vpop.f32.mrb[0].mxu0
  %1517 = vmatprep.mubr.bf16.mxu0 %v1165
  %1518 = vmatmul.mubr.bf16.gmra.mrb[0].mxu0 %v865
  %v1519 = vpop.f32.mrb[0].mxu0
  %v1520 = vadd.f32 0.0, %v1519
  %v1521 = vpop.f32.mrb[0].mxu0
  %v1522 = vpop.f32.mrb[0].mxu0
  %v1523 = vadd.f32 0.0, %v1522
  %v1524 = vpop.f32.mrb[0].mxu0
  %1525 = vmatprep.mubr.bf16.mxu0 %v1168
  %1526 = vmatmul.mubr.bf16.gmra.mrb[0].mxu0 %v867
  %v1527 = vpop.f32.mrb[0].mxu0
  %v1528 = vadd.f32 0.0, %v1527
  %v1529 = vpop.f32.mrb[0].mxu0
  %v1530 = vpop.f32.mrb[0].mxu0
  %v1531 = vadd.f32 0.0, %v1530
  %v1532 = vpop.f32.mrb[0].mxu0
  %1533 = vmatprep.mubr.bf16.mxu0 %v1171
  %1534 = vmatmul.mubr.bf16.gmra.mrb[0].mxu0 %v869
  %v1535 = vpop.f32.mrb[0].mxu0
  %v1536 = vadd.f32 0.0, %v1535
  %v1537 = vpop.f32.mrb[0].mxu0
  %v1538 = vpop.f32.mrb[0].mxu0
  %v1539 = vadd.f32 0.0, %v1538
  %v1540 = vpop.f32.mrb[0].mxu0
  %1541 = vmatprep.mubr.bf16.mxu0 %v1174
  %1542 = vmatmul.mubr.bf16.gmra.mrb[0].mxu0 %v871
  %v1543 = vpop.f32.mrb[0].mxu0
  %v1544 = vadd.f32 0.0, %v1543
  %v1545 = vpop.f32.mrb[0].mxu0
  %v1546 = vpop.f32.mrb[0].mxu0
  %v1547 = vadd.f32 0.0, %v1546
  %v1548 = vpop.f32.mrb[0].mxu0
  %1549 = vmatprep.mubr.bf16.mxu0 %v1177
  %1550 = vmatmul.mubr.bf16.gmra.mrb[0].mxu0 %v873
  %v1551 = vpop.f32.mrb[0].mxu0
  %v1552 = vadd.f32 0.0, %v1551
  %v1553 = vpop.f32.mrb[0].mxu0
  %v1554 = vpop.f32.mrb[0].mxu0
  %v1555 = vadd.f32 0.0, %v1554
  %v1556 = vpop.f32.mrb[0].mxu0
  %1557 = vmatprep.mubr.bf16.mxu0 %v1180
  %1558 = vmatmul.mubr.bf16.gmra.mrb[0].mxu0 %v875
  %v1559 = vpop.f32.mrb[0].mxu0
  %v1560 = vadd.f32 0.0, %v1559
  %v1561 = vpop.f32.mrb[0].mxu0
  %v1562 = vpop.f32.mrb[0].mxu0
  %v1563 = vadd.f32 0.0, %v1562
  %v1564 = vpop.f32.mrb[0].mxu0
  %1565 = vmatprep.mubr.bf16.mxu0 %v1183
  %1566 = vmatmul.mubr.bf16.gmra.mrb[0].mxu0 %v877
  %v1567 = vpop.f32.mrb[0].mxu0
  %v1568 = vadd.f32 0.0, %v1567
  %v1569 = vpop.f32.mrb[0].mxu0
  %v1570 = vpop.f32.mrb[0].mxu0
  %v1571 = vadd.f32 0.0, %v1570
  %v1572 = vpop.f32.mrb[0].mxu0
  %1573 = vmatprep.mubr.bf16.mxu0 %v1186
  %1574 = vmatmul.mubr.bf16.gmra.mrb[0].mxu0 %v879
  %v1575 = vpop.f32.mrb[0].mxu0
  %v1576 = vadd.f32 0.0, %v1575
  %v1577 = vpop.f32.mrb[0].mxu0
  %v1578 = vpop.f32.mrb[0].mxu0
  %v1579 = vadd.f32 0.0, %v1578
  %v1580 = vpop.f32.mrb[0].mxu0
  %1581 = vmatprep.mubr.bf16.mxu0 %v1189
  %1582 = vmatmul.mubr.bf16.gmra.mrb[0].mxu0 %v881
  %v1583 = vpop.f32.mrb[0].mxu0
  %v1584 = vadd.f32 0.0, %v1583
  %v1585 = vpop.f32.mrb[0].mxu0
  %v1586 = vpop.f32.mrb[0].mxu0
  %v1587 = vadd.f32 0.0, %v1586
  %v1588 = vpop.f32.mrb[0].mxu0
  %1589 = vmatprep.mubr.bf16.mxu0 %v1192
  %1590 = vmatmul.mubr.bf16.gmra.mrb[0].mxu0 %v883
  %v1591 = vpop.f32.mrb[0].mxu0
  %v1592 = vadd.f32 0.0, %v1591
  %v1593 = vpop.f32.mrb[0].mxu0
  %v1594 = vpop.f32.mrb[0].mxu0
  %v1595 = vadd.f32 0.0, %v1594
  %v1596 = vpop.f32.mrb[0].mxu0
  %1597 = vmatprep.mubr.bf16.mxu0 %v1195
  %1598 = vmatmul.mubr.bf16.gmra.mrb[0].mxu0 %v885
  %v1599 = vpop.f32.mrb[0].mxu0
  %v1600 = vadd.f32 0.0, %v1599
  %v1601 = vpop.f32.mrb[0].mxu0
  %v1602 = vpop.f32.mrb[0].mxu0
  %v1603 = vadd.f32 0.0, %v1602
  %v1604 = vpop.f32.mrb[0].mxu0
  %1605 = vmatprep.mubr.bf16.mxu0 %v1198
  %1606 = vmatmul.mubr.bf16.gmra.mrb[0].mxu0 %v887
  %v1607 = vpop.f32.mrb[0].mxu0
  %v1608 = vadd.f32 0.0, %v1607
  %v1609 = vpop.f32.mrb[0].mxu0
  %v1610 = vpop.f32.mrb[0].mxu0
  %v1611 = vadd.f32 0.0, %v1610
  %v1612 = vpop.f32.mrb[0].mxu0
  %1613 = vmatprep.mubr.bf16.mxu0 %v1201
  %1614 = vmatmul.mubr.bf16.gmra.mrb[0].mxu0 %v889
  %v1615 = vpop.f32.mrb[0].mxu0
  %v1616 = vadd.f32 0.0, %v1615
  %v1617 = vpop.f32.mrb[0].mxu0
  %v1618 = vpop.f32.mrb[0].mxu0
  %v1619 = vadd.f32 0.0, %v1618
  %v1620 = vpop.f32.mrb[0].mxu0
  %1621 = vmatprep.mubr.bf16.mxu0 %v1204
  %1622 = vmatmul.mubr.bf16.gmra.mrb[0].mxu0 %v891
  %v1623 = vpop.f32.mrb[0].mxu0
  %v1624 = vadd.f32 0.0, %v1623
  %v1625 = vpop.f32.mrb[0].mxu0
  %v1626 = vpop.f32.mrb[0].mxu0
  %v1627 = vadd.f32 0.0, %v1626
  %v1628 = vpop.f32.mrb[0].mxu0
  %1629 = vmatprep.mubr.bf16.mxu0 %v1207
  %1630 = vmatmul.mubr.bf16.gmra.mrb[0].mxu0 %v893
  %v1631 = vpop.f32.mrb[0].mxu0
  %v1632 = vadd.f32 0.0, %v1631
  %v1633 = vpop.f32.mrb[0].mxu0
  %v1634 = vpop.f32.mrb[0].mxu0
  %v1635 = vadd.f32 0.0, %v1634
  %v1636 = vpop.f32.mrb[0].mxu0
  %1637 = vmatprep.mubr.bf16.mxu0 %v1210
  %1638 = vmatmul.mubr.bf16.gmra.mrb[0].mxu0 %v895
  %v1639 = vpop.f32.mrb[0].mxu0
  %v1640 = vadd.f32 0.0, %v1639
  %v1641 = vpop.f32.mrb[0].mxu0
  %v1642 = vpop.f32.mrb[0].mxu0
  %v1643 = vadd.f32 0.0, %v1642
  %v1644 = vpop.f32.mrb[0].mxu0
  %1645 = vmatprep.mubr.bf16.mxu0 %v1213
  %1646 = vmatmul.mubr.bf16.gmra.mrb[0].mxu0 %v897
  %v1647 = vpop.f32.mrb[0].mxu0
  %v1648 = vadd.f32 0.0, %v1647
  %v1649 = vpop.f32.mrb[0].mxu0
  %v1650 = vpop.f32.mrb[0].mxu0
  %v1651 = vadd.f32 0.0, %v1650
  %v1652 = vpop.f32.mrb[0].mxu0
  %1653 = vmatprep.mubr.bf16.mxu0 %v1216
  %1654 = vmatmul.mubr.bf16.gmra.mrb[0].mxu0 %v899
  %v1655 = vpop.f32.mrb[0].mxu0
  %v1656 = vadd.f32 0.0, %v1655
  %v1657 = vpop.f32.mrb[0].mxu0
  %v1658 = vpop.f32.mrb[0].mxu0
  %v1659 = vadd.f32 0.0, %v1658
  %v1660 = vpop.f32.mrb[0].mxu0
  %1661 = vmatprep.mubr.bf16.mxu0 %v1219
  %1662 = vmatmul.mubr.bf16.gmra.mrb[0].mxu0 %v901
  %v1663 = vpop.f32.mrb[0].mxu0
  %v1664 = vadd.f32 0.0, %v1663
  %v1665 = vpop.f32.mrb[0].mxu0
  %v1666 = vpop.f32.mrb[0].mxu0
  %v1667 = vadd.f32 0.0, %v1666
  %v1668 = vpop.f32.mrb[0].mxu0
  %1669 = vmatprep.mubr.bf16.mxu0 %v1222
  %1670 = vmatmul.mubr.bf16.gmra.mrb[0].mxu0 %v903
  %v1671 = vpop.f32.mrb[0].mxu0
  %v1672 = vadd.f32 0.0, %v1671
  %v1673 = vpop.f32.mrb[0].mxu0
  %v1674 = vpop.f32.mrb[0].mxu0
  %v1675 = vadd.f32 0.0, %v1674
  %v1676 = vpop.f32.mrb[0].mxu0
  %1677 = vmatprep.mubr.bf16.mxu0 %v1225
  %1678 = vmatmul.mubr.bf16.gmra.mrb[0].mxu0 %v905
  %v1679 = vpop.f32.mrb[0].mxu0
  %v1680 = vadd.f32 0.0, %v1679
  %v1681 = vpop.f32.mrb[0].mxu0
  %v1682 = vpop.f32.mrb[0].mxu0
  %v1683 = vadd.f32 0.0, %v1682
  %v1684 = vpop.f32.mrb[0].mxu0
  %1685 = vmatprep.mubr.bf16.mxu0 %v1228
  %1686 = vmatmul.mubr.bf16.gmra.mrb[0].mxu0 %v907
  %v1687 = vpop.f32.mrb[0].mxu0
  %v1688 = vadd.f32 0.0, %v1687
  %v1689 = vpop.f32.mrb[0].mxu0
  %v1690 = vpop.f32.mrb[0].mxu0
  %v1691 = vadd.f32 0.0, %v1690
  %v1692 = vpop.f32.mrb[0].mxu0
  %1693 = vmatprep.mubr.bf16.mxu0 %v1231
  %1694 = vmatmul.mubr.bf16.gmra.mrb[0].mxu0 %v909
  %v1695 = vpop.f32.mrb[0].mxu0
  %v1696 = vadd.f32 0.0, %v1695
  %v1697 = vpop.f32.mrb[0].mxu0
  %v1698 = vpop.f32.mrb[0].mxu0
  %v1699 = vadd.f32 0.0, %v1698
  %v1700 = vpop.f32.mrb[0].mxu0
  %1701 = vmatprep.mubr.bf16.mxu0 %v1234
  %1702 = vmatmul.mubr.bf16.gmra.mrb[0].mxu0 %v911
  %v1703 = vpop.f32.mrb[0].mxu0
  %v1704 = vadd.f32 0.0, %v1703
  %v1705 = vpop.f32.mrb[0].mxu0
  %v1706 = vpop.f32.mrb[0].mxu0
  %v1707 = vadd.f32 0.0, %v1706
  %v1708 = vpop.f32.mrb[0].mxu0
  %1709 = vmatprep.mubr.bf16.mxu0 %v1237
  %1710 = vmatmul.mubr.bf16.gmra.mrb[0].mxu0 %v913
  %v1711 = vpop.f32.mrb[0].mxu0
  %v1712 = vadd.f32 0.0, %v1711
  %v1713 = vpop.f32.mrb[0].mxu0
  %v1714 = vpop.f32.mrb[0].mxu0
  %v1715 = vadd.f32 0.0, %v1714
  %v1716 = vpop.f32.mrb[0].mxu0
  %1717 = vmatprep.mubr.bf16.mxu0 %v1240
  %1718 = vmatmul.mubr.bf16.gmra.mrb[0].mxu0 %v915
  %v1719 = vpop.f32.mrb[0].mxu0
  %v1720 = vadd.f32 0.0, %v1719
  %v1721 = vpop.f32.mrb[0].mxu0
  %v1722 = vpop.f32.mrb[0].mxu0
  %v1723 = vadd.f32 0.0, %v1722
  %v1724 = vpop.f32.mrb[0].mxu0
  %1725 = vmatprep.mubr.bf16.mxu0 %v1243
  %1726 = vmatmul.mubr.bf16.gmra.mrb[0].mxu0 %v917
  %v1727 = vpop.f32.mrb[0].mxu0
  %v1728 = vadd.f32 0.0, %v1727
  %v1729 = vpop.f32.mrb[0].mxu0
  %v1730 = vpop.f32.mrb[0].mxu0
  %v1731 = vadd.f32 0.0, %v1730
  %v1732 = vpop.f32.mrb[0].mxu0
  %1733 = vmatprep.mubr.bf16.mxu0 %v1246
  %1734 = vmatmul.mubr.bf16.gmra.mrb[0].mxu0 %v919
  %v1735 = vpop.f32.mrb[0].mxu0
  %v1736 = vadd.f32 0.0, %v1735
  %v1737 = vpop.f32.mrb[0].mxu0
  %v1738 = vpop.f32.mrb[0].mxu0
  %v1739 = vadd.f32 0.0, %v1738
  %v1740 = vpop.f32.mrb[0].mxu0
  %1741 = vmatprep.mubr.bf16.mxu0 %v1249
  %1742 = vmatmul.mubr.bf16.gmra.mrb[0].mxu0 %v921
  %v1743 = vpop.f32.mrb[0].mxu0
  %v1744 = vadd.f32 0.0, %v1743
  %v1745 = vpop.f32.mrb[0].mxu0
  %v1746 = vpop.f32.mrb[0].mxu0
  %v1747 = vadd.f32 0.0, %v1746
  %v1748 = vpop.f32.mrb[0].mxu0
  %1749 = vmatprep.mubr.bf16.mxu0 %v1252
  %1750 = vmatmul.mubr.bf16.gmra.mrb[0].mxu0 %v923
  %v1751 = vpop.f32.mrb[0].mxu0
  %v1752 = vadd.f32 0.0, %v1751
  %v1753 = vpop.f32.mrb[0].mxu0
  %v1754 = vpop.f32.mrb[0].mxu0
  %v1755 = vadd.f32 0.0, %v1754
  %v1756 = vpop.f32.mrb[0].mxu0
  %1757 = vmatprep.mubr.bf16.mxu0 %v1255
  %1758 = vmatmul.mubr.bf16.gmra.mrb[0].mxu0 %v925
  %v1759 = vpop.f32.mrb[0].mxu0
  %v1760 = vadd.f32 0.0, %v1759
  %v1761 = vpop.f32.mrb[0].mxu0
  %v1762 = vpop.f32.mrb[0].mxu0
  %v1763 = vadd.f32 0.0, %v1762
  %v1764 = vpop.f32.mrb[0].mxu0
  %1765 = vmatprep.mubr.bf16.mxu0 %v1258
  %1766 = vmatmul.mubr.bf16.gmra.mrb[0].mxu0 %v927
  %v1767 = vpop.f32.mrb[0].mxu0
  %v1768 = vadd.f32 0.0, %v1767
  %v1769 = vpop.f32.mrb[0].mxu0
  %v1770 = vpop.f32.mrb[0].mxu0
  %v1771 = vadd.f32 0.0, %v1770
  %v1772 = vpop.f32.mrb[0].mxu0
  %1773 = vmatprep.mubr.bf16.mxu0 %v1261
  %1774 = vmatmul.mubr.bf16.gmra.mrb[0].mxu0 %v929
  %v1775 = vpop.f32.mrb[0].mxu0
  %v1776 = vadd.f32 0.0, %v1775
  %v1777 = vpop.f32.mrb[0].mxu0
  %v1778 = vpop.f32.mrb[0].mxu0
  %v1779 = vadd.f32 0.0, %v1778
  %v1780 = vpop.f32.mrb[0].mxu0
  %1781 = vmatprep.mubr.bf16.mxu0 %v1264
  %1782 = vmatmul.mubr.bf16.gmra.mrb[0].mxu0 %v931
  %v1783 = vpop.f32.mrb[0].mxu0
  %v1784 = vadd.f32 0.0, %v1783
  %v1785 = vpop.f32.mrb[0].mxu0
  %v1786 = vpop.f32.mrb[0].mxu0
  %v1787 = vadd.f32 0.0, %v1786
  %v1788 = vpop.f32.mrb[0].mxu0
  %1789 = vmatprep.mubr.bf16.mxu0 %v1267
  %1790 = vmatmul.mubr.bf16.gmra.mrb[0].mxu0 %v933
  %v1791 = vpop.f32.mrb[0].mxu0
  %v1792 = vadd.f32 0.0, %v1791
  %v1793 = vpop.f32.mrb[0].mxu0
  %v1794 = vpop.f32.mrb[0].mxu0
  %v1795 = vadd.f32 0.0, %v1794
  %v1796 = vpop.f32.mrb[0].mxu0
  %1797 = vmatprep.mubr.bf16.mxu0 %v1270
  %1798 = vmatmul.mubr.bf16.gmra.mrb[0].mxu0 %v935
  %v1799 = vpop.f32.mrb[0].mxu0
  %v1800 = vadd.f32 0.0, %v1799
  %v1801 = vpop.f32.mrb[0].mxu0
  %v1802 = vpop.f32.mrb[0].mxu0
  %v1803 = vadd.f32 0.0, %v1802
  %v1804 = vpop.f32.mrb[0].mxu0
  %1805 = vmatprep.mubr.bf16.mxu0 %v1273
  %1806 = vmatmul.mubr.bf16.gmra.mrb[0].mxu0 %v937
  %v1807 = vpop.f32.mrb[0].mxu0
  %v1808 = vadd.f32 0.0, %v1807
  %v1809 = vpop.f32.mrb[0].mxu0
  %v1810 = vpop.f32.mrb[0].mxu0
  %v1811 = vadd.f32 0.0, %v1810
  %v1812 = vpop.f32.mrb[0].mxu0
  %1813 = vmatprep.mubr.bf16.mxu0 %v1276
  %1814 = vmatmul.mubr.bf16.gmra.mrb[0].mxu0 %v939
  %v1815 = vpop.f32.mrb[0].mxu0
  %v1816 = vadd.f32 0.0, %v1815
  %v1817 = vpop.f32.mrb[0].mxu0
  %v1818 = vpop.f32.mrb[0].mxu0
  %v1819 = vadd.f32 0.0, %v1818
  %v1820 = vpop.f32.mrb[0].mxu0
  %1821 = vmatprep.mubr.bf16.mxu0 %v1279
  %1822 = vmatmul.mubr.bf16.gmra.mrb[0].mxu0 %v941
  %v1823 = vpop.f32.mrb[0].mxu0
  %v1824 = vadd.f32 0.0, %v1823
  %v1825 = vpop.f32.mrb[0].mxu0
  %v1826 = vpop.f32.mrb[0].mxu0
  %v1827 = vadd.f32 0.0, %v1826
  %v1828 = vpop.f32.mrb[0].mxu0
  %1829 = vdwg.mxu0
  %v1830 = vadd.f32 %v148, %v1320
  %v1831 = vadd.f32 %v149, %v1323
  %v1832 = vadd.f32 %v150, %v1328
  %v1833 = vadd.f32 %v151, %v1331
  %v1834 = vadd.f32 %v152, %v1336
  %v1835 = vadd.f32 %v153, %v1339
  %v1836 = vadd.f32 %v154, %v1344
  %v1837 = vadd.f32 %v155, %v1347
  %v1838 = vadd.f32 %v156, %v1352
  %v1839 = vadd.f32 %v157, %v1355
  %v1840 = vadd.f32 %v158, %v1360
  %v1841 = vadd.f32 %v159, %v1363
  %v1842 = vadd.f32 %v160, %v1368
  %v1843 = vadd.f32 %v161, %v1371
  %v1844 = vadd.f32 %v162, %v1376
  %v1845 = vadd.f32 %v163, %v1379
  %v1846 = vadd.f32 %v164, %v1384
  %v1847 = vadd.f32 %v165, %v1387
  %v1848 = vadd.f32 %v166, %v1392
  %v1849 = vadd.f32 %v167, %v1395
  %v1850 = vadd.f32 %v168, %v1400
  %v1851 = vadd.f32 %v169, %v1403
  %v1852 = vadd.f32 %v170, %v1408
  %v1853 = vadd.f32 %v171, %v1411
  %v1854 = vadd.f32 %v172, %v1416
  %v1855 = vadd.f32 %v173, %v1419
  %v1856 = vadd.f32 %v174, %v1424
  %v1857 = vadd.f32 %v175, %v1427
  %v1858 = vadd.f32 %v176, %v1432
  %v1859 = vadd.f32 %v177, %v1435
  %v1860 = vadd.f32 %v178, %v1440
  %v1861 = vadd.f32 %v179, %v1443
  %v1862 = vadd.f32 %v180, %v1448
  %v1863 = vadd.f32 %v181, %v1451
  %v1864 = vadd.f32 %v182, %v1456
  %v1865 = vadd.f32 %v183, %v1459
  %v1866 = vadd.f32 %v184, %v1464
  %v1867 = vadd.f32 %v185, %v1467
  %v1868 = vadd.f32 %v186, %v1472
  %v1869 = vadd.f32 %v187, %v1475
  %v1870 = vadd.f32 %v188, %v1480
  %v1871 = vadd.f32 %v189, %v1483
  %v1872 = vadd.f32 %v190, %v1488
  %v1873 = vadd.f32 %v191, %v1491
  %v1874 = vadd.f32 %v192, %v1496
  %v1875 = vadd.f32 %v193, %v1499
  %v1876 = vadd.f32 %v194, %v1504
  %v1877 = vadd.f32 %v195, %v1507
  %v1878 = vadd.f32 %v196, %v1512
  %v1879 = vadd.f32 %v197, %v1515
  %v1880 = vadd.f32 %v198, %v1520
  %v1881 = vadd.f32 %v199, %v1523
  %v1882 = vadd.f32 %v200, %v1528
  %v1883 = vadd.f32 %v201, %v1531
  %v1884 = vadd.f32 %v202, %v1536
  %v1885 = vadd.f32 %v203, %v1539
  %v1886 = vadd.f32 %v204, %v1544
  %v1887 = vadd.f32 %v205, %v1547
  %v1888 = vadd.f32 %v206, %v1552
  %v1889 = vadd.f32 %v207, %v1555
  %v1890 = vadd.f32 %v208, %v1560
  %v1891 = vadd.f32 %v209, %v1563
  %v1892 = vadd.f32 %v210, %v1568
  %v1893 = vadd.f32 %v211, %v1571
  %v1894 = vadd.f32 %v212, %v1576
  %v1895 = vadd.f32 %v213, %v1579
  %v1896 = vadd.f32 %v214, %v1584
  %v1897 = vadd.f32 %v215, %v1587
  %v1898 = vadd.f32 %v216, %v1592
  %v1899 = vadd.f32 %v217, %v1595
  %v1900 = vadd.f32 %v218, %v1600
  %v1901 = vadd.f32 %v219, %v1603
  %v1902 = vadd.f32 %v220, %v1608
  %v1903 = vadd.f32 %v221, %v1611
  %v1904 = vadd.f32 %v222, %v1616
  %v1905 = vadd.f32 %v223, %v1619
  %v1906 = vadd.f32 %v224, %v1624
  %v1907 = vadd.f32 %v225, %v1627
  %v1908 = vadd.f32 %v226, %v1632
  %v1909 = vadd.f32 %v227, %v1635
  %v1910 = vadd.f32 %v228, %v1640
  %v1911 = vadd.f32 %v229, %v1643
  %v1912 = vadd.f32 %v230, %v1648
  %v1913 = vadd.f32 %v231, %v1651
  %v1914 = vadd.f32 %v232, %v1656
  %v1915 = vadd.f32 %v233, %v1659
  %v1916 = vadd.f32 %v234, %v1664
  %v1917 = vadd.f32 %v235, %v1667
  %v1918 = vadd.f32 %v236, %v1672
  %v1919 = vadd.f32 %v237, %v1675
  %v1920 = vadd.f32 %v238, %v1680
  %v1921 = vadd.f32 %v239, %v1683
  %v1922 = vadd.f32 %v240, %v1688
  %v1923 = vadd.f32 %v241, %v1691
  %v1924 = vadd.f32 %v242, %v1696
  %v1925 = vadd.f32 %v243, %v1699
  %v1926 = vadd.f32 %v244, %v1704
  %v1927 = vadd.f32 %v245, %v1707
  %v1928 = vadd.f32 %v246, %v1712
  %v1929 = vadd.f32 %v247, %v1715
  %v1930 = vadd.f32 %v248, %v1720
  %v1931 = vadd.f32 %v249, %v1723
  %v1932 = vadd.f32 %v250, %v1728
  %v1933 = vadd.f32 %v251, %v1731
  %v1934 = vadd.f32 %v252, %v1736
  %v1935 = vadd.f32 %v253, %v1739
  %v1936 = vadd.f32 %v254, %v1744
  %v1937 = vadd.f32 %v255, %v1747
  %v1938 = vadd.f32 %v256, %v1752
  %v1939 = vadd.f32 %v257, %v1755
  %v1940 = vadd.f32 %v258, %v1760
  %v1941 = vadd.f32 %v259, %v1763
  %v1942 = vadd.f32 %v260, %v1768
  %v1943 = vadd.f32 %v261, %v1771
  %v1944 = vadd.f32 %v262, %v1776
  %v1945 = vadd.f32 %v263, %v1779
  %v1946 = vadd.f32 %v264, %v1784
  %v1947 = vadd.f32 %v265, %v1787
  %v1948 = vadd.f32 %v266, %v1792
  %v1949 = vadd.f32 %v267, %v1795
  %v1950 = vadd.f32 %v268, %v1800
  %v1951 = vadd.f32 %v269, %v1803
  %v1952 = vadd.f32 %v270, %v1808
  %v1953 = vadd.f32 %v271, %v1811
  %v1954 = vadd.f32 %v272, %v1816
  %v1955 = vadd.f32 %v273, %v1819
  %v1956 = vadd.f32 %v274, %v1824
  %v1957 = vadd.f32 %v275, %v1827
  %vm1958 = vcmask 64512
  %1959 = vst.msk [vmem:[#allocation2] sm:$0xff] %vm1958, %v1830
  %1960 = vst.msk [vmem:[#allocation2 + $0x8] sm:$0xff] %vm1958, %v1831
  %1961 = vst.msk [vmem:[#allocation2 + $0x10] sm:$0xff] %vm1958, %v1832
  %1962 = vst.msk [vmem:[#allocation2 + $0x18] sm:$0xff] %vm1958, %v1833
  %1963 = vst.msk [vmem:[#allocation2 + $0x20] sm:$0xff] %vm1958, %v1834
  %1964 = vst.msk [vmem:[#allocation2 + $0x28] sm:$0xff] %vm1958, %v1835
  %1965 = vst.msk [vmem:[#allocation2 + $0x30] sm:$0xff] %vm1958, %v1836
  %1966 = vst.msk [vmem:[#allocation2 + $0x38] sm:$0xff] %vm1958, %v1837
  %1967 = vst.msk [vmem:[#allocation2 + $0x40] sm:$0xff] %vm1958, %v1838
  %1968 = vst.msk [vmem:[#allocation2 + $0x48] sm:$0xff] %vm1958, %v1839
  %1969 = vst.msk [vmem:[#allocation2 + $0x50] sm:$0xff] %vm1958, %v1840
  %1970 = vst.msk [vmem:[#allocation2 + $0x58] sm:$0xff] %vm1958, %v1841
  %1971 = vst.msk [vmem:[#allocation2 + $0x60] sm:$0xff] %vm1958, %v1842
  %1972 = vst.msk [vmem:[#allocation2 + $0x68] sm:$0xff] %vm1958, %v1843
  %1973 = vst.msk [vmem:[#allocation2 + $0x70] sm:$0xff] %vm1958, %v1844
  %1974 = vst.msk [vmem:[#allocation2 + $0x78] sm:$0xff] %vm1958, %v1845
  %1975 = vst.msk [vmem:[#allocation2 + $0x80] sm:$0xff] %vm1958, %v1846
  %1976 = vst.msk [vmem:[#allocation2 + $0x88] sm:$0xff] %vm1958, %v1847
  %1977 = vst.msk [vmem:[#allocation2 + $0x90] sm:$0xff] %vm1958, %v1848
  %1978 = vst.msk [vmem:[#allocation2 + $0x98] sm:$0xff] %vm1958, %v1849
  %1979 = vst.msk [vmem:[#allocation2 + $0xa0] sm:$0xff] %vm1958, %v1850
  %1980 = vst.msk [vmem:[#allocation2 + $0xa8] sm:$0xff] %vm1958, %v1851
  %1981 = vst.msk [vmem:[#allocation2 + $0xb0] sm:$0xff] %vm1958, %v1852
  %1982 = vst.msk [vmem:[#allocation2 + $0xb8] sm:$0xff] %vm1958, %v1853
  %1983 = vst.msk [vmem:[#allocation2 + $0xc0] sm:$0xff] %vm1958, %v1854
  %1984 = vst.msk [vmem:[#allocation2 + $0xc8] sm:$0xff] %vm1958, %v1855
  %1985 = vst.msk [vmem:[#allocation2 + $0xd0] sm:$0xff] %vm1958, %v1856
  %1986 = vst.msk [vmem:[#allocation2 + $0xd8] sm:$0xff] %vm1958, %v1857
  %1987 = vst.msk [vmem:[#allocation2 + $0xe0] sm:$0xff] %vm1958, %v1858
  %1988 = vst.msk [vmem:[#allocation2 + $0xe8] sm:$0xff] %vm1958, %v1859
  %1989 = vst.msk [vmem:[#allocation2 + $0xf0] sm:$0xff] %vm1958, %v1860
  %1990 = vst.msk [vmem:[#allocation2 + $0xf8] sm:$0xff] %vm1958, %v1861
  %1991 = vst.msk [vmem:[#allocation2 + $0x100] sm:$0xff] %vm1958, %v1862
  %1992 = vst.msk [vmem:[#allocation2 + $0x108] sm:$0xff] %vm1958, %v1863
  %1993 = vst.msk [vmem:[#allocation2 + $0x110] sm:$0xff] %vm1958, %v1864
  %1994 = vst.msk [vmem:[#allocation2 + $0x118] sm:$0xff] %vm1958, %v1865
  %1995 = vst.msk [vmem:[#allocation2 + $0x120] sm:$0xff] %vm1958, %v1866
  %1996 = vst.msk [vmem:[#allocation2 + $0x128] sm:$0xff] %vm1958, %v1867
  %1997 = vst.msk [vmem:[#allocation2 + $0x130] sm:$0xff] %vm1958, %v1868
  %1998 = vst.msk [vmem:[#allocation2 + $0x138] sm:$0xff] %vm1958, %v1869
  %1999 = vst.msk [vmem:[#allocation2 + $0x140] sm:$0xff] %vm1958, %v1870
  %2000 = vst.msk [vmem:[#allocation2 + $0x148] sm:$0xff] %vm1958, %v1871
  %2001 = vst.msk [vmem:[#allocation2 + $0x150] sm:$0xff] %vm1958, %v1872
  %2002 = vst.msk [vmem:[#allocation2 + $0x158] sm:$0xff] %vm1958, %v1873
  %2003 = vst.msk [vmem:[#allocation2 + $0x160] sm:$0xff] %vm1958, %v1874
  %2004 = vst.msk [vmem:[#allocation2 + $0x168] sm:$0xff] %vm1958, %v1875
  %2005 = vst.msk [vmem:[#allocation2 + $0x170] sm:$0xff] %vm1958, %v1876
  %2006 = vst.msk [vmem:[#allocation2 + $0x178] sm:$0xff] %vm1958, %v1877
  %2007 = vst.msk [vmem:[#allocation2 + $0x180] sm:$0xff] %vm1958, %v1878
  %2008 = vst.msk [vmem:[#allocation2 + $0x188] sm:$0xff] %vm1958, %v1879
  %2009 = vst.msk [vmem:[#allocation2 + $0x190] sm:$0xff] %vm1958, %v1880
  %2010 = vst.msk [vmem:[#allocation2 + $0x198] sm:$0xff] %vm1958, %v1881
  %2011 = vst.msk [vmem:[#allocation2 + $0x1a0] sm:$0xff] %vm1958, %v1882
  %2012 = vst.msk [vmem:[#allocation2 + $0x1a8] sm:$0xff] %vm1958, %v1883
  %2013 = vst.msk [vmem:[#allocation2 + $0x1b0] sm:$0xff] %vm1958, %v1884
  %2014 = vst.msk [vmem:[#allocation2 + $0x1b8] sm:$0xff] %vm1958, %v1885
  %2015 = vst.msk [vmem:[#allocation2 + $0x1c0] sm:$0xff] %vm1958, %v1886
  %2016 = vst.msk [vmem:[#allocation2 + $0x1c8] sm:$0xff] %vm1958, %v1887
  %2017 = vst.msk [vmem:[#allocation2 + $0x1d0] sm:$0xff] %vm1958, %v1888
  %2018 = vst.msk [vmem:[#allocation2 + $0x1d8] sm:$0xff] %vm1958, %v1889
  %2019 = vst.msk [vmem:[#allocation2 + $0x1e0] sm:$0xff] %vm1958, %v1890
  %2020 = vst.msk [vmem:[#allocation2 + $0x1e8] sm:$0xff] %vm1958, %v1891
  %2021 = vst.msk [vmem:[#allocation2 + $0x1f0] sm:$0xff] %vm1958, %v1892
  %2022 = vst.msk [vmem:[#allocation2 + $0x1f8] sm:$0xff] %vm1958, %v1893
  %2023 = vst.msk [vmem:[#allocation2 + $0x200] sm:$0xff] %vm1958, %v1894
  %2024 = vst.msk [vmem:[#allocation2 + $0x208] sm:$0xff] %vm1958, %v1895
  %2025 = vst.msk [vmem:[#allocation2 + $0x210] sm:$0xff] %vm1958, %v1896
  %2026 = vst.msk [vmem:[#allocation2 + $0x218] sm:$0xff] %vm1958, %v1897
  %2027 = vst.msk [vmem:[#allocation2 + $0x220] sm:$0xff] %vm1958, %v1898
  %2028 = vst.msk [vmem:[#allocation2 + $0x228] sm:$0xff] %vm1958, %v1899
  %2029 = vst.msk [vmem:[#allocation2 + $0x230] sm:$0xff] %vm1958, %v1900
  %2030 = vst.msk [vmem:[#allocation2 + $0x238] sm:$0xff] %vm1958, %v1901
  %2031 = vst.msk [vmem:[#allocation2 + $0x240] sm:$0xff] %vm1958, %v1902
  %2032 = vst.msk [vmem:[#allocation2 + $0x248] sm:$0xff] %vm1958, %v1903
  %2033 = vst.msk [vmem:[#allocation2 + $0x250] sm:$0xff] %vm1958, %v1904
  %2034 = vst.msk [vmem:[#allocation2 + $0x258] sm:$0xff] %vm1958, %v1905
  %2035 = vst.msk [vmem:[#allocation2 + $0x260] sm:$0xff] %vm1958, %v1906
  %2036 = vst.msk [vmem:[#allocation2 + $0x268] sm:$0xff] %vm1958, %v1907
  %2037 = vst.msk [vmem:[#allocation2 + $0x270] sm:$0xff] %vm1958, %v1908
  %2038 = vst.msk [vmem:[#allocation2 + $0x278] sm:$0xff] %vm1958, %v1909
  %2039 = vst.msk [vmem:[#allocation2 + $0x280] sm:$0xff] %vm1958, %v1910
  %2040 = vst.msk [vmem:[#allocation2 + $0x288] sm:$0xff] %vm1958, %v1911
  %2041 = vst.msk [vmem:[#allocation2 + $0x290] sm:$0xff] %vm1958, %v1912
  %2042 = vst.msk [vmem:[#allocation2 + $0x298] sm:$0xff] %vm1958, %v1913
  %2043 = vst.msk [vmem:[#allocation2 + $0x2a0] sm:$0xff] %vm1958, %v1914
  %2044 = vst.msk [vmem:[#allocation2 + $0x2a8] sm:$0xff] %vm1958, %v1915
  %2045 = vst.msk [vmem:[#allocation2 + $0x2b0] sm:$0xff] %vm1958, %v1916
  %2046 = vst.msk [vmem:[#allocation2 + $0x2b8] sm:$0xff] %vm1958, %v1917
  %2047 = vst.msk [vmem:[#allocation2 + $0x2c0] sm:$0xff] %vm1958, %v1918
  %2048 = vst.msk [vmem:[#allocation2 + $0x2c8] sm:$0xff] %vm1958, %v1919
  %2049 = vst.msk [vmem:[#allocation2 + $0x2d0] sm:$0xff] %vm1958, %v1920
  %2050 = vst.msk [vmem:[#allocation2 + $0x2d8] sm:$0xff] %vm1958, %v1921
  %2051 = vst.msk [vmem:[#allocation2 + $0x2e0] sm:$0xff] %vm1958, %v1922
  %2052 = vst.msk [vmem:[#allocation2 + $0x2e8] sm:$0xff] %vm1958, %v1923
  %2053 = vst.msk [vmem:[#allocation2 + $0x2f0] sm:$0xff] %vm1958, %v1924
  %2054 = vst.msk [vmem:[#allocation2 + $0x2f8] sm:$0xff] %vm1958, %v1925
  %2055 = vst.msk [vmem:[#allocation2 + $0x300] sm:$0xff] %vm1958, %v1926
  %2056 = vst.msk [vmem:[#allocation2 + $0x308] sm:$0xff] %vm1958, %v1927
  %2057 = vst.msk [vmem:[#allocation2 + $0x310] sm:$0xff] %vm1958, %v1928
  %2058 = vst.msk [vmem:[#allocation2 + $0x318] sm:$0xff] %vm1958, %v1929
  %2059 = vst.msk [vmem:[#allocation2 + $0x320] sm:$0xff] %vm1958, %v1930
  %2060 = vst.msk [vmem:[#allocation2 + $0x328] sm:$0xff] %vm1958, %v1931
  %2061 = vst.msk [vmem:[#allocation2 + $0x330] sm:$0xff] %vm1958, %v1932
  %2062 = vst.msk [vmem:[#allocation2 + $0x338] sm:$0xff] %vm1958, %v1933
  %2063 = vst.msk [vmem:[#allocation2 + $0x340] sm:$0xff] %vm1958, %v1934
  %2064 = vst.msk [vmem:[#allocation2 + $0x348] sm:$0xff] %vm1958, %v1935
  %2065 = vst.msk [vmem:[#allocation2 + $0x350] sm:$0xff] %vm1958, %v1936
  %2066 = vst.msk [vmem:[#allocation2 + $0x358] sm:$0xff] %vm1958, %v1937
  %2067 = vst.msk [vmem:[#allocation2 + $0x360] sm:$0xff] %vm1958, %v1938
  %2068 = vst.msk [vmem:[#allocation2 + $0x368] sm:$0xff] %vm1958, %v1939
  %2069 = vst.msk [vmem:[#allocation2 + $0x370] sm:$0xff] %vm1958, %v1940
  %2070 = vst.msk [vmem:[#allocation2 + $0x378] sm:$0xff] %vm1958, %v1941
  %2071 = vst.msk [vmem:[#allocation2 + $0x380] sm:$0xff] %vm1958, %v1942
  %2072 = vst.msk [vmem:[#allocation2 + $0x388] sm:$0xff] %vm1958, %v1943
  %2073 = vst.msk [vmem:[#allocation2 + $0x390] sm:$0xff] %vm1958, %v1944
  %2074 = vst.msk [vmem:[#allocation2 + $0x398] sm:$0xff] %vm1958, %v1945
  %2075 = vst.msk [vmem:[#allocation2 + $0x3a0] sm:$0xff] %vm1958, %v1946
  %2076 = vst.msk [vmem:[#allocation2 + $0x3a8] sm:$0xff] %vm1958, %v1947
  %2077 = vst.msk [vmem:[#allocation2 + $0x3b0] sm:$0xff] %vm1958, %v1948
  %2078 = vst.msk [vmem:[#allocation2 + $0x3b8] sm:$0xff] %vm1958, %v1949
  %2079 = vst.msk [vmem:[#allocation2 + $0x3c0] sm:$0xff] %vm1958, %v1950
  %2080 = vst.msk [vmem:[#allocation2 + $0x3c8] sm:$0xff] %vm1958, %v1951
  %2081 = vst.msk [vmem:[#allocation2 + $0x3d0] sm:$0xff] %vm1958, %v1952
  %2082 = vst.msk [vmem:[#allocation2 + $0x3d8] sm:$0xff] %vm1958, %v1953
  %2083 = vst.msk [vmem:[#allocation2 + $0x3e0] sm:$0xff] %vm1958, %v1954
  %2084 = vst.msk [vmem:[#allocation2 + $0x3e8] sm:$0xff] %vm1958, %v1955
  %2085 = vst.msk [vmem:[#allocation2 + $0x3f0] sm:$0xff] %vm1958, %v1956
  %2086 = vst.msk [vmem:[#allocation2 + $0x3f8] sm:$0xff] %vm1958, %v1957
  // Predicated region
  $region14: #{net_up_block_di_forward.10} parent=0 // pred_check
    %p2087 = pneg %p15
  $region15: #{net_up_block_di_forward.10} parent=0 // pred_check_branch
    %2089 = sbr.rel (%p2087) target = $region17
  $region16: #{net_up_block_di_forward.10} parent=0 // pred_region
    %v2090 = vld [vmem:[#allocation2] sm:$0xff]
    %v2091 = vld [vmem:[#allocation2 + $0x8] sm:$0xff]
    %v2092 = vld [vmem:[#allocation2 + $0x10] sm:$0xff]
    %v2093 = vld [vmem:[#allocation2 + $0x18] sm:$0xff]
    %v2094 = vld [vmem:[#allocation2 + $0x20] sm:$0xff]
    %v2095 = vld [vmem:[#allocation2 + $0x28] sm:$0xff]
    %v2096 = vld [vmem:[#allocation2 + $0x30] sm:$0xff]
    %v2097 = vld [vmem:[#allocation2 + $0x38] sm:$0xff]
    %v2098 = vld [vmem:[#allocation2 + $0x40] sm:$0xff]
    %v2099 = vld [vmem:[#allocation2 + $0x48] sm:$0xff]
    %v2100 = vld [vmem:[#allocation2 + $0x50] sm:$0xff]
    %v2101 = vld [vmem:[#allocation2 + $0x58] sm:$0xff]
    %v2102 = vld [vmem:[#allocation2 + $0x60] sm:$0xff]
    %v2103 = vld [vmem:[#allocation2 + $0x68] sm:$0xff]
    %v2104 = vld [vmem:[#allocation2 + $0x70] sm:$0xff]
    %v2105 = vld [vmem:[#allocation2 + $0x78] sm:$0xff]
    %v2106 = vld [vmem:[#allocation2 + $0x80] sm:$0xff]
    %v2107 = vld [vmem:[#allocation2 + $0x88] sm:$0xff]
    %v2108 = vld [vmem:[#allocation2 + $0x90] sm:$0xff]
    %v2109 = vld [vmem:[#allocation2 + $0x98] sm:$0xff]
    %v2110 = vld [vmem:[#allocation2 + $0xa0] sm:$0xff]
    %v2111 = vld [vmem:[#allocation2 + $0xa8] sm:$0xff]
    %v2112 = vld [vmem:[#allocation2 + $0xb0] sm:$0xff]
    %v2113 = vld [vmem:[#allocation2 + $0xb8] sm:$0xff]
    %v2114 = vld [vmem:[#allocation2 + $0xc0] sm:$0xff]
    %v2115 = vld [vmem:[#allocation2 + $0xc8] sm:$0xff]
    %v2116 = vld [vmem:[#allocation2 + $0xd0] sm:$0xff]
    %v2117 = vld [vmem:[#allocation2 + $0xd8] sm:$0xff]
    %v2118 = vld [vmem:[#allocation2 + $0xe0] sm:$0xff]
    %v2119 = vld [vmem:[#allocation2 + $0xe8] sm:$0xff]
    %v2120 = vld [vmem:[#allocation2 + $0xf0] sm:$0xff]
    %v2121 = vld [vmem:[#allocation2 + $0xf8] sm:$0xff]
    %v2122 = vld [vmem:[#allocation2 + $0x100] sm:$0xff]
    %v2123 = vld [vmem:[#allocation2 + $0x108] sm:$0xff]
    %v2124 = vld [vmem:[#allocation2 + $0x110] sm:$0xff]
    %v2125 = vld [vmem:[#allocation2 + $0x118] sm:$0xff]
    %v2126 = vld [vmem:[#allocation2 + $0x120] sm:$0xff]
    %v2127 = vld [vmem:[#allocation2 + $0x128] sm:$0xff]
    %v2128 = vld [vmem:[#allocation2 + $0x130] sm:$0xff]
    %v2129 = vld [vmem:[#allocation2 + $0x138] sm:$0xff]
    %v2130 = vld [vmem:[#allocation2 + $0x140] sm:$0xff]
    %v2131 = vld [vmem:[#allocation2 + $0x148] sm:$0xff]
    %v2132 = vld [vmem:[#allocation2 + $0x150] sm:$0xff]
    %v2133 = vld [vmem:[#allocation2 + $0x158] sm:$0xff]
    %v2134 = vld [vmem:[#allocation2 + $0x160] sm:$0xff]
    %v2135 = vld [vmem:[#allocation2 + $0x168] sm:$0xff]
    %v2136 = vld [vmem:[#allocation2 + $0x170] sm:$0xff]
    %v2137 = vld [vmem:[#allocation2 + $0x178] sm:$0xff]
    %v2138 = vld [vmem:[#allocation2 + $0x180] sm:$0xff]
    %v2139 = vld [vmem:[#allocation2 + $0x188] sm:$0xff]
    %v2140 = vld [vmem:[#allocation2 + $0x190] sm:$0xff]
    %v2141 = vld [vmem:[#allocation2 + $0x198] sm:$0xff]
    %v2142 = vld [vmem:[#allocation2 + $0x1a0] sm:$0xff]
    %v2143 = vld [vmem:[#allocation2 + $0x1a8] sm:$0xff]
    %v2144 = vld [vmem:[#allocation2 + $0x1b0] sm:$0xff]
    %v2145 = vld [vmem:[#allocation2 + $0x1b8] sm:$0xff]
    %v2146 = vld [vmem:[#allocation2 + $0x1c0] sm:$0xff]
    %v2147 = vld [vmem:[#allocation2 + $0x1c8] sm:$0xff]
    %v2148 = vld [vmem:[#allocation2 + $0x1d0] sm:$0xff]
    %v2149 = vld [vmem:[#allocation2 + $0x1d8] sm:$0xff]
    %v2150 = vld [vmem:[#allocation2 + $0x1e0] sm:$0xff]
    %v2151 = vld [vmem:[#allocation2 + $0x1e8] sm:$0xff]
    %v2152 = vld [vmem:[#allocation2 + $0x1f0] sm:$0xff]
    %v2153 = vld [vmem:[#allocation2 + $0x1f8] sm:$0xff]
    %v2154 = vld [vmem:[#allocation2 + $0x200] sm:$0xff]
    %v2155 = vld [vmem:[#allocation2 + $0x208] sm:$0xff]
    %v2156 = vld [vmem:[#allocation2 + $0x210] sm:$0xff]
    %v2157 = vld [vmem:[#allocation2 + $0x218] sm:$0xff]
    %v2158 = vld [vmem:[#allocation2 + $0x220] sm:$0xff]
    %v2159 = vld [vmem:[#allocation2 + $0x228] sm:$0xff]
    %v2160 = vld [vmem:[#allocation2 + $0x230] sm:$0xff]
    %v2161 = vld [vmem:[#allocation2 + $0x238] sm:$0xff]
    %v2162 = vld [vmem:[#allocation2 + $0x240] sm:$0xff]
    %v2163 = vld [vmem:[#allocation2 + $0x248] sm:$0xff]
    %v2164 = vld [vmem:[#allocation2 + $0x250] sm:$0xff]
    %v2165 = vld [vmem:[#allocation2 + $0x258] sm:$0xff]
    %v2166 = vld [vmem:[#allocation2 + $0x260] sm:$0xff]
    %v2167 = vld [vmem:[#allocation2 + $0x268] sm:$0xff]
    %v2168 = vld [vmem:[#allocation2 + $0x270] sm:$0xff]
    %v2169 = vld [vmem:[#allocation2 + $0x278] sm:$0xff]
    %v2170 = vld [vmem:[#allocation2 + $0x280] sm:$0xff]
    %v2171 = vld [vmem:[#allocation2 + $0x288] sm:$0xff]
    %v2172 = vld [vmem:[#allocation2 + $0x290] sm:$0xff]
    %v2173 = vld [vmem:[#allocation2 + $0x298] sm:$0xff]
    %v2174 = vld [vmem:[#allocation2 + $0x2a0] sm:$0xff]
    %v2175 = vld [vmem:[#allocation2 + $0x2a8] sm:$0xff]
    %v2176 = vld [vmem:[#allocation2 + $0x2b0] sm:$0xff]
    %v2177 = vld [vmem:[#allocation2 + $0x2b8] sm:$0xff]
    %v2178 = vld [vmem:[#allocation2 + $0x2c0] sm:$0xff]
    %v2179 = vld [vmem:[#allocation2 + $0x2c8] sm:$0xff]
    %v2180 = vld [vmem:[#allocation2 + $0x2d0] sm:$0xff]
    %v2181 = vld [vmem:[#allocation2 + $0x2d8] sm:$0xff]
    %v2182 = vld [vmem:[#allocation2 + $0x2e0] sm:$0xff]
    %v2183 = vld [vmem:[#allocation2 + $0x2e8] sm:$0xff]
    %v2184 = vld [vmem:[#allocation2 + $0x2f0] sm:$0xff]
    %v2185 = vld [vmem:[#allocation2 + $0x2f8] sm:$0xff]
    %v2186 = vld [vmem:[#allocation2 + $0x300] sm:$0xff]
    %v2187 = vld [vmem:[#allocation2 + $0x308] sm:$0xff]
    %v2188 = vld [vmem:[#allocation2 + $0x310] sm:$0xff]
    %v2189 = vld [vmem:[#allocation2 + $0x318] sm:$0xff]
    %v2190 = vld [vmem:[#allocation2 + $0x320] sm:$0xff]
    %v2191 = vld [vmem:[#allocation2 + $0x328] sm:$0xff]
    %v2192 = vld [vmem:[#allocation2 + $0x330] sm:$0xff]
    %v2193 = vld [vmem:[#allocation2 + $0x338] sm:$0xff]
    %v2194 = vld [vmem:[#allocation2 + $0x340] sm:$0xff]
    %v2195 = vld [vmem:[#allocation2 + $0x348] sm:$0xff]
    %v2196 = vld [vmem:[#allocation2 + $0x350] sm:$0xff]
    %v2197 = vld [vmem:[#allocation2 + $0x358] sm:$0xff]
    %v2198 = vld [vmem:[#allocation2 + $0x360] sm:$0xff]
    %v2199 = vld [vmem:[#allocation2 + $0x368] sm:$0xff]
    %v2200 = vld [vmem:[#allocation2 + $0x370] sm:$0xff]
    %v2201 = vld [vmem:[#allocation2 + $0x378] sm:$0xff]
    %v2202 = vld [vmem:[#allocation2 + $0x380] sm:$0xff]
    %v2203 = vld [vmem:[#allocation2 + $0x388] sm:$0xff]
    %v2204 = vld [vmem:[#allocation2 + $0x390] sm:$0xff]
    %v2205 = vld [vmem:[#allocation2 + $0x398] sm:$0xff]
    %v2206 = vld [vmem:[#allocation2 + $0x3a0] sm:$0xff]
    %v2207 = vld [vmem:[#allocation2 + $0x3a8] sm:$0xff]
    %v2208 = vld [vmem:[#allocation2 + $0x3b0] sm:$0xff]
    %v2209 = vld [vmem:[#allocation2 + $0x3b8] sm:$0xff]
    %v2210 = vld [vmem:[#allocation2 + $0x3c0] sm:$0xff]
    %v2211 = vld [vmem:[#allocation2 + $0x3c8] sm:$0xff]
    %v2212 = vld [vmem:[#allocation2 + $0x3d0] sm:$0xff]
    %v2213 = vld [vmem:[#allocation2 + $0x3d8] sm:$0xff]
    %v2214 = vld [vmem:[#allocation2 + $0x3e0] sm:$0xff]
    %v2215 = vld [vmem:[#allocation2 + $0x3e8] sm:$0xff]
    %v2216 = vld [vmem:[#allocation2 + $0x3f0] sm:$0xff]
    %v2217 = vld [vmem:[#allocation2 + $0x3f8] sm:$0xff]
    %2218 = vst.msk [vmem:[%s2] sm:$0xff] %vm1958, %v2090
    %2219 = vst.msk [vmem:[%s2 + $0x8] sm:$0xff] %vm1958, %v2091
    %2220 = vst.msk [vmem:[%s2 + $0x10] sm:$0xff] %vm1958, %v2092
    %2221 = vst.msk [vmem:[%s2 + $0x18] sm:$0xff] %vm1958, %v2093
    %2222 = vst.msk [vmem:[%s2 + $0x20] sm:$0xff] %vm1958, %v2094
    %2223 = vst.msk [vmem:[%s2 + $0x28] sm:$0xff] %vm1958, %v2095
    %2224 = vst.msk [vmem:[%s2 + $0x30] sm:$0xff] %vm1958, %v2096
    %2225 = vst.msk [vmem:[%s2 + $0x38] sm:$0xff] %vm1958, %v2097
    %2226 = vst.msk [vmem:[%s2 + $0x40] sm:$0xff] %vm1958, %v2098
    %2227 = vst.msk [vmem:[%s2 + $0x48] sm:$0xff] %vm1958, %v2099
    %2228 = vst.msk [vmem:[%s2 + $0x50] sm:$0xff] %vm1958, %v2100
    %2229 = vst.msk [vmem:[%s2 + $0x58] sm:$0xff] %vm1958, %v2101
    %2230 = vst.msk [vmem:[%s2 + $0x60] sm:$0xff] %vm1958, %v2102
    %2231 = vst.msk [vmem:[%s2 + $0x68] sm:$0xff] %vm1958, %v2103
    %2232 = vst.msk [vmem:[%s2 + $0x70] sm:$0xff] %vm1958, %v2104
    %2233 = vst.msk [vmem:[%s2 + $0x78] sm:$0xff] %vm1958, %v2105
    %2234 = vst.msk [vmem:[%s2 + $0x80] sm:$0xff] %vm1958, %v2106
    %2235 = vst.msk [vmem:[%s2 + $0x88] sm:$0xff] %vm1958, %v2107
    %2236 = vst.msk [vmem:[%s2 + $0x90] sm:$0xff] %vm1958, %v2108
    %2237 = vst.msk [vmem:[%s2 + $0x98] sm:$0xff] %vm1958, %v2109
    %2238 = vst.msk [vmem:[%s2 + $0xa0] sm:$0xff] %vm1958, %v2110
    %2239 = vst.msk [vmem:[%s2 + $0xa8] sm:$0xff] %vm1958, %v2111
    %2240 = vst.msk [vmem:[%s2 + $0xb0] sm:$0xff] %vm1958, %v2112
    %2241 = vst.msk [vmem:[%s2 + $0xb8] sm:$0xff] %vm1958, %v2113
    %2242 = vst.msk [vmem:[%s2 + $0xc0] sm:$0xff] %vm1958, %v2114
    %2243 = vst.msk [vmem:[%s2 + $0xc8] sm:$0xff] %vm1958, %v2115
    %2244 = vst.msk [vmem:[%s2 + $0xd0] sm:$0xff] %vm1958, %v2116
    %2245 = vst.msk [vmem:[%s2 + $0xd8] sm:$0xff] %vm1958, %v2117
    %2246 = vst.msk [vmem:[%s2 + $0xe0] sm:$0xff] %vm1958, %v2118
    %2247 = vst.msk [vmem:[%s2 + $0xe8] sm:$0xff] %vm1958, %v2119
    %2248 = vst.msk [vmem:[%s2 + $0xf0] sm:$0xff] %vm1958, %v2120
    %2249 = vst.msk [vmem:[%s2 + $0xf8] sm:$0xff] %vm1958, %v2121
    %2250 = vst.msk [vmem:[%s2 + $0x100] sm:$0xff] %vm1958, %v2122
    %2251 = vst.msk [vmem:[%s2 + $0x108] sm:$0xff] %vm1958, %v2123
    %2252 = vst.msk [vmem:[%s2 + $0x110] sm:$0xff] %vm1958, %v2124
    %2253 = vst.msk [vmem:[%s2 + $0x118] sm:$0xff] %vm1958, %v2125
    %2254 = vst.msk [vmem:[%s2 + $0x120] sm:$0xff] %vm1958, %v2126
    %2255 = vst.msk [vmem:[%s2 + $0x128] sm:$0xff] %vm1958, %v2127
    %2256 = vst.msk [vmem:[%s2 + $0x130] sm:$0xff] %vm1958, %v2128
    %2257 = vst.msk [vmem:[%s2 + $0x138] sm:$0xff] %vm1958, %v2129
    %2258 = vst.msk [vmem:[%s2 + $0x140] sm:$0xff] %vm1958, %v2130
    %2259 = vst.msk [vmem:[%s2 + $0x148] sm:$0xff] %vm1958, %v2131
    %2260 = vst.msk [vmem:[%s2 + $0x150] sm:$0xff] %vm1958, %v2132
    %2261 = vst.msk [vmem:[%s2 + $0x158] sm:$0xff] %vm1958, %v2133
    %2262 = vst.msk [vmem:[%s2 + $0x160] sm:$0xff] %vm1958, %v2134
    %2263 = vst.msk [vmem:[%s2 + $0x168] sm:$0xff] %vm1958, %v2135
    %2264 = vst.msk [vmem:[%s2 + $0x170] sm:$0xff] %vm1958, %v2136
    %2265 = vst.msk [vmem:[%s2 + $0x178] sm:$0xff] %vm1958, %v2137
    %2266 = vst.msk [vmem:[%s2 + $0x180] sm:$0xff] %vm1958, %v2138
    %2267 = vst.msk [vmem:[%s2 + $0x188] sm:$0xff] %vm1958, %v2139
    %2268 = vst.msk [vmem:[%s2 + $0x190] sm:$0xff] %vm1958, %v2140
    %2269 = vst.msk [vmem:[%s2 + $0x198] sm:$0xff] %vm1958, %v2141
    %2270 = vst.msk [vmem:[%s2 + $0x1a0] sm:$0xff] %vm1958, %v2142
    %2271 = vst.msk [vmem:[%s2 + $0x1a8] sm:$0xff] %vm1958, %v2143
    %2272 = vst.msk [vmem:[%s2 + $0x1b0] sm:$0xff] %vm1958, %v2144
    %2273 = vst.msk [vmem:[%s2 + $0x1b8] sm:$0xff] %vm1958, %v2145
    %2274 = vst.msk [vmem:[%s2 + $0x1c0] sm:$0xff] %vm1958, %v2146
    %2275 = vst.msk [vmem:[%s2 + $0x1c8] sm:$0xff] %vm1958, %v2147
    %2276 = vst.msk [vmem:[%s2 + $0x1d0] sm:$0xff] %vm1958, %v2148
    %2277 = vst.msk [vmem:[%s2 + $0x1d8] sm:$0xff] %vm1958, %v2149
    %2278 = vst.msk [vmem:[%s2 + $0x1e0] sm:$0xff] %vm1958, %v2150
    %2279 = vst.msk [vmem:[%s2 + $0x1e8] sm:$0xff] %vm1958, %v2151
    %2280 = vst.msk [vmem:[%s2 + $0x1f0] sm:$0xff] %vm1958, %v2152
    %2281 = vst.msk [vmem:[%s2 + $0x1f8] sm:$0xff] %vm1958, %v2153
    %2282 = vst.msk [vmem:[%s2 + $0x200] sm:$0xff] %vm1958, %v2154
    %2283 = vst.msk [vmem:[%s2 + $0x208] sm:$0xff] %vm1958, %v2155
    %2284 = vst.msk [vmem:[%s2 + $0x210] sm:$0xff] %vm1958, %v2156
    %2285 = vst.msk [vmem:[%s2 + $0x218] sm:$0xff] %vm1958, %v2157
    %2286 = vst.msk [vmem:[%s2 + $0x220] sm:$0xff] %vm1958, %v2158
    %2287 = vst.msk [vmem:[%s2 + $0x228] sm:$0xff] %vm1958, %v2159
    %2288 = vst.msk [vmem:[%s2 + $0x230] sm:$0xff] %vm1958, %v2160
    %2289 = vst.msk [vmem:[%s2 + $0x238] sm:$0xff] %vm1958, %v2161
    %2290 = vst.msk [vmem:[%s2 + $0x240] sm:$0xff] %vm1958, %v2162
    %2291 = vst.msk [vmem:[%s2 + $0x248] sm:$0xff] %vm1958, %v2163
    %2292 = vst.msk [vmem:[%s2 + $0x250] sm:$0xff] %vm1958, %v2164
    %2293 = vst.msk [vmem:[%s2 + $0x258] sm:$0xff] %vm1958, %v2165
    %2294 = vst.msk [vmem:[%s2 + $0x260] sm:$0xff] %vm1958, %v2166
    %2295 = vst.msk [vmem:[%s2 + $0x268] sm:$0xff] %vm1958, %v2167
    %2296 = vst.msk [vmem:[%s2 + $0x270] sm:$0xff] %vm1958, %v2168
    %2297 = vst.msk [vmem:[%s2 + $0x278] sm:$0xff] %vm1958, %v2169
    %2298 = vst.msk [vmem:[%s2 + $0x280] sm:$0xff] %vm1958, %v2170
    %2299 = vst.msk [vmem:[%s2 + $0x288] sm:$0xff] %vm1958, %v2171
    %2300 = vst.msk [vmem:[%s2 + $0x290] sm:$0xff] %vm1958, %v2172
    %2301 = vst.msk [vmem:[%s2 + $0x298] sm:$0xff] %vm1958, %v2173
    %2302 = vst.msk [vmem:[%s2 + $0x2a0] sm:$0xff] %vm1958, %v2174
    %2303 = vst.msk [vmem:[%s2 + $0x2a8] sm:$0xff] %vm1958, %v2175
    %2304 = vst.msk [vmem:[%s2 + $0x2b0] sm:$0xff] %vm1958, %v2176
    %2305 = vst.msk [vmem:[%s2 + $0x2b8] sm:$0xff] %vm1958, %v2177
    %2306 = vst.msk [vmem:[%s2 + $0x2c0] sm:$0xff] %vm1958, %v2178
    %2307 = vst.msk [vmem:[%s2 + $0x2c8] sm:$0xff] %vm1958, %v2179
    %2308 = vst.msk [vmem:[%s2 + $0x2d0] sm:$0xff] %vm1958, %v2180
    %2309 = vst.msk [vmem:[%s2 + $0x2d8] sm:$0xff] %vm1958, %v2181
    %2310 = vst.msk [vmem:[%s2 + $0x2e0] sm:$0xff] %vm1958, %v2182
    %2311 = vst.msk [vmem:[%s2 + $0x2e8] sm:$0xff] %vm1958, %v2183
    %2312 = vst.msk [vmem:[%s2 + $0x2f0] sm:$0xff] %vm1958, %v2184
    %2313 = vst.msk [vmem:[%s2 + $0x2f8] sm:$0xff] %vm1958, %v2185
    %2314 = vst.msk [vmem:[%s2 + $0x300] sm:$0xff] %vm1958, %v2186
    %2315 = vst.msk [vmem:[%s2 + $0x308] sm:$0xff] %vm1958, %v2187
    %2316 = vst.msk [vmem:[%s2 + $0x310] sm:$0xff] %vm1958, %v2188
    %2317 = vst.msk [vmem:[%s2 + $0x318] sm:$0xff] %vm1958, %v2189
    %2318 = vst.msk [vmem:[%s2 + $0x320] sm:$0xff] %vm1958, %v2190
    %2319 = vst.msk [vmem:[%s2 + $0x328] sm:$0xff] %vm1958, %v2191
    %2320 = vst.msk [vmem:[%s2 + $0x330] sm:$0xff] %vm1958, %v2192
    %2321 = vst.msk [vmem:[%s2 + $0x338] sm:$0xff] %vm1958, %v2193
    %2322 = vst.msk [vmem:[%s2 + $0x340] sm:$0xff] %vm1958, %v2194
    %2323 = vst.msk [vmem:[%s2 + $0x348] sm:$0xff] %vm1958, %v2195
    %2324 = vst.msk [vmem:[%s2 + $0x350] sm:$0xff] %vm1958, %v2196
    %2325 = vst.msk [vmem:[%s2 + $0x358] sm:$0xff] %vm1958, %v2197
    %2326 = vst.msk [vmem:[%s2 + $0x360] sm:$0xff] %vm1958, %v2198
    %2327 = vst.msk [vmem:[%s2 + $0x368] sm:$0xff] %vm1958, %v2199
    %2328 = vst.msk [vmem:[%s2 + $0x370] sm:$0xff] %vm1958, %v2200
    %2329 = vst.msk [vmem:[%s2 + $0x378] sm:$0xff] %vm1958, %v2201
    %2330 = vst.msk [vmem:[%s2 + $0x380] sm:$0xff] %vm1958, %v2202
    %2331 = vst.msk [vmem:[%s2 + $0x388] sm:$0xff] %vm1958, %v2203
    %2332 = vst.msk [vmem:[%s2 + $0x390] sm:$0xff] %vm1958, %v2204
    %2333 = vst.msk [vmem:[%s2 + $0x398] sm:$0xff] %vm1958, %v2205
    %2334 = vst.msk [vmem:[%s2 + $0x3a0] sm:$0xff] %vm1958, %v2206
    %2335 = vst.msk [vmem:[%s2 + $0x3a8] sm:$0xff] %vm1958, %v2207
    %2336 = vst.msk [vmem:[%s2 + $0x3b0] sm:$0xff] %vm1958, %v2208
    %2337 = vst.msk [vmem:[%s2 + $0x3b8] sm:$0xff] %vm1958, %v2209
    %2338 = vst.msk [vmem:[%s2 + $0x3c0] sm:$0xff] %vm1958, %v2210
    %2339 = vst.msk [vmem:[%s2 + $0x3c8] sm:$0xff] %vm1958, %v2211
    %2340 = vst.msk [vmem:[%s2 + $0x3d0] sm:$0xff] %vm1958, %v2212
    %2341 = vst.msk [vmem:[%s2 + $0x3d8] sm:$0xff] %vm1958, %v2213
    %2342 = vst.msk [vmem:[%s2 + $0x3e0] sm:$0xff] %vm1958, %v2214
    %2343 = vst.msk [vmem:[%s2 + $0x3e8] sm:$0xff] %vm1958, %v2215
    %2344 = vst.msk [vmem:[%s2 + $0x3f0] sm:$0xff] %vm1958, %v2216
    %2345 = vst.msk [vmem:[%s2 + $0x3f8] sm:$0xff] %vm1958, %v2217
    %v2346 = vsel %vm1958, %v2090, 0.0
    %v2347 = vsel %vm1958, %v2091, 0.0
    %v2348 = vadd.f32 %v2346, %v2347
    %v2349 = vsel %vm1958, %v2092, 0.0
    %v2350 = vadd.f32 %v2348, %v2349
    %v2351 = vsel %vm1958, %v2093, 0.0
    %v2352 = vadd.f32 %v2350, %v2351
    %v2353 = vsel %vm1958, %v2094, 0.0
    %v2354 = vadd.f32 %v2352, %v2353
    %v2355 = vsel %vm1958, %v2095, 0.0
    %v2356 = vadd.f32 %v2354, %v2355
    %v2357 = vsel %vm1958, %v2096, 0.0
    %v2358 = vadd.f32 %v2356, %v2357
    %v2359 = vsel %vm1958, %v2097, 0.0
    %v2360 = vadd.f32 %v2358, %v2359
    %v2361 = vsel %vm1958, %v2098, 0.0
    %v2362 = vadd.f32 %v2360, %v2361
    %v2363 = vsel %vm1958, %v2099, 0.0
    %v2364 = vadd.f32 %v2362, %v2363
    %v2365 = vsel %vm1958, %v2100, 0.0
    %v2366 = vadd.f32 %v2364, %v2365
    %v2367 = vsel %vm1958, %v2101, 0.0
    %v2368 = vadd.f32 %v2366, %v2367
    %v2369 = vsel %vm1958, %v2102, 0.0
    %v2370 = vadd.f32 %v2368, %v2369
    %v2371 = vsel %vm1958, %v2103, 0.0
    %v2372 = vadd.f32 %v2370, %v2371
    %v2373 = vsel %vm1958, %v2104, 0.0
    %v2374 = vadd.f32 %v2372, %v2373
    %v2375 = vsel %vm1958, %v2105, 0.0
    %v2376 = vadd.f32 %v2374, %v2375
    %v2377 = vsel %vm1958, %v2106, 0.0
    %v2378 = vadd.f32 %v2376, %v2377
    %v2379 = vsel %vm1958, %v2107, 0.0
    %v2380 = vadd.f32 %v2378, %v2379
    %v2381 = vsel %vm1958, %v2108, 0.0
    %v2382 = vadd.f32 %v2380, %v2381
    %v2383 = vsel %vm1958, %v2109, 0.0
    %v2384 = vadd.f32 %v2382, %v2383
    %v2385 = vsel %vm1958, %v2110, 0.0
    %v2386 = vadd.f32 %v2384, %v2385
    %v2387 = vsel %vm1958, %v2111, 0.0
    %v2388 = vadd.f32 %v2386, %v2387
    %v2389 = vsel %vm1958, %v2112, 0.0
    %v2390 = vadd.f32 %v2388, %v2389
    %v2391 = vsel %vm1958, %v2113, 0.0
    %v2392 = vadd.f32 %v2390, %v2391
    %v2393 = vsel %vm1958, %v2114, 0.0
    %v2394 = vadd.f32 %v2392, %v2393
    %v2395 = vsel %vm1958, %v2115, 0.0
    %v2396 = vadd.f32 %v2394, %v2395
    %v2397 = vsel %vm1958, %v2116, 0.0
    %v2398 = vadd.f32 %v2396, %v2397
    %v2399 = vsel %vm1958, %v2117, 0.0
    %v2400 = vadd.f32 %v2398, %v2399
    %v2401 = vsel %vm1958, %v2118, 0.0
    %v2402 = vadd.f32 %v2400, %v2401
    %v2403 = vsel %vm1958, %v2119, 0.0
    %v2404 = vadd.f32 %v2402, %v2403
    %v2405 = vsel %vm1958, %v2120, 0.0
    %v2406 = vadd.f32 %v2404, %v2405
    %v2407 = vsel %vm1958, %v2121, 0.0
    %v2408 = vadd.f32 %v2406, %v2407
    %v2409 = vsel %vm1958, %v2122, 0.0
    %v2410 = vadd.f32 %v2408, %v2409
    %v2411 = vsel %vm1958, %v2123, 0.0
    %v2412 = vadd.f32 %v2410, %v2411
    %v2413 = vsel %vm1958, %v2124, 0.0
    %v2414 = vadd.f32 %v2412, %v2413
    %v2415 = vsel %vm1958, %v2125, 0.0
    %v2416 = vadd.f32 %v2414, %v2415
    %v2417 = vsel %vm1958, %v2126, 0.0
    %v2418 = vadd.f32 %v2416, %v2417
    %v2419 = vsel %vm1958, %v2127, 0.0
    %v2420 = vadd.f32 %v2418, %v2419
    %v2421 = vsel %vm1958, %v2128, 0.0
    %v2422 = vadd.f32 %v2420, %v2421
    %v2423 = vsel %vm1958, %v2129, 0.0
    %v2424 = vadd.f32 %v2422, %v2423
    %v2425 = vsel %vm1958, %v2130, 0.0
    %v2426 = vadd.f32 %v2424, %v2425
    %v2427 = vsel %vm1958, %v2131, 0.0
    %v2428 = vadd.f32 %v2426, %v2427
    %v2429 = vsel %vm1958, %v2132, 0.0
    %v2430 = vadd.f32 %v2428, %v2429
    %v2431 = vsel %vm1958, %v2133, 0.0
    %v2432 = vadd.f32 %v2430, %v2431
    %v2433 = vsel %vm1958, %v2134, 0.0
    %v2434 = vadd.f32 %v2432, %v2433
    %v2435 = vsel %vm1958, %v2135, 0.0
    %v2436 = vadd.f32 %v2434, %v2435
    %v2437 = vsel %vm1958, %v2136, 0.0
    %v2438 = vadd.f32 %v2436, %v2437
    %v2439 = vsel %vm1958, %v2137, 0.0
    %v2440 = vadd.f32 %v2438, %v2439
    %v2441 = vsel %vm1958, %v2138, 0.0
    %v2442 = vadd.f32 %v2440, %v2441
    %v2443 = vsel %vm1958, %v2139, 0.0
    %v2444 = vadd.f32 %v2442, %v2443
    %v2445 = vsel %vm1958, %v2140, 0.0
    %v2446 = vadd.f32 %v2444, %v2445
    %v2447 = vsel %vm1958, %v2141, 0.0
    %v2448 = vadd.f32 %v2446, %v2447
    %v2449 = vsel %vm1958, %v2142, 0.0
    %v2450 = vadd.f32 %v2448, %v2449
    %v2451 = vsel %vm1958, %v2143, 0.0
    %v2452 = vadd.f32 %v2450, %v2451
    %v2453 = vsel %vm1958, %v2144, 0.0
    %v2454 = vadd.f32 %v2452, %v2453
    %v2455 = vsel %vm1958, %v2145, 0.0
    %v2456 = vadd.f32 %v2454, %v2455
    %v2457 = vsel %vm1958, %v2146, 0.0
    %v2458 = vadd.f32 %v2456, %v2457
    %v2459 = vsel %vm1958, %v2147, 0.0
    %v2460 = vadd.f32 %v2458, %v2459
    %v2461 = vsel %vm1958, %v2148, 0.0
    %v2462 = vadd.f32 %v2460, %v2461
    %v2463 = vsel %vm1958, %v2149, 0.0
    %v2464 = vadd.f32 %v2462, %v2463
    %v2465 = vsel %vm1958, %v2150, 0.0
    %v2466 = vadd.f32 %v2464, %v2465
    %v2467 = vsel %vm1958, %v2151, 0.0
    %v2468 = vadd.f32 %v2466, %v2467
    %v2469 = vsel %vm1958, %v2152, 0.0
    %v2470 = vadd.f32 %v2468, %v2469
    %v2471 = vsel %vm1958, %v2153, 0.0
    %v2472 = vadd.f32 %v2470, %v2471
    %v2473 = vsel %vm1958, %v2154, 0.0
    %v2474 = vadd.f32 %v2472, %v2473
    %v2475 = vsel %vm1958, %v2155, 0.0
    %v2476 = vadd.f32 %v2474, %v2475
    %v2477 = vsel %vm1958, %v2156, 0.0
    %v2478 = vadd.f32 %v2476, %v2477
    %v2479 = vsel %vm1958, %v2157, 0.0
    %v2480 = vadd.f32 %v2478, %v2479
    %v2481 = vsel %vm1958, %v2158, 0.0
    %v2482 = vadd.f32 %v2480, %v2481
    %v2483 = vsel %vm1958, %v2159, 0.0
    %v2484 = vadd.f32 %v2482, %v2483
    %v2485 = vsel %vm1958, %v2160, 0.0
    %v2486 = vadd.f32 %v2484, %v2485
    %v2487 = vsel %vm1958, %v2161, 0.0
    %v2488 = vadd.f32 %v2486, %v2487
    %v2489 = vsel %vm1958, %v2162, 0.0
    %v2490 = vadd.f32 %v2488, %v2489
    %v2491 = vsel %vm1958, %v2163, 0.0
    %v2492 = vadd.f32 %v2490, %v2491
    %v2493 = vsel %vm1958, %v2164, 0.0
    %v2494 = vadd.f32 %v2492, %v2493
    %v2495 = vsel %vm1958, %v2165, 0.0
    %v2496 = vadd.f32 %v2494, %v2495
    %v2497 = vsel %vm1958, %v2166, 0.0
    %v2498 = vadd.f32 %v2496, %v2497
    %v2499 = vsel %vm1958, %v2167, 0.0
    %v2500 = vadd.f32 %v2498, %v2499
    %v2501 = vsel %vm1958, %v2168, 0.0
    %v2502 = vadd.f32 %v2500, %v2501
    %v2503 = vsel %vm1958, %v2169, 0.0
    %v2504 = vadd.f32 %v2502, %v2503
    %v2505 = vsel %vm1958, %v2170, 0.0
    %v2506 = vadd.f32 %v2504, %v2505
    %v2507 = vsel %vm1958, %v2171, 0.0
    %v2508 = vadd.f32 %v2506, %v2507
    %v2509 = vsel %vm1958, %v2172, 0.0
    %v2510 = vadd.f32 %v2508, %v2509
    %v2511 = vsel %vm1958, %v2173, 0.0
    %v2512 = vadd.f32 %v2510, %v2511
    %v2513 = vsel %vm1958, %v2174, 0.0
    %v2514 = vadd.f32 %v2512, %v2513
    %v2515 = vsel %vm1958, %v2175, 0.0
    %v2516 = vadd.f32 %v2514, %v2515
    %v2517 = vsel %vm1958, %v2176, 0.0
    %v2518 = vadd.f32 %v2516, %v2517
    %v2519 = vsel %vm1958, %v2177, 0.0
    %v2520 = vadd.f32 %v2518, %v2519
    %v2521 = vsel %vm1958, %v2178, 0.0
    %v2522 = vadd.f32 %v2520, %v2521
    %v2523 = vsel %vm1958, %v2179, 0.0
    %v2524 = vadd.f32 %v2522, %v2523
    %v2525 = vsel %vm1958, %v2180, 0.0
    %v2526 = vadd.f32 %v2524, %v2525
    %v2527 = vsel %vm1958, %v2181, 0.0
    %v2528 = vadd.f32 %v2526, %v2527
    %v2529 = vsel %vm1958, %v2182, 0.0
    %v2530 = vadd.f32 %v2528, %v2529
    %v2531 = vsel %vm1958, %v2183, 0.0
    %v2532 = vadd.f32 %v2530, %v2531
    %v2533 = vsel %vm1958, %v2184, 0.0
    %v2534 = vadd.f32 %v2532, %v2533
    %v2535 = vsel %vm1958, %v2185, 0.0
    %v2536 = vadd.f32 %v2534, %v2535
    %v2537 = vsel %vm1958, %v2186, 0.0
    %v2538 = vadd.f32 %v2536, %v2537
    %v2539 = vsel %vm1958, %v2187, 0.0
    %v2540 = vadd.f32 %v2538, %v2539
    %v2541 = vsel %vm1958, %v2188, 0.0
    %v2542 = vadd.f32 %v2540, %v2541
    %v2543 = vsel %vm1958, %v2189, 0.0
    %v2544 = vadd.f32 %v2542, %v2543
    %v2545 = vsel %vm1958, %v2190, 0.0
    %v2546 = vadd.f32 %v2544, %v2545
    %v2547 = vsel %vm1958, %v2191, 0.0
    %v2548 = vadd.f32 %v2546, %v2547
    %v2549 = vsel %vm1958, %v2192, 0.0
    %v2550 = vadd.f32 %v2548, %v2549
    %v2551 = vsel %vm1958, %v2193, 0.0
    %v2552 = vadd.f32 %v2550, %v2551
    %v2553 = vsel %vm1958, %v2194, 0.0
    %v2554 = vadd.f32 %v2552, %v2553
    %v2555 = vsel %vm1958, %v2195, 0.0
    %v2556 = vadd.f32 %v2554, %v2555
    %v2557 = vsel %vm1958, %v2196, 0.0
    %v2558 = vadd.f32 %v2556, %v2557
    %v2559 = vsel %vm1958, %v2197, 0.0
    %v2560 = vadd.f32 %v2558, %v2559
    %v2561 = vsel %vm1958, %v2198, 0.0
    %v2562 = vadd.f32 %v2560, %v2561
    %v2563 = vsel %vm1958, %v2199, 0.0
    %v2564 = vadd.f32 %v2562, %v2563
    %v2565 = vsel %vm1958, %v2200, 0.0
    %v2566 = vadd.f32 %v2564, %v2565
    %v2567 = vsel %vm1958, %v2201, 0.0
    %v2568 = vadd.f32 %v2566, %v2567
    %v2569 = vsel %vm1958, %v2202, 0.0
    %v2570 = vadd.f32 %v2568, %v2569
    %v2571 = vsel %vm1958, %v2203, 0.0
    %v2572 = vadd.f32 %v2570, %v2571
    %v2573 = vsel %vm1958, %v2204, 0.0
    %v2574 = vadd.f32 %v2572, %v2573
    %v2575 = vsel %vm1958, %v2205, 0.0
    %v2576 = vadd.f32 %v2574, %v2575
    %v2577 = vsel %vm1958, %v2206, 0.0
    %v2578 = vadd.f32 %v2576, %v2577
    %v2579 = vsel %vm1958, %v2207, 0.0
    %v2580 = vadd.f32 %v2578, %v2579
    %v2581 = vsel %vm1958, %v2208, 0.0
    %v2582 = vadd.f32 %v2580, %v2581
    %v2583 = vsel %vm1958, %v2209, 0.0
    %v2584 = vadd.f32 %v2582, %v2583
    %v2585 = vsel %vm1958, %v2210, 0.0
    %v2586 = vadd.f32 %v2584, %v2585
    %v2587 = vsel %vm1958, %v2211, 0.0
    %v2588 = vadd.f32 %v2586, %v2587
    %v2589 = vsel %vm1958, %v2212, 0.0
    %v2590 = vadd.f32 %v2588, %v2589
    %v2591 = vsel %vm1958, %v2213, 0.0
    %v2592 = vadd.f32 %v2590, %v2591
    %v2593 = vsel %vm1958, %v2214, 0.0
    %v2594 = vadd.f32 %v2592, %v2593
    %v2595 = vsel %vm1958, %v2215, 0.0
    %v2596 = vadd.f32 %v2594, %v2595
    %v2597 = vsel %vm1958, %v2216, 0.0
    %v2598 = vadd.f32 %v2596, %v2597
    %v2599 = vsel %vm1958, %v2217, 0.0
    %v2600 = vadd.f32 %v2598, %v2599
    %v2601 = vrot.slane %v2600, 4
    %v2602 = vadd.f32 %v2600, %v2601
    %v2603 = vrot.slane %v2602, 2
    %v2604 = vadd.f32 %v2602, %v2603
    %v2605 = vrot.slane %v2604, 1
    %v2606 = vadd.f32 %v2604, %v2605
    %2607 = vst.msk [vmem:[%s3] sm:$0xff] %vm1958, %v2606
    %v2608 = vmul.f32 %v2090, %v2090
    %v2609 = vmul.f32 %v2091, %v2091
    %v2610 = vmul.f32 %v2092, %v2092
    %v2611 = vmul.f32 %v2093, %v2093
    %v2612 = vmul.f32 %v2094, %v2094
    %v2613 = vmul.f32 %v2095, %v2095
    %v2614 = vmul.f32 %v2096, %v2096
    %v2615 = vmul.f32 %v2097, %v2097
    %v2616 = vmul.f32 %v2098, %v2098
    %v2617 = vmul.f32 %v2099, %v2099
    %v2618 = vmul.f32 %v2100, %v2100
    %v2619 = vmul.f32 %v2101, %v2101
    %v2620 = vmul.f32 %v2102, %v2102
    %v2621 = vmul.f32 %v2103, %v2103
    %v2622 = vmul.f32 %v2104, %v2104
    %v2623 = vmul.f32 %v2105, %v2105
    %v2624 = vmul.f32 %v2106, %v2106
    %v2625 = vmul.f32 %v2107, %v2107
    %v2626 = vmul.f32 %v2108, %v2108
    %v2627 = vmul.f32 %v2109, %v2109
    %v2628 = vmul.f32 %v2110, %v2110
    %v2629 = vmul.f32 %v2111, %v2111
    %v2630 = vmul.f32 %v2112, %v2112
    %v2631 = vmul.f32 %v2113, %v2113
    %v2632 = vmul.f32 %v2114, %v2114
    %v2633 = vmul.f32 %v2115, %v2115
    %v2634 = vmul.f32 %v2116, %v2116
    %v2635 = vmul.f32 %v2117, %v2117
    %v2636 = vmul.f32 %v2118, %v2118
    %v2637 = vmul.f32 %v2119, %v2119
    %v2638 = vmul.f32 %v2120, %v2120
    %v2639 = vmul.f32 %v2121, %v2121
    %v2640 = vmul.f32 %v2122, %v2122
    %v2641 = vmul.f32 %v2123, %v2123
    %v2642 = vmul.f32 %v2124, %v2124
    %v2643 = vmul.f32 %v2125, %v2125
    %v2644 = vmul.f32 %v2126, %v2126
    %v2645 = vmul.f32 %v2127, %v2127
    %v2646 = vmul.f32 %v2128, %v2128
    %v2647 = vmul.f32 %v2129, %v2129
    %v2648 = vmul.f32 %v2130, %v2130
    %v2649 = vmul.f32 %v2131, %v2131
    %v2650 = vmul.f32 %v2132, %v2132
    %v2651 = vmul.f32 %v2133, %v2133
    %v2652 = vmul.f32 %v2134, %v2134
    %v2653 = vmul.f32 %v2135, %v2135
    %v2654 = vmul.f32 %v2136, %v2136
    %v2655 = vmul.f32 %v2137, %v2137
    %v2656 = vmul.f32 %v2138, %v2138
    %v2657 = vmul.f32 %v2139, %v2139
    %v2658 = vmul.f32 %v2140, %v2140
    %v2659 = vmul.f32 %v2141, %v2141
    %v2660 = vmul.f32 %v2142, %v2142
    %v2661 = vmul.f32 %v2143, %v2143
    %v2662 = vmul.f32 %v2144, %v2144
    %v2663 = vmul.f32 %v2145, %v2145
    %v2664 = vmul.f32 %v2146, %v2146
    %v2665 = vmul.f32 %v2147, %v2147
    %v2666 = vmul.f32 %v2148, %v2148
    %v2667 = vmul.f32 %v2149, %v2149
    %v2668 = vmul.f32 %v2150, %v2150
    %v2669 = vmul.f32 %v2151, %v2151
    %v2670 = vmul.f32 %v2152, %v2152
    %v2671 = vmul.f32 %v2153, %v2153
    %v2672 = vmul.f32 %v2154, %v2154
    %v2673 = vmul.f32 %v2155, %v2155
    %v2674 = vmul.f32 %v2156, %v2156
    %v2675 = vmul.f32 %v2157, %v2157
    %v2676 = vmul.f32 %v2158, %v2158
    %v2677 = vmul.f32 %v2159, %v2159
    %v2678 = vmul.f32 %v2160, %v2160
    %v2679 = vmul.f32 %v2161, %v2161
    %v2680 = vmul.f32 %v2162, %v2162
    %v2681 = vmul.f32 %v2163, %v2163
    %v2682 = vmul.f32 %v2164, %v2164
    %v2683 = vmul.f32 %v2165, %v2165
    %v2684 = vmul.f32 %v2166, %v2166
    %v2685 = vmul.f32 %v2167, %v2167
    %v2686 = vmul.f32 %v2168, %v2168
    %v2687 = vmul.f32 %v2169, %v2169
    %v2688 = vmul.f32 %v2170, %v2170
    %v2689 = vmul.f32 %v2171, %v2171
    %v2690 = vmul.f32 %v2172, %v2172
    %v2691 = vmul.f32 %v2173, %v2173
    %v2692 = vmul.f32 %v2174, %v2174
    %v2693 = vmul.f32 %v2175, %v2175
    %v2694 = vmul.f32 %v2176, %v2176
    %v2695 = vmul.f32 %v2177, %v2177
    %v2696 = vmul.f32 %v2178, %v2178
    %v2697 = vmul.f32 %v2179, %v2179
    %v2698 = vmul.f32 %v2180, %v2180
    %v2699 = vmul.f32 %v2181, %v2181
    %v2700 = vmul.f32 %v2182, %v2182
    %v2701 = vmul.f32 %v2183, %v2183
    %v2702 = vmul.f32 %v2184, %v2184
    %v2703 = vmul.f32 %v2185, %v2185
    %v2704 = vmul.f32 %v2186, %v2186
    %v2705 = vmul.f32 %v2187, %v2187
    %v2706 = vmul.f32 %v2188, %v2188
    %v2707 = vmul.f32 %v2189, %v2189
    %v2708 = vmul.f32 %v2190, %v2190
    %v2709 = vmul.f32 %v2191, %v2191
    %v2710 = vmul.f32 %v2192, %v2192
    %v2711 = vmul.f32 %v2193, %v2193
    %v2712 = vmul.f32 %v2194, %v2194
    %v2713 = vmul.f32 %v2195, %v2195
    %v2714 = vmul.f32 %v2196, %v2196
    %v2715 = vmul.f32 %v2197, %v2197
    %v2716 = vmul.f32 %v2198, %v2198
    %v2717 = vmul.f32 %v2199, %v2199
    %v2718 = vmul.f32 %v2200, %v2200
    %v2719 = vmul.f32 %v2201, %v2201
    %v2720 = vmul.f32 %v2202, %v2202
    %v2721 = vmul.f32 %v2203, %v2203
    %v2722 = vmul.f32 %v2204, %v2204
    %v2723 = vmul.f32 %v2205, %v2205
    %v2724 = vmul.f32 %v2206, %v2206
    %v2725 = vmul.f32 %v2207, %v2207
    %v2726 = vmul.f32 %v2208, %v2208
    %v2727 = vmul.f32 %v2209, %v2209
    %v2728 = vmul.f32 %v2210, %v2210
    %v2729 = vmul.f32 %v2211, %v2211
    %v2730 = vmul.f32 %v2212, %v2212
    %v2731 = vmul.f32 %v2213, %v2213
    %v2732 = vmul.f32 %v2214, %v2214
    %v2733 = vmul.f32 %v2215, %v2215
    %v2734 = vmul.f32 %v2216, %v2216
    %v2735 = vmul.f32 %v2217, %v2217
    %v2736 = vsel %vm1958, %v2608, 0.0
    %v2737 = vsel %vm1958, %v2609, 0.0
    %v2738 = vadd.f32 %v2736, %v2737
    %v2739 = vsel %vm1958, %v2610, 0.0
    %v2740 = vadd.f32 %v2738, %v2739
    %v2741 = vsel %vm1958, %v2611, 0.0
    %v2742 = vadd.f32 %v2740, %v2741
    %v2743 = vsel %vm1958, %v2612, 0.0
    %v2744 = vadd.f32 %v2742, %v2743
    %v2745 = vsel %vm1958, %v2613, 0.0
    %v2746 = vadd.f32 %v2744, %v2745
    %v2747 = vsel %vm1958, %v2614, 0.0
    %v2748 = vadd.f32 %v2746, %v2747
    %v2749 = vsel %vm1958, %v2615, 0.0
    %v2750 = vadd.f32 %v2748, %v2749
    %v2751 = vsel %vm1958, %v2616, 0.0
    %v2752 = vadd.f32 %v2750, %v2751
    %v2753 = vsel %vm1958, %v2617, 0.0
    %v2754 = vadd.f32 %v2752, %v2753
    %v2755 = vsel %vm1958, %v2618, 0.0
    %v2756 = vadd.f32 %v2754, %v2755
    %v2757 = vsel %vm1958, %v2619, 0.0
    %v2758 = vadd.f32 %v2756, %v2757
    %v2759 = vsel %vm1958, %v2620, 0.0
    %v2760 = vadd.f32 %v2758, %v2759
    %v2761 = vsel %vm1958, %v2621, 0.0
    %v2762 = vadd.f32 %v2760, %v2761
    %v2763 = vsel %vm1958, %v2622, 0.0
    %v2764 = vadd.f32 %v2762, %v2763
    %v2765 = vsel %vm1958, %v2623, 0.0
    %v2766 = vadd.f32 %v2764, %v2765
    %v2767 = vsel %vm1958, %v2624, 0.0
    %v2768 = vadd.f32 %v2766, %v2767
    %v2769 = vsel %vm1958, %v2625, 0.0
    %v2770 = vadd.f32 %v2768, %v2769
    %v2771 = vsel %vm1958, %v2626, 0.0
    %v2772 = vadd.f32 %v2770, %v2771
    %v2773 = vsel %vm1958, %v2627, 0.0
    %v2774 = vadd.f32 %v2772, %v2773
    %v2775 = vsel %vm1958, %v2628, 0.0
    %v2776 = vadd.f32 %v2774, %v2775
    %v2777 = vsel %vm1958, %v2629, 0.0
    %v2778 = vadd.f32 %v2776, %v2777
    %v2779 = vsel %vm1958, %v2630, 0.0
    %v2780 = vadd.f32 %v2778, %v2779
    %v2781 = vsel %vm1958, %v2631, 0.0
    %v2782 = vadd.f32 %v2780, %v2781
    %v2783 = vsel %vm1958, %v2632, 0.0
    %v2784 = vadd.f32 %v2782, %v2783
    %v2785 = vsel %vm1958, %v2633, 0.0
    %v2786 = vadd.f32 %v2784, %v2785
    %v2787 = vsel %vm1958, %v2634, 0.0
    %v2788 = vadd.f32 %v2786, %v2787
    %v2789 = vsel %vm1958, %v2635, 0.0
    %v2790 = vadd.f32 %v2788, %v2789
    %v2791 = vsel %vm1958, %v2636, 0.0
    %v2792 = vadd.f32 %v2790, %v2791
    %v2793 = vsel %vm1958, %v2637, 0.0
    %v2794 = vadd.f32 %v2792, %v2793
    %v2795 = vsel %vm1958, %v2638, 0.0
    %v2796 = vadd.f32 %v2794, %v2795
    %v2797 = vsel %vm1958, %v2639, 0.0
    %v2798 = vadd.f32 %v2796, %v2797
    %v2799 = vsel %vm1958, %v2640, 0.0
    %v2800 = vadd.f32 %v2798, %v2799
    %v2801 = vsel %vm1958, %v2641, 0.0
    %v2802 = vadd.f32 %v2800, %v2801
    %v2803 = vsel %vm1958, %v2642, 0.0
    %v2804 = vadd.f32 %v2802, %v2803
    %v2805 = vsel %vm1958, %v2643, 0.0
    %v2806 = vadd.f32 %v2804, %v2805
    %v2807 = vsel %vm1958, %v2644, 0.0
    %v2808 = vadd.f32 %v2806, %v2807
    %v2809 = vsel %vm1958, %v2645, 0.0
    %v2810 = vadd.f32 %v2808, %v2809
    %v2811 = vsel %vm1958, %v2646, 0.0
    %v2812 = vadd.f32 %v2810, %v2811
    %v2813 = vsel %vm1958, %v2647, 0.0
    %v2814 = vadd.f32 %v2812, %v2813
    %v2815 = vsel %vm1958, %v2648, 0.0
    %v2816 = vadd.f32 %v2814, %v2815
    %v2817 = vsel %vm1958, %v2649, 0.0
    %v2818 = vadd.f32 %v2816, %v2817
    %v2819 = vsel %vm1958, %v2650, 0.0
    %v2820 = vadd.f32 %v2818, %v2819
    %v2821 = vsel %vm1958, %v2651, 0.0
    %v2822 = vadd.f32 %v2820, %v2821
    %v2823 = vsel %vm1958, %v2652, 0.0
    %v2824 = vadd.f32 %v2822, %v2823
    %v2825 = vsel %vm1958, %v2653, 0.0
    %v2826 = vadd.f32 %v2824, %v2825
    %v2827 = vsel %vm1958, %v2654, 0.0
    %v2828 = vadd.f32 %v2826, %v2827
    %v2829 = vsel %vm1958, %v2655, 0.0
    %v2830 = vadd.f32 %v2828, %v2829
    %v2831 = vsel %vm1958, %v2656, 0.0
    %v2832 = vadd.f32 %v2830, %v2831
    %v2833 = vsel %vm1958, %v2657, 0.0
    %v2834 = vadd.f32 %v2832, %v2833
    %v2835 = vsel %vm1958, %v2658, 0.0
    %v2836 = vadd.f32 %v2834, %v2835
    %v2837 = vsel %vm1958, %v2659, 0.0
    %v2838 = vadd.f32 %v2836, %v2837
    %v2839 = vsel %vm1958, %v2660, 0.0
    %v2840 = vadd.f32 %v2838, %v2839
    %v2841 = vsel %vm1958, %v2661, 0.0
    %v2842 = vadd.f32 %v2840, %v2841
    %v2843 = vsel %vm1958, %v2662, 0.0
    %v2844 = vadd.f32 %v2842, %v2843
    %v2845 = vsel %vm1958, %v2663, 0.0
    %v2846 = vadd.f32 %v2844, %v2845
    %v2847 = vsel %vm1958, %v2664, 0.0
    %v2848 = vadd.f32 %v2846, %v2847
    %v2849 = vsel %vm1958, %v2665, 0.0
    %v2850 = vadd.f32 %v2848, %v2849
    %v2851 = vsel %vm1958, %v2666, 0.0
    %v2852 = vadd.f32 %v2850, %v2851
    %v2853 = vsel %vm1958, %v2667, 0.0
    %v2854 = vadd.f32 %v2852, %v2853
    %v2855 = vsel %vm1958, %v2668, 0.0
    %v2856 = vadd.f32 %v2854, %v2855
    %v2857 = vsel %vm1958, %v2669, 0.0
    %v2858 = vadd.f32 %v2856, %v2857
    %v2859 = vsel %vm1958, %v2670, 0.0
    %v2860 = vadd.f32 %v2858, %v2859
    %v2861 = vsel %vm1958, %v2671, 0.0
    %v2862 = vadd.f32 %v2860, %v2861
    %v2863 = vsel %vm1958, %v2672, 0.0
    %v2864 = vadd.f32 %v2862, %v2863
    %v2865 = vsel %vm1958, %v2673, 0.0
    %v2866 = vadd.f32 %v2864, %v2865
    %v2867 = vsel %vm1958, %v2674, 0.0
    %v2868 = vadd.f32 %v2866, %v2867
    %v2869 = vsel %vm1958, %v2675, 0.0
    %v2870 = vadd.f32 %v2868, %v2869
    %v2871 = vsel %vm1958, %v2676, 0.0
    %v2872 = vadd.f32 %v2870, %v2871
    %v2873 = vsel %vm1958, %v2677, 0.0
    %v2874 = vadd.f32 %v2872, %v2873
    %v2875 = vsel %vm1958, %v2678, 0.0
    %v2876 = vadd.f32 %v2874, %v2875
    %v2877 = vsel %vm1958, %v2679, 0.0
    %v2878 = vadd.f32 %v2876, %v2877
    %v2879 = vsel %vm1958, %v2680, 0.0
    %v2880 = vadd.f32 %v2878, %v2879
    %v2881 = vsel %vm1958, %v2681, 0.0
    %v2882 = vadd.f32 %v2880, %v2881
    %v2883 = vsel %vm1958, %v2682, 0.0
    %v2884 = vadd.f32 %v2882, %v2883
    %v2885 = vsel %vm1958, %v2683, 0.0
    %v2886 = vadd.f32 %v2884, %v2885
    %v2887 = vsel %vm1958, %v2684, 0.0
    %v2888 = vadd.f32 %v2886, %v2887
    %v2889 = vsel %vm1958, %v2685, 0.0
    %v2890 = vadd.f32 %v2888, %v2889
    %v2891 = vsel %vm1958, %v2686, 0.0
    %v2892 = vadd.f32 %v2890, %v2891
    %v2893 = vsel %vm1958, %v2687, 0.0
    %v2894 = vadd.f32 %v2892, %v2893
    %v2895 = vsel %vm1958, %v2688, 0.0
    %v2896 = vadd.f32 %v2894, %v2895
    %v2897 = vsel %vm1958, %v2689, 0.0
    %v2898 = vadd.f32 %v2896, %v2897
    %v2899 = vsel %vm1958, %v2690, 0.0
    %v2900 = vadd.f32 %v2898, %v2899
    %v2901 = vsel %vm1958, %v2691, 0.0
    %v2902 = vadd.f32 %v2900, %v2901
    %v2903 = vsel %vm1958, %v2692, 0.0
    %v2904 = vadd.f32 %v2902, %v2903
    %v2905 = vsel %vm1958, %v2693, 0.0
    %v2906 = vadd.f32 %v2904, %v2905
    %v2907 = vsel %vm1958, %v2694, 0.0
    %v2908 = vadd.f32 %v2906, %v2907
    %v2909 = vsel %vm1958, %v2695, 0.0
    %v2910 = vadd.f32 %v2908, %v2909
    %v2911 = vsel %vm1958, %v2696, 0.0
    %v2912 = vadd.f32 %v2910, %v2911
    %v2913 = vsel %vm1958, %v2697, 0.0
    %v2914 = vadd.f32 %v2912, %v2913
    %v2915 = vsel %vm1958, %v2698, 0.0
    %v2916 = vadd.f32 %v2914, %v2915
    %v2917 = vsel %vm1958, %v2699, 0.0
    %v2918 = vadd.f32 %v2916, %v2917
    %v2919 = vsel %vm1958, %v2700, 0.0
    %v2920 = vadd.f32 %v2918, %v2919
    %v2921 = vsel %vm1958, %v2701, 0.0
    %v2922 = vadd.f32 %v2920, %v2921
    %v2923 = vsel %vm1958, %v2702, 0.0
    %v2924 = vadd.f32 %v2922, %v2923
    %v2925 = vsel %vm1958, %v2703, 0.0
    %v2926 = vadd.f32 %v2924, %v2925
    %v2927 = vsel %vm1958, %v2704, 0.0
    %v2928 = vadd.f32 %v2926, %v2927
    %v2929 = vsel %vm1958, %v2705, 0.0
    %v2930 = vadd.f32 %v2928, %v2929
    %v2931 = vsel %vm1958, %v2706, 0.0
    %v2932 = vadd.f32 %v2930, %v2931
    %v2933 = vsel %vm1958, %v2707, 0.0
    %v2934 = vadd.f32 %v2932, %v2933
    %v2935 = vsel %vm1958, %v2708, 0.0
    %v2936 = vadd.f32 %v2934, %v2935
    %v2937 = vsel %vm1958, %v2709, 0.0
    %v2938 = vadd.f32 %v2936, %v2937
    %v2939 = vsel %vm1958, %v2710, 0.0
    %v2940 = vadd.f32 %v2938, %v2939
    %v2941 = vsel %vm1958, %v2711, 0.0
    %v2942 = vadd.f32 %v2940, %v2941
    %v2943 = vsel %vm1958, %v2712, 0.0
    %v2944 = vadd.f32 %v2942, %v2943
    %v2945 = vsel %vm1958, %v2713, 0.0
    %v2946 = vadd.f32 %v2944, %v2945
    %v2947 = vsel %vm1958, %v2714, 0.0
    %v2948 = vadd.f32 %v2946, %v2947
    %v2949 = vsel %vm1958, %v2715, 0.0
    %v2950 = vadd.f32 %v2948, %v2949
    %v2951 = vsel %vm1958, %v2716, 0.0
    %v2952 = vadd.f32 %v2950, %v2951
    %v2953 = vsel %vm1958, %v2717, 0.0
    %v2954 = vadd.f32 %v2952, %v2953
    %v2955 = vsel %vm1958, %v2718, 0.0
    %v2956 = vadd.f32 %v2954, %v2955
    %v2957 = vsel %vm1958, %v2719, 0.0
    %v2958 = vadd.f32 %v2956, %v2957
    %v2959 = vsel %vm1958, %v2720, 0.0
    %v2960 = vadd.f32 %v2958, %v2959
    %v2961 = vsel %vm1958, %v2721, 0.0
    %v2962 = vadd.f32 %v2960, %v2961
    %v2963 = vsel %vm1958, %v2722, 0.0
    %v2964 = vadd.f32 %v2962, %v2963
    %v2965 = vsel %vm1958, %v2723, 0.0
    %v2966 = vadd.f32 %v2964, %v2965
    %v2967 = vsel %vm1958, %v2724, 0.0
    %v2968 = vadd.f32 %v2966, %v2967
    %v2969 = vsel %vm1958, %v2725, 0.0
    %v2970 = vadd.f32 %v2968, %v2969
    %v2971 = vsel %vm1958, %v2726, 0.0
    %v2972 = vadd.f32 %v2970, %v2971
    %v2973 = vsel %vm1958, %v2727, 0.0
    %v2974 = vadd.f32 %v2972, %v2973
    %v2975 = vsel %vm1958, %v2728, 0.0
    %v2976 = vadd.f32 %v2974, %v2975
    %v2977 = vsel %vm1958, %v2729, 0.0
    %v2978 = vadd.f32 %v2976, %v2977
    %v2979 = vsel %vm1958, %v2730, 0.0
    %v2980 = vadd.f32 %v2978, %v2979
    %v2981 = vsel %vm1958, %v2731, 0.0
    %v2982 = vadd.f32 %v2980, %v2981
    %v2983 = vsel %vm1958, %v2732, 0.0
    %v2984 = vadd.f32 %v2982, %v2983
    %v2985 = vsel %vm1958, %v2733, 0.0
    %v2986 = vadd.f32 %v2984, %v2985
    %v2987 = vsel %vm1958, %v2734, 0.0
    %v2988 = vadd.f32 %v2986, %v2987
    %v2989 = vsel %vm1958, %v2735, 0.0
    %v2990 = vadd.f32 %v2988, %v2989
    %v2991 = vrot.slane %v2990, 4
    %v2992 = vadd.f32 %v2990, %v2991
    %v2993 = vrot.slane %v2992, 2
    %v2994 = vadd.f32 %v2992, %v2993
    %v2995 = vrot.slane %v2994, 1
    %v2996 = vadd.f32 %v2994, %v2995
    %2997 = vst.msk [vmem:[%s4] sm:$0xff] %vm1958, %v2996
  $region17: #{net_up_block_di_forward.10} parent=0 // pred_fallthru
    _
  // Predicated region
  $region18: #{net_up_block_di_forward.10} parent=0 // pred_check
    _
  $region19: #{net_up_block_di_forward.10} parent=0 // pred_check_branch
    %2999 = sbr.rel (0) target = $region21
  $region20: #{net_up_block_di_forward.10} parent=0 // pred_region
    _
  $region21: #{net_up_block_di_forward.10} parent=0 // pred_fallthru
    _
  // Predicated region
  $region22: #{net_up_block_di_forward.10} parent=0 // pred_check
    _
  $region23: #{net_up_block_di_forward.10} parent=0 // pred_check_branch
    %3001 = sbr.rel (0) target = $region25
  $region24: #{net_up_block_di_forward.10} parent=0 // pred_region
    _
  $region25: #{net_up_block_di_forward.10} parent=0 // pred_fallthru
    _
  // Predicated region
  $region26: #{net_up_block_di_forward.10} parent=0 // pred_check
    _
  $region27: #{net_up_block_di_forward.10} parent=0 // pred_check_branch
    %3003 = sbr.rel (0) target = $region29
  $region28: #{net_up_block_di_forward.10} parent=0 // pred_region
    _
  $region29: #{net_up_block_di_forward.10} parent=0 // pred_fallthru
    _
  // Predicated region
  $region30: #{net_up_block_di_forward.10} parent=0 // pred_check
    _
  $region31: #{net_up_block_di_forward.10} parent=0 // pred_check_branch
    %3005 = sbr.rel (0) target = $region33
  $region32: #{net_up_block_di_forward.10} parent=0 // pred_region
    _
  $region33: #{net_up_block_di_forward.10} parent=0 // pred_fallthru
    _
  // Predicated region
  $region34: #{net_up_block_di_forward.10} parent=0 // pred_check
    _
  $region35: #{net_up_block_di_forward.10} parent=0 // pred_check_branch
    %3007 = sbr.rel (0) target = $region37
  $region36: #{net_up_block_di_forward.10} parent=0 // pred_region
    _
  $region37: #{net_up_block_di_forward.10} parent=0 // pred_fallthru
    _
  // Predicated region
  $region38: #{net_up_block_di_forward.10} parent=0 // pred_check
    _
  $region39: #{net_up_block_di_forward.10} parent=0 // pred_check_branch
    %3009 = sbr.rel (0) target = $region41
  $region40: #{net_up_block_di_forward.10} parent=0 // pred_region
    _
  $region41: #{net_up_block_di_forward.10} parent=0 // pred_fallthru
    _

</llo_original>
